<compile_context>
chip_gen: v7x
topology: tpu7x:2x2x1
jax: 0.10.0
libtpu: 0.0.40
codegen_flags: <defaults>
</compile_context>

<pallas_src>
import functools

import numpy as np
import jax
import jax.numpy as jnp
from jax import lax
from jax.experimental import pallas as pl
from jax.experimental.pallas import tpu as pltpu

EPS = 1e-5


# ------------------------------------------------------------ shift matrices
# Constant 0/1 matrices (built once per block geometry at trace time) that
# implement the spatial gather of a conv as a matmul in channel-major layout:
#   (x_cm @ Pt_k)[ci, m] == x[n, ci, h_in(k), w_in(k)]  (0 if padded).

@functools.lru_cache(maxsize=None)
def _conv3x3_shift_mats(N, H, W, stride):
    Ho = (H - 1) // stride + 1
    Wo = (W - 1) // stride + 1
    Min, M = N * H * W, N * Ho * Wo
    mats = np.zeros((9, Min, M), np.float32)
    for kh in range(3):
        for kw in range(3):
            k = kh * 3 + kw
            for n in range(N):
                for ho in range(Ho):
                    hi = ho * stride + kh - 1
                    if hi < 0 or hi >= H:
                        continue
                    for wo in range(Wo):
                        wi = wo * stride + kw - 1
                        if wi < 0 or wi >= W:
                            continue
                        mats[k, n * H * W + hi * W + wi,
                             n * Ho * Wo + ho * Wo + wo] = 1.0
    return mats


@functools.lru_cache(maxsize=None)
def _conv1x1_shift_mat(N, H, W, stride):
    Ho = (H - 1) // stride + 1
    Wo = (W - 1) // stride + 1
    Min, M = N * H * W, N * Ho * Wo
    mat = np.zeros((Min, M), np.float32)
    for n in range(N):
        for ho in range(Ho):
            for wo in range(Wo):
                mat[n * H * W + ho * stride * W + wo * stride,
                    n * Ho * Wo + ho * Wo + wo] = 1.0
    return mat


# ------------------------------------------------------------- fused kernel
def _basic_block_kernel(x_ref, psc_ref, wsc_ref, bsc_ref,
                        p0_ref, w0_ref, g0_ref, b0_ref,
                        p1_ref, w1_ref, g1_ref, b1_ref,
                        o_ref):
    cout, m = o_ref.shape
    x = x_ref[...]                                                    # (Cin, Min)

    # -- shortcut: 1x1 conv, stride folded into psc (bias kept)
    xs = jnp.dot(wsc_ref[...],
                 jnp.dot(x, psc_ref[...], preferred_element_type=jnp.float32),
                 preferred_element_type=jnp.float32) + bsc_ref[...]   # (Cout, M)

    # -- conv0: 3x3 stride-s pad-1 as 9 shift-matmuls (bias dropped: BN cancels it)
    z = jnp.zeros((cout, m), jnp.float32)
    for k in range(9):
        t = jnp.dot(x, p0_ref[k], preferred_element_type=jnp.float32)        # (Cin, M)
        z = z + jnp.dot(w0_ref[k], t, preferred_element_type=jnp.float32)    # (Cout, M)

    # -- BN0 (batch statistics over M = N*H*W) + ReLU, all in VMEM/vregs
    mu = jnp.mean(z, axis=1, keepdims=True)
    var = jnp.mean((z - mu) ** 2, axis=1, keepdims=True)
    h = jnp.maximum((z - mu) * lax.rsqrt(var + EPS) * g0_ref[...] + b0_ref[...],
                    0.0)                                              # (Cout, M)

    # -- conv1: 3x3 stride-1 pad-1 (bias dropped)
    z = jnp.zeros((cout, m), jnp.float32)
    for k in range(9):
        t = jnp.dot(h, p1_ref[k], preferred_element_type=jnp.float32)        # (Cout, M)
        z = z + jnp.dot(w1_ref[k], t, preferred_element_type=jnp.float32)

    # -- BN1 + residual add + ReLU, lane-dense (Cout, M) store
    mu = jnp.mean(z, axis=1, keepdims=True)
    var = jnp.mean((z - mu) ** 2, axis=1, keepdims=True)
    o_ref[...] = jnp.maximum(
        (z - mu) * lax.rsqrt(var + EPS) * g1_ref[...] + b1_ref[...] + xs, 0.0)


# ------------------------------------------------------------- block wrapper
def _full_spec(shape):
    return pl.BlockSpec(shape, lambda i: (0,) * len(shape))


def basic_block_pallas(x_cm, p, stride, N, H, W):
    """x_cm: (Cin, N*H*W) channel-major activations -> ((Cout, N*Ho*Wo), Ho, Wo)."""
    Cin = x_cm.shape[0]
    Cout = p["c0_w"].shape[0]
    Ho = (H - 1) // stride + 1
    Wo = (W - 1) // stride + 1
    M = N * Ho * Wo

    psc = jnp.asarray(_conv1x1_shift_mat(N, H, W, stride))            # (Min, M)
    p0 = jnp.asarray(_conv3x3_shift_mats(N, H, W, stride))            # (9, Min, M)
    p1 = jnp.asarray(_conv3x3_shift_mats(N, Ho, Wo, 1))               # (9, M, M)

    # weights in channel-major orientation, (kh, kw) ordering matching p0/p1
    wsc_t = p["sc_w"].reshape(Cout, Cin)                              # (Cout, Cin)
    w0_t = jnp.transpose(p["c0_w"], (2, 3, 0, 1)).reshape(9, Cout, Cin)
    w1_t = jnp.transpose(p["c1_w"], (2, 3, 0, 1)).reshape(9, Cout, Cout)
    bsc = p["sc_b"].reshape(Cout, 1)
    g0, b0 = p["g0"].reshape(Cout, 1), p["b0"].reshape(Cout, 1)
    g1, b1 = p["g1"].reshape(Cout, 1), p["b1"].reshape(Cout, 1)

    args = (x_cm, psc, wsc_t, bsc, p0, w0_t, g0, b0, p1, w1_t, g1, b1)
    out = pl.pallas_call(
        _basic_block_kernel,
        grid=(1,),
        in_specs=[_full_spec(a.shape) for a in args],
        out_specs=_full_spec((Cout, M)),
        out_shape=jax.ShapeDtypeStruct((Cout, M), jnp.float32),
        compiler_params=pltpu.CompilerParams(
            dimension_semantics=("arbitrary",),
            vmem_limit_bytes=64 * 1024 * 1024),
    )(*args)
    return out, Ho, Wo


# ------------------------------------------------------------------ Layer fwd
def layer_fwd(x_nchw, params_list):
    N, Cin, H, W = x_nchw.shape
    x_cm = jnp.transpose(x_nchw, (1, 0, 2, 3)).reshape(Cin, N * H * W)
    for i, p in enumerate(params_list):
        x_cm, H, W = basic_block_pallas(x_cm, p, 2 if i == 0 else 1, N, H, W)
    Cout = x_cm.shape[0]
    return jnp.transpose(x_cm.reshape(Cout, N, H, W), (1, 0, 2, 3))   # -> NCHW


# ------------------------------------------------- reference (plain JAX, XLA)
def _conv_ref(x, w, b, stride, padding):
    return lax.conv_general_dilated(
        x, jnp.transpose(w, (2, 3, 1, 0)), (stride, stride),
        [(padding, padding), (padding, padding)],
        dimension_numbers=("NHWC", "HWIO", "NHWC"),
    ) + b


def _bn_ref(x, g, bt):
    m = jnp.mean(x, axis=(0, 1, 2), keepdims=True)
    v = jnp.mean((x - m) ** 2, axis=(0, 1, 2), keepdims=True)
    return (x - m) * lax.rsqrt(v + EPS) * g + bt


def layer_ref(x_nchw, params_list):
    x = jnp.transpose(x_nchw, (0, 2, 3, 1))
    for i, p in enumerate(params_list):
        s = 2 if i == 0 else 1
        xs = _conv_ref(x, p["sc_w"], p["sc_b"], s, 0)
        h = _conv_ref(x, p["c0_w"], p["c0_b"], s, 1)     # biases kept in reference
        h = jnp.maximum(_bn_ref(h, p["g0"], p["b0"]), 0.0)
        h = _conv_ref(h, p["c1_w"], p["c1_b"], 1, 1)
        x = jnp.maximum(_bn_ref(h, p["g1"], p["b1"]) + xs, 0.0)
    return jnp.transpose(x, (0, 3, 1, 2))


# ---------------------------------------------------------------- param init
def init_layer_params(key, in_chans, out_chans, nblocks):
    params = []
    ic = in_chans
    for _ in range(nblocks):
        key, k0, k1, k2, k3, k4, k5 = jax.random.split(key, 7)
        params.append({
            "sc_w": 0.1 * jax.random.normal(k0, (out_chans, ic, 1, 1), jnp.float32),
            "sc_b": 0.1 * jax.random.normal(k1, (out_chans,), jnp.float32),
            "c0_w": 0.1 * jax.random.normal(k2, (out_chans, ic, 3, 3), jnp.float32),
            "c0_b": 0.1 * jax.random.normal(k3, (out_chans,), jnp.float32),
            "g0": jnp.ones((out_chans,), jnp.float32),
            "b0": jnp.zeros((out_chans,), jnp.float32),
            "c1_w": 0.1 * jax.random.normal(k4, (out_chans, out_chans, 3, 3), jnp.float32),
            "c1_b": 0.1 * jax.random.normal(k5, (out_chans,), jnp.float32),
            "g1": jnp.ones((out_chans,), jnp.float32),
            "b1": jnp.zeros((out_chans,), jnp.float32),
        })
        ic = out_chans
    return params


# ---------------------------------------------------------------------- main
if __name__ == "__main__":
    key = jax.random.PRNGKey(0)
    key, kx = jax.random.split(key)

    N, C_IN, C_OUT, HW, NBLOCKS = 2, 4, 8, 16, 5
    x = jax.random.normal(kx, (N, C_IN, HW, HW), jnp.float32)        # NCHW like torch
    params = init_layer_params(key, C_IN, C_OUT, NBLOCKS)

    fwd = jax.jit(layer_fwd)
    y = jax.block_until_ready(fwd(x, params))

    # correctness check against plain-JAX reference of the same module
    y_ref = jax.block_until_ready(layer_ref(x, params))
    assert y.shape == (N, C_OUT, HW // 2, HW // 2), y.shape
    max_err = float(jnp.max(jnp.abs(y - y_ref)))
    assert max_err < 1e-3, max_err

    print("KERNEL_OK")
</pallas_src>

<mosaic_0001>
module attributes {stable_mosaic.version = 11 : i64} {
  func.func @_basic_block_kernel(%arg0: i32, %arg1: memref<4x512xf32, #tpu.memory_space<vmem>>, %arg2: memref<512x128xf32, #tpu.memory_space<vmem>>, %arg3: memref<8x4xf32, #tpu.memory_space<vmem>>, %arg4: memref<8x1xf32, #tpu.memory_space<vmem>>, %arg5: memref<9x512x128xf32, #tpu.memory_space<vmem>>, %arg6: memref<9x8x4xf32, #tpu.memory_space<vmem>>, %arg7: memref<8x1xf32, #tpu.memory_space<vmem>>, %arg8: memref<8x1xf32, #tpu.memory_space<vmem>>, %arg9: memref<9x128x128xf32, #tpu.memory_space<vmem>>, %arg10: memref<9x8x8xf32, #tpu.memory_space<vmem>>, %arg11: memref<8x1xf32, #tpu.memory_space<vmem>>, %arg12: memref<8x1xf32, #tpu.memory_space<vmem>>, %arg13: memref<8x128xf32, #tpu.memory_space<vmem>>) attributes {dimension_semantics = [#tpu.dimension_semantics<arbitrary>], iteration_bounds = array<i64: 1>, scalar_prefetch = 0 : i64, scratch_operands = 0 : i64, tpu.core_type = #tpu.core_type<tc>, window_params = [{pipeline_mode = #tpu.pipeline_mode<synchronous>, transform_indices = @transform_0, window_bounds = array<i64: 4, 512>}, {pipeline_mode = #tpu.pipeline_mode<synchronous>, transform_indices = @transform_1, window_bounds = array<i64: 512, 128>}, {pipeline_mode = #tpu.pipeline_mode<synchronous>, transform_indices = @transform_2, window_bounds = array<i64: 8, 4>}, {pipeline_mode = #tpu.pipeline_mode<synchronous>, transform_indices = @transform_3, window_bounds = array<i64: 8, 1>}, {pipeline_mode = #tpu.pipeline_mode<synchronous>, transform_indices = @transform_4, window_bounds = array<i64: 9, 512, 128>}, {pipeline_mode = #tpu.pipeline_mode<synchronous>, transform_indices = @transform_5, window_bounds = array<i64: 9, 8, 4>}, {pipeline_mode = #tpu.pipeline_mode<synchronous>, transform_indices = @transform_6, window_bounds = array<i64: 8, 1>}, {pipeline_mode = #tpu.pipeline_mode<synchronous>, transform_indices = @transform_7, window_bounds = array<i64: 8, 1>}, {pipeline_mode = #tpu.pipeline_mode<synchronous>, transform_indices = @transform_8, window_bounds = array<i64: 9, 128, 128>}, {pipeline_mode = #tpu.pipeline_mode<synchronous>, transform_indices = @transform_9, window_bounds = array<i64: 9, 8, 8>}, {pipeline_mode = #tpu.pipeline_mode<synchronous>, transform_indices = @transform_10, window_bounds = array<i64: 8, 1>}, {pipeline_mode = #tpu.pipeline_mode<synchronous>, transform_indices = @transform_11, window_bounds = array<i64: 8, 1>}, {pipeline_mode = #tpu.pipeline_mode<synchronous>, transform_indices = @transform_12, window_bounds = array<i64: 8, 128>}]} {
    %c0 = arith.constant 0 : index
    %c0_0 = arith.constant 0 : index
    %0 = vector.load %arg1[%c0, %c0_0] : memref<4x512xf32, #tpu.memory_space<vmem>>, vector<4x512xf32>
    %c0_1 = arith.constant 0 : index
    %c0_2 = arith.constant 0 : index
    %1 = vector.load %arg3[%c0_1, %c0_2] : memref<8x4xf32, #tpu.memory_space<vmem>>, vector<8x4xf32>
    %c0_3 = arith.constant 0 : index
    %c0_4 = arith.constant 0 : index
    %2 = vector.load %arg2[%c0_3, %c0_4] : memref<512x128xf32, #tpu.memory_space<vmem>>, vector<512x128xf32>
    %cst = arith.constant dense<0.000000e+00> : vector<4x128xf32>
    %3 = tpu.matmul %0, %2, %cst {dimension_numbers = #tpu.dot_dimension_numbers<[1], [0], [0], [1], [0, 0, 1, 1], [], []>} : vector<4x512xf32>, vector<512x128xf32>, vector<4x128xf32> -> vector<4x128xf32>
    %cst_5 = arith.constant dense<0.000000e+00> : vector<8x128xf32>
    %4 = tpu.matmul %1, %3, %cst_5 {dimension_numbers = #tpu.dot_dimension_numbers<[1], [0], [0], [1], [0, 0, 1, 1], [], []>} : vector<8x4xf32>, vector<4x128xf32>, vector<8x128xf32> -> vector<8x128xf32>
    %c0_6 = arith.constant 0 : index
    %c0_7 = arith.constant 0 : index
    %5 = vector.load %arg4[%c0_6, %c0_7] : memref<8x1xf32, #tpu.memory_space<vmem>>, vector<8x1xf32>
    %6 = vector.broadcast %5 : vector<8x1xf32> to vector<8x128xf32>
    %7 = arith.addf %4, %6 : vector<8x128xf32>
    %cst_8 = arith.constant 0.000000e+00 : f32
    %8 = vector.broadcast %cst_8 : f32 to vector<8x128xf32>
    %c0_9 = arith.constant 0 : index
    %c0_10 = arith.constant 0 : index
    %c0_11 = arith.constant 0 : index
    %9 = vector.load %arg5[%c0_9, %c0_10, %c0_11] : memref<9x512x128xf32, #tpu.memory_space<vmem>>, vector<1x512x128xf32>
    %10 = vector.shape_cast %9 : vector<1x512x128xf32> to vector<512x128xf32>
    %cst_12 = arith.constant dense<0.000000e+00> : vector<4x128xf32>
    %11 = tpu.matmul %0, %10, %cst_12 {dimension_numbers = #tpu.dot_dimension_numbers<[1], [0], [0], [1], [0, 0, 1, 1], [], []>} : vector<4x512xf32>, vector<512x128xf32>, vector<4x128xf32> -> vector<4x128xf32>
    %c0_13 = arith.constant 0 : index
    %c0_14 = arith.constant 0 : index
    %c0_15 = arith.constant 0 : index
    %12 = vector.load %arg6[%c0_13, %c0_14, %c0_15] : memref<9x8x4xf32, #tpu.memory_space<vmem>>, vector<1x8x4xf32>
    %13 = vector.shape_cast %12 : vector<1x8x4xf32> to vector<8x4xf32>
    %cst_16 = arith.constant dense<0.000000e+00> : vector<8x128xf32>
    %14 = tpu.matmul %13, %11, %cst_16 {dimension_numbers = #tpu.dot_dimension_numbers<[1], [0], [0], [1], [0, 0, 1, 1], [], []>} : vector<8x4xf32>, vector<4x128xf32>, vector<8x128xf32> -> vector<8x128xf32>
    %15 = arith.addf %8, %14 : vector<8x128xf32>
    %c1 = arith.constant 1 : index
    %c0_17 = arith.constant 0 : index
    %c0_18 = arith.constant 0 : index
    %16 = vector.load %arg5[%c1, %c0_17, %c0_18] : memref<9x512x128xf32, #tpu.memory_space<vmem>>, vector<1x512x128xf32>
    %17 = vector.shape_cast %16 : vector<1x512x128xf32> to vector<512x128xf32>
    %cst_19 = arith.constant dense<0.000000e+00> : vector<4x128xf32>
    %18 = tpu.matmul %0, %17, %cst_19 {dimension_numbers = #tpu.dot_dimension_numbers<[1], [0], [0], [1], [0, 0, 1, 1], [], []>} : vector<4x512xf32>, vector<512x128xf32>, vector<4x128xf32> -> vector<4x128xf32>
    %c1_20 = arith.constant 1 : index
    %c0_21 = arith.constant 0 : index
    %c0_22 = arith.constant 0 : index
    %19 = vector.load %arg6[%c1_20, %c0_21, %c0_22] : memref<9x8x4xf32, #tpu.memory_space<vmem>>, vector<1x8x4xf32>
    %20 = vector.shape_cast %19 : vector<1x8x4xf32> to vector<8x4xf32>
    %cst_23 = arith.constant dense<0.000000e+00> : vector<8x128xf32>
    %21 = tpu.matmul %20, %18, %cst_23 {dimension_numbers = #tpu.dot_dimension_numbers<[1], [0], [0], [1], [0, 0, 1, 1], [], []>} : vector<8x4xf32>, vector<4x128xf32>, vector<8x128xf32> -> vector<8x128xf32>
    %22 = arith.addf %15, %21 : vector<8x128xf32>
    %c2 = arith.constant 2 : index
    %c0_24 = arith.constant 0 : index
    %c0_25 = arith.constant 0 : index
    %23 = vector.load %arg5[%c2, %c0_24, %c0_25] : memref<9x512x128xf32, #tpu.memory_space<vmem>>, vector<1x512x128xf32>
    %24 = vector.shape_cast %23 : vector<1x512x128xf32> to vector<512x128xf32>
    %cst_26 = arith.constant dense<0.000000e+00> : vector<4x128xf32>
    %25 = tpu.matmul %0, %24, %cst_26 {dimension_numbers = #tpu.dot_dimension_numbers<[1], [0], [0], [1], [0, 0, 1, 1], [], []>} : vector<4x512xf32>, vector<512x128xf32>, vector<4x128xf32> -> vector<4x128xf32>
    %c2_27 = arith.constant 2 : index
    %c0_28 = arith.constant 0 : index
    %c0_29 = arith.constant 0 : index
    %26 = vector.load %arg6[%c2_27, %c0_28, %c0_29] : memref<9x8x4xf32, #tpu.memory_space<vmem>>, vector<1x8x4xf32>
    %27 = vector.shape_cast %26 : vector<1x8x4xf32> to vector<8x4xf32>
    %cst_30 = arith.constant dense<0.000000e+00> : vector<8x128xf32>
    %28 = tpu.matmul %27, %25, %cst_30 {dimension_numbers = #tpu.dot_dimension_numbers<[1], [0], [0], [1], [0, 0, 1, 1], [], []>} : vector<8x4xf32>, vector<4x128xf32>, vector<8x128xf32> -> vector<8x128xf32>
    %29 = arith.addf %22, %28 : vector<8x128xf32>
    %c3 = arith.constant 3 : index
    %c0_31 = arith.constant 0 : index
    %c0_32 = arith.constant 0 : index
    %30 = vector.load %arg5[%c3, %c0_31, %c0_32] : memref<9x512x128xf32, #tpu.memory_space<vmem>>, vector<1x512x128xf32>
    %31 = vector.shape_cast %30 : vector<1x512x128xf32> to vector<512x128xf32>
    %cst_33 = arith.constant dense<0.000000e+00> : vector<4x128xf32>
    %32 = tpu.matmul %0, %31, %cst_33 {dimension_numbers = #tpu.dot_dimension_numbers<[1], [0], [0], [1], [0, 0, 1, 1], [], []>} : vector<4x512xf32>, vector<512x128xf32>, vector<4x128xf32> -> vector<4x128xf32>
    %c3_34 = arith.constant 3 : index
    %c0_35 = arith.constant 0 : index
    %c0_36 = arith.constant 0 : index
    %33 = vector.load %arg6[%c3_34, %c0_35, %c0_36] : memref<9x8x4xf32, #tpu.memory_space<vmem>>, vector<1x8x4xf32>
    %34 = vector.shape_cast %33 : vector<1x8x4xf32> to vector<8x4xf32>
    %cst_37 = arith.constant dense<0.000000e+00> : vector<8x128xf32>
    %35 = tpu.matmul %34, %32, %cst_37 {dimension_numbers = #tpu.dot_dimension_numbers<[1], [0], [0], [1], [0, 0, 1, 1], [], []>} : vector<8x4xf32>, vector<4x128xf32>, vector<8x128xf32> -> vector<8x128xf32>
    %36 = arith.addf %29, %35 : vector<8x128xf32>
    %c4 = arith.constant 4 : index
    %c0_38 = arith.constant 0 : index
    %c0_39 = arith.constant 0 : index
    %37 = vector.load %arg5[%c4, %c0_38, %c0_39] : memref<9x512x128xf32, #tpu.memory_space<vmem>>, vector<1x512x128xf32>
    %38 = vector.shape_cast %37 : vector<1x512x128xf32> to vector<512x128xf32>
    %cst_40 = arith.constant dense<0.000000e+00> : vector<4x128xf32>
    %39 = tpu.matmul %0, %38, %cst_40 {dimension_numbers = #tpu.dot_dimension_numbers<[1], [0], [0], [1], [0, 0, 1, 1], [], []>} : vector<4x512xf32>, vector<512x128xf32>, vector<4x128xf32> -> vector<4x128xf32>
    %c4_41 = arith.constant 4 : index
    %c0_42 = arith.constant 0 : index
    %c0_43 = arith.constant 0 : index
    %40 = vector.load %arg6[%c4_41, %c0_42, %c0_43] : memref<9x8x4xf32, #tpu.memory_space<vmem>>, vector<1x8x4xf32>
    %41 = vector.shape_cast %40 : vector<1x8x4xf32> to vector<8x4xf32>
    %cst_44 = arith.constant dense<0.000000e+00> : vector<8x128xf32>
    %42 = tpu.matmul %41, %39, %cst_44 {dimension_numbers = #tpu.dot_dimension_numbers<[1], [0], [0], [1], [0, 0, 1, 1], [], []>} : vector<8x4xf32>, vector<4x128xf32>, vector<8x128xf32> -> vector<8x128xf32>
    %43 = arith.addf %36, %42 : vector<8x128xf32>
    %c5 = arith.constant 5 : index
    %c0_45 = arith.constant 0 : index
    %c0_46 = arith.constant 0 : index
    %44 = vector.load %arg5[%c5, %c0_45, %c0_46] : memref<9x512x128xf32, #tpu.memory_space<vmem>>, vector<1x512x128xf32>
    %45 = vector.shape_cast %44 : vector<1x512x128xf32> to vector<512x128xf32>
    %cst_47 = arith.constant dense<0.000000e+00> : vector<4x128xf32>
    %46 = tpu.matmul %0, %45, %cst_47 {dimension_numbers = #tpu.dot_dimension_numbers<[1], [0], [0], [1], [0, 0, 1, 1], [], []>} : vector<4x512xf32>, vector<512x128xf32>, vector<4x128xf32> -> vector<4x128xf32>
    %c5_48 = arith.constant 5 : index
    %c0_49 = arith.constant 0 : index
    %c0_50 = arith.constant 0 : index
    %47 = vector.load %arg6[%c5_48, %c0_49, %c0_50] : memref<9x8x4xf32, #tpu.memory_space<vmem>>, vector<1x8x4xf32>
    %48 = vector.shape_cast %47 : vector<1x8x4xf32> to vector<8x4xf32>
    %cst_51 = arith.constant dense<0.000000e+00> : vector<8x128xf32>
    %49 = tpu.matmul %48, %46, %cst_51 {dimension_numbers = #tpu.dot_dimension_numbers<[1], [0], [0], [1], [0, 0, 1, 1], [], []>} : vector<8x4xf32>, vector<4x128xf32>, vector<8x128xf32> -> vector<8x128xf32>
    %50 = arith.addf %43, %49 : vector<8x128xf32>
    %c6 = arith.constant 6 : index
    %c0_52 = arith.constant 0 : index
    %c0_53 = arith.constant 0 : index
    %51 = vector.load %arg5[%c6, %c0_52, %c0_53] : memref<9x512x128xf32, #tpu.memory_space<vmem>>, vector<1x512x128xf32>
    %52 = vector.shape_cast %51 : vector<1x512x128xf32> to vector<512x128xf32>
    %cst_54 = arith.constant dense<0.000000e+00> : vector<4x128xf32>
    %53 = tpu.matmul %0, %52, %cst_54 {dimension_numbers = #tpu.dot_dimension_numbers<[1], [0], [0], [1], [0, 0, 1, 1], [], []>} : vector<4x512xf32>, vector<512x128xf32>, vector<4x128xf32> -> vector<4x128xf32>
    %c6_55 = arith.constant 6 : index
    %c0_56 = arith.constant 0 : index
    %c0_57 = arith.constant 0 : index
    %54 = vector.load %arg6[%c6_55, %c0_56, %c0_57] : memref<9x8x4xf32, #tpu.memory_space<vmem>>, vector<1x8x4xf32>
    %55 = vector.shape_cast %54 : vector<1x8x4xf32> to vector<8x4xf32>
    %cst_58 = arith.constant dense<0.000000e+00> : vector<8x128xf32>
    %56 = tpu.matmul %55, %53, %cst_58 {dimension_numbers = #tpu.dot_dimension_numbers<[1], [0], [0], [1], [0, 0, 1, 1], [], []>} : vector<8x4xf32>, vector<4x128xf32>, vector<8x128xf32> -> vector<8x128xf32>
    %57 = arith.addf %50, %56 : vector<8x128xf32>
    %c7 = arith.constant 7 : index
    %c0_59 = arith.constant 0 : index
    %c0_60 = arith.constant 0 : index
    %58 = vector.load %arg5[%c7, %c0_59, %c0_60] : memref<9x512x128xf32, #tpu.memory_space<vmem>>, vector<1x512x128xf32>
    %59 = vector.shape_cast %58 : vector<1x512x128xf32> to vector<512x128xf32>
    %cst_61 = arith.constant dense<0.000000e+00> : vector<4x128xf32>
    %60 = tpu.matmul %0, %59, %cst_61 {dimension_numbers = #tpu.dot_dimension_numbers<[1], [0], [0], [1], [0, 0, 1, 1], [], []>} : vector<4x512xf32>, vector<512x128xf32>, vector<4x128xf32> -> vector<4x128xf32>
    %c7_62 = arith.constant 7 : index
    %c0_63 = arith.constant 0 : index
    %c0_64 = arith.constant 0 : index
    %61 = vector.load %arg6[%c7_62, %c0_63, %c0_64] : memref<9x8x4xf32, #tpu.memory_space<vmem>>, vector<1x8x4xf32>
    %62 = vector.shape_cast %61 : vector<1x8x4xf32> to vector<8x4xf32>
    %cst_65 = arith.constant dense<0.000000e+00> : vector<8x128xf32>
    %63 = tpu.matmul %62, %60, %cst_65 {dimension_numbers = #tpu.dot_dimension_numbers<[1], [0], [0], [1], [0, 0, 1, 1], [], []>} : vector<8x4xf32>, vector<4x128xf32>, vector<8x128xf32> -> vector<8x128xf32>
    %64 = arith.addf %57, %63 : vector<8x128xf32>
    %c8 = arith.constant 8 : index
    %c0_66 = arith.constant 0 : index
    %c0_67 = arith.constant 0 : index
    %65 = vector.load %arg5[%c8, %c0_66, %c0_67] : memref<9x512x128xf32, #tpu.memory_space<vmem>>, vector<1x512x128xf32>
    %66 = vector.shape_cast %65 : vector<1x512x128xf32> to vector<512x128xf32>
    %cst_68 = arith.constant dense<0.000000e+00> : vector<4x128xf32>
    %67 = tpu.matmul %0, %66, %cst_68 {dimension_numbers = #tpu.dot_dimension_numbers<[1], [0], [0], [1], [0, 0, 1, 1], [], []>} : vector<4x512xf32>, vector<512x128xf32>, vector<4x128xf32> -> vector<4x128xf32>
    %c8_69 = arith.constant 8 : index
    %c0_70 = arith.constant 0 : index
    %c0_71 = arith.constant 0 : index
    %68 = vector.load %arg6[%c8_69, %c0_70, %c0_71] : memref<9x8x4xf32, #tpu.memory_space<vmem>>, vector<1x8x4xf32>
    %69 = vector.shape_cast %68 : vector<1x8x4xf32> to vector<8x4xf32>
    %cst_72 = arith.constant dense<0.000000e+00> : vector<8x128xf32>
    %70 = tpu.matmul %69, %67, %cst_72 {dimension_numbers = #tpu.dot_dimension_numbers<[1], [0], [0], [1], [0, 0, 1, 1], [], []>} : vector<8x4xf32>, vector<4x128xf32>, vector<8x128xf32> -> vector<8x128xf32>
    %71 = arith.addf %64, %70 : vector<8x128xf32>
    %cst_73 = arith.constant dense<0.000000e+00> : vector<8xf32>
    %72 = vector.multi_reduction <add>, %71, %cst_73 [1] : vector<8x128xf32> to vector<8xf32>
    %73 = vector.shape_cast %72 : vector<8xf32> to vector<8x1xf32>
    %cst_74 = arith.constant 1.280000e+02 : f32
    %74 = vector.broadcast %cst_74 : f32 to vector<8x1xf32>
    %75 = arith.divf %73, %74 : vector<8x1xf32>
    %76 = vector.broadcast %75 : vector<8x1xf32> to vector<8x128xf32>
    %77 = arith.subf %71, %76 : vector<8x128xf32>
    %78 = arith.mulf %77, %77 : vector<8x128xf32>
    %cst_75 = arith.constant dense<0.000000e+00> : vector<8xf32>
    %79 = vector.multi_reduction <add>, %78, %cst_75 [1] : vector<8x128xf32> to vector<8xf32>
    %80 = vector.shape_cast %79 : vector<8xf32> to vector<8x1xf32>
    %cst_76 = arith.constant 1.280000e+02 : f32
    %81 = vector.broadcast %cst_76 : f32 to vector<8x1xf32>
    %82 = arith.divf %80, %81 : vector<8x1xf32>
    %83 = vector.broadcast %75 : vector<8x1xf32> to vector<8x128xf32>
    %84 = arith.subf %71, %83 : vector<8x128xf32>
    %cst_77 = arith.constant 9.99999974E-6 : f32
    %85 = vector.broadcast %cst_77 : f32 to vector<8x1xf32>
    %86 = arith.addf %82, %85 : vector<8x1xf32>
    %87 = math.rsqrt %86 : vector<8x1xf32>
    %88 = vector.broadcast %87 : vector<8x1xf32> to vector<8x128xf32>
    %89 = arith.mulf %84, %88 : vector<8x128xf32>
    %c0_78 = arith.constant 0 : index
    %c0_79 = arith.constant 0 : index
    %90 = vector.load %arg7[%c0_78, %c0_79] : memref<8x1xf32, #tpu.memory_space<vmem>>, vector<8x1xf32>
    %91 = vector.broadcast %90 : vector<8x1xf32> to vector<8x128xf32>
    %92 = arith.mulf %89, %91 : vector<8x128xf32>
    %c0_80 = arith.constant 0 : index
    %c0_81 = arith.constant 0 : index
    %93 = vector.load %arg8[%c0_80, %c0_81] : memref<8x1xf32, #tpu.memory_space<vmem>>, vector<8x1xf32>
    %94 = vector.broadcast %93 : vector<8x1xf32> to vector<8x128xf32>
    %95 = arith.addf %92, %94 : vector<8x128xf32>
    %cst_82 = arith.constant 0.000000e+00 : f32
    %96 = vector.broadcast %cst_82 : f32 to vector<8x128xf32>
    %97 = arith.maximumf %95, %96 : vector<8x128xf32>
    %cst_83 = arith.constant 0.000000e+00 : f32
    %98 = vector.broadcast %cst_83 : f32 to vector<8x128xf32>
    %c0_84 = arith.constant 0 : index
    %c0_85 = arith.constant 0 : index
    %c0_86 = arith.constant 0 : index
    %99 = vector.load %arg9[%c0_84, %c0_85, %c0_86] : memref<9x128x128xf32, #tpu.memory_space<vmem>>, vector<1x128x128xf32>
    %100 = vector.shape_cast %99 : vector<1x128x128xf32> to vector<128x128xf32>
    %cst_87 = arith.constant dense<0.000000e+00> : vector<8x128xf32>
    %101 = tpu.matmul %97, %100, %cst_87 {dimension_numbers = #tpu.dot_dimension_numbers<[1], [0], [0], [1], [0, 0, 1, 1], [], []>} : vector<8x128xf32>, vector<128x128xf32>, vector<8x128xf32> -> vector<8x128xf32>
    %c0_88 = arith.constant 0 : index
    %c0_89 = arith.constant 0 : index
    %c0_90 = arith.constant 0 : index
    %102 = vector.load %arg10[%c0_88, %c0_89, %c0_90] : memref<9x8x8xf32, #tpu.memory_space<vmem>>, vector<1x8x8xf32>
    %103 = vector.shape_cast %102 : vector<1x8x8xf32> to vector<8x8xf32>
    %cst_91 = arith.constant dense<0.000000e+00> : vector<8x128xf32>
    %104 = tpu.matmul %103, %101, %cst_91 {dimension_numbers = #tpu.dot_dimension_numbers<[1], [0], [0], [1], [0, 0, 1, 1], [], []>} : vector<8x8xf32>, vector<8x128xf32>, vector<8x128xf32> -> vector<8x128xf32>
    %105 = arith.addf %98, %104 : vector<8x128xf32>
    %c1_92 = arith.constant 1 : index
    %c0_93 = arith.constant 0 : index
    %c0_94 = arith.constant 0 : index
    %106 = vector.load %arg9[%c1_92, %c0_93, %c0_94] : memref<9x128x128xf32, #tpu.memory_space<vmem>>, vector<1x128x128xf32>
    %107 = vector.shape_cast %106 : vector<1x128x128xf32> to vector<128x128xf32>
    %cst_95 = arith.constant dense<0.000000e+00> : vector<8x128xf32>
    %108 = tpu.matmul %97, %107, %cst_95 {dimension_numbers = #tpu.dot_dimension_numbers<[1], [0], [0], [1], [0, 0, 1, 1], [], []>} : vector<8x128xf32>, vector<128x128xf32>, vector<8x128xf32> -> vector<8x128xf32>
    %c1_96 = arith.constant 1 : index
    %c0_97 = arith.constant 0 : index
    %c0_98 = arith.constant 0 : index
    %109 = vector.load %arg10[%c1_96, %c0_97, %c0_98] : memref<9x8x8xf32, #tpu.memory_space<vmem>>, vector<1x8x8xf32>
    %110 = vector.shape_cast %109 : vector<1x8x8xf32> to vector<8x8xf32>
    %cst_99 = arith.constant dense<0.000000e+00> : vector<8x128xf32>
    %111 = tpu.matmul %110, %108, %cst_99 {dimension_numbers = #tpu.dot_dimension_numbers<[1], [0], [0], [1], [0, 0, 1, 1], [], []>} : vector<8x8xf32>, vector<8x128xf32>, vector<8x128xf32> -> vector<8x128xf32>
    %112 = arith.addf %105, %111 : vector<8x128xf32>
    %c2_100 = arith.constant 2 : index
    %c0_101 = arith.constant 0 : index
    %c0_102 = arith.constant 0 : index
    %113 = vector.load %arg9[%c2_100, %c0_101, %c0_102] : memref<9x128x128xf32, #tpu.memory_space<vmem>>, vector<1x128x128xf32>
    %114 = vector.shape_cast %113 : vector<1x128x128xf32> to vector<128x128xf32>
    %cst_103 = arith.constant dense<0.000000e+00> : vector<8x128xf32>
    %115 = tpu.matmul %97, %114, %cst_103 {dimension_numbers = #tpu.dot_dimension_numbers<[1], [0], [0], [1], [0, 0, 1, 1], [], []>} : vector<8x128xf32>, vector<128x128xf32>, vector<8x128xf32> -> vector<8x128xf32>
    %c2_104 = arith.constant 2 : index
    %c0_105 = arith.constant 0 : index
    %c0_106 = arith.constant 0 : index
    %116 = vector.load %arg10[%c2_104, %c0_105, %c0_106] : memref<9x8x8xf32, #tpu.memory_space<vmem>>, vector<1x8x8xf32>
    %117 = vector.shape_cast %116 : vector<1x8x8xf32> to vector<8x8xf32>
    %cst_107 = arith.constant dense<0.000000e+00> : vector<8x128xf32>
    %118 = tpu.matmul %117, %115, %cst_107 {dimension_numbers = #tpu.dot_dimension_numbers<[1], [0], [0], [1], [0, 0, 1, 1], [], []>} : vector<8x8xf32>, vector<8x128xf32>, vector<8x128xf32> -> vector<8x128xf32>
    %119 = arith.addf %112, %118 : vector<8x128xf32>
    %c3_108 = arith.constant 3 : index
    %c0_109 = arith.constant 0 : index
    %c0_110 = arith.constant 0 : index
    %120 = vector.load %arg9[%c3_108, %c0_109, %c0_110] : memref<9x128x128xf32, #tpu.memory_space<vmem>>, vector<1x128x128xf32>
    %121 = vector.shape_cast %120 : vector<1x128x128xf32> to vector<128x128xf32>
    %cst_111 = arith.constant dense<0.000000e+00> : vector<8x128xf32>
    %122 = tpu.matmul %97, %121, %cst_111 {dimension_numbers = #tpu.dot_dimension_numbers<[1], [0], [0], [1], [0, 0, 1, 1], [], []>} : vector<8x128xf32>, vector<128x128xf32>, vector<8x128xf32> -> vector<8x128xf32>
    %c3_112 = arith.constant 3 : index
    %c0_113 = arith.constant 0 : index
    %c0_114 = arith.constant 0 : index
    %123 = vector.load %arg10[%c3_112, %c0_113, %c0_114] : memref<9x8x8xf32, #tpu.memory_space<vmem>>, vector<1x8x8xf32>
    %124 = vector.shape_cast %123 : vector<1x8x8xf32> to vector<8x8xf32>
    %cst_115 = arith.constant dense<0.000000e+00> : vector<8x128xf32>
    %125 = tpu.matmul %124, %122, %cst_115 {dimension_numbers = #tpu.dot_dimension_numbers<[1], [0], [0], [1], [0, 0, 1, 1], [], []>} : vector<8x8xf32>, vector<8x128xf32>, vector<8x128xf32> -> vector<8x128xf32>
    %126 = arith.addf %119, %125 : vector<8x128xf32>
    %c4_116 = arith.constant 4 : index
    %c0_117 = arith.constant 0 : index
    %c0_118 = arith.constant 0 : index
    %127 = vector.load %arg9[%c4_116, %c0_117, %c0_118] : memref<9x128x128xf32, #tpu.memory_space<vmem>>, vector<1x128x128xf32>
    %128 = vector.shape_cast %127 : vector<1x128x128xf32> to vector<128x128xf32>
    %cst_119 = arith.constant dense<0.000000e+00> : vector<8x128xf32>
    %129 = tpu.matmul %97, %128, %cst_119 {dimension_numbers = #tpu.dot_dimension_numbers<[1], [0], [0], [1], [0, 0, 1, 1], [], []>} : vector<8x128xf32>, vector<128x128xf32>, vector<8x128xf32> -> vector<8x128xf32>
    %c4_120 = arith.constant 4 : index
    %c0_121 = arith.constant 0 : index
    %c0_122 = arith.constant 0 : index
    %130 = vector.load %arg10[%c4_120, %c0_121, %c0_122] : memref<9x8x8xf32, #tpu.memory_space<vmem>>, vector<1x8x8xf32>
    %131 = vector.shape_cast %130 : vector<1x8x8xf32> to vector<8x8xf32>
    %cst_123 = arith.constant dense<0.000000e+00> : vector<8x128xf32>
    %132 = tpu.matmul %131, %129, %cst_123 {dimension_numbers = #tpu.dot_dimension_numbers<[1], [0], [0], [1], [0, 0, 1, 1], [], []>} : vector<8x8xf32>, vector<8x128xf32>, vector<8x128xf32> -> vector<8x128xf32>
    %133 = arith.addf %126, %132 : vector<8x128xf32>
    %c5_124 = arith.constant 5 : index
    %c0_125 = arith.constant 0 : index
    %c0_126 = arith.constant 0 : index
    %134 = vector.load %arg9[%c5_124, %c0_125, %c0_126] : memref<9x128x128xf32, #tpu.memory_space<vmem>>, vector<1x128x128xf32>
    %135 = vector.shape_cast %134 : vector<1x128x128xf32> to vector<128x128xf32>
    %cst_127 = arith.constant dense<0.000000e+00> : vector<8x128xf32>
    %136 = tpu.matmul %97, %135, %cst_127 {dimension_numbers = #tpu.dot_dimension_numbers<[1], [0], [0], [1], [0, 0, 1, 1], [], []>} : vector<8x128xf32>, vector<128x128xf32>, vector<8x128xf32> -> vector<8x128xf32>
    %c5_128 = arith.constant 5 : index
    %c0_129 = arith.constant 0 : index
    %c0_130 = arith.constant 0 : index
    %137 = vector.load %arg10[%c5_128, %c0_129, %c0_130] : memref<9x8x8xf32, #tpu.memory_space<vmem>>, vector<1x8x8xf32>
    %138 = vector.shape_cast %137 : vector<1x8x8xf32> to vector<8x8xf32>
    %cst_131 = arith.constant dense<0.000000e+00> : vector<8x128xf32>
    %139 = tpu.matmul %138, %136, %cst_131 {dimension_numbers = #tpu.dot_dimension_numbers<[1], [0], [0], [1], [0, 0, 1, 1], [], []>} : vector<8x8xf32>, vector<8x128xf32>, vector<8x128xf32> -> vector<8x128xf32>
    %140 = arith.addf %133, %139 : vector<8x128xf32>
    %c6_132 = arith.constant 6 : index
    %c0_133 = arith.constant 0 : index
    %c0_134 = arith.constant 0 : index
    %141 = vector.load %arg9[%c6_132, %c0_133, %c0_134] : memref<9x128x128xf32, #tpu.memory_space<vmem>>, vector<1x128x128xf32>
    %142 = vector.shape_cast %141 : vector<1x128x128xf32> to vector<128x128xf32>
    %cst_135 = arith.constant dense<0.000000e+00> : vector<8x128xf32>
    %143 = tpu.matmul %97, %142, %cst_135 {dimension_numbers = #tpu.dot_dimension_numbers<[1], [0], [0], [1], [0, 0, 1, 1], [], []>} : vector<8x128xf32>, vector<128x128xf32>, vector<8x128xf32> -> vector<8x128xf32>
    %c6_136 = arith.constant 6 : index
    %c0_137 = arith.constant 0 : index
    %c0_138 = arith.constant 0 : index
    %144 = vector.load %arg10[%c6_136, %c0_137, %c0_138] : memref<9x8x8xf32, #tpu.memory_space<vmem>>, vector<1x8x8xf32>
    %145 = vector.shape_cast %144 : vector<1x8x8xf32> to vector<8x8xf32>
    %cst_139 = arith.constant dense<0.000000e+00> : vector<8x128xf32>
    %146 = tpu.matmul %145, %143, %cst_139 {dimension_numbers = #tpu.dot_dimension_numbers<[1], [0], [0], [1], [0, 0, 1, 1], [], []>} : vector<8x8xf32>, vector<8x128xf32>, vector<8x128xf32> -> vector<8x128xf32>
    %147 = arith.addf %140, %146 : vector<8x128xf32>
    %c7_140 = arith.constant 7 : index
    %c0_141 = arith.constant 0 : index
    %c0_142 = arith.constant 0 : index
    %148 = vector.load %arg9[%c7_140, %c0_141, %c0_142] : memref<9x128x128xf32, #tpu.memory_space<vmem>>, vector<1x128x128xf32>
    %149 = vector.shape_cast %148 : vector<1x128x128xf32> to vector<128x128xf32>
    %cst_143 = arith.constant dense<0.000000e+00> : vector<8x128xf32>
    %150 = tpu.matmul %97, %149, %cst_143 {dimension_numbers = #tpu.dot_dimension_numbers<[1], [0], [0], [1], [0, 0, 1, 1], [], []>} : vector<8x128xf32>, vector<128x128xf32>, vector<8x128xf32> -> vector<8x128xf32>
    %c7_144 = arith.constant 7 : index
    %c0_145 = arith.constant 0 : index
    %c0_146 = arith.constant 0 : index
    %151 = vector.load %arg10[%c7_144, %c0_145, %c0_146] : memref<9x8x8xf32, #tpu.memory_space<vmem>>, vector<1x8x8xf32>
    %152 = vector.shape_cast %151 : vector<1x8x8xf32> to vector<8x8xf32>
    %cst_147 = arith.constant dense<0.000000e+00> : vector<8x128xf32>
    %153 = tpu.matmul %152, %150, %cst_147 {dimension_numbers = #tpu.dot_dimension_numbers<[1], [0], [0], [1], [0, 0, 1, 1], [], []>} : vector<8x8xf32>, vector<8x128xf32>, vector<8x128xf32> -> vector<8x128xf32>
    %154 = arith.addf %147, %153 : vector<8x128xf32>
    %c8_148 = arith.constant 8 : index
    %c0_149 = arith.constant 0 : index
    %c0_150 = arith.constant 0 : index
    %155 = vector.load %arg9[%c8_148, %c0_149, %c0_150] : memref<9x128x128xf32, #tpu.memory_space<vmem>>, vector<1x128x128xf32>
    %156 = vector.shape_cast %155 : vector<1x128x128xf32> to vector<128x128xf32>
    %cst_151 = arith.constant dense<0.000000e+00> : vector<8x128xf32>
    %157 = tpu.matmul %97, %156, %cst_151 {dimension_numbers = #tpu.dot_dimension_numbers<[1], [0], [0], [1], [0, 0, 1, 1], [], []>} : vector<8x128xf32>, vector<128x128xf32>, vector<8x128xf32> -> vector<8x128xf32>
    %c8_152 = arith.constant 8 : index
    %c0_153 = arith.constant 0 : index
    %c0_154 = arith.constant 0 : index
    %158 = vector.load %arg10[%c8_152, %c0_153, %c0_154] : memref<9x8x8xf32, #tpu.memory_space<vmem>>, vector<1x8x8xf32>
    %159 = vector.shape_cast %158 : vector<1x8x8xf32> to vector<8x8xf32>
    %cst_155 = arith.constant dense<0.000000e+00> : vector<8x128xf32>
    %160 = tpu.matmul %159, %157, %cst_155 {dimension_numbers = #tpu.dot_dimension_numbers<[1], [0], [0], [1], [0, 0, 1, 1], [], []>} : vector<8x8xf32>, vector<8x128xf32>, vector<8x128xf32> -> vector<8x128xf32>
    %161 = arith.addf %154, %160 : vector<8x128xf32>
    %cst_156 = arith.constant dense<0.000000e+00> : vector<8xf32>
    %162 = vector.multi_reduction <add>, %161, %cst_156 [1] : vector<8x128xf32> to vector<8xf32>
    %163 = vector.shape_cast %162 : vector<8xf32> to vector<8x1xf32>
    %cst_157 = arith.constant 1.280000e+02 : f32
    %164 = vector.broadcast %cst_157 : f32 to vector<8x1xf32>
    %165 = arith.divf %163, %164 : vector<8x1xf32>
    %166 = vector.broadcast %165 : vector<8x1xf32> to vector<8x128xf32>
    %167 = arith.subf %161, %166 : vector<8x128xf32>
    %168 = arith.mulf %167, %167 : vector<8x128xf32>
    %cst_158 = arith.constant dense<0.000000e+00> : vector<8xf32>
    %169 = vector.multi_reduction <add>, %168, %cst_158 [1] : vector<8x128xf32> to vector<8xf32>
    %170 = vector.shape_cast %169 : vector<8xf32> to vector<8x1xf32>
    %cst_159 = arith.constant 1.280000e+02 : f32
    %171 = vector.broadcast %cst_159 : f32 to vector<8x1xf32>
    %172 = arith.divf %170, %171 : vector<8x1xf32>
    %173 = vector.broadcast %165 : vector<8x1xf32> to vector<8x128xf32>
    %174 = arith.subf %161, %173 : vector<8x128xf32>
    %cst_160 = arith.constant 9.99999974E-6 : f32
    %175 = vector.broadcast %cst_160 : f32 to vector<8x1xf32>
    %176 = arith.addf %172, %175 : vector<8x1xf32>
    %177 = math.rsqrt %176 : vector<8x1xf32>
    %178 = vector.broadcast %177 : vector<8x1xf32> to vector<8x128xf32>
    %179 = arith.mulf %174, %178 : vector<8x128xf32>
    %c0_161 = arith.constant 0 : index
    %c0_162 = arith.constant 0 : index
    %180 = vector.load %arg11[%c0_161, %c0_162] : memref<8x1xf32, #tpu.memory_space<vmem>>, vector<8x1xf32>
    %181 = vector.broadcast %180 : vector<8x1xf32> to vector<8x128xf32>
    %182 = arith.mulf %179, %181 : vector<8x128xf32>
    %c0_163 = arith.constant 0 : index
    %c0_164 = arith.constant 0 : index
    %183 = vector.load %arg12[%c0_163, %c0_164] : memref<8x1xf32, #tpu.memory_space<vmem>>, vector<8x1xf32>
    %184 = vector.broadcast %183 : vector<8x1xf32> to vector<8x128xf32>
    %185 = arith.addf %182, %184 : vector<8x128xf32>
    %186 = arith.addf %185, %7 : vector<8x128xf32>
    %cst_165 = arith.constant 0.000000e+00 : f32
    %187 = vector.broadcast %cst_165 : f32 to vector<8x128xf32>
    %188 = arith.maximumf %186, %187 : vector<8x128xf32>
    %c0_166 = arith.constant 0 : index
    %c0_167 = arith.constant 0 : index
    %189 = vector.load %arg13[%c0_166, %c0_167] : memref<8x128xf32, #tpu.memory_space<vmem>>, vector<8x128xf32>
    tpu.vector_store %arg13[%c0_166, %c0_167], %188 {strides = array<i32>} : memref<8x128xf32, #tpu.memory_space<vmem>>, vector<8x128xf32>,
    return
  }
  func.func @transform_0(%arg0: i32) -> (i32, i32) {
    %c0_i32 = arith.constant 0 : i32
    %c0_i32_0 = arith.constant 0 : i32
    %c0_i32_1 = arith.constant 0 : i32
    return %c0_i32, %c0_i32_0 : i32, i32
  }
  func.func @transform_1(%arg0: i32) -> (i32, i32) {
    %c0_i32 = arith.constant 0 : i32
    %c0_i32_0 = arith.constant 0 : i32
    %c0_i32_1 = arith.constant 0 : i32
    return %c0_i32, %c0_i32_0 : i32, i32
  }
  func.func @transform_2(%arg0: i32) -> (i32, i32) {
    %c0_i32 = arith.constant 0 : i32
    %c0_i32_0 = arith.constant 0 : i32
    %c0_i32_1 = arith.constant 0 : i32
    return %c0_i32, %c0_i32_0 : i32, i32
  }
  func.func @transform_3(%arg0: i32) -> (i32, i32) {
    %c0_i32 = arith.constant 0 : i32
    %c0_i32_0 = arith.constant 0 : i32
    %c0_i32_1 = arith.constant 0 : i32
    return %c0_i32, %c0_i32_0 : i32, i32
  }
  func.func @transform_4(%arg0: i32) -> (i32, i32, i32) {
    %c0_i32 = arith.constant 0 : i32
    %c0_i32_0 = arith.constant 0 : i32
    %c0_i32_1 = arith.constant 0 : i32
    %c0_i32_2 = arith.constant 0 : i32
    return %c0_i32, %c0_i32_0, %c0_i32_1 : i32, i32, i32
  }
  func.func @transform_5(%arg0: i32) -> (i32, i32, i32) {
    %c0_i32 = arith.constant 0 : i32
    %c0_i32_0 = arith.constant 0 : i32
    %c0_i32_1 = arith.constant 0 : i32
    %c0_i32_2 = arith.constant 0 : i32
    return %c0_i32, %c0_i32_0, %c0_i32_1 : i32, i32, i32
  }
  func.func @transform_6(%arg0: i32) -> (i32, i32) {
    %c0_i32 = arith.constant 0 : i32
    %c0_i32_0 = arith.constant 0 : i32
    %c0_i32_1 = arith.constant 0 : i32
    return %c0_i32, %c0_i32_0 : i32, i32
  }
  func.func @transform_7(%arg0: i32) -> (i32, i32) {
    %c0_i32 = arith.constant 0 : i32
    %c0_i32_0 = arith.constant 0 : i32
    %c0_i32_1 = arith.constant 0 : i32
    return %c0_i32, %c0_i32_0 : i32, i32
  }
  func.func @transform_8(%arg0: i32) -> (i32, i32, i32) {
    %c0_i32 = arith.constant 0 : i32
    %c0_i32_0 = arith.constant 0 : i32
    %c0_i32_1 = arith.constant 0 : i32
    %c0_i32_2 = arith.constant 0 : i32
    return %c0_i32, %c0_i32_0, %c0_i32_1 : i32, i32, i32
  }
  func.func @transform_9(%arg0: i32) -> (i32, i32, i32) {
    %c0_i32 = arith.constant 0 : i32
    %c0_i32_0 = arith.constant 0 : i32
    %c0_i32_1 = arith.constant 0 : i32
    %c0_i32_2 = arith.constant 0 : i32
    return %c0_i32, %c0_i32_0, %c0_i32_1 : i32, i32, i32
  }
  func.func @transform_10(%arg0: i32) -> (i32, i32) {
    %c0_i32 = arith.constant 0 : i32
    %c0_i32_0 = arith.constant 0 : i32
    %c0_i32_1 = arith.constant 0 : i32
    return %c0_i32, %c0_i32_0 : i32, i32
  }
  func.func @transform_11(%arg0: i32) -> (i32, i32) {
    %c0_i32 = arith.constant 0 : i32
    %c0_i32_0 = arith.constant 0 : i32
    %c0_i32_1 = arith.constant 0 : i32
    return %c0_i32, %c0_i32_0 : i32, i32
  }
  func.func @transform_12(%arg0: i32) -> (i32, i32) {
    %c0_i32 = arith.constant 0 : i32
    %c0_i32_0 = arith.constant 0 : i32
    %c0_i32_1 = arith.constant 0 : i32
    return %c0_i32, %c0_i32_0 : i32, i32
  }
}

module attributes {stable_mosaic.version = 11 : i64} {
  func.func @_basic_block_kernel(%arg0: i32, %arg1: memref<8x128xf32, #tpu.memory_space<vmem>>, %arg2: memref<128x128xf32, #tpu.memory_space<vmem>>, %arg3: memref<8x8xf32, #tpu.memory_space<vmem>>, %arg4: memref<8x1xf32, #tpu.memory_space<vmem>>, %arg5: memref<9x128x128xf32, #tpu.memory_space<vmem>>, %arg6: memref<9x8x8xf32, #tpu.memory_space<vmem>>, %arg7: memref<8x1xf32, #tpu.memory_space<vmem>>, %arg8: memref<8x1xf32, #tpu.memory_space<vmem>>, %arg9: memref<9x128x128xf32, #tpu.memory_space<vmem>>, %arg10: memref<9x8x8xf32, #tpu.memory_space<vmem>>, %arg11: memref<8x1xf32, #tpu.memory_space<vmem>>, %arg12: memref<8x1xf32, #tpu.memory_space<vmem>>, %arg13: memref<8x128xf32, #tpu.memory_space<vmem>>) attributes {dimension_semantics = [#tpu.dimension_semantics<arbitrary>], iteration_bounds = array<i64: 1>, scalar_prefetch = 0 : i64, scratch_operands = 0 : i64, tpu.core_type = #tpu.core_type<tc>, window_params = [{pipeline_mode = #tpu.pipeline_mode<synchronous>, transform_indices = @transform_0, window_bounds = array<i64: 8, 128>}, {pipeline_mode = #tpu.pipeline_mode<synchronous>, transform_indices = @transform_1, window_bounds = array<i64: 128, 128>}, {pipeline_mode = #tpu.pipeline_mode<synchronous>, transform_indices = @transform_2, window_bounds = array<i64: 8, 8>}, {pipeline_mode = #tpu.pipeline_mode<synchronous>, transform_indices = @transform_3, window_bounds = array<i64: 8, 1>}, {pipeline_mode = #tpu.pipeline_mode<synchronous>, transform_indices = @transform_4, window_bounds = array<i64: 9, 128, 128>}, {pipeline_mode = #tpu.pipeline_mode<synchronous>, transform_indices = @transform_5, window_bounds = array<i64: 9, 8, 8>}, {pipeline_mode = #tpu.pipeline_mode<synchronous>, transform_indices = @transform_6, window_bounds = array<i64: 8, 1>}, {pipeline_mode = #tpu.pipeline_mode<synchronous>, transform_indices = @transform_7, window_bounds = array<i64: 8, 1>}, {pipeline_mode = #tpu.pipeline_mode<synchronous>, transform_indices = @transform_8, window_bounds = array<i64: 9, 128, 128>}, {pipeline_mode = #tpu.pipeline_mode<synchronous>, transform_indices = @transform_9, window_bounds = array<i64: 9, 8, 8>}, {pipeline_mode = #tpu.pipeline_mode<synchronous>, transform_indices = @transform_10, window_bounds = array<i64: 8, 1>}, {pipeline_mode = #tpu.pipeline_mode<synchronous>, transform_indices = @transform_11, window_bounds = array<i64: 8, 1>}, {pipeline_mode = #tpu.pipeline_mode<synchronous>, transform_indices = @transform_12, window_bounds = array<i64: 8, 128>}]} {
    %c0 = arith.constant 0 : index
    %c0_0 = arith.constant 0 : index
    %0 = vector.load %arg1[%c0, %c0_0] : memref<8x128xf32, #tpu.memory_space<vmem>>, vector<8x128xf32>
    %c0_1 = arith.constant 0 : index
    %c0_2 = arith.constant 0 : index
    %1 = vector.load %arg3[%c0_1, %c0_2] : memref<8x8xf32, #tpu.memory_space<vmem>>, vector<8x8xf32>
    %c0_3 = arith.constant 0 : index
    %c0_4 = arith.constant 0 : index
    %2 = vector.load %arg2[%c0_3, %c0_4] : memref<128x128xf32, #tpu.memory_space<vmem>>, vector<128x128xf32>
    %cst = arith.constant dense<0.000000e+00> : vector<8x128xf32>
    %3 = tpu.matmul %0, %2, %cst {dimension_numbers = #tpu.dot_dimension_numbers<[1], [0], [0], [1], [0, 0, 1, 1], [], []>} : vector<8x128xf32>, vector<128x128xf32>, vector<8x128xf32> -> vector<8x128xf32>
    %cst_5 = arith.constant dense<0.000000e+00> : vector<8x128xf32>
    %4 = tpu.matmul %1, %3, %cst_5 {dimension_numbers = #tpu.dot_dimension_numbers<[1], [0], [0], [1], [0, 0, 1, 1], [], []>} : vector<8x8xf32>, vector<8x128xf32>, vector<8x128xf32> -> vector<8x128xf32>
    %c0_6 = arith.constant 0 : index
    %c0_7 = arith.constant 0 : index
    %5 = vector.load %arg4[%c0_6, %c0_7] : memref<8x1xf32, #tpu.memory_space<vmem>>, vector<8x1xf32>
    %6 = vector.broadcast %5 : vector<8x1xf32> to vector<8x128xf32>
    %7 = arith.addf %4, %6 : vector<8x128xf32>
    %cst_8 = arith.constant 0.000000e+00 : f32
    %8 = vector.broadcast %cst_8 : f32 to vector<8x128xf32>
    %c0_9 = arith.constant 0 : index
    %c0_10 = arith.constant 0 : index
    %c0_11 = arith.constant 0 : index
    %9 = vector.load %arg5[%c0_9, %c0_10, %c0_11] : memref<9x128x128xf32, #tpu.memory_space<vmem>>, vector<1x128x128xf32>
    %10 = vector.shape_cast %9 : vector<1x128x128xf32> to vector<128x128xf32>
    %cst_12 = arith.constant dense<0.000000e+00> : vector<8x128xf32>
    %11 = tpu.matmul %0, %10, %cst_12 {dimension_numbers = #tpu.dot_dimension_numbers<[1], [0], [0], [1], [0, 0, 1, 1], [], []>} : vector<8x128xf32>, vector<128x128xf32>, vector<8x128xf32> -> vector<8x128xf32>
    %c0_13 = arith.constant 0 : index
    %c0_14 = arith.constant 0 : index
    %c0_15 = arith.constant 0 : index
    %12 = vector.load %arg6[%c0_13, %c0_14, %c0_15] : memref<9x8x8xf32, #tpu.memory_space<vmem>>, vector<1x8x8xf32>
    %13 = vector.shape_cast %12 : vector<1x8x8xf32> to vector<8x8xf32>
    %cst_16 = arith.constant dense<0.000000e+00> : vector<8x128xf32>
    %14 = tpu.matmul %13, %11, %cst_16 {dimension_numbers = #tpu.dot_dimension_numbers<[1], [0], [0], [1], [0, 0, 1, 1], [], []>} : vector<8x8xf32>, vector<8x128xf32>, vector<8x128xf32> -> vector<8x128xf32>
    %15 = arith.addf %8, %14 : vector<8x128xf32>
    %c1 = arith.constant 1 : index
    %c0_17 = arith.constant 0 : index
    %c0_18 = arith.constant 0 : index
    %16 = vector.load %arg5[%c1, %c0_17, %c0_18] : memref<9x128x128xf32, #tpu.memory_space<vmem>>, vector<1x128x128xf32>
    %17 = vector.shape_cast %16 : vector<1x128x128xf32> to vector<128x128xf32>
    %cst_19 = arith.constant dense<0.000000e+00> : vector<8x128xf32>
    %18 = tpu.matmul %0, %17, %cst_19 {dimension_numbers = #tpu.dot_dimension_numbers<[1], [0], [0], [1], [0, 0, 1, 1], [], []>} : vector<8x128xf32>, vector<128x128xf32>, vector<8x128xf32> -> vector<8x128xf32>
    %c1_20 = arith.constant 1 : index
    %c0_21 = arith.constant 0 : index
    %c0_22 = arith.constant 0 : index
    %19 = vector.load %arg6[%c1_20, %c0_21, %c0_22] : memref<9x8x8xf32, #tpu.memory_space<vmem>>, vector<1x8x8xf32>
    %20 = vector.shape_cast %19 : vector<1x8x8xf32> to vector<8x8xf32>
    %cst_23 = arith.constant dense<0.000000e+00> : vector<8x128xf32>
    %21 = tpu.matmul %20, %18, %cst_23 {dimension_numbers = #tpu.dot_dimension_numbers<[1], [0], [0], [1], [0, 0, 1, 1], [], []>} : vector<8x8xf32>, vector<8x128xf32>, vector<8x128xf32> -> vector<8x128xf32>
    %22 = arith.addf %15, %21 : vector<8x128xf32>
    %c2 = arith.constant 2 : index
    %c0_24 = arith.constant 0 : index
    %c0_25 = arith.constant 0 : index
    %23 = vector.load %arg5[%c2, %c0_24, %c0_25] : memref<9x128x128xf32, #tpu.memory_space<vmem>>, vector<1x128x128xf32>
    %24 = vector.shape_cast %23 : vector<1x128x128xf32> to vector<128x128xf32>
    %cst_26 = arith.constant dense<0.000000e+00> : vector<8x128xf32>
    %25 = tpu.matmul %0, %24, %cst_26 {dimension_numbers = #tpu.dot_dimension_numbers<[1], [0], [0], [1], [0, 0, 1, 1], [], []>} : vector<8x128xf32>, vector<128x128xf32>, vector<8x128xf32> -> vector<8x128xf32>
    %c2_27 = arith.constant 2 : index
    %c0_28 = arith.constant 0 : index
    %c0_29 = arith.constant 0 : index
    %26 = vector.load %arg6[%c2_27, %c0_28, %c0_29] : memref<9x8x8xf32, #tpu.memory_space<vmem>>, vector<1x8x8xf32>
    %27 = vector.shape_cast %26 : vector<1x8x8xf32> to vector<8x8xf32>
    %cst_30 = arith.constant dense<0.000000e+00> : vector<8x128xf32>
    %28 = tpu.matmul %27, %25, %cst_30 {dimension_numbers = #tpu.dot_dimension_numbers<[1], [0], [0], [1], [0, 0, 1, 1], [], []>} : vector<8x8xf32>, vector<8x128xf32>, vector<8x128xf32> -> vector<8x128xf32>
    %29 = arith.addf %22, %28 : vector<8x128xf32>
    %c3 = arith.constant 3 : index
    %c0_31 = arith.constant 0 : index
    %c0_32 = arith.constant 0 : index
    %30 = vector.load %arg5[%c3, %c0_31, %c0_32] : memref<9x128x128xf32, #tpu.memory_space<vmem>>, vector<1x128x128xf32>
    %31 = vector.shape_cast %30 : vector<1x128x128xf32> to vector<128x128xf32>
    %cst_33 = arith.constant dense<0.000000e+00> : vector<8x128xf32>
    %32 = tpu.matmul %0, %31, %cst_33 {dimension_numbers = #tpu.dot_dimension_numbers<[1], [0], [0], [1], [0, 0, 1, 1], [], []>} : vector<8x128xf32>, vector<128x128xf32>, vector<8x128xf32> -> vector<8x128xf32>
    %c3_34 = arith.constant 3 : index
    %c0_35 = arith.constant 0 : index
    %c0_36 = arith.constant 0 : index
    %33 = vector.load %arg6[%c3_34, %c0_35, %c0_36] : memref<9x8x8xf32, #tpu.memory_space<vmem>>, vector<1x8x8xf32>
    %34 = vector.shape_cast %33 : vector<1x8x8xf32> to vector<8x8xf32>
    %cst_37 = arith.constant dense<0.000000e+00> : vector<8x128xf32>
    %35 = tpu.matmul %34, %32, %cst_37 {dimension_numbers = #tpu.dot_dimension_numbers<[1], [0], [0], [1], [0, 0, 1, 1], [], []>} : vector<8x8xf32>, vector<8x128xf32>, vector<8x128xf32> -> vector<8x128xf32>
    %36 = arith.addf %29, %35 : vector<8x128xf32>
    %c4 = arith.constant 4 : index
    %c0_38 = arith.constant 0 : index
    %c0_39 = arith.constant 0 : index
    %37 = vector.load %arg5[%c4, %c0_38, %c0_39] : memref<9x128x128xf32, #tpu.memory_space<vmem>>, vector<1x128x128xf32>
    %38 = vector.shape_cast %37 : vector<1x128x128xf32> to vector<128x128xf32>
    %cst_40 = arith.constant dense<0.000000e+00> : vector<8x128xf32>
    %39 = tpu.matmul %0, %38, %cst_40 {dimension_numbers = #tpu.dot_dimension_numbers<[1], [0], [0], [1], [0, 0, 1, 1], [], []>} : vector<8x128xf32>, vector<128x128xf32>, vector<8x128xf32> -> vector<8x128xf32>
    %c4_41 = arith.constant 4 : index
    %c0_42 = arith.constant 0 : index
    %c0_43 = arith.constant 0 : index
    %40 = vector.load %arg6[%c4_41, %c0_42, %c0_43] : memref<9x8x8xf32, #tpu.memory_space<vmem>>, vector<1x8x8xf32>
    %41 = vector.shape_cast %40 : vector<1x8x8xf32> to vector<8x8xf32>
    %cst_44 = arith.constant dense<0.000000e+00> : vector<8x128xf32>
    %42 = tpu.matmul %41, %39, %cst_44 {dimension_numbers = #tpu.dot_dimension_numbers<[1], [0], [0], [1], [0, 0, 1, 1], [], []>} : vector<8x8xf32>, vector<8x128xf32>, vector<8x128xf32> -> vector<8x128xf32>
    %43 = arith.addf %36, %42 : vector<8x128xf32>
    %c5 = arith.constant 5 : index
    %c0_45 = arith.constant 0 : index
    %c0_46 = arith.constant 0 : index
    %44 = vector.load %arg5[%c5, %c0_45, %c0_46] : memref<9x128x128xf32, #tpu.memory_space<vmem>>, vector<1x128x128xf32>
    %45 = vector.shape_cast %44 : vector<1x128x128xf32> to vector<128x128xf32>
    %cst_47 = arith.constant dense<0.000000e+00> : vector<8x128xf32>
    %46 = tpu.matmul %0, %45, %cst_47 {dimension_numbers = #tpu.dot_dimension_numbers<[1], [0], [0], [1], [0, 0, 1, 1], [], []>} : vector<8x128xf32>, vector<128x128xf32>, vector<8x128xf32> -> vector<8x128xf32>
    %c5_48 = arith.constant 5 : index
    %c0_49 = arith.constant 0 : index
    %c0_50 = arith.constant 0 : index
    %47 = vector.load %arg6[%c5_48, %c0_49, %c0_50] : memref<9x8x8xf32, #tpu.memory_space<vmem>>, vector<1x8x8xf32>
    %48 = vector.shape_cast %47 : vector<1x8x8xf32> to vector<8x8xf32>
    %cst_51 = arith.constant dense<0.000000e+00> : vector<8x128xf32>
    %49 = tpu.matmul %48, %46, %cst_51 {dimension_numbers = #tpu.dot_dimension_numbers<[1], [0], [0], [1], [0, 0, 1, 1], [], []>} : vector<8x8xf32>, vector<8x128xf32>, vector<8x128xf32> -> vector<8x128xf32>
    %50 = arith.addf %43, %49 : vector<8x128xf32>
    %c6 = arith.constant 6 : index
    %c0_52 = arith.constant 0 : index
    %c0_53 = arith.constant 0 : index
    %51 = vector.load %arg5[%c6, %c0_52, %c0_53] : memref<9x128x128xf32, #tpu.memory_space<vmem>>, vector<1x128x128xf32>
    %52 = vector.shape_cast %51 : vector<1x128x128xf32> to vector<128x128xf32>
    %cst_54 = arith.constant dense<0.000000e+00> : vector<8x128xf32>
    %53 = tpu.matmul %0, %52, %cst_54 {dimension_numbers = #tpu.dot_dimension_numbers<[1], [0], [0], [1], [0, 0, 1, 1], [], []>} : vector<8x128xf32>, vector<128x128xf32>, vector<8x128xf32> -> vector<8x128xf32>
    %c6_55 = arith.constant 6 : index
    %c0_56 = arith.constant 0 : index
    %c0_57 = arith.constant 0 : index
    %54 = vector.load %arg6[%c6_55, %c0_56, %c0_57] : memref<9x8x8xf32, #tpu.memory_space<vmem>>, vector<1x8x8xf32>
    %55 = vector.shape_cast %54 : vector<1x8x8xf32> to vector<8x8xf32>
    %cst_58 = arith.constant dense<0.000000e+00> : vector<8x128xf32>
    %56 = tpu.matmul %55, %53, %cst_58 {dimension_numbers = #tpu.dot_dimension_numbers<[1], [0], [0], [1], [0, 0, 1, 1], [], []>} : vector<8x8xf32>, vector<8x128xf32>, vector<8x128xf32> -> vector<8x128xf32>
    %57 = arith.addf %50, %56 : vector<8x128xf32>
    %c7 = arith.constant 7 : index
    %c0_59 = arith.constant 0 : index
    %c0_60 = arith.constant 0 : index
    %58 = vector.load %arg5[%c7, %c0_59, %c0_60] : memref<9x128x128xf32, #tpu.memory_space<vmem>>, vector<1x128x128xf32>
    %59 = vector.shape_cast %58 : vector<1x128x128xf32> to vector<128x128xf32>
    %cst_61 = arith.constant dense<0.000000e+00> : vector<8x128xf32>
    %60 = tpu.matmul %0, %59, %cst_61 {dimension_numbers = #tpu.dot_dimension_numbers<[1], [0], [0], [1], [0, 0, 1, 1], [], []>} : vector<8x128xf32>, vector<128x128xf32>, vector<8x128xf32> -> vector<8x128xf32>
    %c7_62 = arith.constant 7 : index
    %c0_63 = arith.constant 0 : index
    %c0_64 = arith.constant 0 : index
    %61 = vector.load %arg6[%c7_62, %c0_63, %c0_64] : memref<9x8x8xf32, #tpu.memory_space<vmem>>, vector<1x8x8xf32>
    %62 = vector.shape_cast %61 : vector<1x8x8xf32> to vector<8x8xf32>
    %cst_65 = arith.constant dense<0.000000e+00> : vector<8x128xf32>
    %63 = tpu.matmul %62, %60, %cst_65 {dimension_numbers = #tpu.dot_dimension_numbers<[1], [0], [0], [1], [0, 0, 1, 1], [], []>} : vector<8x8xf32>, vector<8x128xf32>, vector<8x128xf32> -> vector<8x128xf32>
    %64 = arith.addf %57, %63 : vector<8x128xf32>
    %c8 = arith.constant 8 : index
    %c0_66 = arith.constant 0 : index
    %c0_67 = arith.constant 0 : index
    %65 = vector.load %arg5[%c8, %c0_66, %c0_67] : memref<9x128x128xf32, #tpu.memory_space<vmem>>, vector<1x128x128xf32>
    %66 = vector.shape_cast %65 : vector<1x128x128xf32> to vector<128x128xf32>
    %cst_68 = arith.constant dense<0.000000e+00> : vector<8x128xf32>
    %67 = tpu.matmul %0, %66, %cst_68 {dimension_numbers = #tpu.dot_dimension_numbers<[1], [0], [0], [1], [0, 0, 1, 1], [], []>} : vector<8x128xf32>, vector<128x128xf32>, vector<8x128xf32> -> vector<8x128xf32>
    %c8_69 = arith.constant 8 : index
    %c0_70 = arith.constant 0 : index
    %c0_71 = arith.constant 0 : index
    %68 = vector.load %arg6[%c8_69, %c0_70, %c0_71] : memref<9x8x8xf32, #tpu.memory_space<vmem>>, vector<1x8x8xf32>
    %69 = vector.shape_cast %68 : vector<1x8x8xf32> to vector<8x8xf32>
    %cst_72 = arith.constant dense<0.000000e+00> : vector<8x128xf32>
    %70 = tpu.matmul %69, %67, %cst_72 {dimension_numbers = #tpu.dot_dimension_numbers<[1], [0], [0], [1], [0, 0, 1, 1], [], []>} : vector<8x8xf32>, vector<8x128xf32>, vector<8x128xf32> -> vector<8x128xf32>
    %71 = arith.addf %64, %70 : vector<8x128xf32>
    %cst_73 = arith.constant dense<0.000000e+00> : vector<8xf32>
    %72 = vector.multi_reduction <add>, %71, %cst_73 [1] : vector<8x128xf32> to vector<8xf32>
    %73 = vector.shape_cast %72 : vector<8xf32> to vector<8x1xf32>
    %cst_74 = arith.constant 1.280000e+02 : f32
    %74 = vector.broadcast %cst_74 : f32 to vector<8x1xf32>
    %75 = arith.divf %73, %74 : vector<8x1xf32>
    %76 = vector.broadcast %75 : vector<8x1xf32> to vector<8x128xf32>
    %77 = arith.subf %71, %76 : vector<8x128xf32>
    %78 = arith.mulf %77, %77 : vector<8x128xf32>
    %cst_75 = arith.constant dense<0.000000e+00> : vector<8xf32>
    %79 = vector.multi_reduction <add>, %78, %cst_75 [1] : vector<8x128xf32> to vector<8xf32>
    %80 = vector.shape_cast %79 : vector<8xf32> to vector<8x1xf32>
    %cst_76 = arith.constant 1.280000e+02 : f32
    %81 = vector.broadcast %cst_76 : f32 to vector<8x1xf32>
    %82 = arith.divf %80, %81 : vector<8x1xf32>
    %83 = vector.broadcast %75 : vector<8x1xf32> to vector<8x128xf32>
    %84 = arith.subf %71, %83 : vector<8x128xf32>
    %cst_77 = arith.constant 9.99999974E-6 : f32
    %85 = vector.broadcast %cst_77 : f32 to vector<8x1xf32>
    %86 = arith.addf %82, %85 : vector<8x1xf32>
    %87 = math.rsqrt %86 : vector<8x1xf32>
    %88 = vector.broadcast %87 : vector<8x1xf32> to vector<8x128xf32>
    %89 = arith.mulf %84, %88 : vector<8x128xf32>
    %c0_78 = arith.constant 0 : index
    %c0_79 = arith.constant 0 : index
    %90 = vector.load %arg7[%c0_78, %c0_79] : memref<8x1xf32, #tpu.memory_space<vmem>>, vector<8x1xf32>
    %91 = vector.broadcast %90 : vector<8x1xf32> to vector<8x128xf32>
    %92 = arith.mulf %89, %91 : vector<8x128xf32>
    %c0_80 = arith.constant 0 : index
    %c0_81 = arith.constant 0 : index
    %93 = vector.load %arg8[%c0_80, %c0_81] : memref<8x1xf32, #tpu.memory_space<vmem>>, vector<8x1xf32>
    %94 = vector.broadcast %93 : vector<8x1xf32> to vector<8x128xf32>
    %95 = arith.addf %92, %94 : vector<8x128xf32>
    %cst_82 = arith.constant 0.000000e+00 : f32
    %96 = vector.broadcast %cst_82 : f32 to vector<8x128xf32>
    %97 = arith.maximumf %95, %96 : vector<8x128xf32>
    %cst_83 = arith.constant 0.000000e+00 : f32
    %98 = vector.broadcast %cst_83 : f32 to vector<8x128xf32>
    %c0_84 = arith.constant 0 : index
    %c0_85 = arith.constant 0 : index
    %c0_86 = arith.constant 0 : index
    %99 = vector.load %arg9[%c0_84, %c0_85, %c0_86] : memref<9x128x128xf32, #tpu.memory_space<vmem>>, vector<1x128x128xf32>
    %100 = vector.shape_cast %99 : vector<1x128x128xf32> to vector<128x128xf32>
    %cst_87 = arith.constant dense<0.000000e+00> : vector<8x128xf32>
    %101 = tpu.matmul %97, %100, %cst_87 {dimension_numbers = #tpu.dot_dimension_numbers<[1], [0], [0], [1], [0, 0, 1, 1], [], []>} : vector<8x128xf32>, vector<128x128xf32>, vector<8x128xf32> -> vector<8x128xf32>
    %c0_88 = arith.constant 0 : index
    %c0_89 = arith.constant 0 : index
    %c0_90 = arith.constant 0 : index
    %102 = vector.load %arg10[%c0_88, %c0_89, %c0_90] : memref<9x8x8xf32, #tpu.memory_space<vmem>>, vector<1x8x8xf32>
    %103 = vector.shape_cast %102 : vector<1x8x8xf32> to vector<8x8xf32>
    %cst_91 = arith.constant dense<0.000000e+00> : vector<8x128xf32>
    %104 = tpu.matmul %103, %101, %cst_91 {dimension_numbers = #tpu.dot_dimension_numbers<[1], [0], [0], [1], [0, 0, 1, 1], [], []>} : vector<8x8xf32>, vector<8x128xf32>, vector<8x128xf32> -> vector<8x128xf32>
    %105 = arith.addf %98, %104 : vector<8x128xf32>
    %c1_92 = arith.constant 1 : index
    %c0_93 = arith.constant 0 : index
    %c0_94 = arith.constant 0 : index
    %106 = vector.load %arg9[%c1_92, %c0_93, %c0_94] : memref<9x128x128xf32, #tpu.memory_space<vmem>>, vector<1x128x128xf32>
    %107 = vector.shape_cast %106 : vector<1x128x128xf32> to vector<128x128xf32>
    %cst_95 = arith.constant dense<0.000000e+00> : vector<8x128xf32>
    %108 = tpu.matmul %97, %107, %cst_95 {dimension_numbers = #tpu.dot_dimension_numbers<[1], [0], [0], [1], [0, 0, 1, 1], [], []>} : vector<8x128xf32>, vector<128x128xf32>, vector<8x128xf32> -> vector<8x128xf32>
    %c1_96 = arith.constant 1 : index
    %c0_97 = arith.constant 0 : index
    %c0_98 = arith.constant 0 : index
    %109 = vector.load %arg10[%c1_96, %c0_97, %c0_98] : memref<9x8x8xf32, #tpu.memory_space<vmem>>, vector<1x8x8xf32>
    %110 = vector.shape_cast %109 : vector<1x8x8xf32> to vector<8x8xf32>
    %cst_99 = arith.constant dense<0.000000e+00> : vector<8x128xf32>
    %111 = tpu.matmul %110, %108, %cst_99 {dimension_numbers = #tpu.dot_dimension_numbers<[1], [0], [0], [1], [0, 0, 1, 1], [], []>} : vector<8x8xf32>, vector<8x128xf32>, vector<8x128xf32> -> vector<8x128xf32>
    %112 = arith.addf %105, %111 : vector<8x128xf32>
    %c2_100 = arith.constant 2 : index
    %c0_101 = arith.constant 0 : index
    %c0_102 = arith.constant 0 : index
    %113 = vector.load %arg9[%c2_100, %c0_101, %c0_102] : memref<9x128x128xf32, #tpu.memory_space<vmem>>, vector<1x128x128xf32>
    %114 = vector.shape_cast %113 : vector<1x128x128xf32> to vector<128x128xf32>
    %cst_103 = arith.constant dense<0.000000e+00> : vector<8x128xf32>
    %115 = tpu.matmul %97, %114, %cst_103 {dimension_numbers = #tpu.dot_dimension_numbers<[1], [0], [0], [1], [0, 0, 1, 1], [], []>} : vector<8x128xf32>, vector<128x128xf32>, vector<8x128xf32> -> vector<8x128xf32>
    %c2_104 = arith.constant 2 : index
    %c0_105 = arith.constant 0 : index
    %c0_106 = arith.constant 0 : index
    %116 = vector.load %arg10[%c2_104, %c0_105, %c0_106] : memref<9x8x8xf32, #tpu.memory_space<vmem>>, vector<1x8x8xf32>
    %117 = vector.shape_cast %116 : vector<1x8x8xf32> to vector<8x8xf32>
    %cst_107 = arith.constant dense<0.000000e+00> : vector<8x128xf32>
    %118 = tpu.matmul %117, %115, %cst_107 {dimension_numbers = #tpu.dot_dimension_numbers<[1], [0], [0], [1], [0, 0, 1, 1], [], []>} : vector<8x8xf32>, vector<8x128xf32>, vector<8x128xf32> -> vector<8x128xf32>
    %119 = arith.addf %112, %118 : vector<8x128xf32>
    %c3_108 = arith.constant 3 : index
    %c0_109 = arith.constant 0 : index
    %c0_110 = arith.constant 0 : index
    %120 = vector.load %arg9[%c3_108, %c0_109, %c0_110] : memref<9x128x128xf32, #tpu.memory_space<vmem>>, vector<1x128x128xf32>
    %121 = vector.shape_cast %120 : vector<1x128x128xf32> to vector<128x128xf32>
    %cst_111 = arith.constant dense<0.000000e+00> : vector<8x128xf32>
    %122 = tpu.matmul %97, %121, %cst_111 {dimension_numbers = #tpu.dot_dimension_numbers<[1], [0], [0], [1], [0, 0, 1, 1], [], []>} : vector<8x128xf32>, vector<128x128xf32>, vector<8x128xf32> -> vector<8x128xf32>
    %c3_112 = arith.constant 3 : index
    %c0_113 = arith.constant 0 : index
    %c0_114 = arith.constant 0 : index
    %123 = vector.load %arg10[%c3_112, %c0_113, %c0_114] : memref<9x8x8xf32, #tpu.memory_space<vmem>>, vector<1x8x8xf32>
    %124 = vector.shape_cast %123 : vector<1x8x8xf32> to vector<8x8xf32>
    %cst_115 = arith.constant dense<0.000000e+00> : vector<8x128xf32>
    %125 = tpu.matmul %124, %122, %cst_115 {dimension_numbers = #tpu.dot_dimension_numbers<[1], [0], [0], [1], [0, 0, 1, 1], [], []>} : vector<8x8xf32>, vector<8x128xf32>, vector<8x128xf32> -> vector<8x128xf32>
    %126 = arith.addf %119, %125 : vector<8x128xf32>
    %c4_116 = arith.constant 4 : index
    %c0_117 = arith.constant 0 : index
    %c0_118 = arith.constant 0 : index
    %127 = vector.load %arg9[%c4_116, %c0_117, %c0_118] : memref<9x128x128xf32, #tpu.memory_space<vmem>>, vector<1x128x128xf32>
    %128 = vector.shape_cast %127 : vector<1x128x128xf32> to vector<128x128xf32>
    %cst_119 = arith.constant dense<0.000000e+00> : vector<8x128xf32>
    %129 = tpu.matmul %97, %128, %cst_119 {dimension_numbers = #tpu.dot_dimension_numbers<[1], [0], [0], [1], [0, 0, 1, 1], [], []>} : vector<8x128xf32>, vector<128x128xf32>, vector<8x128xf32> -> vector<8x128xf32>
    %c4_120 = arith.constant 4 : index
    %c0_121 = arith.constant 0 : index
    %c0_122 = arith.constant 0 : index
    %130 = vector.load %arg10[%c4_120, %c0_121, %c0_122] : memref<9x8x8xf32, #tpu.memory_space<vmem>>, vector<1x8x8xf32>
    %131 = vector.shape_cast %130 : vector<1x8x8xf32> to vector<8x8xf32>
    %cst_123 = arith.constant dense<0.000000e+00> : vector<8x128xf32>
    %132 = tpu.matmul %131, %129, %cst_123 {dimension_numbers = #tpu.dot_dimension_numbers<[1], [0], [0], [1], [0, 0, 1, 1], [], []>} : vector<8x8xf32>, vector<8x128xf32>, vector<8x128xf32> -> vector<8x128xf32>
    %133 = arith.addf %126, %132 : vector<8x128xf32>
    %c5_124 = arith.constant 5 : index
    %c0_125 = arith.constant 0 : index
    %c0_126 = arith.constant 0 : index
    %134 = vector.load %arg9[%c5_124, %c0_125, %c0_126] : memref<9x128x128xf32, #tpu.memory_space<vmem>>, vector<1x128x128xf32>
    %135 = vector.shape_cast %134 : vector<1x128x128xf32> to vector<128x128xf32>
    %cst_127 = arith.constant dense<0.000000e+00> : vector<8x128xf32>
    %136 = tpu.matmul %97, %135, %cst_127 {dimension_numbers = #tpu.dot_dimension_numbers<[1], [0], [0], [1], [0, 0, 1, 1], [], []>} : vector<8x128xf32>, vector<128x128xf32>, vector<8x128xf32> -> vector<8x128xf32>
    %c5_128 = arith.constant 5 : index
    %c0_129 = arith.constant 0 : index
    %c0_130 = arith.constant 0 : index
    %137 = vector.load %arg10[%c5_128, %c0_129, %c0_130] : memref<9x8x8xf32, #tpu.memory_space<vmem>>, vector<1x8x8xf32>
    %138 = vector.shape_cast %137 : vector<1x8x8xf32> to vector<8x8xf32>
    %cst_131 = arith.constant dense<0.000000e+00> : vector<8x128xf32>
    %139 = tpu.matmul %138, %136, %cst_131 {dimension_numbers = #tpu.dot_dimension_numbers<[1], [0], [0], [1], [0, 0, 1, 1], [], []>} : vector<8x8xf32>, vector<8x128xf32>, vector<8x128xf32> -> vector<8x128xf32>
    %140 = arith.addf %133, %139 : vector<8x128xf32>
    %c6_132 = arith.constant 6 : index
    %c0_133 = arith.constant 0 : index
    %c0_134 = arith.constant 0 : index
    %141 = vector.load %arg9[%c6_132, %c0_133, %c0_134] : memref<9x128x128xf32, #tpu.memory_space<vmem>>, vector<1x128x128xf32>
    %142 = vector.shape_cast %141 : vector<1x128x128xf32> to vector<128x128xf32>
    %cst_135 = arith.constant dense<0.000000e+00> : vector<8x128xf32>
    %143 = tpu.matmul %97, %142, %cst_135 {dimension_numbers = #tpu.dot_dimension_numbers<[1], [0], [0], [1], [0, 0, 1, 1], [], []>} : vector<8x128xf32>, vector<128x128xf32>, vector<8x128xf32> -> vector<8x128xf32>
    %c6_136 = arith.constant 6 : index
    %c0_137 = arith.constant 0 : index
    %c0_138 = arith.constant 0 : index
    %144 = vector.load %arg10[%c6_136, %c0_137, %c0_138] : memref<9x8x8xf32, #tpu.memory_space<vmem>>, vector<1x8x8xf32>
    %145 = vector.shape_cast %144 : vector<1x8x8xf32> to vector<8x8xf32>
    %cst_139 = arith.constant dense<0.000000e+00> : vector<8x128xf32>
    %146 = tpu.matmul %145, %143, %cst_139 {dimension_numbers = #tpu.dot_dimension_numbers<[1], [0], [0], [1], [0, 0, 1, 1], [], []>} : vector<8x8xf32>, vector<8x128xf32>, vector<8x128xf32> -> vector<8x128xf32>
    %147 = arith.addf %140, %146 : vector<8x128xf32>
    %c7_140 = arith.constant 7 : index
    %c0_141 = arith.constant 0 : index
    %c0_142 = arith.constant 0 : index
    %148 = vector.load %arg9[%c7_140, %c0_141, %c0_142] : memref<9x128x128xf32, #tpu.memory_space<vmem>>, vector<1x128x128xf32>
    %149 = vector.shape_cast %148 : vector<1x128x128xf32> to vector<128x128xf32>
    %cst_143 = arith.constant dense<0.000000e+00> : vector<8x128xf32>
    %150 = tpu.matmul %97, %149, %cst_143 {dimension_numbers = #tpu.dot_dimension_numbers<[1], [0], [0], [1], [0, 0, 1, 1], [], []>} : vector<8x128xf32>, vector<128x128xf32>, vector<8x128xf32> -> vector<8x128xf32>
    %c7_144 = arith.constant 7 : index
    %c0_145 = arith.constant 0 : index
    %c0_146 = arith.constant 0 : index
    %151 = vector.load %arg10[%c7_144, %c0_145, %c0_146] : memref<9x8x8xf32, #tpu.memory_space<vmem>>, vector<1x8x8xf32>
    %152 = vector.shape_cast %151 : vector<1x8x8xf32> to vector<8x8xf32>
    %cst_147 = arith.constant dense<0.000000e+00> : vector<8x128xf32>
    %153 = tpu.matmul %152, %150, %cst_147 {dimension_numbers = #tpu.dot_dimension_numbers<[1], [0], [0], [1], [0, 0, 1, 1], [], []>} : vector<8x8xf32>, vector<8x128xf32>, vector<8x128xf32> -> vector<8x128xf32>
    %154 = arith.addf %147, %153 : vector<8x128xf32>
    %c8_148 = arith.constant 8 : index
    %c0_149 = arith.constant 0 : index
    %c0_150 = arith.constant 0 : index
    %155 = vector.load %arg9[%c8_148, %c0_149, %c0_150] : memref<9x128x128xf32, #tpu.memory_space<vmem>>, vector<1x128x128xf32>
    %156 = vector.shape_cast %155 : vector<1x128x128xf32> to vector<128x128xf32>
    %cst_151 = arith.constant dense<0.000000e+00> : vector<8x128xf32>
    %157 = tpu.matmul %97, %156, %cst_151 {dimension_numbers = #tpu.dot_dimension_numbers<[1], [0], [0], [1], [0, 0, 1, 1], [], []>} : vector<8x128xf32>, vector<128x128xf32>, vector<8x128xf32> -> vector<8x128xf32>
    %c8_152 = arith.constant 8 : index
    %c0_153 = arith.constant 0 : index
    %c0_154 = arith.constant 0 : index
    %158 = vector.load %arg10[%c8_152, %c0_153, %c0_154] : memref<9x8x8xf32, #tpu.memory_space<vmem>>, vector<1x8x8xf32>
    %159 = vector.shape_cast %158 : vector<1x8x8xf32> to vector<8x8xf32>
    %cst_155 = arith.constant dense<0.000000e+00> : vector<8x128xf32>
    %160 = tpu.matmul %159, %157, %cst_155 {dimension_numbers = #tpu.dot_dimension_numbers<[1], [0], [0], [1], [0, 0, 1, 1], [], []>} : vector<8x8xf32>, vector<8x128xf32>, vector<8x128xf32> -> vector<8x128xf32>
    %161 = arith.addf %154, %160 : vector<8x128xf32>
    %cst_156 = arith.constant dense<0.000000e+00> : vector<8xf32>
    %162 = vector.multi_reduction <add>, %161, %cst_156 [1] : vector<8x128xf32> to vector<8xf32>
    %163 = vector.shape_cast %162 : vector<8xf32> to vector<8x1xf32>
    %cst_157 = arith.constant 1.280000e+02 : f32
    %164 = vector.broadcast %cst_157 : f32 to vector<8x1xf32>
    %165 = arith.divf %163, %164 : vector<8x1xf32>
    %166 = vector.broadcast %165 : vector<8x1xf32> to vector<8x128xf32>
    %167 = arith.subf %161, %166 : vector<8x128xf32>
    %168 = arith.mulf %167, %167 : vector<8x128xf32>
    %cst_158 = arith.constant dense<0.000000e+00> : vector<8xf32>
    %169 = vector.multi_reduction <add>, %168, %cst_158 [1] : vector<8x128xf32> to vector<8xf32>
    %170 = vector.shape_cast %169 : vector<8xf32> to vector<8x1xf32>
    %cst_159 = arith.constant 1.280000e+02 : f32
    %171 = vector.broadcast %cst_159 : f32 to vector<8x1xf32>
    %172 = arith.divf %170, %171 : vector<8x1xf32>
    %173 = vector.broadcast %165 : vector<8x1xf32> to vector<8x128xf32>
    %174 = arith.subf %161, %173 : vector<8x128xf32>
    %cst_160 = arith.constant 9.99999974E-6 : f32
    %175 = vector.broadcast %cst_160 : f32 to vector<8x1xf32>
    %176 = arith.addf %172, %175 : vector<8x1xf32>
    %177 = math.rsqrt %176 : vector<8x1xf32>
    %178 = vector.broadcast %177 : vector<8x1xf32> to vector<8x128xf32>
    %179 = arith.mulf %174, %178 : vector<8x128xf32>
    %c0_161 = arith.constant 0 : index
    %c0_162 = arith.constant 0 : index
    %180 = vector.load %arg11[%c0_161, %c0_162] : memref<8x1xf32, #tpu.memory_space<vmem>>, vector<8x1xf32>
    %181 = vector.broadcast %180 : vector<8x1xf32> to vector<8x128xf32>
    %182 = arith.mulf %179, %181 : vector<8x128xf32>
    %c0_163 = arith.constant 0 : index
    %c0_164 = arith.constant 0 : index
    %183 = vector.load %arg12[%c0_163, %c0_164] : memref<8x1xf32, #tpu.memory_space<vmem>>, vector<8x1xf32>
    %184 = vector.broadcast %183 : vector<8x1xf32> to vector<8x128xf32>
    %185 = arith.addf %182, %184 : vector<8x128xf32>
    %186 = arith.addf %185, %7 : vector<8x128xf32>
    %cst_165 = arith.constant 0.000000e+00 : f32
    %187 = vector.broadcast %cst_165 : f32 to vector<8x128xf32>
    %188 = arith.maximumf %186, %187 : vector<8x128xf32>
    %c0_166 = arith.constant 0 : index
    %c0_167 = arith.constant 0 : index
    %189 = vector.load %arg13[%c0_166, %c0_167] : memref<8x128xf32, #tpu.memory_space<vmem>>, vector<8x128xf32>
    tpu.vector_store %arg13[%c0_166, %c0_167], %188 {strides = array<i32>} : memref<8x128xf32, #tpu.memory_space<vmem>>, vector<8x128xf32>,
    return
  }
  func.func @transform_0(%arg0: i32) -> (i32, i32) {
    %c0_i32 = arith.constant 0 : i32
    %c0_i32_0 = arith.constant 0 : i32
    %c0_i32_1 = arith.constant 0 : i32
    return %c0_i32, %c0_i32_0 : i32, i32
  }
  func.func @transform_1(%arg0: i32) -> (i32, i32) {
    %c0_i32 = arith.constant 0 : i32
    %c0_i32_0 = arith.constant 0 : i32
    %c0_i32_1 = arith.constant 0 : i32
    return %c0_i32, %c0_i32_0 : i32, i32
  }
  func.func @transform_2(%arg0: i32) -> (i32, i32) {
    %c0_i32 = arith.constant 0 : i32
    %c0_i32_0 = arith.constant 0 : i32
    %c0_i32_1 = arith.constant 0 : i32
    return %c0_i32, %c0_i32_0 : i32, i32
  }
  func.func @transform_3(%arg0: i32) -> (i32, i32) {
    %c0_i32 = arith.constant 0 : i32
    %c0_i32_0 = arith.constant 0 : i32
    %c0_i32_1 = arith.constant 0 : i32
    return %c0_i32, %c0_i32_0 : i32, i32
  }
  func.func @transform_4(%arg0: i32) -> (i32, i32, i32) {
    %c0_i32 = arith.constant 0 : i32
    %c0_i32_0 = arith.constant 0 : i32
    %c0_i32_1 = arith.constant 0 : i32
    %c0_i32_2 = arith.constant 0 : i32
    return %c0_i32, %c0_i32_0, %c0_i32_1 : i32, i32, i32
  }
  func.func @transform_5(%arg0: i32) -> (i32, i32, i32) {
    %c0_i32 = arith.constant 0 : i32
    %c0_i32_0 = arith.constant 0 : i32
    %c0_i32_1 = arith.constant 0 : i32
    %c0_i32_2 = arith.constant 0 : i32
    return %c0_i32, %c0_i32_0, %c0_i32_1 : i32, i32, i32
  }
  func.func @transform_6(%arg0: i32) -> (i32, i32) {
    %c0_i32 = arith.constant 0 : i32
    %c0_i32_0 = arith.constant 0 : i32
    %c0_i32_1 = arith.constant 0 : i32
    return %c0_i32, %c0_i32_0 : i32, i32
  }
  func.func @transform_7(%arg0: i32) -> (i32, i32) {
    %c0_i32 = arith.constant 0 : i32
    %c0_i32_0 = arith.constant 0 : i32
    %c0_i32_1 = arith.constant 0 : i32
    return %c0_i32, %c0_i32_0 : i32, i32
  }
  func.func @transform_8(%arg0: i32) -> (i32, i32, i32) {
    %c0_i32 = arith.constant 0 : i32
    %c0_i32_0 = arith.constant 0 : i32
    %c0_i32_1 = arith.constant 0 : i32
    %c0_i32_2 = arith.constant 0 : i32
    return %c0_i32, %c0_i32_0, %c0_i32_1 : i32, i32, i32
  }
  func.func @transform_9(%arg0: i32) -> (i32, i32, i32) {
    %c0_i32 = arith.constant 0 : i32
    %c0_i32_0 = arith.constant 0 : i32
    %c0_i32_1 = arith.constant 0 : i32
    %c0_i32_2 = arith.constant 0 : i32
    return %c0_i32, %c0_i32_0, %c0_i32_1 : i32, i32, i32
  }
  func.func @transform_10(%arg0: i32) -> (i32, i32) {
    %c0_i32 = arith.constant 0 : i32
    %c0_i32_0 = arith.constant 0 : i32
    %c0_i32_1 = arith.constant 0 : i32
    return %c0_i32, %c0_i32_0 : i32, i32
  }
  func.func @transform_11(%arg0: i32) -> (i32, i32) {
    %c0_i32 = arith.constant 0 : i32
    %c0_i32_0 = arith.constant 0 : i32
    %c0_i32_1 = arith.constant 0 : i32
    return %c0_i32, %c0_i32_0 : i32, i32
  }
  func.func @transform_12(%arg0: i32) -> (i32, i32) {
    %c0_i32 = arith.constant 0 : i32
    %c0_i32_0 = arith.constant 0 : i32
    %c0_i32_1 = arith.constant 0 : i32
    return %c0_i32, %c0_i32_0 : i32, i32
  }
}

</mosaic_0001>

<llo_original>
// kernel: layer_fwd.5
$region0: #{layer_fwd.5}
  #allocation0 [shape = 'u32[]', space=smem, size = 0x4, offset = 0x4, fixed_abs, tag = 'smem constant byte address 0x4 - core index']
  #allocation1 [shape = 'u32[144,128]{1,0:T(1,128)}', space=vmem, size = 0x12000, scoped, tag = 'internal scratch']
  %s0 = inlined_call_operand.hbm [shape: f32[4,512], index: 0, kind: input, shape index: {}]
  %s1 = inlined_call_operand.hbm [shape: f32[512,128], index: 1, kind: input, shape index: {}]
  %s2 = inlined_call_operand.hbm [shape: f32[8,4], index: 2, kind: input, shape index: {}]
  %s3 = inlined_call_operand.hbm [shape: f32[8,1], index: 3, kind: input, shape index: {}]
  %s4 = inlined_call_operand.hbm [shape: f32[9,512,128], index: 4, kind: input, shape index: {}]
  %s5 = inlined_call_operand.hbm [shape: f32[9,8,4], index: 5, kind: input, shape index: {}]
  %s6 = inlined_call_operand.hbm [shape: f32[8,1], index: 6, kind: input, shape index: {}]
  %s7 = inlined_call_operand.hbm [shape: f32[8,1], index: 7, kind: input, shape index: {}]
  %s8 = inlined_call_operand.hbm [shape: f32[9,128,128], index: 8, kind: input, shape index: {}]
  %s9 = inlined_call_operand.hbm [shape: f32[9,8,8], index: 9, kind: input, shape index: {}]
  %s10 = inlined_call_operand.hbm [shape: f32[8,1], index: 10, kind: input, shape index: {}]
  %s11 = inlined_call_operand.hbm [shape: f32[8,1], index: 11, kind: input, shape index: {}]
  %s12 = inlined_call_operand.hbm [shape: f32[8,128], index: 12, kind: output, shape index: {}]
  %s13 = sld [smem:[#allocation0]]
  $region106: #{layer_fwd.5} parent=0
    _
  %s15 = ssub.s32 1, %s13
  %s16 = scalar_select 0, %s15, %s13
  $region1: #{layer_fwd.5} parent=0
    #allocation2 [shape = 'u8[8192]{0}', space=vmem, size = 0x2000, scoped, tag = 'input window, operand 0, single buffered']
    #allocation3 [shape = 's32[1]{0}', space=sflag, size = 0x4, scoped, tag = 'scoped memory for layer_fwd.5']
    #allocation4 [shape = 's32[1]{0}', space=sflag, size = 0x4, scoped, tag = 'scoped memory for layer_fwd.5']
    #allocation5 [shape = 'u8[262144]{0}', space=vmem, size = 0x40000, scoped, tag = 'input window, operand 1, single buffered']
    #allocation6 [shape = 's32[1]{0}', space=sflag, size = 0x4, scoped, tag = 'scoped memory for layer_fwd.5']
    #allocation7 [shape = 'u8[4096]{0}', space=vmem, size = 0x1000, scoped, tag = 'input window, operand 2, single buffered']
    #allocation8 [shape = 'u8[4096]{0}', space=vmem, size = 0x1000, scoped, tag = 'input window, operand 3, single buffered']
    #allocation9 [shape = 's32[1]{0}', space=sflag, size = 0x4, scoped, tag = 'scoped memory for layer_fwd.5']
    #allocation10 [shape = 'u8[2359296]{0}', space=vmem, size = 0x240000, scoped, tag = 'input window, operand 4, single buffered']
    #allocation11 [shape = 'u8[36864]{0}', space=vmem, size = 0x9000, scoped, tag = 'input window, operand 5, single buffered']
    #allocation12 [shape = 's32[1]{0}', space=sflag, size = 0x4, scoped, tag = 'scoped memory for layer_fwd.5']
    #allocation13 [shape = 'u8[4096]{0}', space=vmem, size = 0x1000, scoped, tag = 'input window, operand 6, single buffered']
    #allocation14 [shape = 'u8[4096]{0}', space=vmem, size = 0x1000, scoped, tag = 'input window, operand 7, single buffered']
    #allocation15 [shape = 's32[1]{0}', space=sflag, size = 0x4, scoped, tag = 'scoped memory for layer_fwd.5']
    #allocation16 [shape = 'u8[589824]{0}', space=vmem, size = 0x90000, scoped, tag = 'input window, operand 8, single buffered']
    #allocation17 [shape = 'u8[36864]{0}', space=vmem, size = 0x9000, scoped, tag = 'input window, operand 9, single buffered']
    #allocation18 [shape = 's32[1]{0}', space=sflag, size = 0x4, scoped, tag = 'scoped memory for layer_fwd.5']
    #allocation19 [shape = 'u8[4096]{0}', space=vmem, size = 0x1000, scoped, tag = 'input window, operand 10, single buffered']
    #allocation20 [shape = 'u8[4096]{0}', space=vmem, size = 0x1000, scoped, tag = 'input window, operand 11, single buffered']
    #allocation21 [shape = 's32[1]{0}', space=sflag, size = 0x4, scoped, tag = 'scoped memory for layer_fwd.5']
    #allocation22 [shape = 'u8[4096]{0}', space=vmem, size = 0x1000, scoped, tag = 'output window, operand 0, single buffered']
    %17 = vsyncpa [#allocation3], 0
    %18 = vsyncpa [#allocation6], 0
    %19 = vsyncpa [#allocation9], 0
    %20 = vsyncpa [#allocation12], 0
    %21 = vsyncpa [#allocation15], 0
    %22 = vsyncpa [#allocation18], 0
    %23 = vsyncpa [#allocation21], 0
    %24 = vsyncpa [#allocation4], 0
    // Predicated region
    $region2: #{layer_fwd.5} parent=1 // pred_check
      _
    $region3: #{layer_fwd.5} parent=1 // pred_check_branch
      %26 = sbr.rel (0) target = $region5
    $region4: #{layer_fwd.5} parent=1 // pred_region
      %s28 = ssub.s32 256, 256
      %29 = vsyncadd [#allocation3], %s28
      %s31 = sshll.u32 [#allocation2], 4
      %s32 = int_to_ptr.vmem [resolvable:$true] %s31
      %34 = dma.hbm_to_vmem [thread:$0]  %s0, 256, %s32, [#allocation3]
    $region5: #{layer_fwd.5} parent=1 // pred_fallthru
      _
    // Predicated region
    $region6: #{layer_fwd.5} parent=1 // pred_check
      _
    $region7: #{layer_fwd.5} parent=1 // pred_check_branch
      %36 = sbr.rel (0) target = $region9
    $region8: #{layer_fwd.5} parent=1 // pred_region
      %s38 = ssub.s32 8192, 8192
      %39 = vsyncadd [#allocation6], %s38
      %s40 = sshll.u32 [#allocation5], 4
      %s41 = int_to_ptr.vmem [resolvable:$true] %s40
      %46 = dma.hbm_to_vmem [thread:$0]  %s1, 8192, %s41, [#allocation6], 128, 128, 8
    $region9: #{layer_fwd.5} parent=1 // pred_fallthru
      _
    // Predicated region
    $region10: #{layer_fwd.5} parent=1 // pred_check
      _
    $region11: #{layer_fwd.5} parent=1 // pred_check_branch
      %48 = sbr.rel (0) target = $region13
    $region12: #{layer_fwd.5} parent=1 // pred_region
      %s50 = ssub.s32 128, 128
      %51 = vsyncadd [#allocation6], %s50
      %s53 = sshll.u32 [#allocation7], 4
      %s54 = int_to_ptr.vmem [resolvable:$true] %s53
      %56 = dma.hbm_to_vmem [thread:$0]  %s2, 128, %s54, [#allocation6]
    $region13: #{layer_fwd.5} parent=1 // pred_fallthru
      _
    // Predicated region
    $region14: #{layer_fwd.5} parent=1 // pred_check
      _
    $region15: #{layer_fwd.5} parent=1 // pred_check_branch
      %58 = sbr.rel (0) target = $region17
    $region16: #{layer_fwd.5} parent=1 // pred_region
      %s60 = ssub.s32 128, 128
      %61 = vsyncadd [#allocation9], %s60
      %s63 = sshll.u32 [#allocation8], 4
      %s64 = int_to_ptr.vmem [resolvable:$true] %s63
      %66 = dma.hbm_to_vmem [thread:$0]  %s3, 128, %s64, [#allocation9]
    $region17: #{layer_fwd.5} parent=1 // pred_fallthru
      _
    // Predicated region
    $region18: #{layer_fwd.5} parent=1 // pred_check
      _
    $region19: #{layer_fwd.5} parent=1 // pred_check_branch
      %68 = sbr.rel (0) target = $region21
    $region20: #{layer_fwd.5} parent=1 // pred_region
      %s70 = ssub.s32 73728, 73728
      %71 = vsyncadd [#allocation9], %s70
      %s72 = sshll.u32 [#allocation10], 4
      %s73 = int_to_ptr.vmem [resolvable:$true] %s72
      %78 = dma.hbm_to_vmem [thread:$0]  %s4, 73728, %s73, [#allocation9], 128, 128, 8
    $region21: #{layer_fwd.5} parent=1 // pred_fallthru
      _
    // Predicated region
    $region22: #{layer_fwd.5} parent=1 // pred_check
      _
    $region23: #{layer_fwd.5} parent=1 // pred_check_branch
      %80 = sbr.rel (0) target = $region25
    $region24: #{layer_fwd.5} parent=1 // pred_region
      %s82 = ssub.s32 1152, 1152
      %83 = vsyncadd [#allocation12], %s82
      %s84 = sshll.u32 [#allocation11], 4
      %s85 = int_to_ptr.vmem [resolvable:$true] %s84
      %90 = dma.hbm_to_vmem [thread:$0]  %s5, 1152, %s85, [#allocation12], 128, 128, 8
    $region25: #{layer_fwd.5} parent=1 // pred_fallthru
      _
    // Predicated region
    $region26: #{layer_fwd.5} parent=1 // pred_check
      _
    $region27: #{layer_fwd.5} parent=1 // pred_check_branch
      %92 = sbr.rel (0) target = $region29
    $region28: #{layer_fwd.5} parent=1 // pred_region
      %s94 = ssub.s32 128, 128
      %95 = vsyncadd [#allocation12], %s94
      %s97 = sshll.u32 [#allocation13], 4
      %s98 = int_to_ptr.vmem [resolvable:$true] %s97
      %100 = dma.hbm_to_vmem [thread:$0]  %s6, 128, %s98, [#allocation12]
    $region29: #{layer_fwd.5} parent=1 // pred_fallthru
      _
    // Predicated region
    $region30: #{layer_fwd.5} parent=1 // pred_check
      _
    $region31: #{layer_fwd.5} parent=1 // pred_check_branch
      %102 = sbr.rel (0) target = $region33
    $region32: #{layer_fwd.5} parent=1 // pred_region
      %s104 = ssub.s32 128, 128
      %105 = vsyncadd [#allocation15], %s104
      %s107 = sshll.u32 [#allocation14], 4
      %s108 = int_to_ptr.vmem [resolvable:$true] %s107
      %110 = dma.hbm_to_vmem [thread:$0]  %s7, 128, %s108, [#allocation15]
    $region33: #{layer_fwd.5} parent=1 // pred_fallthru
      _
    // Predicated region
    $region34: #{layer_fwd.5} parent=1 // pred_check
      _
    $region35: #{layer_fwd.5} parent=1 // pred_check_branch
      %112 = sbr.rel (0) target = $region37
    $region36: #{layer_fwd.5} parent=1 // pred_region
      %s114 = ssub.s32 18432, 18432
      %115 = vsyncadd [#allocation15], %s114
      %s116 = sshll.u32 [#allocation16], 4
      %s117 = int_to_ptr.vmem [resolvable:$true] %s116
      %122 = dma.hbm_to_vmem [thread:$0]  %s8, 18432, %s117, [#allocation15], 128, 128, 8
    $region37: #{layer_fwd.5} parent=1 // pred_fallthru
      _
    // Predicated region
    $region38: #{layer_fwd.5} parent=1 // pred_check
      _
    $region39: #{layer_fwd.5} parent=1 // pred_check_branch
      %124 = sbr.rel (0) target = $region41
    $region40: #{layer_fwd.5} parent=1 // pred_region
      %s126 = ssub.s32 1152, 1152
      %127 = vsyncadd [#allocation18], %s126
      %s128 = sshll.u32 [#allocation17], 4
      %s129 = int_to_ptr.vmem [resolvable:$true] %s128
      %134 = dma.hbm_to_vmem [thread:$0]  %s9, 1152, %s129, [#allocation18], 128, 128, 8
    $region41: #{layer_fwd.5} parent=1 // pred_fallthru
      _
    // Predicated region
    $region42: #{layer_fwd.5} parent=1 // pred_check
      _
    $region43: #{layer_fwd.5} parent=1 // pred_check_branch
      %136 = sbr.rel (0) target = $region45
    $region44: #{layer_fwd.5} parent=1 // pred_region
      %s138 = ssub.s32 128, 128
      %139 = vsyncadd [#allocation18], %s138
      %s141 = sshll.u32 [#allocation19], 4
      %s142 = int_to_ptr.vmem [resolvable:$true] %s141
      %144 = dma.hbm_to_vmem [thread:$0]  %s10, 128, %s142, [#allocation18]
    $region45: #{layer_fwd.5} parent=1 // pred_fallthru
      _
    // Predicated region
    $region46: #{layer_fwd.5} parent=1 // pred_check
      _
    $region47: #{layer_fwd.5} parent=1 // pred_check_branch
      %146 = sbr.rel (0) target = $region49
    $region48: #{layer_fwd.5} parent=1 // pred_region
      %s148 = ssub.s32 128, 128
      %149 = vsyncadd [#allocation21], %s148
      %s151 = sshll.u32 [#allocation20], 4
      %s152 = int_to_ptr.vmem [resolvable:$true] %s151
      %154 = dma.hbm_to_vmem [thread:$0]  %s11, 128, %s152, [#allocation21]
    $region49: #{layer_fwd.5} parent=1 // pred_fallthru
      _
    // Predicated region
    $region50: #{layer_fwd.5} parent=1 // pred_check
      _
    $region51: #{layer_fwd.5} parent=1 // pred_check_branch
      %156 = sbr.rel (0) target = $region53
    $region52: #{layer_fwd.5} parent=1 // pred_region
      %157 = dma.done [#allocation3], 256
    $region53: #{layer_fwd.5} parent=1 // pred_fallthru
      _
    // Predicated region
    $region54: #{layer_fwd.5} parent=1 // pred_check
      _
    $region55: #{layer_fwd.5} parent=1 // pred_check_branch
      %159 = sbr.rel (0) target = $region57
    $region56: #{layer_fwd.5} parent=1 // pred_region
      %160 = dma.done [#allocation6], 8192
    $region57: #{layer_fwd.5} parent=1 // pred_fallthru
      _
    // Predicated region
    $region58: #{layer_fwd.5} parent=1 // pred_check
      _
    $region59: #{layer_fwd.5} parent=1 // pred_check_branch
      %162 = sbr.rel (0) target = $region61
    $region60: #{layer_fwd.5} parent=1 // pred_region
      %163 = dma.done [#allocation6], 128
    $region61: #{layer_fwd.5} parent=1 // pred_fallthru
      _
    // Predicated region
    $region62: #{layer_fwd.5} parent=1 // pred_check
      _
    $region63: #{layer_fwd.5} parent=1 // pred_check_branch
      %165 = sbr.rel (0) target = $region65
    $region64: #{layer_fwd.5} parent=1 // pred_region
      %166 = dma.done [#allocation9], 128
    $region65: #{layer_fwd.5} parent=1 // pred_fallthru
      _
    // Predicated region
    $region66: #{layer_fwd.5} parent=1 // pred_check
      _
    $region67: #{layer_fwd.5} parent=1 // pred_check_branch
      %168 = sbr.rel (0) target = $region69
    $region68: #{layer_fwd.5} parent=1 // pred_region
      %169 = dma.done [#allocation9], 73728
    $region69: #{layer_fwd.5} parent=1 // pred_fallthru
      _
    // Predicated region
    $region70: #{layer_fwd.5} parent=1 // pred_check
      _
    $region71: #{layer_fwd.5} parent=1 // pred_check_branch
      %171 = sbr.rel (0) target = $region73
    $region72: #{layer_fwd.5} parent=1 // pred_region
      %172 = dma.done [#allocation12], 1152
    $region73: #{layer_fwd.5} parent=1 // pred_fallthru
      _
    // Predicated region
    $region74: #{layer_fwd.5} parent=1 // pred_check
      _
    $region75: #{layer_fwd.5} parent=1 // pred_check_branch
      %174 = sbr.rel (0) target = $region77
    $region76: #{layer_fwd.5} parent=1 // pred_region
      %175 = dma.done [#allocation12], 128
    $region77: #{layer_fwd.5} parent=1 // pred_fallthru
      _
    // Predicated region
    $region78: #{layer_fwd.5} parent=1 // pred_check
      _
    $region79: #{layer_fwd.5} parent=1 // pred_check_branch
      %177 = sbr.rel (0) target = $region81
    $region80: #{layer_fwd.5} parent=1 // pred_region
      %178 = dma.done [#allocation15], 128
    $region81: #{layer_fwd.5} parent=1 // pred_fallthru
      _
    // Predicated region
    $region82: #{layer_fwd.5} parent=1 // pred_check
      _
    $region83: #{layer_fwd.5} parent=1 // pred_check_branch
      %180 = sbr.rel (0) target = $region85
    $region84: #{layer_fwd.5} parent=1 // pred_region
      %181 = dma.done [#allocation15], 18432
    $region85: #{layer_fwd.5} parent=1 // pred_fallthru
      _
    // Predicated region
    $region86: #{layer_fwd.5} parent=1 // pred_check
      _
    $region87: #{layer_fwd.5} parent=1 // pred_check_branch
      %183 = sbr.rel (0) target = $region89
    $region88: #{layer_fwd.5} parent=1 // pred_region
      %184 = dma.done [#allocation18], 1152
    $region89: #{layer_fwd.5} parent=1 // pred_fallthru
      _
    // Predicated region
    $region90: #{layer_fwd.5} parent=1 // pred_check
      _
    $region91: #{layer_fwd.5} parent=1 // pred_check_branch
      %186 = sbr.rel (0) target = $region93
    $region92: #{layer_fwd.5} parent=1 // pred_region
      %187 = dma.done [#allocation18], 128
    $region93: #{layer_fwd.5} parent=1 // pred_fallthru
      _
    // Predicated region
    $region94: #{layer_fwd.5} parent=1 // pred_check
      _
    $region95: #{layer_fwd.5} parent=1 // pred_check_branch
      %189 = sbr.rel (0) target = $region97
    $region96: #{layer_fwd.5} parent=1 // pred_region
      %190 = dma.done [#allocation21], 128
    $region97: #{layer_fwd.5} parent=1 // pred_fallthru
      _
    %v191 = vld [vmem:[#allocation2] sm:$0xff]
    %v192 = vld [vmem:[#allocation2 + $0x8] sm:$0xff]
    %v193 = vld [vmem:[#allocation7] sm:$0xff]
    %v194 = vld [vmem:[#allocation5] sm:$0xff]
    %v195 = vld [vmem:[#allocation5 + $0x8] sm:$0xff]
    %v196 = vld [vmem:[#allocation5 + $0x10] sm:$0xff]
    %v197 = vld [vmem:[#allocation5 + $0x18] sm:$0xff]
    %v198 = vld [vmem:[#allocation5 + $0x20] sm:$0xff]
    %v199 = vld [vmem:[#allocation5 + $0x28] sm:$0xff]
    %v200 = vld [vmem:[#allocation5 + $0x30] sm:$0xff]
    %v201 = vld [vmem:[#allocation5 + $0x38] sm:$0xff]
    %v202 = vld [vmem:[#allocation5 + $0x40] sm:$0xff]
    %v203 = vld [vmem:[#allocation5 + $0x48] sm:$0xff]
    %v204 = vld [vmem:[#allocation5 + $0x50] sm:$0xff]
    %v205 = vld [vmem:[#allocation5 + $0x58] sm:$0xff]
    %v206 = vld [vmem:[#allocation5 + $0x60] sm:$0xff]
    %v207 = vld [vmem:[#allocation5 + $0x68] sm:$0xff]
    %v208 = vld [vmem:[#allocation5 + $0x70] sm:$0xff]
    %v209 = vld [vmem:[#allocation5 + $0x78] sm:$0xff]
    %v210 = vld [vmem:[#allocation5 + $0x80] sm:$0xff]
    %v211 = vld [vmem:[#allocation5 + $0x88] sm:$0xff]
    %v212 = vld [vmem:[#allocation5 + $0x90] sm:$0xff]
    %v213 = vld [vmem:[#allocation5 + $0x98] sm:$0xff]
    %v214 = vld [vmem:[#allocation5 + $0xa0] sm:$0xff]
    %v215 = vld [vmem:[#allocation5 + $0xa8] sm:$0xff]
    %v216 = vld [vmem:[#allocation5 + $0xb0] sm:$0xff]
    %v217 = vld [vmem:[#allocation5 + $0xb8] sm:$0xff]
    %v218 = vld [vmem:[#allocation5 + $0xc0] sm:$0xff]
    %v219 = vld [vmem:[#allocation5 + $0xc8] sm:$0xff]
    %v220 = vld [vmem:[#allocation5 + $0xd0] sm:$0xff]
    %v221 = vld [vmem:[#allocation5 + $0xd8] sm:$0xff]
    %v222 = vld [vmem:[#allocation5 + $0xe0] sm:$0xff]
    %v223 = vld [vmem:[#allocation5 + $0xe8] sm:$0xff]
    %v224 = vld [vmem:[#allocation5 + $0xf0] sm:$0xff]
    %v225 = vld [vmem:[#allocation5 + $0xf8] sm:$0xff]
    %v226 = vld [vmem:[#allocation5 + $0x100] sm:$0xff]
    %v227 = vld [vmem:[#allocation5 + $0x108] sm:$0xff]
    %v228 = vld [vmem:[#allocation5 + $0x110] sm:$0xff]
    %v229 = vld [vmem:[#allocation5 + $0x118] sm:$0xff]
    %v230 = vld [vmem:[#allocation5 + $0x120] sm:$0xff]
    %v231 = vld [vmem:[#allocation5 + $0x128] sm:$0xff]
    %v232 = vld [vmem:[#allocation5 + $0x130] sm:$0xff]
    %v233 = vld [vmem:[#allocation5 + $0x138] sm:$0xff]
    %v234 = vld [vmem:[#allocation5 + $0x140] sm:$0xff]
    %v235 = vld [vmem:[#allocation5 + $0x148] sm:$0xff]
    %v236 = vld [vmem:[#allocation5 + $0x150] sm:$0xff]
    %v237 = vld [vmem:[#allocation5 + $0x158] sm:$0xff]
    %v238 = vld [vmem:[#allocation5 + $0x160] sm:$0xff]
    %v239 = vld [vmem:[#allocation5 + $0x168] sm:$0xff]
    %v240 = vld [vmem:[#allocation5 + $0x170] sm:$0xff]
    %v241 = vld [vmem:[#allocation5 + $0x178] sm:$0xff]
    %v242 = vld [vmem:[#allocation5 + $0x180] sm:$0xff]
    %v243 = vld [vmem:[#allocation5 + $0x188] sm:$0xff]
    %v244 = vld [vmem:[#allocation5 + $0x190] sm:$0xff]
    %v245 = vld [vmem:[#allocation5 + $0x198] sm:$0xff]
    %v246 = vld [vmem:[#allocation5 + $0x1a0] sm:$0xff]
    %v247 = vld [vmem:[#allocation5 + $0x1a8] sm:$0xff]
    %v248 = vld [vmem:[#allocation5 + $0x1b0] sm:$0xff]
    %v249 = vld [vmem:[#allocation5 + $0x1b8] sm:$0xff]
    %v250 = vld [vmem:[#allocation5 + $0x1c0] sm:$0xff]
    %v251 = vld [vmem:[#allocation5 + $0x1c8] sm:$0xff]
    %v252 = vld [vmem:[#allocation5 + $0x1d0] sm:$0xff]
    %v253 = vld [vmem:[#allocation5 + $0x1d8] sm:$0xff]
    %v254 = vld [vmem:[#allocation5 + $0x1e0] sm:$0xff]
    %v255 = vld [vmem:[#allocation5 + $0x1e8] sm:$0xff]
    %v256 = vld [vmem:[#allocation5 + $0x1f0] sm:$0xff]
    %v257 = vld [vmem:[#allocation5 + $0x1f8] sm:$0xff]
    %v260 = vcombine.high %v191, %v191
    %v261 = vcombine.high %v192, %v192
    %264 = vmatprep.subr.mxu0 0.0
    %265 = vmatpush1.msra.mxu0 %v194
    %266 = vmatprep.subr.mxu0 0.0
    %267 = vmatpush1.msra.mxu0 %v195
    %268 = vmatprep.subr.mxu0 0.0
    %269 = vmatpush1.msra.mxu0 %v196
    %270 = vmatprep.subr.mxu0 0.0
    %271 = vmatpush1.msra.mxu0 %v197
    %272 = vmatprep.subr.mxu0 0.0
    %273 = vmatpush1.msra.mxu0 %v198
    %274 = vmatprep.subr.mxu0 0.0
    %275 = vmatpush1.msra.mxu0 %v199
    %276 = vmatprep.subr.mxu0 0.0
    %277 = vmatpush1.msra.mxu0 %v200
    %278 = vmatprep.subr.mxu0 0.0
    %279 = vmatpush1.msra.mxu0 %v201
    %280 = vmatprep.subr.mxu0 0.0
    %281 = vmatpush1.msra.mxu0 %v202
    %282 = vmatprep.subr.mxu0 0.0
    %283 = vmatpush1.msra.mxu0 %v203
    %284 = vmatprep.subr.mxu0 0.0
    %285 = vmatpush1.msra.mxu0 %v204
    %286 = vmatprep.subr.mxu0 0.0
    %287 = vmatpush1.msra.mxu0 %v205
    %288 = vmatprep.subr.mxu0 0.0
    %289 = vmatpush1.msra.mxu0 %v206
    %290 = vmatprep.subr.mxu0 0.0
    %291 = vmatpush1.msra.mxu0 %v207
    %292 = vmatprep.subr.mxu0 0.0
    %293 = vmatpush1.msra.mxu0 %v208
    %294 = vmatprep.subr.mxu0 0.0
    %295 = vmatpush1.msra.mxu0 %v209
    %296 = vmatprep.subr.mxu0 0.0
    %297 = vmatpush1.msra.mxu0 %v210
    %298 = vmatprep.subr.mxu0 0.0
    %299 = vmatpush1.msra.mxu0 %v211
    %300 = vmatprep.subr.mxu0 0.0
    %301 = vmatpush1.msra.mxu0 %v212
    %302 = vmatprep.subr.mxu0 0.0
    %303 = vmatpush1.msra.mxu0 %v213
    %304 = vmatprep.subr.mxu0 0.0
    %305 = vmatpush1.msra.mxu0 %v214
    %306 = vmatprep.subr.mxu0 0.0
    %307 = vmatpush1.msra.mxu0 %v215
    %308 = vmatprep.subr.mxu0 0.0
    %309 = vmatpush1.msra.mxu0 %v216
    %310 = vmatprep.subr.mxu0 0.0
    %311 = vmatpush1.msra.mxu0 %v217
    %312 = vmatprep.subr.mxu0 0.0
    %313 = vmatpush1.msra.mxu0 %v218
    %314 = vmatprep.subr.mxu0 0.0
    %315 = vmatpush1.msra.mxu0 %v219
    %316 = vmatprep.subr.mxu0 0.0
    %317 = vmatpush1.msra.mxu0 %v220
    %318 = vmatprep.subr.mxu0 0.0
    %319 = vmatpush1.msra.mxu0 %v221
    %320 = vmatprep.subr.mxu0 0.0
    %321 = vmatpush1.msra.mxu0 %v222
    %322 = vmatprep.subr.mxu0 0.0
    %323 = vmatpush1.msra.mxu0 %v223
    %324 = vmatprep.subr.mxu0 0.0
    %325 = vmatpush1.msra.mxu0 %v224
    %326 = vmatprep.subr.mxu0 0.0
    %327 = vmatpush1.msra.mxu0 %v225
    %328 = vmatprep.mubr.f32.mxu0 %v260
    %329 = vmatmul.mubr.f32.gmra.mrb[0].mxu0 %v191
    %v330 = vpop.f32.mrb[0].mxu0
    %v331 = vadd.f32 0.0, %v330
    %v332 = vpop.f32.mrb[0].mxu0
    %333 = vdwg.mxu0
    %334 = vmatprep.subr.mxu0 0.0
    %335 = vmatpush1.msra.mxu0 %v226
    %336 = vmatprep.subr.mxu0 0.0
    %337 = vmatpush1.msra.mxu0 %v227
    %338 = vmatprep.subr.mxu0 0.0
    %339 = vmatpush1.msra.mxu0 %v228
    %340 = vmatprep.subr.mxu0 0.0
    %341 = vmatpush1.msra.mxu0 %v229
    %342 = vmatprep.subr.mxu0 0.0
    %343 = vmatpush1.msra.mxu0 %v230
    %344 = vmatprep.subr.mxu0 0.0
    %345 = vmatpush1.msra.mxu0 %v231
    %346 = vmatprep.subr.mxu0 0.0
    %347 = vmatpush1.msra.mxu0 %v232
    %348 = vmatprep.subr.mxu0 0.0
    %349 = vmatpush1.msra.mxu0 %v233
    %350 = vmatprep.subr.mxu0 0.0
    %351 = vmatpush1.msra.mxu0 %v234
    %352 = vmatprep.subr.mxu0 0.0
    %353 = vmatpush1.msra.mxu0 %v235
    %354 = vmatprep.subr.mxu0 0.0
    %355 = vmatpush1.msra.mxu0 %v236
    %356 = vmatprep.subr.mxu0 0.0
    %357 = vmatpush1.msra.mxu0 %v237
    %358 = vmatprep.subr.mxu0 0.0
    %359 = vmatpush1.msra.mxu0 %v238
    %360 = vmatprep.subr.mxu0 0.0
    %361 = vmatpush1.msra.mxu0 %v239
    %362 = vmatprep.subr.mxu0 0.0
    %363 = vmatpush1.msra.mxu0 %v240
    %364 = vmatprep.subr.mxu0 0.0
    %365 = vmatpush1.msra.mxu0 %v241
    %366 = vmatprep.subr.mxu0 0.0
    %367 = vmatpush1.msra.mxu0 %v242
    %368 = vmatprep.subr.mxu0 0.0
    %369 = vmatpush1.msra.mxu0 %v243
    %370 = vmatprep.subr.mxu0 0.0
    %371 = vmatpush1.msra.mxu0 %v244
    %372 = vmatprep.subr.mxu0 0.0
    %373 = vmatpush1.msra.mxu0 %v245
    %374 = vmatprep.subr.mxu0 0.0
    %375 = vmatpush1.msra.mxu0 %v246
    %376 = vmatprep.subr.mxu0 0.0
    %377 = vmatpush1.msra.mxu0 %v247
    %378 = vmatprep.subr.mxu0 0.0
    %379 = vmatpush1.msra.mxu0 %v248
    %380 = vmatprep.subr.mxu0 0.0
    %381 = vmatpush1.msra.mxu0 %v249
    %382 = vmatprep.subr.mxu0 0.0
    %383 = vmatpush1.msra.mxu0 %v250
    %384 = vmatprep.subr.mxu0 0.0
    %385 = vmatpush1.msra.mxu0 %v251
    %386 = vmatprep.subr.mxu0 0.0
    %387 = vmatpush1.msra.mxu0 %v252
    %388 = vmatprep.subr.mxu0 0.0
    %389 = vmatpush1.msra.mxu0 %v253
    %390 = vmatprep.subr.mxu0 0.0
    %391 = vmatpush1.msra.mxu0 %v254
    %392 = vmatprep.subr.mxu0 0.0
    %393 = vmatpush1.msra.mxu0 %v255
    %394 = vmatprep.subr.mxu0 0.0
    %395 = vmatpush1.msra.mxu0 %v256
    %396 = vmatprep.subr.mxu0 0.0
    %397 = vmatpush1.msra.mxu0 %v257
    %398 = vmatprep.mubr.f32.mxu0 %v261
    %399 = vmatmul.mubr.f32.gmra.mrb[0].mxu0 %v192
    %v400 = vpop.f32.mrb[0].mxu0
    %v401 = vadd.f32 %v331, %v400
    %v402 = vpop.f32.mrb[0].mxu0
    %403 = vdwg.mxu0
    %v404 = vld [vmem:[#allocation8] sm:$0xff]
    %406 = vset.pattern.permute.xlu0 0
    %407 = vperm.xlu0 %406, %v404
    %v408 = vpop.permute.xlu0 %407
    %vm410 = vcmask 31744
    %v412 = vsel %vm410, %v193, 0
    %vm414 = vcmask 1043456
    %v416 = vsel %vm414, %v401, 0
    %418 = vmatprep.subr.mxu0 0.0
    %419 = vmatpush1.msra.mxu0 %v416
    %420 = vmatprep.subr.mxu0 0.0
    %421 = vmatpush1.msra.mxu0 0.0
    %422 = vmatprep.subr.mxu0 0.0
    %423 = vmatpush1.msra.mxu0 0.0
    %424 = vmatprep.subr.mxu0 0.0
    %425 = vmatpush1.msra.mxu0 0.0
    %426 = vmatprep.subr.mxu0 0.0
    %427 = vmatpush1.msra.mxu0 0.0
    %428 = vmatprep.subr.mxu0 0.0
    %429 = vmatpush1.msra.mxu0 0.0
    %430 = vmatprep.subr.mxu0 0.0
    %431 = vmatpush1.msra.mxu0 0.0
    %432 = vmatprep.subr.mxu0 0.0
    %433 = vmatpush1.msra.mxu0 0.0
    %434 = vmatprep.subr.mxu0 0.0
    %435 = vmatpush1.msra.mxu0 0.0
    %436 = vmatprep.subr.mxu0 0.0
    %437 = vmatpush1.msra.mxu0 0.0
    %438 = vmatprep.subr.mxu0 0.0
    %439 = vmatpush1.msra.mxu0 0.0
    %440 = vmatprep.subr.mxu0 0.0
    %441 = vmatpush1.msra.mxu0 0.0
    %442 = vmatprep.subr.mxu0 0.0
    %443 = vmatpush1.msra.mxu0 0.0
    %444 = vmatprep.subr.mxu0 0.0
    %445 = vmatpush1.msra.mxu0 0.0
    %446 = vmatprep.subr.mxu0 0.0
    %447 = vmatpush1.msra.mxu0 0.0
    %448 = vmatprep.subr.mxu0 0.0
    %449 = vmatpush1.msra.mxu0 0.0
    %450 = vmatprep.subr.mxu0 0.0
    %451 = vmatpush1.msra.mxu0 0.0
    %452 = vmatprep.subr.mxu0 0.0
    %453 = vmatpush1.msra.mxu0 0.0
    %454 = vmatprep.subr.mxu0 0.0
    %455 = vmatpush1.msra.mxu0 0.0
    %456 = vmatprep.subr.mxu0 0.0
    %457 = vmatpush1.msra.mxu0 0.0
    %458 = vmatprep.subr.mxu0 0.0
    %459 = vmatpush1.msra.mxu0 0.0
    %460 = vmatprep.subr.mxu0 0.0
    %461 = vmatpush1.msra.mxu0 0.0
    %462 = vmatprep.subr.mxu0 0.0
    %463 = vmatpush1.msra.mxu0 0.0
    %464 = vmatprep.subr.mxu0 0.0
    %465 = vmatpush1.msra.mxu0 0.0
    %466 = vmatprep.subr.mxu0 0.0
    %467 = vmatpush1.msra.mxu0 0.0
    %468 = vmatprep.subr.mxu0 0.0
    %469 = vmatpush1.msra.mxu0 0.0
    %470 = vmatprep.subr.mxu0 0.0
    %471 = vmatpush1.msra.mxu0 0.0
    %472 = vmatprep.subr.mxu0 0.0
    %473 = vmatpush1.msra.mxu0 0.0
    %474 = vmatprep.subr.mxu0 0.0
    %475 = vmatpush1.msra.mxu0 0.0
    %476 = vmatprep.subr.mxu0 0.0
    %477 = vmatpush1.msra.mxu0 0.0
    %478 = vmatprep.subr.mxu0 0.0
    %479 = vmatpush1.msra.mxu0 0.0
    %480 = vmatprep.subr.mxu0 0.0
    %481 = vmatpush1.msra.mxu0 0.0
    %482 = vmatprep.mubr.f32.mxu0 0.0
    %483 = vmatmul.mubr.f32.gmra.mrb[0].mxu0 %v412
    %v484 = vpop.f32.mrb[0].mxu0
    %v485 = vadd.f32 %v408, %v484
    %v486 = vpop.f32.mrb[0].mxu0
    %487 = vdwg.mxu0
    %v488 = vld [vmem:[#allocation10] sm:$0xff]
    %v489 = vld [vmem:[#allocation10 + $0x8] sm:$0xff]
    %v490 = vld [vmem:[#allocation10 + $0x10] sm:$0xff]
    %v491 = vld [vmem:[#allocation10 + $0x18] sm:$0xff]
    %v492 = vld [vmem:[#allocation10 + $0x20] sm:$0xff]
    %v493 = vld [vmem:[#allocation10 + $0x28] sm:$0xff]
    %v494 = vld [vmem:[#allocation10 + $0x30] sm:$0xff]
    %v495 = vld [vmem:[#allocation10 + $0x38] sm:$0xff]
    %v496 = vld [vmem:[#allocation10 + $0x40] sm:$0xff]
    %v497 = vld [vmem:[#allocation10 + $0x48] sm:$0xff]
    %v498 = vld [vmem:[#allocation10 + $0x50] sm:$0xff]
    %v499 = vld [vmem:[#allocation10 + $0x58] sm:$0xff]
    %v500 = vld [vmem:[#allocation10 + $0x60] sm:$0xff]
    %v501 = vld [vmem:[#allocation10 + $0x68] sm:$0xff]
    %v502 = vld [vmem:[#allocation10 + $0x70] sm:$0xff]
    %v503 = vld [vmem:[#allocation10 + $0x78] sm:$0xff]
    %v504 = vld [vmem:[#allocation10 + $0x80] sm:$0xff]
    %v505 = vld [vmem:[#allocation10 + $0x88] sm:$0xff]
    %v506 = vld [vmem:[#allocation10 + $0x90] sm:$0xff]
    %v507 = vld [vmem:[#allocation10 + $0x98] sm:$0xff]
    %v508 = vld [vmem:[#allocation10 + $0xa0] sm:$0xff]
    %v509 = vld [vmem:[#allocation10 + $0xa8] sm:$0xff]
    %v510 = vld [vmem:[#allocation10 + $0xb0] sm:$0xff]
    %v511 = vld [vmem:[#allocation10 + $0xb8] sm:$0xff]
    %v512 = vld [vmem:[#allocation10 + $0xc0] sm:$0xff]
    %v513 = vld [vmem:[#allocation10 + $0xc8] sm:$0xff]
    %v514 = vld [vmem:[#allocation10 + $0xd0] sm:$0xff]
    %v515 = vld [vmem:[#allocation10 + $0xd8] sm:$0xff]
    %v516 = vld [vmem:[#allocation10 + $0xe0] sm:$0xff]
    %v517 = vld [vmem:[#allocation10 + $0xe8] sm:$0xff]
    %v518 = vld [vmem:[#allocation10 + $0xf0] sm:$0xff]
    %v519 = vld [vmem:[#allocation10 + $0xf8] sm:$0xff]
    %v520 = vld [vmem:[#allocation10 + $0x100] sm:$0xff]
    %v521 = vld [vmem:[#allocation10 + $0x108] sm:$0xff]
    %v522 = vld [vmem:[#allocation10 + $0x110] sm:$0xff]
    %v523 = vld [vmem:[#allocation10 + $0x118] sm:$0xff]
    %v524 = vld [vmem:[#allocation10 + $0x120] sm:$0xff]
    %v525 = vld [vmem:[#allocation10 + $0x128] sm:$0xff]
    %v526 = vld [vmem:[#allocation10 + $0x130] sm:$0xff]
    %v527 = vld [vmem:[#allocation10 + $0x138] sm:$0xff]
    %v528 = vld [vmem:[#allocation10 + $0x140] sm:$0xff]
    %v529 = vld [vmem:[#allocation10 + $0x148] sm:$0xff]
    %v530 = vld [vmem:[#allocation10 + $0x150] sm:$0xff]
    %v531 = vld [vmem:[#allocation10 + $0x158] sm:$0xff]
    %v532 = vld [vmem:[#allocation10 + $0x160] sm:$0xff]
    %v533 = vld [vmem:[#allocation10 + $0x168] sm:$0xff]
    %v534 = vld [vmem:[#allocation10 + $0x170] sm:$0xff]
    %v535 = vld [vmem:[#allocation10 + $0x178] sm:$0xff]
    %v536 = vld [vmem:[#allocation10 + $0x180] sm:$0xff]
    %v537 = vld [vmem:[#allocation10 + $0x188] sm:$0xff]
    %v538 = vld [vmem:[#allocation10 + $0x190] sm:$0xff]
    %v539 = vld [vmem:[#allocation10 + $0x198] sm:$0xff]
    %v540 = vld [vmem:[#allocation10 + $0x1a0] sm:$0xff]
    %v541 = vld [vmem:[#allocation10 + $0x1a8] sm:$0xff]
    %v542 = vld [vmem:[#allocation10 + $0x1b0] sm:$0xff]
    %v543 = vld [vmem:[#allocation10 + $0x1b8] sm:$0xff]
    %v544 = vld [vmem:[#allocation10 + $0x1c0] sm:$0xff]
    %v545 = vld [vmem:[#allocation10 + $0x1c8] sm:$0xff]
    %v546 = vld [vmem:[#allocation10 + $0x1d0] sm:$0xff]
    %v547 = vld [vmem:[#allocation10 + $0x1d8] sm:$0xff]
    %v548 = vld [vmem:[#allocation10 + $0x1e0] sm:$0xff]
    %v549 = vld [vmem:[#allocation10 + $0x1e8] sm:$0xff]
    %v550 = vld [vmem:[#allocation10 + $0x1f0] sm:$0xff]
    %v551 = vld [vmem:[#allocation10 + $0x1f8] sm:$0xff]
    %552 = vmatprep.subr.mxu0 0.0
    %553 = vmatpush1.msra.mxu0 %v488
    %554 = vmatprep.subr.mxu0 0.0
    %555 = vmatpush1.msra.mxu0 %v489
    %556 = vmatprep.subr.mxu0 0.0
    %557 = vmatpush1.msra.mxu0 %v490
    %558 = vmatprep.subr.mxu0 0.0
    %559 = vmatpush1.msra.mxu0 %v491
    %560 = vmatprep.subr.mxu0 0.0
    %561 = vmatpush1.msra.mxu0 %v492
    %562 = vmatprep.subr.mxu0 0.0
    %563 = vmatpush1.msra.mxu0 %v493
    %564 = vmatprep.subr.mxu0 0.0
    %565 = vmatpush1.msra.mxu0 %v494
    %566 = vmatprep.subr.mxu0 0.0
    %567 = vmatpush1.msra.mxu0 %v495
    %568 = vmatprep.subr.mxu0 0.0
    %569 = vmatpush1.msra.mxu0 %v496
    %570 = vmatprep.subr.mxu0 0.0
    %571 = vmatpush1.msra.mxu0 %v497
    %572 = vmatprep.subr.mxu0 0.0
    %573 = vmatpush1.msra.mxu0 %v498
    %574 = vmatprep.subr.mxu0 0.0
    %575 = vmatpush1.msra.mxu0 %v499
    %576 = vmatprep.subr.mxu0 0.0
    %577 = vmatpush1.msra.mxu0 %v500
    %578 = vmatprep.subr.mxu0 0.0
    %579 = vmatpush1.msra.mxu0 %v501
    %580 = vmatprep.subr.mxu0 0.0
    %581 = vmatpush1.msra.mxu0 %v502
    %582 = vmatprep.subr.mxu0 0.0
    %583 = vmatpush1.msra.mxu0 %v503
    %584 = vmatprep.subr.mxu0 0.0
    %585 = vmatpush1.msra.mxu0 %v504
    %586 = vmatprep.subr.mxu0 0.0
    %587 = vmatpush1.msra.mxu0 %v505
    %588 = vmatprep.subr.mxu0 0.0
    %589 = vmatpush1.msra.mxu0 %v506
    %590 = vmatprep.subr.mxu0 0.0
    %591 = vmatpush1.msra.mxu0 %v507
    %592 = vmatprep.subr.mxu0 0.0
    %593 = vmatpush1.msra.mxu0 %v508
    %594 = vmatprep.subr.mxu0 0.0
    %595 = vmatpush1.msra.mxu0 %v509
    %596 = vmatprep.subr.mxu0 0.0
    %597 = vmatpush1.msra.mxu0 %v510
    %598 = vmatprep.subr.mxu0 0.0
    %599 = vmatpush1.msra.mxu0 %v511
    %600 = vmatprep.subr.mxu0 0.0
    %601 = vmatpush1.msra.mxu0 %v512
    %602 = vmatprep.subr.mxu0 0.0
    %603 = vmatpush1.msra.mxu0 %v513
    %604 = vmatprep.subr.mxu0 0.0
    %605 = vmatpush1.msra.mxu0 %v514
    %606 = vmatprep.subr.mxu0 0.0
    %607 = vmatpush1.msra.mxu0 %v515
    %608 = vmatprep.subr.mxu0 0.0
    %609 = vmatpush1.msra.mxu0 %v516
    %610 = vmatprep.subr.mxu0 0.0
    %611 = vmatpush1.msra.mxu0 %v517
    %612 = vmatprep.subr.mxu0 0.0
    %613 = vmatpush1.msra.mxu0 %v518
    %614 = vmatprep.subr.mxu0 0.0
    %615 = vmatpush1.msra.mxu0 %v519
    %616 = vmatprep.mubr.f32.mxu0 %v260
    %617 = vmatmul.mubr.f32.gmra.mrb[0].mxu0 %v191
    %v618 = vpop.f32.mrb[0].mxu0
    %v619 = vadd.f32 0.0, %v618
    %v620 = vpop.f32.mrb[0].mxu0
    %621 = vdwg.mxu0
    %622 = vmatprep.subr.mxu0 0.0
    %623 = vmatpush1.msra.mxu0 %v520
    %624 = vmatprep.subr.mxu0 0.0
    %625 = vmatpush1.msra.mxu0 %v521
    %626 = vmatprep.subr.mxu0 0.0
    %627 = vmatpush1.msra.mxu0 %v522
    %628 = vmatprep.subr.mxu0 0.0
    %629 = vmatpush1.msra.mxu0 %v523
    %630 = vmatprep.subr.mxu0 0.0
    %631 = vmatpush1.msra.mxu0 %v524
    %632 = vmatprep.subr.mxu0 0.0
    %633 = vmatpush1.msra.mxu0 %v525
    %634 = vmatprep.subr.mxu0 0.0
    %635 = vmatpush1.msra.mxu0 %v526
    %636 = vmatprep.subr.mxu0 0.0
    %637 = vmatpush1.msra.mxu0 %v527
    %638 = vmatprep.subr.mxu0 0.0
    %639 = vmatpush1.msra.mxu0 %v528
    %640 = vmatprep.subr.mxu0 0.0
    %641 = vmatpush1.msra.mxu0 %v529
    %642 = vmatprep.subr.mxu0 0.0
    %643 = vmatpush1.msra.mxu0 %v530
    %644 = vmatprep.subr.mxu0 0.0
    %645 = vmatpush1.msra.mxu0 %v531
    %646 = vmatprep.subr.mxu0 0.0
    %647 = vmatpush1.msra.mxu0 %v532
    %648 = vmatprep.subr.mxu0 0.0
    %649 = vmatpush1.msra.mxu0 %v533
    %650 = vmatprep.subr.mxu0 0.0
    %651 = vmatpush1.msra.mxu0 %v534
    %652 = vmatprep.subr.mxu0 0.0
    %653 = vmatpush1.msra.mxu0 %v535
    %654 = vmatprep.subr.mxu0 0.0
    %655 = vmatpush1.msra.mxu0 %v536
    %656 = vmatprep.subr.mxu0 0.0
    %657 = vmatpush1.msra.mxu0 %v537
    %658 = vmatprep.subr.mxu0 0.0
    %659 = vmatpush1.msra.mxu0 %v538
    %660 = vmatprep.subr.mxu0 0.0
    %661 = vmatpush1.msra.mxu0 %v539
    %662 = vmatprep.subr.mxu0 0.0
    %663 = vmatpush1.msra.mxu0 %v540
    %664 = vmatprep.subr.mxu0 0.0
    %665 = vmatpush1.msra.mxu0 %v541
    %666 = vmatprep.subr.mxu0 0.0
    %667 = vmatpush1.msra.mxu0 %v542
    %668 = vmatprep.subr.mxu0 0.0
    %669 = vmatpush1.msra.mxu0 %v543
    %670 = vmatprep.subr.mxu0 0.0
    %671 = vmatpush1.msra.mxu0 %v544
    %672 = vmatprep.subr.mxu0 0.0
    %673 = vmatpush1.msra.mxu0 %v545
    %674 = vmatprep.subr.mxu0 0.0
    %675 = vmatpush1.msra.mxu0 %v546
    %676 = vmatprep.subr.mxu0 0.0
    %677 = vmatpush1.msra.mxu0 %v547
    %678 = vmatprep.subr.mxu0 0.0
    %679 = vmatpush1.msra.mxu0 %v548
    %680 = vmatprep.subr.mxu0 0.0
    %681 = vmatpush1.msra.mxu0 %v549
    %682 = vmatprep.subr.mxu0 0.0
    %683 = vmatpush1.msra.mxu0 %v550
    %684 = vmatprep.subr.mxu0 0.0
    %685 = vmatpush1.msra.mxu0 %v551
    %686 = vmatprep.mubr.f32.mxu0 %v261
    %687 = vmatmul.mubr.f32.gmra.mrb[0].mxu0 %v192
    %v688 = vpop.f32.mrb[0].mxu0
    %v689 = vadd.f32 %v619, %v688
    %v690 = vpop.f32.mrb[0].mxu0
    %691 = vdwg.mxu0
    %v692 = vld [vmem:[#allocation11] sm:$0xff]
    %s693 = scalar_lea.vmem [#allocation10], 512
    %v694 = vld [vmem:[%s693] sm:$0xff]
    %v695 = vld [vmem:[%s693 + $0x8] sm:$0xff]
    %v696 = vld [vmem:[%s693 + $0x10] sm:$0xff]
    %v697 = vld [vmem:[%s693 + $0x18] sm:$0xff]
    %v698 = vld [vmem:[%s693 + $0x20] sm:$0xff]
    %v699 = vld [vmem:[%s693 + $0x28] sm:$0xff]
    %v700 = vld [vmem:[%s693 + $0x30] sm:$0xff]
    %v701 = vld [vmem:[%s693 + $0x38] sm:$0xff]
    %v702 = vld [vmem:[%s693 + $0x40] sm:$0xff]
    %v703 = vld [vmem:[%s693 + $0x48] sm:$0xff]
    %v704 = vld [vmem:[%s693 + $0x50] sm:$0xff]
    %v705 = vld [vmem:[%s693 + $0x58] sm:$0xff]
    %v706 = vld [vmem:[%s693 + $0x60] sm:$0xff]
    %v707 = vld [vmem:[%s693 + $0x68] sm:$0xff]
    %v708 = vld [vmem:[%s693 + $0x70] sm:$0xff]
    %v709 = vld [vmem:[%s693 + $0x78] sm:$0xff]
    %v710 = vld [vmem:[%s693 + $0x80] sm:$0xff]
    %v711 = vld [vmem:[%s693 + $0x88] sm:$0xff]
    %v712 = vld [vmem:[%s693 + $0x90] sm:$0xff]
    %v713 = vld [vmem:[%s693 + $0x98] sm:$0xff]
    %v714 = vld [vmem:[%s693 + $0xa0] sm:$0xff]
    %v715 = vld [vmem:[%s693 + $0xa8] sm:$0xff]
    %v716 = vld [vmem:[%s693 + $0xb0] sm:$0xff]
    %v717 = vld [vmem:[%s693 + $0xb8] sm:$0xff]
    %v718 = vld [vmem:[%s693 + $0xc0] sm:$0xff]
    %v719 = vld [vmem:[%s693 + $0xc8] sm:$0xff]
    %v720 = vld [vmem:[%s693 + $0xd0] sm:$0xff]
    %v721 = vld [vmem:[%s693 + $0xd8] sm:$0xff]
    %v722 = vld [vmem:[%s693 + $0xe0] sm:$0xff]
    %v723 = vld [vmem:[%s693 + $0xe8] sm:$0xff]
    %v724 = vld [vmem:[%s693 + $0xf0] sm:$0xff]
    %v725 = vld [vmem:[%s693 + $0xf8] sm:$0xff]
    %v726 = vld [vmem:[%s693 + $0x100] sm:$0xff]
    %v727 = vld [vmem:[%s693 + $0x108] sm:$0xff]
    %v728 = vld [vmem:[%s693 + $0x110] sm:$0xff]
    %v729 = vld [vmem:[%s693 + $0x118] sm:$0xff]
    %v730 = vld [vmem:[%s693 + $0x120] sm:$0xff]
    %v731 = vld [vmem:[%s693 + $0x128] sm:$0xff]
    %v732 = vld [vmem:[%s693 + $0x130] sm:$0xff]
    %v733 = vld [vmem:[%s693 + $0x138] sm:$0xff]
    %v734 = vld [vmem:[%s693 + $0x140] sm:$0xff]
    %v735 = vld [vmem:[%s693 + $0x148] sm:$0xff]
    %v736 = vld [vmem:[%s693 + $0x150] sm:$0xff]
    %v737 = vld [vmem:[%s693 + $0x158] sm:$0xff]
    %v738 = vld [vmem:[%s693 + $0x160] sm:$0xff]
    %v739 = vld [vmem:[%s693 + $0x168] sm:$0xff]
    %v740 = vld [vmem:[%s693 + $0x170] sm:$0xff]
    %v741 = vld [vmem:[%s693 + $0x178] sm:$0xff]
    %v742 = vld [vmem:[%s693 + $0x180] sm:$0xff]
    %v743 = vld [vmem:[%s693 + $0x188] sm:$0xff]
    %v744 = vld [vmem:[%s693 + $0x190] sm:$0xff]
    %v745 = vld [vmem:[%s693 + $0x198] sm:$0xff]
    %v746 = vld [vmem:[%s693 + $0x1a0] sm:$0xff]
    %v747 = vld [vmem:[%s693 + $0x1a8] sm:$0xff]
    %v748 = vld [vmem:[%s693 + $0x1b0] sm:$0xff]
    %v749 = vld [vmem:[%s693 + $0x1b8] sm:$0xff]
    %v750 = vld [vmem:[%s693 + $0x1c0] sm:$0xff]
    %v751 = vld [vmem:[%s693 + $0x1c8] sm:$0xff]
    %v752 = vld [vmem:[%s693 + $0x1d0] sm:$0xff]
    %v753 = vld [vmem:[%s693 + $0x1d8] sm:$0xff]
    %v754 = vld [vmem:[%s693 + $0x1e0] sm:$0xff]
    %v755 = vld [vmem:[%s693 + $0x1e8] sm:$0xff]
    %v756 = vld [vmem:[%s693 + $0x1f0] sm:$0xff]
    %v757 = vld [vmem:[%s693 + $0x1f8] sm:$0xff]
    %758 = vmatprep.subr.mxu0 0.0
    %759 = vmatpush1.msra.mxu0 %v694
    %760 = vmatprep.subr.mxu0 0.0
    %761 = vmatpush1.msra.mxu0 %v695
    %762 = vmatprep.subr.mxu0 0.0
    %763 = vmatpush1.msra.mxu0 %v696
    %764 = vmatprep.subr.mxu0 0.0
    %765 = vmatpush1.msra.mxu0 %v697
    %766 = vmatprep.subr.mxu0 0.0
    %767 = vmatpush1.msra.mxu0 %v698
    %768 = vmatprep.subr.mxu0 0.0
    %769 = vmatpush1.msra.mxu0 %v699
    %770 = vmatprep.subr.mxu0 0.0
    %771 = vmatpush1.msra.mxu0 %v700
    %772 = vmatprep.subr.mxu0 0.0
    %773 = vmatpush1.msra.mxu0 %v701
    %774 = vmatprep.subr.mxu0 0.0
    %775 = vmatpush1.msra.mxu0 %v702
    %776 = vmatprep.subr.mxu0 0.0
    %777 = vmatpush1.msra.mxu0 %v703
    %778 = vmatprep.subr.mxu0 0.0
    %779 = vmatpush1.msra.mxu0 %v704
    %780 = vmatprep.subr.mxu0 0.0
    %781 = vmatpush1.msra.mxu0 %v705
    %782 = vmatprep.subr.mxu0 0.0
    %783 = vmatpush1.msra.mxu0 %v706
    %784 = vmatprep.subr.mxu0 0.0
    %785 = vmatpush1.msra.mxu0 %v707
    %786 = vmatprep.subr.mxu0 0.0
    %787 = vmatpush1.msra.mxu0 %v708
    %788 = vmatprep.subr.mxu0 0.0
    %789 = vmatpush1.msra.mxu0 %v709
    %790 = vmatprep.subr.mxu0 0.0
    %791 = vmatpush1.msra.mxu0 %v710
    %792 = vmatprep.subr.mxu0 0.0
    %793 = vmatpush1.msra.mxu0 %v711
    %794 = vmatprep.subr.mxu0 0.0
    %795 = vmatpush1.msra.mxu0 %v712
    %796 = vmatprep.subr.mxu0 0.0
    %797 = vmatpush1.msra.mxu0 %v713
    %798 = vmatprep.subr.mxu0 0.0
    %799 = vmatpush1.msra.mxu0 %v714
    %800 = vmatprep.subr.mxu0 0.0
    %801 = vmatpush1.msra.mxu0 %v715
    %802 = vmatprep.subr.mxu0 0.0
    %803 = vmatpush1.msra.mxu0 %v716
    %804 = vmatprep.subr.mxu0 0.0
    %805 = vmatpush1.msra.mxu0 %v717
    %806 = vmatprep.subr.mxu0 0.0
    %807 = vmatpush1.msra.mxu0 %v718
    %808 = vmatprep.subr.mxu0 0.0
    %809 = vmatpush1.msra.mxu0 %v719
    %810 = vmatprep.subr.mxu0 0.0
    %811 = vmatpush1.msra.mxu0 %v720
    %812 = vmatprep.subr.mxu0 0.0
    %813 = vmatpush1.msra.mxu0 %v721
    %814 = vmatprep.subr.mxu0 0.0
    %815 = vmatpush1.msra.mxu0 %v722
    %816 = vmatprep.subr.mxu0 0.0
    %817 = vmatpush1.msra.mxu0 %v723
    %818 = vmatprep.subr.mxu0 0.0
    %819 = vmatpush1.msra.mxu0 %v724
    %820 = vmatprep.subr.mxu0 0.0
    %821 = vmatpush1.msra.mxu0 %v725
    %822 = vmatprep.mubr.f32.mxu0 %v260
    %823 = vmatmul.mubr.f32.gmra.mrb[0].mxu0 %v191
    %v824 = vpop.f32.mrb[0].mxu0
    %v825 = vadd.f32 0.0, %v824
    %v826 = vpop.f32.mrb[0].mxu0
    %827 = vdwg.mxu0
    %828 = vmatprep.subr.mxu0 0.0
    %829 = vmatpush1.msra.mxu0 %v726
    %830 = vmatprep.subr.mxu0 0.0
    %831 = vmatpush1.msra.mxu0 %v727
    %832 = vmatprep.subr.mxu0 0.0
    %833 = vmatpush1.msra.mxu0 %v728
    %834 = vmatprep.subr.mxu0 0.0
    %835 = vmatpush1.msra.mxu0 %v729
    %836 = vmatprep.subr.mxu0 0.0
    %837 = vmatpush1.msra.mxu0 %v730
    %838 = vmatprep.subr.mxu0 0.0
    %839 = vmatpush1.msra.mxu0 %v731
    %840 = vmatprep.subr.mxu0 0.0
    %841 = vmatpush1.msra.mxu0 %v732
    %842 = vmatprep.subr.mxu0 0.0
    %843 = vmatpush1.msra.mxu0 %v733
    %844 = vmatprep.subr.mxu0 0.0
    %845 = vmatpush1.msra.mxu0 %v734
    %846 = vmatprep.subr.mxu0 0.0
    %847 = vmatpush1.msra.mxu0 %v735
    %848 = vmatprep.subr.mxu0 0.0
    %849 = vmatpush1.msra.mxu0 %v736
    %850 = vmatprep.subr.mxu0 0.0
    %851 = vmatpush1.msra.mxu0 %v737
    %852 = vmatprep.subr.mxu0 0.0
    %853 = vmatpush1.msra.mxu0 %v738
    %854 = vmatprep.subr.mxu0 0.0
    %855 = vmatpush1.msra.mxu0 %v739
    %856 = vmatprep.subr.mxu0 0.0
    %857 = vmatpush1.msra.mxu0 %v740
    %858 = vmatprep.subr.mxu0 0.0
    %859 = vmatpush1.msra.mxu0 %v741
    %860 = vmatprep.subr.mxu0 0.0
    %861 = vmatpush1.msra.mxu0 %v742
    %862 = vmatprep.subr.mxu0 0.0
    %863 = vmatpush1.msra.mxu0 %v743
    %864 = vmatprep.subr.mxu0 0.0
    %865 = vmatpush1.msra.mxu0 %v744
    %866 = vmatprep.subr.mxu0 0.0
    %867 = vmatpush1.msra.mxu0 %v745
    %868 = vmatprep.subr.mxu0 0.0
    %869 = vmatpush1.msra.mxu0 %v746
    %870 = vmatprep.subr.mxu0 0.0
    %871 = vmatpush1.msra.mxu0 %v747
    %872 = vmatprep.subr.mxu0 0.0
    %873 = vmatpush1.msra.mxu0 %v748
    %874 = vmatprep.subr.mxu0 0.0
    %875 = vmatpush1.msra.mxu0 %v749
    %876 = vmatprep.subr.mxu0 0.0
    %877 = vmatpush1.msra.mxu0 %v750
    %878 = vmatprep.subr.mxu0 0.0
    %879 = vmatpush1.msra.mxu0 %v751
    %880 = vmatprep.subr.mxu0 0.0
    %881 = vmatpush1.msra.mxu0 %v752
    %882 = vmatprep.subr.mxu0 0.0
    %883 = vmatpush1.msra.mxu0 %v753
    %884 = vmatprep.subr.mxu0 0.0
    %885 = vmatpush1.msra.mxu0 %v754
    %886 = vmatprep.subr.mxu0 0.0
    %887 = vmatpush1.msra.mxu0 %v755
    %888 = vmatprep.subr.mxu0 0.0
    %889 = vmatpush1.msra.mxu0 %v756
    %890 = vmatprep.subr.mxu0 0.0
    %891 = vmatpush1.msra.mxu0 %v757
    %892 = vmatprep.mubr.f32.mxu0 %v261
    %893 = vmatmul.mubr.f32.gmra.mrb[0].mxu0 %v192
    %v894 = vpop.f32.mrb[0].mxu0
    %v895 = vadd.f32 %v825, %v894
    %v896 = vpop.f32.mrb[0].mxu0
    %897 = vdwg.mxu0
    %s898 = scalar_lea.vmem [#allocation11], 8
    %v899 = vld [vmem:[%s898] sm:$0xff]
    %v901 = vsel %vm410, %v899, 0
    %v904 = vsel %vm414, %v895, 0
    %906 = vmatprep.subr.mxu0 0.0
    %907 = vmatpush1.msra.mxu0 %v904
    %908 = vmatprep.subr.mxu0 0.0
    %909 = vmatpush1.msra.mxu0 0.0
    %910 = vmatprep.subr.mxu0 0.0
    %911 = vmatpush1.msra.mxu0 0.0
    %912 = vmatprep.subr.mxu0 0.0
    %913 = vmatpush1.msra.mxu0 0.0
    %914 = vmatprep.subr.mxu0 0.0
    %915 = vmatpush1.msra.mxu0 0.0
    %916 = vmatprep.subr.mxu0 0.0
    %917 = vmatpush1.msra.mxu0 0.0
    %918 = vmatprep.subr.mxu0 0.0
    %919 = vmatpush1.msra.mxu0 0.0
    %920 = vmatprep.subr.mxu0 0.0
    %921 = vmatpush1.msra.mxu0 0.0
    %922 = vmatprep.subr.mxu0 0.0
    %923 = vmatpush1.msra.mxu0 0.0
    %924 = vmatprep.subr.mxu0 0.0
    %925 = vmatpush1.msra.mxu0 0.0
    %926 = vmatprep.subr.mxu0 0.0
    %927 = vmatpush1.msra.mxu0 0.0
    %928 = vmatprep.subr.mxu0 0.0
    %929 = vmatpush1.msra.mxu0 0.0
    %930 = vmatprep.subr.mxu0 0.0
    %931 = vmatpush1.msra.mxu0 0.0
    %932 = vmatprep.subr.mxu0 0.0
    %933 = vmatpush1.msra.mxu0 0.0
    %934 = vmatprep.subr.mxu0 0.0
    %935 = vmatpush1.msra.mxu0 0.0
    %936 = vmatprep.subr.mxu0 0.0
    %937 = vmatpush1.msra.mxu0 0.0
    %938 = vmatprep.subr.mxu0 0.0
    %939 = vmatpush1.msra.mxu0 0.0
    %940 = vmatprep.subr.mxu0 0.0
    %941 = vmatpush1.msra.mxu0 0.0
    %942 = vmatprep.subr.mxu0 0.0
    %943 = vmatpush1.msra.mxu0 0.0
    %944 = vmatprep.subr.mxu0 0.0
    %945 = vmatpush1.msra.mxu0 0.0
    %946 = vmatprep.subr.mxu0 0.0
    %947 = vmatpush1.msra.mxu0 0.0
    %948 = vmatprep.subr.mxu0 0.0
    %949 = vmatpush1.msra.mxu0 0.0
    %950 = vmatprep.subr.mxu0 0.0
    %951 = vmatpush1.msra.mxu0 0.0
    %952 = vmatprep.subr.mxu0 0.0
    %953 = vmatpush1.msra.mxu0 0.0
    %954 = vmatprep.subr.mxu0 0.0
    %955 = vmatpush1.msra.mxu0 0.0
    %956 = vmatprep.subr.mxu0 0.0
    %957 = vmatpush1.msra.mxu0 0.0
    %958 = vmatprep.subr.mxu0 0.0
    %959 = vmatpush1.msra.mxu0 0.0
    %960 = vmatprep.subr.mxu0 0.0
    %961 = vmatpush1.msra.mxu0 0.0
    %962 = vmatprep.subr.mxu0 0.0
    %963 = vmatpush1.msra.mxu0 0.0
    %964 = vmatprep.subr.mxu0 0.0
    %965 = vmatpush1.msra.mxu0 0.0
    %966 = vmatprep.subr.mxu0 0.0
    %967 = vmatpush1.msra.mxu0 0.0
    %968 = vmatprep.subr.mxu0 0.0
    %969 = vmatpush1.msra.mxu0 0.0
    %970 = vmatprep.mubr.f32.mxu0 0.0
    %971 = vmatmul.mubr.f32.gmra.mrb[0].mxu0 %v901
    %v972 = vpop.f32.mrb[0].mxu0
    %v973 = vadd.f32 0.0, %v972
    %v974 = vpop.f32.mrb[0].mxu0
    %975 = vdwg.mxu0
    %v977 = vsel %vm410, %v692, 0
    %v980 = vsel %vm414, %v689, 0
    %982 = vmatprep.subr.mxu0 0.0
    %983 = vmatpush1.msra.mxu0 %v980
    %984 = vmatprep.subr.mxu0 0.0
    %985 = vmatpush1.msra.mxu0 0.0
    %986 = vmatprep.subr.mxu0 0.0
    %987 = vmatpush1.msra.mxu0 0.0
    %988 = vmatprep.subr.mxu0 0.0
    %989 = vmatpush1.msra.mxu0 0.0
    %990 = vmatprep.subr.mxu0 0.0
    %991 = vmatpush1.msra.mxu0 0.0
    %992 = vmatprep.subr.mxu0 0.0
    %993 = vmatpush1.msra.mxu0 0.0
    %994 = vmatprep.subr.mxu0 0.0
    %995 = vmatpush1.msra.mxu0 0.0
    %996 = vmatprep.subr.mxu0 0.0
    %997 = vmatpush1.msra.mxu0 0.0
    %998 = vmatprep.subr.mxu0 0.0
    %999 = vmatpush1.msra.mxu0 0.0
    %1000 = vmatprep.subr.mxu0 0.0
    %1001 = vmatpush1.msra.mxu0 0.0
    %1002 = vmatprep.subr.mxu0 0.0
    %1003 = vmatpush1.msra.mxu0 0.0
    %1004 = vmatprep.subr.mxu0 0.0
    %1005 = vmatpush1.msra.mxu0 0.0
    %1006 = vmatprep.subr.mxu0 0.0
    %1007 = vmatpush1.msra.mxu0 0.0
    %1008 = vmatprep.subr.mxu0 0.0
    %1009 = vmatpush1.msra.mxu0 0.0
    %1010 = vmatprep.subr.mxu0 0.0
    %1011 = vmatpush1.msra.mxu0 0.0
    %1012 = vmatprep.subr.mxu0 0.0
    %1013 = vmatpush1.msra.mxu0 0.0
    %1014 = vmatprep.subr.mxu0 0.0
    %1015 = vmatpush1.msra.mxu0 0.0
    %1016 = vmatprep.subr.mxu0 0.0
    %1017 = vmatpush1.msra.mxu0 0.0
    %1018 = vmatprep.subr.mxu0 0.0
    %1019 = vmatpush1.msra.mxu0 0.0
    %1020 = vmatprep.subr.mxu0 0.0
    %1021 = vmatpush1.msra.mxu0 0.0
    %1022 = vmatprep.subr.mxu0 0.0
    %1023 = vmatpush1.msra.mxu0 0.0
    %1024 = vmatprep.subr.mxu0 0.0
    %1025 = vmatpush1.msra.mxu0 0.0
    %1026 = vmatprep.subr.mxu0 0.0
    %1027 = vmatpush1.msra.mxu0 0.0
    %1028 = vmatprep.subr.mxu0 0.0
    %1029 = vmatpush1.msra.mxu0 0.0
    %1030 = vmatprep.subr.mxu0 0.0
    %1031 = vmatpush1.msra.mxu0 0.0
    %1032 = vmatprep.subr.mxu0 0.0
    %1033 = vmatpush1.msra.mxu0 0.0
    %1034 = vmatprep.subr.mxu0 0.0
    %1035 = vmatpush1.msra.mxu0 0.0
    %1036 = vmatprep.subr.mxu0 0.0
    %1037 = vmatpush1.msra.mxu0 0.0
    %1038 = vmatprep.subr.mxu0 0.0
    %1039 = vmatpush1.msra.mxu0 0.0
    %1040 = vmatprep.subr.mxu0 0.0
    %1041 = vmatpush1.msra.mxu0 0.0
    %1042 = vmatprep.subr.mxu0 0.0
    %1043 = vmatpush1.msra.mxu0 0.0
    %1044 = vmatprep.subr.mxu0 0.0
    %1045 = vmatpush1.msra.mxu0 0.0
    %1046 = vmatprep.mubr.f32.mxu0 0.0
    %1047 = vmatmul.mubr.f32.gmra.mrb[0].mxu0 %v977
    %v1048 = vpop.f32.mrb[0].mxu0
    %v1049 = vadd.f32 %v973, %v1048
    %v1050 = vpop.f32.mrb[0].mxu0
    %1051 = vdwg.mxu0
    %s1052 = scalar_lea.vmem [#allocation10], 1024
    %v1053 = vld [vmem:[%s1052] sm:$0xff]
    %v1054 = vld [vmem:[%s1052 + $0x8] sm:$0xff]
    %v1055 = vld [vmem:[%s1052 + $0x10] sm:$0xff]
    %v1056 = vld [vmem:[%s1052 + $0x18] sm:$0xff]
    %v1057 = vld [vmem:[%s1052 + $0x20] sm:$0xff]
    %v1058 = vld [vmem:[%s1052 + $0x28] sm:$0xff]
    %v1059 = vld [vmem:[%s1052 + $0x30] sm:$0xff]
    %v1060 = vld [vmem:[%s1052 + $0x38] sm:$0xff]
    %v1061 = vld [vmem:[%s1052 + $0x40] sm:$0xff]
    %v1062 = vld [vmem:[%s1052 + $0x48] sm:$0xff]
    %v1063 = vld [vmem:[%s1052 + $0x50] sm:$0xff]
    %v1064 = vld [vmem:[%s1052 + $0x58] sm:$0xff]
    %v1065 = vld [vmem:[%s1052 + $0x60] sm:$0xff]
    %v1066 = vld [vmem:[%s1052 + $0x68] sm:$0xff]
    %v1067 = vld [vmem:[%s1052 + $0x70] sm:$0xff]
    %v1068 = vld [vmem:[%s1052 + $0x78] sm:$0xff]
    %v1069 = vld [vmem:[%s1052 + $0x80] sm:$0xff]
    %v1070 = vld [vmem:[%s1052 + $0x88] sm:$0xff]
    %v1071 = vld [vmem:[%s1052 + $0x90] sm:$0xff]
    %v1072 = vld [vmem:[%s1052 + $0x98] sm:$0xff]
    %v1073 = vld [vmem:[%s1052 + $0xa0] sm:$0xff]
    %v1074 = vld [vmem:[%s1052 + $0xa8] sm:$0xff]
    %v1075 = vld [vmem:[%s1052 + $0xb0] sm:$0xff]
    %v1076 = vld [vmem:[%s1052 + $0xb8] sm:$0xff]
    %v1077 = vld [vmem:[%s1052 + $0xc0] sm:$0xff]
    %v1078 = vld [vmem:[%s1052 + $0xc8] sm:$0xff]
    %v1079 = vld [vmem:[%s1052 + $0xd0] sm:$0xff]
    %v1080 = vld [vmem:[%s1052 + $0xd8] sm:$0xff]
    %v1081 = vld [vmem:[%s1052 + $0xe0] sm:$0xff]
    %v1082 = vld [vmem:[%s1052 + $0xe8] sm:$0xff]
    %v1083 = vld [vmem:[%s1052 + $0xf0] sm:$0xff]
    %v1084 = vld [vmem:[%s1052 + $0xf8] sm:$0xff]
    %v1085 = vld [vmem:[%s1052 + $0x100] sm:$0xff]
    %v1086 = vld [vmem:[%s1052 + $0x108] sm:$0xff]
    %v1087 = vld [vmem:[%s1052 + $0x110] sm:$0xff]
    %v1088 = vld [vmem:[%s1052 + $0x118] sm:$0xff]
    %v1089 = vld [vmem:[%s1052 + $0x120] sm:$0xff]
    %v1090 = vld [vmem:[%s1052 + $0x128] sm:$0xff]
    %v1091 = vld [vmem:[%s1052 + $0x130] sm:$0xff]
    %v1092 = vld [vmem:[%s1052 + $0x138] sm:$0xff]
    %v1093 = vld [vmem:[%s1052 + $0x140] sm:$0xff]
    %v1094 = vld [vmem:[%s1052 + $0x148] sm:$0xff]
    %v1095 = vld [vmem:[%s1052 + $0x150] sm:$0xff]
    %v1096 = vld [vmem:[%s1052 + $0x158] sm:$0xff]
    %v1097 = vld [vmem:[%s1052 + $0x160] sm:$0xff]
    %v1098 = vld [vmem:[%s1052 + $0x168] sm:$0xff]
    %v1099 = vld [vmem:[%s1052 + $0x170] sm:$0xff]
    %v1100 = vld [vmem:[%s1052 + $0x178] sm:$0xff]
    %v1101 = vld [vmem:[%s1052 + $0x180] sm:$0xff]
    %v1102 = vld [vmem:[%s1052 + $0x188] sm:$0xff]
    %v1103 = vld [vmem:[%s1052 + $0x190] sm:$0xff]
    %v1104 = vld [vmem:[%s1052 + $0x198] sm:$0xff]
    %v1105 = vld [vmem:[%s1052 + $0x1a0] sm:$0xff]
    %v1106 = vld [vmem:[%s1052 + $0x1a8] sm:$0xff]
    %v1107 = vld [vmem:[%s1052 + $0x1b0] sm:$0xff]
    %v1108 = vld [vmem:[%s1052 + $0x1b8] sm:$0xff]
    %v1109 = vld [vmem:[%s1052 + $0x1c0] sm:$0xff]
    %v1110 = vld [vmem:[%s1052 + $0x1c8] sm:$0xff]
    %v1111 = vld [vmem:[%s1052 + $0x1d0] sm:$0xff]
    %v1112 = vld [vmem:[%s1052 + $0x1d8] sm:$0xff]
    %v1113 = vld [vmem:[%s1052 + $0x1e0] sm:$0xff]
    %v1114 = vld [vmem:[%s1052 + $0x1e8] sm:$0xff]
    %v1115 = vld [vmem:[%s1052 + $0x1f0] sm:$0xff]
    %v1116 = vld [vmem:[%s1052 + $0x1f8] sm:$0xff]
    %1117 = vmatprep.subr.mxu0 0.0
    %1118 = vmatpush1.msra.mxu0 %v1053
    %1119 = vmatprep.subr.mxu0 0.0
    %1120 = vmatpush1.msra.mxu0 %v1054
    %1121 = vmatprep.subr.mxu0 0.0
    %1122 = vmatpush1.msra.mxu0 %v1055
    %1123 = vmatprep.subr.mxu0 0.0
    %1124 = vmatpush1.msra.mxu0 %v1056
    %1125 = vmatprep.subr.mxu0 0.0
    %1126 = vmatpush1.msra.mxu0 %v1057
    %1127 = vmatprep.subr.mxu0 0.0
    %1128 = vmatpush1.msra.mxu0 %v1058
    %1129 = vmatprep.subr.mxu0 0.0
    %1130 = vmatpush1.msra.mxu0 %v1059
    %1131 = vmatprep.subr.mxu0 0.0
    %1132 = vmatpush1.msra.mxu0 %v1060
    %1133 = vmatprep.subr.mxu0 0.0
    %1134 = vmatpush1.msra.mxu0 %v1061
    %1135 = vmatprep.subr.mxu0 0.0
    %1136 = vmatpush1.msra.mxu0 %v1062
    %1137 = vmatprep.subr.mxu0 0.0
    %1138 = vmatpush1.msra.mxu0 %v1063
    %1139 = vmatprep.subr.mxu0 0.0
    %1140 = vmatpush1.msra.mxu0 %v1064
    %1141 = vmatprep.subr.mxu0 0.0
    %1142 = vmatpush1.msra.mxu0 %v1065
    %1143 = vmatprep.subr.mxu0 0.0
    %1144 = vmatpush1.msra.mxu0 %v1066
    %1145 = vmatprep.subr.mxu0 0.0
    %1146 = vmatpush1.msra.mxu0 %v1067
    %1147 = vmatprep.subr.mxu0 0.0
    %1148 = vmatpush1.msra.mxu0 %v1068
    %1149 = vmatprep.subr.mxu0 0.0
    %1150 = vmatpush1.msra.mxu0 %v1069
    %1151 = vmatprep.subr.mxu0 0.0
    %1152 = vmatpush1.msra.mxu0 %v1070
    %1153 = vmatprep.subr.mxu0 0.0
    %1154 = vmatpush1.msra.mxu0 %v1071
    %1155 = vmatprep.subr.mxu0 0.0
    %1156 = vmatpush1.msra.mxu0 %v1072
    %1157 = vmatprep.subr.mxu0 0.0
    %1158 = vmatpush1.msra.mxu0 %v1073
    %1159 = vmatprep.subr.mxu0 0.0
    %1160 = vmatpush1.msra.mxu0 %v1074
    %1161 = vmatprep.subr.mxu0 0.0
    %1162 = vmatpush1.msra.mxu0 %v1075
    %1163 = vmatprep.subr.mxu0 0.0
    %1164 = vmatpush1.msra.mxu0 %v1076
    %1165 = vmatprep.subr.mxu0 0.0
    %1166 = vmatpush1.msra.mxu0 %v1077
    %1167 = vmatprep.subr.mxu0 0.0
    %1168 = vmatpush1.msra.mxu0 %v1078
    %1169 = vmatprep.subr.mxu0 0.0
    %1170 = vmatpush1.msra.mxu0 %v1079
    %1171 = vmatprep.subr.mxu0 0.0
    %1172 = vmatpush1.msra.mxu0 %v1080
    %1173 = vmatprep.subr.mxu0 0.0
    %1174 = vmatpush1.msra.mxu0 %v1081
    %1175 = vmatprep.subr.mxu0 0.0
    %1176 = vmatpush1.msra.mxu0 %v1082
    %1177 = vmatprep.subr.mxu0 0.0
    %1178 = vmatpush1.msra.mxu0 %v1083
    %1179 = vmatprep.subr.mxu0 0.0
    %1180 = vmatpush1.msra.mxu0 %v1084
    %1181 = vmatprep.mubr.f32.mxu0 %v260
    %1182 = vmatmul.mubr.f32.gmra.mrb[0].mxu0 %v191
    %v1183 = vpop.f32.mrb[0].mxu0
    %v1184 = vadd.f32 0.0, %v1183
    %v1185 = vpop.f32.mrb[0].mxu0
    %1186 = vdwg.mxu0
    %1187 = vmatprep.subr.mxu0 0.0
    %1188 = vmatpush1.msra.mxu0 %v1085
    %1189 = vmatprep.subr.mxu0 0.0
    %1190 = vmatpush1.msra.mxu0 %v1086
    %1191 = vmatprep.subr.mxu0 0.0
    %1192 = vmatpush1.msra.mxu0 %v1087
    %1193 = vmatprep.subr.mxu0 0.0
    %1194 = vmatpush1.msra.mxu0 %v1088
    %1195 = vmatprep.subr.mxu0 0.0
    %1196 = vmatpush1.msra.mxu0 %v1089
    %1197 = vmatprep.subr.mxu0 0.0
    %1198 = vmatpush1.msra.mxu0 %v1090
    %1199 = vmatprep.subr.mxu0 0.0
    %1200 = vmatpush1.msra.mxu0 %v1091
    %1201 = vmatprep.subr.mxu0 0.0
    %1202 = vmatpush1.msra.mxu0 %v1092
    %1203 = vmatprep.subr.mxu0 0.0
    %1204 = vmatpush1.msra.mxu0 %v1093
    %1205 = vmatprep.subr.mxu0 0.0
    %1206 = vmatpush1.msra.mxu0 %v1094
    %1207 = vmatprep.subr.mxu0 0.0
    %1208 = vmatpush1.msra.mxu0 %v1095
    %1209 = vmatprep.subr.mxu0 0.0
    %1210 = vmatpush1.msra.mxu0 %v1096
    %1211 = vmatprep.subr.mxu0 0.0
    %1212 = vmatpush1.msra.mxu0 %v1097
    %1213 = vmatprep.subr.mxu0 0.0
    %1214 = vmatpush1.msra.mxu0 %v1098
    %1215 = vmatprep.subr.mxu0 0.0
    %1216 = vmatpush1.msra.mxu0 %v1099
    %1217 = vmatprep.subr.mxu0 0.0
    %1218 = vmatpush1.msra.mxu0 %v1100
    %1219 = vmatprep.subr.mxu0 0.0
    %1220 = vmatpush1.msra.mxu0 %v1101
    %1221 = vmatprep.subr.mxu0 0.0
    %1222 = vmatpush1.msra.mxu0 %v1102
    %1223 = vmatprep.subr.mxu0 0.0
    %1224 = vmatpush1.msra.mxu0 %v1103
    %1225 = vmatprep.subr.mxu0 0.0
    %1226 = vmatpush1.msra.mxu0 %v1104
    %1227 = vmatprep.subr.mxu0 0.0
    %1228 = vmatpush1.msra.mxu0 %v1105
    %1229 = vmatprep.subr.mxu0 0.0
    %1230 = vmatpush1.msra.mxu0 %v1106
    %1231 = vmatprep.subr.mxu0 0.0
    %1232 = vmatpush1.msra.mxu0 %v1107
    %1233 = vmatprep.subr.mxu0 0.0
    %1234 = vmatpush1.msra.mxu0 %v1108
    %1235 = vmatprep.subr.mxu0 0.0
    %1236 = vmatpush1.msra.mxu0 %v1109
    %1237 = vmatprep.subr.mxu0 0.0
    %1238 = vmatpush1.msra.mxu0 %v1110
    %1239 = vmatprep.subr.mxu0 0.0
    %1240 = vmatpush1.msra.mxu0 %v1111
    %1241 = vmatprep.subr.mxu0 0.0
    %1242 = vmatpush1.msra.mxu0 %v1112
    %1243 = vmatprep.subr.mxu0 0.0
    %1244 = vmatpush1.msra.mxu0 %v1113
    %1245 = vmatprep.subr.mxu0 0.0
    %1246 = vmatpush1.msra.mxu0 %v1114
    %1247 = vmatprep.subr.mxu0 0.0
    %1248 = vmatpush1.msra.mxu0 %v1115
    %1249 = vmatprep.subr.mxu0 0.0
    %1250 = vmatpush1.msra.mxu0 %v1116
    %1251 = vmatprep.mubr.f32.mxu0 %v261
    %1252 = vmatmul.mubr.f32.gmra.mrb[0].mxu0 %v192
    %v1253 = vpop.f32.mrb[0].mxu0
    %v1254 = vadd.f32 %v1184, %v1253
    %v1255 = vpop.f32.mrb[0].mxu0
    %1256 = vdwg.mxu0
    %s1257 = scalar_lea.vmem [#allocation11], 16
    %v1258 = vld [vmem:[%s1257] sm:$0xff]
    %v1260 = vsel %vm410, %v1258, 0
    %v1263 = vsel %vm414, %v1254, 0
    %1265 = vmatprep.subr.mxu0 0.0
    %1266 = vmatpush1.msra.mxu0 %v1263
    %1267 = vmatprep.subr.mxu0 0.0
    %1268 = vmatpush1.msra.mxu0 0.0
    %1269 = vmatprep.subr.mxu0 0.0
    %1270 = vmatpush1.msra.mxu0 0.0
    %1271 = vmatprep.subr.mxu0 0.0
    %1272 = vmatpush1.msra.mxu0 0.0
    %1273 = vmatprep.subr.mxu0 0.0
    %1274 = vmatpush1.msra.mxu0 0.0
    %1275 = vmatprep.subr.mxu0 0.0
    %1276 = vmatpush1.msra.mxu0 0.0
    %1277 = vmatprep.subr.mxu0 0.0
    %1278 = vmatpush1.msra.mxu0 0.0
    %1279 = vmatprep.subr.mxu0 0.0
    %1280 = vmatpush1.msra.mxu0 0.0
    %1281 = vmatprep.subr.mxu0 0.0
    %1282 = vmatpush1.msra.mxu0 0.0
    %1283 = vmatprep.subr.mxu0 0.0
    %1284 = vmatpush1.msra.mxu0 0.0
    %1285 = vmatprep.subr.mxu0 0.0
    %1286 = vmatpush1.msra.mxu0 0.0
    %1287 = vmatprep.subr.mxu0 0.0
    %1288 = vmatpush1.msra.mxu0 0.0
    %1289 = vmatprep.subr.mxu0 0.0
    %1290 = vmatpush1.msra.mxu0 0.0
    %1291 = vmatprep.subr.mxu0 0.0
    %1292 = vmatpush1.msra.mxu0 0.0
    %1293 = vmatprep.subr.mxu0 0.0
    %1294 = vmatpush1.msra.mxu0 0.0
    %1295 = vmatprep.subr.mxu0 0.0
    %1296 = vmatpush1.msra.mxu0 0.0
    %1297 = vmatprep.subr.mxu0 0.0
    %1298 = vmatpush1.msra.mxu0 0.0
    %1299 = vmatprep.subr.mxu0 0.0
    %1300 = vmatpush1.msra.mxu0 0.0
    %1301 = vmatprep.subr.mxu0 0.0
    %1302 = vmatpush1.msra.mxu0 0.0
    %1303 = vmatprep.subr.mxu0 0.0
    %1304 = vmatpush1.msra.mxu0 0.0
    %1305 = vmatprep.subr.mxu0 0.0
    %1306 = vmatpush1.msra.mxu0 0.0
    %1307 = vmatprep.subr.mxu0 0.0
    %1308 = vmatpush1.msra.mxu0 0.0
    %1309 = vmatprep.subr.mxu0 0.0
    %1310 = vmatpush1.msra.mxu0 0.0
    %1311 = vmatprep.subr.mxu0 0.0
    %1312 = vmatpush1.msra.mxu0 0.0
    %1313 = vmatprep.subr.mxu0 0.0
    %1314 = vmatpush1.msra.mxu0 0.0
    %1315 = vmatprep.subr.mxu0 0.0
    %1316 = vmatpush1.msra.mxu0 0.0
    %1317 = vmatprep.subr.mxu0 0.0
    %1318 = vmatpush1.msra.mxu0 0.0
    %1319 = vmatprep.subr.mxu0 0.0
    %1320 = vmatpush1.msra.mxu0 0.0
    %1321 = vmatprep.subr.mxu0 0.0
    %1322 = vmatpush1.msra.mxu0 0.0
    %1323 = vmatprep.subr.mxu0 0.0
    %1324 = vmatpush1.msra.mxu0 0.0
    %1325 = vmatprep.subr.mxu0 0.0
    %1326 = vmatpush1.msra.mxu0 0.0
    %1327 = vmatprep.subr.mxu0 0.0
    %1328 = vmatpush1.msra.mxu0 0.0
    %1329 = vmatprep.mubr.f32.mxu0 0.0
    %1330 = vmatmul.mubr.f32.gmra.mrb[0].mxu0 %v1260
    %v1331 = vpop.f32.mrb[0].mxu0
    %v1332 = vadd.f32 0.0, %v1331
    %v1333 = vpop.f32.mrb[0].mxu0
    %1334 = vdwg.mxu0
    %v1335 = vadd.f32 %v1049, %v1332
    %s1336 = scalar_lea.vmem [#allocation10], 1536
    %v1337 = vld [vmem:[%s1336] sm:$0xff]
    %v1338 = vld [vmem:[%s1336 + $0x8] sm:$0xff]
    %v1339 = vld [vmem:[%s1336 + $0x10] sm:$0xff]
    %v1340 = vld [vmem:[%s1336 + $0x18] sm:$0xff]
    %v1341 = vld [vmem:[%s1336 + $0x20] sm:$0xff]
    %v1342 = vld [vmem:[%s1336 + $0x28] sm:$0xff]
    %v1343 = vld [vmem:[%s1336 + $0x30] sm:$0xff]
    %v1344 = vld [vmem:[%s1336 + $0x38] sm:$0xff]
    %v1345 = vld [vmem:[%s1336 + $0x40] sm:$0xff]
    %v1346 = vld [vmem:[%s1336 + $0x48] sm:$0xff]
    %v1347 = vld [vmem:[%s1336 + $0x50] sm:$0xff]
    %v1348 = vld [vmem:[%s1336 + $0x58] sm:$0xff]
    %v1349 = vld [vmem:[%s1336 + $0x60] sm:$0xff]
    %v1350 = vld [vmem:[%s1336 + $0x68] sm:$0xff]
    %v1351 = vld [vmem:[%s1336 + $0x70] sm:$0xff]
    %v1352 = vld [vmem:[%s1336 + $0x78] sm:$0xff]
    %v1353 = vld [vmem:[%s1336 + $0x80] sm:$0xff]
    %v1354 = vld [vmem:[%s1336 + $0x88] sm:$0xff]
    %v1355 = vld [vmem:[%s1336 + $0x90] sm:$0xff]
    %v1356 = vld [vmem:[%s1336 + $0x98] sm:$0xff]
    %v1357 = vld [vmem:[%s1336 + $0xa0] sm:$0xff]
    %v1358 = vld [vmem:[%s1336 + $0xa8] sm:$0xff]
    %v1359 = vld [vmem:[%s1336 + $0xb0] sm:$0xff]
    %v1360 = vld [vmem:[%s1336 + $0xb8] sm:$0xff]
    %v1361 = vld [vmem:[%s1336 + $0xc0] sm:$0xff]
    %v1362 = vld [vmem:[%s1336 + $0xc8] sm:$0xff]
    %v1363 = vld [vmem:[%s1336 + $0xd0] sm:$0xff]
    %v1364 = vld [vmem:[%s1336 + $0xd8] sm:$0xff]
    %v1365 = vld [vmem:[%s1336 + $0xe0] sm:$0xff]
    %v1366 = vld [vmem:[%s1336 + $0xe8] sm:$0xff]
    %v1367 = vld [vmem:[%s1336 + $0xf0] sm:$0xff]
    %v1368 = vld [vmem:[%s1336 + $0xf8] sm:$0xff]
    %v1369 = vld [vmem:[%s1336 + $0x100] sm:$0xff]
    %v1370 = vld [vmem:[%s1336 + $0x108] sm:$0xff]
    %v1371 = vld [vmem:[%s1336 + $0x110] sm:$0xff]
    %v1372 = vld [vmem:[%s1336 + $0x118] sm:$0xff]
    %v1373 = vld [vmem:[%s1336 + $0x120] sm:$0xff]
    %v1374 = vld [vmem:[%s1336 + $0x128] sm:$0xff]
    %v1375 = vld [vmem:[%s1336 + $0x130] sm:$0xff]
    %v1376 = vld [vmem:[%s1336 + $0x138] sm:$0xff]
    %v1377 = vld [vmem:[%s1336 + $0x140] sm:$0xff]
    %v1378 = vld [vmem:[%s1336 + $0x148] sm:$0xff]
    %v1379 = vld [vmem:[%s1336 + $0x150] sm:$0xff]
    %v1380 = vld [vmem:[%s1336 + $0x158] sm:$0xff]
    %v1381 = vld [vmem:[%s1336 + $0x160] sm:$0xff]
    %v1382 = vld [vmem:[%s1336 + $0x168] sm:$0xff]
    %v1383 = vld [vmem:[%s1336 + $0x170] sm:$0xff]
    %v1384 = vld [vmem:[%s1336 + $0x178] sm:$0xff]
    %v1385 = vld [vmem:[%s1336 + $0x180] sm:$0xff]
    %v1386 = vld [vmem:[%s1336 + $0x188] sm:$0xff]
    %v1387 = vld [vmem:[%s1336 + $0x190] sm:$0xff]
    %v1388 = vld [vmem:[%s1336 + $0x198] sm:$0xff]
    %v1389 = vld [vmem:[%s1336 + $0x1a0] sm:$0xff]
    %v1390 = vld [vmem:[%s1336 + $0x1a8] sm:$0xff]
    %v1391 = vld [vmem:[%s1336 + $0x1b0] sm:$0xff]
    %v1392 = vld [vmem:[%s1336 + $0x1b8] sm:$0xff]
    %v1393 = vld [vmem:[%s1336 + $0x1c0] sm:$0xff]
    %v1394 = vld [vmem:[%s1336 + $0x1c8] sm:$0xff]
    %v1395 = vld [vmem:[%s1336 + $0x1d0] sm:$0xff]
    %v1396 = vld [vmem:[%s1336 + $0x1d8] sm:$0xff]
    %v1397 = vld [vmem:[%s1336 + $0x1e0] sm:$0xff]
    %v1398 = vld [vmem:[%s1336 + $0x1e8] sm:$0xff]
    %v1399 = vld [vmem:[%s1336 + $0x1f0] sm:$0xff]
    %v1400 = vld [vmem:[%s1336 + $0x1f8] sm:$0xff]
    %1401 = vmatprep.subr.mxu0 0.0
    %1402 = vmatpush1.msra.mxu0 %v1337
    %1403 = vmatprep.subr.mxu0 0.0
    %1404 = vmatpush1.msra.mxu0 %v1338
    %1405 = vmatprep.subr.mxu0 0.0
    %1406 = vmatpush1.msra.mxu0 %v1339
    %1407 = vmatprep.subr.mxu0 0.0
    %1408 = vmatpush1.msra.mxu0 %v1340
    %1409 = vmatprep.subr.mxu0 0.0
    %1410 = vmatpush1.msra.mxu0 %v1341
    %1411 = vmatprep.subr.mxu0 0.0
    %1412 = vmatpush1.msra.mxu0 %v1342
    %1413 = vmatprep.subr.mxu0 0.0
    %1414 = vmatpush1.msra.mxu0 %v1343
    %1415 = vmatprep.subr.mxu0 0.0
    %1416 = vmatpush1.msra.mxu0 %v1344
    %1417 = vmatprep.subr.mxu0 0.0
    %1418 = vmatpush1.msra.mxu0 %v1345
    %1419 = vmatprep.subr.mxu0 0.0
    %1420 = vmatpush1.msra.mxu0 %v1346
    %1421 = vmatprep.subr.mxu0 0.0
    %1422 = vmatpush1.msra.mxu0 %v1347
    %1423 = vmatprep.subr.mxu0 0.0
    %1424 = vmatpush1.msra.mxu0 %v1348
    %1425 = vmatprep.subr.mxu0 0.0
    %1426 = vmatpush1.msra.mxu0 %v1349
    %1427 = vmatprep.subr.mxu0 0.0
    %1428 = vmatpush1.msra.mxu0 %v1350
    %1429 = vmatprep.subr.mxu0 0.0
    %1430 = vmatpush1.msra.mxu0 %v1351
    %1431 = vmatprep.subr.mxu0 0.0
    %1432 = vmatpush1.msra.mxu0 %v1352
    %1433 = vmatprep.subr.mxu0 0.0
    %1434 = vmatpush1.msra.mxu0 %v1353
    %1435 = vmatprep.subr.mxu0 0.0
    %1436 = vmatpush1.msra.mxu0 %v1354
    %1437 = vmatprep.subr.mxu0 0.0
    %1438 = vmatpush1.msra.mxu0 %v1355
    %1439 = vmatprep.subr.mxu0 0.0
    %1440 = vmatpush1.msra.mxu0 %v1356
    %1441 = vmatprep.subr.mxu0 0.0
    %1442 = vmatpush1.msra.mxu0 %v1357
    %1443 = vmatprep.subr.mxu0 0.0
    %1444 = vmatpush1.msra.mxu0 %v1358
    %1445 = vmatprep.subr.mxu0 0.0
    %1446 = vmatpush1.msra.mxu0 %v1359
    %1447 = vmatprep.subr.mxu0 0.0
    %1448 = vmatpush1.msra.mxu0 %v1360
    %1449 = vmatprep.subr.mxu0 0.0
    %1450 = vmatpush1.msra.mxu0 %v1361
    %1451 = vmatprep.subr.mxu0 0.0
    %1452 = vmatpush1.msra.mxu0 %v1362
    %1453 = vmatprep.subr.mxu0 0.0
    %1454 = vmatpush1.msra.mxu0 %v1363
    %1455 = vmatprep.subr.mxu0 0.0
    %1456 = vmatpush1.msra.mxu0 %v1364
    %1457 = vmatprep.subr.mxu0 0.0
    %1458 = vmatpush1.msra.mxu0 %v1365
    %1459 = vmatprep.subr.mxu0 0.0
    %1460 = vmatpush1.msra.mxu0 %v1366
    %1461 = vmatprep.subr.mxu0 0.0
    %1462 = vmatpush1.msra.mxu0 %v1367
    %1463 = vmatprep.subr.mxu0 0.0
    %1464 = vmatpush1.msra.mxu0 %v1368
    %1465 = vmatprep.mubr.f32.mxu0 %v260
    %1466 = vmatmul.mubr.f32.gmra.mrb[0].mxu0 %v191
    %v1467 = vpop.f32.mrb[0].mxu0
    %v1468 = vadd.f32 0.0, %v1467
    %v1469 = vpop.f32.mrb[0].mxu0
    %1470 = vdwg.mxu0
    %1471 = vmatprep.subr.mxu0 0.0
    %1472 = vmatpush1.msra.mxu0 %v1369
    %1473 = vmatprep.subr.mxu0 0.0
    %1474 = vmatpush1.msra.mxu0 %v1370
    %1475 = vmatprep.subr.mxu0 0.0
    %1476 = vmatpush1.msra.mxu0 %v1371
    %1477 = vmatprep.subr.mxu0 0.0
    %1478 = vmatpush1.msra.mxu0 %v1372
    %1479 = vmatprep.subr.mxu0 0.0
    %1480 = vmatpush1.msra.mxu0 %v1373
    %1481 = vmatprep.subr.mxu0 0.0
    %1482 = vmatpush1.msra.mxu0 %v1374
    %1483 = vmatprep.subr.mxu0 0.0
    %1484 = vmatpush1.msra.mxu0 %v1375
    %1485 = vmatprep.subr.mxu0 0.0
    %1486 = vmatpush1.msra.mxu0 %v1376
    %1487 = vmatprep.subr.mxu0 0.0
    %1488 = vmatpush1.msra.mxu0 %v1377
    %1489 = vmatprep.subr.mxu0 0.0
    %1490 = vmatpush1.msra.mxu0 %v1378
    %1491 = vmatprep.subr.mxu0 0.0
    %1492 = vmatpush1.msra.mxu0 %v1379
    %1493 = vmatprep.subr.mxu0 0.0
    %1494 = vmatpush1.msra.mxu0 %v1380
    %1495 = vmatprep.subr.mxu0 0.0
    %1496 = vmatpush1.msra.mxu0 %v1381
    %1497 = vmatprep.subr.mxu0 0.0
    %1498 = vmatpush1.msra.mxu0 %v1382
    %1499 = vmatprep.subr.mxu0 0.0
    %1500 = vmatpush1.msra.mxu0 %v1383
    %1501 = vmatprep.subr.mxu0 0.0
    %1502 = vmatpush1.msra.mxu0 %v1384
    %1503 = vmatprep.subr.mxu0 0.0
    %1504 = vmatpush1.msra.mxu0 %v1385
    %1505 = vmatprep.subr.mxu0 0.0
    %1506 = vmatpush1.msra.mxu0 %v1386
    %1507 = vmatprep.subr.mxu0 0.0
    %1508 = vmatpush1.msra.mxu0 %v1387
    %1509 = vmatprep.subr.mxu0 0.0
    %1510 = vmatpush1.msra.mxu0 %v1388
    %1511 = vmatprep.subr.mxu0 0.0
    %1512 = vmatpush1.msra.mxu0 %v1389
    %1513 = vmatprep.subr.mxu0 0.0
    %1514 = vmatpush1.msra.mxu0 %v1390
    %1515 = vmatprep.subr.mxu0 0.0
    %1516 = vmatpush1.msra.mxu0 %v1391
    %1517 = vmatprep.subr.mxu0 0.0
    %1518 = vmatpush1.msra.mxu0 %v1392
    %1519 = vmatprep.subr.mxu0 0.0
    %1520 = vmatpush1.msra.mxu0 %v1393
    %1521 = vmatprep.subr.mxu0 0.0
    %1522 = vmatpush1.msra.mxu0 %v1394
    %1523 = vmatprep.subr.mxu0 0.0
    %1524 = vmatpush1.msra.mxu0 %v1395
    %1525 = vmatprep.subr.mxu0 0.0
    %1526 = vmatpush1.msra.mxu0 %v1396
    %1527 = vmatprep.subr.mxu0 0.0
    %1528 = vmatpush1.msra.mxu0 %v1397
    %1529 = vmatprep.subr.mxu0 0.0
    %1530 = vmatpush1.msra.mxu0 %v1398
    %1531 = vmatprep.subr.mxu0 0.0
    %1532 = vmatpush1.msra.mxu0 %v1399
    %1533 = vmatprep.subr.mxu0 0.0
    %1534 = vmatpush1.msra.mxu0 %v1400
    %1535 = vmatprep.mubr.f32.mxu0 %v261
    %1536 = vmatmul.mubr.f32.gmra.mrb[0].mxu0 %v192
    %v1537 = vpop.f32.mrb[0].mxu0
    %v1538 = vadd.f32 %v1468, %v1537
    %v1539 = vpop.f32.mrb[0].mxu0
    %1540 = vdwg.mxu0
    %s1541 = scalar_lea.vmem [#allocation11], 24
    %v1542 = vld [vmem:[%s1541] sm:$0xff]
    %v1544 = vsel %vm410, %v1542, 0
    %v1547 = vsel %vm414, %v1538, 0
    %1549 = vmatprep.subr.mxu0 0.0
    %1550 = vmatpush1.msra.mxu0 %v1547
    %1551 = vmatprep.subr.mxu0 0.0
    %1552 = vmatpush1.msra.mxu0 0.0
    %1553 = vmatprep.subr.mxu0 0.0
    %1554 = vmatpush1.msra.mxu0 0.0
    %1555 = vmatprep.subr.mxu0 0.0
    %1556 = vmatpush1.msra.mxu0 0.0
    %1557 = vmatprep.subr.mxu0 0.0
    %1558 = vmatpush1.msra.mxu0 0.0
    %1559 = vmatprep.subr.mxu0 0.0
    %1560 = vmatpush1.msra.mxu0 0.0
    %1561 = vmatprep.subr.mxu0 0.0
    %1562 = vmatpush1.msra.mxu0 0.0
    %1563 = vmatprep.subr.mxu0 0.0
    %1564 = vmatpush1.msra.mxu0 0.0
    %1565 = vmatprep.subr.mxu0 0.0
    %1566 = vmatpush1.msra.mxu0 0.0
    %1567 = vmatprep.subr.mxu0 0.0
    %1568 = vmatpush1.msra.mxu0 0.0
    %1569 = vmatprep.subr.mxu0 0.0
    %1570 = vmatpush1.msra.mxu0 0.0
    %1571 = vmatprep.subr.mxu0 0.0
    %1572 = vmatpush1.msra.mxu0 0.0
    %1573 = vmatprep.subr.mxu0 0.0
    %1574 = vmatpush1.msra.mxu0 0.0
    %1575 = vmatprep.subr.mxu0 0.0
    %1576 = vmatpush1.msra.mxu0 0.0
    %1577 = vmatprep.subr.mxu0 0.0
    %1578 = vmatpush1.msra.mxu0 0.0
    %1579 = vmatprep.subr.mxu0 0.0
    %1580 = vmatpush1.msra.mxu0 0.0
    %1581 = vmatprep.subr.mxu0 0.0
    %1582 = vmatpush1.msra.mxu0 0.0
    %1583 = vmatprep.subr.mxu0 0.0
    %1584 = vmatpush1.msra.mxu0 0.0
    %1585 = vmatprep.subr.mxu0 0.0
    %1586 = vmatpush1.msra.mxu0 0.0
    %1587 = vmatprep.subr.mxu0 0.0
    %1588 = vmatpush1.msra.mxu0 0.0
    %1589 = vmatprep.subr.mxu0 0.0
    %1590 = vmatpush1.msra.mxu0 0.0
    %1591 = vmatprep.subr.mxu0 0.0
    %1592 = vmatpush1.msra.mxu0 0.0
    %1593 = vmatprep.subr.mxu0 0.0
    %1594 = vmatpush1.msra.mxu0 0.0
    %1595 = vmatprep.subr.mxu0 0.0
    %1596 = vmatpush1.msra.mxu0 0.0
    %1597 = vmatprep.subr.mxu0 0.0
    %1598 = vmatpush1.msra.mxu0 0.0
    %1599 = vmatprep.subr.mxu0 0.0
    %1600 = vmatpush1.msra.mxu0 0.0
    %1601 = vmatprep.subr.mxu0 0.0
    %1602 = vmatpush1.msra.mxu0 0.0
    %1603 = vmatprep.subr.mxu0 0.0
    %1604 = vmatpush1.msra.mxu0 0.0
    %1605 = vmatprep.subr.mxu0 0.0
    %1606 = vmatpush1.msra.mxu0 0.0
    %1607 = vmatprep.subr.mxu0 0.0
    %1608 = vmatpush1.msra.mxu0 0.0
    %1609 = vmatprep.subr.mxu0 0.0
    %1610 = vmatpush1.msra.mxu0 0.0
    %1611 = vmatprep.subr.mxu0 0.0
    %1612 = vmatpush1.msra.mxu0 0.0
    %1613 = vmatprep.mubr.f32.mxu0 0.0
    %1614 = vmatmul.mubr.f32.gmra.mrb[0].mxu0 %v1544
    %v1615 = vpop.f32.mrb[0].mxu0
    %v1616 = vadd.f32 0.0, %v1615
    %v1617 = vpop.f32.mrb[0].mxu0
    %1618 = vdwg.mxu0
    %v1619 = vadd.f32 %v1335, %v1616
    %s1620 = scalar_lea.vmem [#allocation10], 2048
    %v1621 = vld [vmem:[%s1620] sm:$0xff]
    %v1622 = vld [vmem:[%s1620 + $0x8] sm:$0xff]
    %v1623 = vld [vmem:[%s1620 + $0x10] sm:$0xff]
    %v1624 = vld [vmem:[%s1620 + $0x18] sm:$0xff]
    %v1625 = vld [vmem:[%s1620 + $0x20] sm:$0xff]
    %v1626 = vld [vmem:[%s1620 + $0x28] sm:$0xff]
    %v1627 = vld [vmem:[%s1620 + $0x30] sm:$0xff]
    %v1628 = vld [vmem:[%s1620 + $0x38] sm:$0xff]
    %v1629 = vld [vmem:[%s1620 + $0x40] sm:$0xff]
    %v1630 = vld [vmem:[%s1620 + $0x48] sm:$0xff]
    %v1631 = vld [vmem:[%s1620 + $0x50] sm:$0xff]
    %v1632 = vld [vmem:[%s1620 + $0x58] sm:$0xff]
    %v1633 = vld [vmem:[%s1620 + $0x60] sm:$0xff]
    %v1634 = vld [vmem:[%s1620 + $0x68] sm:$0xff]
    %v1635 = vld [vmem:[%s1620 + $0x70] sm:$0xff]
    %v1636 = vld [vmem:[%s1620 + $0x78] sm:$0xff]
    %v1637 = vld [vmem:[%s1620 + $0x80] sm:$0xff]
    %v1638 = vld [vmem:[%s1620 + $0x88] sm:$0xff]
    %v1639 = vld [vmem:[%s1620 + $0x90] sm:$0xff]
    %v1640 = vld [vmem:[%s1620 + $0x98] sm:$0xff]
    %v1641 = vld [vmem:[%s1620 + $0xa0] sm:$0xff]
    %v1642 = vld [vmem:[%s1620 + $0xa8] sm:$0xff]
    %v1643 = vld [vmem:[%s1620 + $0xb0] sm:$0xff]
    %v1644 = vld [vmem:[%s1620 + $0xb8] sm:$0xff]
    %v1645 = vld [vmem:[%s1620 + $0xc0] sm:$0xff]
    %v1646 = vld [vmem:[%s1620 + $0xc8] sm:$0xff]
    %v1647 = vld [vmem:[%s1620 + $0xd0] sm:$0xff]
    %v1648 = vld [vmem:[%s1620 + $0xd8] sm:$0xff]
    %v1649 = vld [vmem:[%s1620 + $0xe0] sm:$0xff]
    %v1650 = vld [vmem:[%s1620 + $0xe8] sm:$0xff]
    %v1651 = vld [vmem:[%s1620 + $0xf0] sm:$0xff]
    %v1652 = vld [vmem:[%s1620 + $0xf8] sm:$0xff]
    %v1653 = vld [vmem:[%s1620 + $0x100] sm:$0xff]
    %v1654 = vld [vmem:[%s1620 + $0x108] sm:$0xff]
    %v1655 = vld [vmem:[%s1620 + $0x110] sm:$0xff]
    %v1656 = vld [vmem:[%s1620 + $0x118] sm:$0xff]
    %v1657 = vld [vmem:[%s1620 + $0x120] sm:$0xff]
    %v1658 = vld [vmem:[%s1620 + $0x128] sm:$0xff]
    %v1659 = vld [vmem:[%s1620 + $0x130] sm:$0xff]
    %v1660 = vld [vmem:[%s1620 + $0x138] sm:$0xff]
    %v1661 = vld [vmem:[%s1620 + $0x140] sm:$0xff]
    %v1662 = vld [vmem:[%s1620 + $0x148] sm:$0xff]
    %v1663 = vld [vmem:[%s1620 + $0x150] sm:$0xff]
    %v1664 = vld [vmem:[%s1620 + $0x158] sm:$0xff]
    %v1665 = vld [vmem:[%s1620 + $0x160] sm:$0xff]
    %v1666 = vld [vmem:[%s1620 + $0x168] sm:$0xff]
    %v1667 = vld [vmem:[%s1620 + $0x170] sm:$0xff]
    %v1668 = vld [vmem:[%s1620 + $0x178] sm:$0xff]
    %v1669 = vld [vmem:[%s1620 + $0x180] sm:$0xff]
    %v1670 = vld [vmem:[%s1620 + $0x188] sm:$0xff]
    %v1671 = vld [vmem:[%s1620 + $0x190] sm:$0xff]
    %v1672 = vld [vmem:[%s1620 + $0x198] sm:$0xff]
    %v1673 = vld [vmem:[%s1620 + $0x1a0] sm:$0xff]
    %v1674 = vld [vmem:[%s1620 + $0x1a8] sm:$0xff]
    %v1675 = vld [vmem:[%s1620 + $0x1b0] sm:$0xff]
    %v1676 = vld [vmem:[%s1620 + $0x1b8] sm:$0xff]
    %v1677 = vld [vmem:[%s1620 + $0x1c0] sm:$0xff]
    %v1678 = vld [vmem:[%s1620 + $0x1c8] sm:$0xff]
    %v1679 = vld [vmem:[%s1620 + $0x1d0] sm:$0xff]
    %v1680 = vld [vmem:[%s1620 + $0x1d8] sm:$0xff]
    %v1681 = vld [vmem:[%s1620 + $0x1e0] sm:$0xff]
    %v1682 = vld [vmem:[%s1620 + $0x1e8] sm:$0xff]
    %v1683 = vld [vmem:[%s1620 + $0x1f0] sm:$0xff]
    %v1684 = vld [vmem:[%s1620 + $0x1f8] sm:$0xff]
    %1685 = vmatprep.subr.mxu0 0.0
    %1686 = vmatpush1.msra.mxu0 %v1621
    %1687 = vmatprep.subr.mxu0 0.0
    %1688 = vmatpush1.msra.mxu0 %v1622
    %1689 = vmatprep.subr.mxu0 0.0
    %1690 = vmatpush1.msra.mxu0 %v1623
    %1691 = vmatprep.subr.mxu0 0.0
    %1692 = vmatpush1.msra.mxu0 %v1624
    %1693 = vmatprep.subr.mxu0 0.0
    %1694 = vmatpush1.msra.mxu0 %v1625
    %1695 = vmatprep.subr.mxu0 0.0
    %1696 = vmatpush1.msra.mxu0 %v1626
    %1697 = vmatprep.subr.mxu0 0.0
    %1698 = vmatpush1.msra.mxu0 %v1627
    %1699 = vmatprep.subr.mxu0 0.0
    %1700 = vmatpush1.msra.mxu0 %v1628
    %1701 = vmatprep.subr.mxu0 0.0
    %1702 = vmatpush1.msra.mxu0 %v1629
    %1703 = vmatprep.subr.mxu0 0.0
    %1704 = vmatpush1.msra.mxu0 %v1630
    %1705 = vmatprep.subr.mxu0 0.0
    %1706 = vmatpush1.msra.mxu0 %v1631
    %1707 = vmatprep.subr.mxu0 0.0
    %1708 = vmatpush1.msra.mxu0 %v1632
    %1709 = vmatprep.subr.mxu0 0.0
    %1710 = vmatpush1.msra.mxu0 %v1633
    %1711 = vmatprep.subr.mxu0 0.0
    %1712 = vmatpush1.msra.mxu0 %v1634
    %1713 = vmatprep.subr.mxu0 0.0
    %1714 = vmatpush1.msra.mxu0 %v1635
    %1715 = vmatprep.subr.mxu0 0.0
    %1716 = vmatpush1.msra.mxu0 %v1636
    %1717 = vmatprep.subr.mxu0 0.0
    %1718 = vmatpush1.msra.mxu0 %v1637
    %1719 = vmatprep.subr.mxu0 0.0
    %1720 = vmatpush1.msra.mxu0 %v1638
    %1721 = vmatprep.subr.mxu0 0.0
    %1722 = vmatpush1.msra.mxu0 %v1639
    %1723 = vmatprep.subr.mxu0 0.0
    %1724 = vmatpush1.msra.mxu0 %v1640
    %1725 = vmatprep.subr.mxu0 0.0
    %1726 = vmatpush1.msra.mxu0 %v1641
    %1727 = vmatprep.subr.mxu0 0.0
    %1728 = vmatpush1.msra.mxu0 %v1642
    %1729 = vmatprep.subr.mxu0 0.0
    %1730 = vmatpush1.msra.mxu0 %v1643
    %1731 = vmatprep.subr.mxu0 0.0
    %1732 = vmatpush1.msra.mxu0 %v1644
    %1733 = vmatprep.subr.mxu0 0.0
    %1734 = vmatpush1.msra.mxu0 %v1645
    %1735 = vmatprep.subr.mxu0 0.0
    %1736 = vmatpush1.msra.mxu0 %v1646
    %1737 = vmatprep.subr.mxu0 0.0
    %1738 = vmatpush1.msra.mxu0 %v1647
    %1739 = vmatprep.subr.mxu0 0.0
    %1740 = vmatpush1.msra.mxu0 %v1648
    %1741 = vmatprep.subr.mxu0 0.0
    %1742 = vmatpush1.msra.mxu0 %v1649
    %1743 = vmatprep.subr.mxu0 0.0
    %1744 = vmatpush1.msra.mxu0 %v1650
    %1745 = vmatprep.subr.mxu0 0.0
    %1746 = vmatpush1.msra.mxu0 %v1651
    %1747 = vmatprep.subr.mxu0 0.0
    %1748 = vmatpush1.msra.mxu0 %v1652
    %1749 = vmatprep.mubr.f32.mxu0 %v260
    %1750 = vmatmul.mubr.f32.gmra.mrb[0].mxu0 %v191
    %v1751 = vpop.f32.mrb[0].mxu0
    %v1752 = vadd.f32 0.0, %v1751
    %v1753 = vpop.f32.mrb[0].mxu0
    %1754 = vdwg.mxu0
    %1755 = vmatprep.subr.mxu0 0.0
    %1756 = vmatpush1.msra.mxu0 %v1653
    %1757 = vmatprep.subr.mxu0 0.0
    %1758 = vmatpush1.msra.mxu0 %v1654
    %1759 = vmatprep.subr.mxu0 0.0
    %1760 = vmatpush1.msra.mxu0 %v1655
    %1761 = vmatprep.subr.mxu0 0.0
    %1762 = vmatpush1.msra.mxu0 %v1656
    %1763 = vmatprep.subr.mxu0 0.0
    %1764 = vmatpush1.msra.mxu0 %v1657
    %1765 = vmatprep.subr.mxu0 0.0
    %1766 = vmatpush1.msra.mxu0 %v1658
    %1767 = vmatprep.subr.mxu0 0.0
    %1768 = vmatpush1.msra.mxu0 %v1659
    %1769 = vmatprep.subr.mxu0 0.0
    %1770 = vmatpush1.msra.mxu0 %v1660
    %1771 = vmatprep.subr.mxu0 0.0
    %1772 = vmatpush1.msra.mxu0 %v1661
    %1773 = vmatprep.subr.mxu0 0.0
    %1774 = vmatpush1.msra.mxu0 %v1662
    %1775 = vmatprep.subr.mxu0 0.0
    %1776 = vmatpush1.msra.mxu0 %v1663
    %1777 = vmatprep.subr.mxu0 0.0
    %1778 = vmatpush1.msra.mxu0 %v1664
    %1779 = vmatprep.subr.mxu0 0.0
    %1780 = vmatpush1.msra.mxu0 %v1665
    %1781 = vmatprep.subr.mxu0 0.0
    %1782 = vmatpush1.msra.mxu0 %v1666
    %1783 = vmatprep.subr.mxu0 0.0
    %1784 = vmatpush1.msra.mxu0 %v1667
    %1785 = vmatprep.subr.mxu0 0.0
    %1786 = vmatpush1.msra.mxu0 %v1668
    %1787 = vmatprep.subr.mxu0 0.0
    %1788 = vmatpush1.msra.mxu0 %v1669
    %1789 = vmatprep.subr.mxu0 0.0
    %1790 = vmatpush1.msra.mxu0 %v1670
    %1791 = vmatprep.subr.mxu0 0.0
    %1792 = vmatpush1.msra.mxu0 %v1671
    %1793 = vmatprep.subr.mxu0 0.0
    %1794 = vmatpush1.msra.mxu0 %v1672
    %1795 = vmatprep.subr.mxu0 0.0
    %1796 = vmatpush1.msra.mxu0 %v1673
    %1797 = vmatprep.subr.mxu0 0.0
    %1798 = vmatpush1.msra.mxu0 %v1674
    %1799 = vmatprep.subr.mxu0 0.0
    %1800 = vmatpush1.msra.mxu0 %v1675
    %1801 = vmatprep.subr.mxu0 0.0
    %1802 = vmatpush1.msra.mxu0 %v1676
    %1803 = vmatprep.subr.mxu0 0.0
    %1804 = vmatpush1.msra.mxu0 %v1677
    %1805 = vmatprep.subr.mxu0 0.0
    %1806 = vmatpush1.msra.mxu0 %v1678
    %1807 = vmatprep.subr.mxu0 0.0
    %1808 = vmatpush1.msra.mxu0 %v1679
    %1809 = vmatprep.subr.mxu0 0.0
    %1810 = vmatpush1.msra.mxu0 %v1680
    %1811 = vmatprep.subr.mxu0 0.0
    %1812 = vmatpush1.msra.mxu0 %v1681
    %1813 = vmatprep.subr.mxu0 0.0
    %1814 = vmatpush1.msra.mxu0 %v1682
    %1815 = vmatprep.subr.mxu0 0.0
    %1816 = vmatpush1.msra.mxu0 %v1683
    %1817 = vmatprep.subr.mxu0 0.0
    %1818 = vmatpush1.msra.mxu0 %v1684
    %1819 = vmatprep.mubr.f32.mxu0 %v261
    %1820 = vmatmul.mubr.f32.gmra.mrb[0].mxu0 %v192
    %v1821 = vpop.f32.mrb[0].mxu0
    %v1822 = vadd.f32 %v1752, %v1821
    %v1823 = vpop.f32.mrb[0].mxu0
    %1824 = vdwg.mxu0
    %s1825 = scalar_lea.vmem [#allocation11], 32
    %v1826 = vld [vmem:[%s1825] sm:$0xff]
    %v1828 = vsel %vm410, %v1826, 0
    %v1831 = vsel %vm414, %v1822, 0
    %1833 = vmatprep.subr.mxu0 0.0
    %1834 = vmatpush1.msra.mxu0 %v1831
    %1835 = vmatprep.subr.mxu0 0.0
    %1836 = vmatpush1.msra.mxu0 0.0
    %1837 = vmatprep.subr.mxu0 0.0
    %1838 = vmatpush1.msra.mxu0 0.0
    %1839 = vmatprep.subr.mxu0 0.0
    %1840 = vmatpush1.msra.mxu0 0.0
    %1841 = vmatprep.subr.mxu0 0.0
    %1842 = vmatpush1.msra.mxu0 0.0
    %1843 = vmatprep.subr.mxu0 0.0
    %1844 = vmatpush1.msra.mxu0 0.0
    %1845 = vmatprep.subr.mxu0 0.0
    %1846 = vmatpush1.msra.mxu0 0.0
    %1847 = vmatprep.subr.mxu0 0.0
    %1848 = vmatpush1.msra.mxu0 0.0
    %1849 = vmatprep.subr.mxu0 0.0
    %1850 = vmatpush1.msra.mxu0 0.0
    %1851 = vmatprep.subr.mxu0 0.0
    %1852 = vmatpush1.msra.mxu0 0.0
    %1853 = vmatprep.subr.mxu0 0.0
    %1854 = vmatpush1.msra.mxu0 0.0
    %1855 = vmatprep.subr.mxu0 0.0
    %1856 = vmatpush1.msra.mxu0 0.0
    %1857 = vmatprep.subr.mxu0 0.0
    %1858 = vmatpush1.msra.mxu0 0.0
    %1859 = vmatprep.subr.mxu0 0.0
    %1860 = vmatpush1.msra.mxu0 0.0
    %1861 = vmatprep.subr.mxu0 0.0
    %1862 = vmatpush1.msra.mxu0 0.0
    %1863 = vmatprep.subr.mxu0 0.0
    %1864 = vmatpush1.msra.mxu0 0.0
    %1865 = vmatprep.subr.mxu0 0.0
    %1866 = vmatpush1.msra.mxu0 0.0
    %1867 = vmatprep.subr.mxu0 0.0
    %1868 = vmatpush1.msra.mxu0 0.0
    %1869 = vmatprep.subr.mxu0 0.0
    %1870 = vmatpush1.msra.mxu0 0.0
    %1871 = vmatprep.subr.mxu0 0.0
    %1872 = vmatpush1.msra.mxu0 0.0
    %1873 = vmatprep.subr.mxu0 0.0
    %1874 = vmatpush1.msra.mxu0 0.0
    %1875 = vmatprep.subr.mxu0 0.0
    %1876 = vmatpush1.msra.mxu0 0.0
    %1877 = vmatprep.subr.mxu0 0.0
    %1878 = vmatpush1.msra.mxu0 0.0
    %1879 = vmatprep.subr.mxu0 0.0
    %1880 = vmatpush1.msra.mxu0 0.0
    %1881 = vmatprep.subr.mxu0 0.0
    %1882 = vmatpush1.msra.mxu0 0.0
    %1883 = vmatprep.subr.mxu0 0.0
    %1884 = vmatpush1.msra.mxu0 0.0
    %1885 = vmatprep.subr.mxu0 0.0
    %1886 = vmatpush1.msra.mxu0 0.0
    %1887 = vmatprep.subr.mxu0 0.0
    %1888 = vmatpush1.msra.mxu0 0.0
    %1889 = vmatprep.subr.mxu0 0.0
    %1890 = vmatpush1.msra.mxu0 0.0
    %1891 = vmatprep.subr.mxu0 0.0
    %1892 = vmatpush1.msra.mxu0 0.0
    %1893 = vmatprep.subr.mxu0 0.0
    %1894 = vmatpush1.msra.mxu0 0.0
    %1895 = vmatprep.subr.mxu0 0.0
    %1896 = vmatpush1.msra.mxu0 0.0
    %1897 = vmatprep.mubr.f32.mxu0 0.0
    %1898 = vmatmul.mubr.f32.gmra.mrb[0].mxu0 %v1828
    %v1899 = vpop.f32.mrb[0].mxu0
    %v1900 = vadd.f32 0.0, %v1899
    %v1901 = vpop.f32.mrb[0].mxu0
    %1902 = vdwg.mxu0
    %v1903 = vadd.f32 %v1619, %v1900
    %s1904 = scalar_lea.vmem [#allocation10], 2560
    %v1905 = vld [vmem:[%s1904] sm:$0xff]
    %v1906 = vld [vmem:[%s1904 + $0x8] sm:$0xff]
    %v1907 = vld [vmem:[%s1904 + $0x10] sm:$0xff]
    %v1908 = vld [vmem:[%s1904 + $0x18] sm:$0xff]
    %v1909 = vld [vmem:[%s1904 + $0x20] sm:$0xff]
    %v1910 = vld [vmem:[%s1904 + $0x28] sm:$0xff]
    %v1911 = vld [vmem:[%s1904 + $0x30] sm:$0xff]
    %v1912 = vld [vmem:[%s1904 + $0x38] sm:$0xff]
    %v1913 = vld [vmem:[%s1904 + $0x40] sm:$0xff]
    %v1914 = vld [vmem:[%s1904 + $0x48] sm:$0xff]
    %v1915 = vld [vmem:[%s1904 + $0x50] sm:$0xff]
    %v1916 = vld [vmem:[%s1904 + $0x58] sm:$0xff]
    %v1917 = vld [vmem:[%s1904 + $0x60] sm:$0xff]
    %v1918 = vld [vmem:[%s1904 + $0x68] sm:$0xff]
    %v1919 = vld [vmem:[%s1904 + $0x70] sm:$0xff]
    %v1920 = vld [vmem:[%s1904 + $0x78] sm:$0xff]
    %v1921 = vld [vmem:[%s1904 + $0x80] sm:$0xff]
    %v1922 = vld [vmem:[%s1904 + $0x88] sm:$0xff]
    %v1923 = vld [vmem:[%s1904 + $0x90] sm:$0xff]
    %v1924 = vld [vmem:[%s1904 + $0x98] sm:$0xff]
    %v1925 = vld [vmem:[%s1904 + $0xa0] sm:$0xff]
    %v1926 = vld [vmem:[%s1904 + $0xa8] sm:$0xff]
    %v1927 = vld [vmem:[%s1904 + $0xb0] sm:$0xff]
    %v1928 = vld [vmem:[%s1904 + $0xb8] sm:$0xff]
    %v1929 = vld [vmem:[%s1904 + $0xc0] sm:$0xff]
    %v1930 = vld [vmem:[%s1904 + $0xc8] sm:$0xff]
    %v1931 = vld [vmem:[%s1904 + $0xd0] sm:$0xff]
    %v1932 = vld [vmem:[%s1904 + $0xd8] sm:$0xff]
    %v1933 = vld [vmem:[%s1904 + $0xe0] sm:$0xff]
    %v1934 = vld [vmem:[%s1904 + $0xe8] sm:$0xff]
    %v1935 = vld [vmem:[%s1904 + $0xf0] sm:$0xff]
    %v1936 = vld [vmem:[%s1904 + $0xf8] sm:$0xff]
    %v1937 = vld [vmem:[%s1904 + $0x100] sm:$0xff]
    %v1938 = vld [vmem:[%s1904 + $0x108] sm:$0xff]
    %v1939 = vld [vmem:[%s1904 + $0x110] sm:$0xff]
    %v1940 = vld [vmem:[%s1904 + $0x118] sm:$0xff]
    %v1941 = vld [vmem:[%s1904 + $0x120] sm:$0xff]
    %v1942 = vld [vmem:[%s1904 + $0x128] sm:$0xff]
    %v1943 = vld [vmem:[%s1904 + $0x130] sm:$0xff]
    %v1944 = vld [vmem:[%s1904 + $0x138] sm:$0xff]
    %v1945 = vld [vmem:[%s1904 + $0x140] sm:$0xff]
    %v1946 = vld [vmem:[%s1904 + $0x148] sm:$0xff]
    %v1947 = vld [vmem:[%s1904 + $0x150] sm:$0xff]
    %v1948 = vld [vmem:[%s1904 + $0x158] sm:$0xff]
    %v1949 = vld [vmem:[%s1904 + $0x160] sm:$0xff]
    %v1950 = vld [vmem:[%s1904 + $0x168] sm:$0xff]
    %v1951 = vld [vmem:[%s1904 + $0x170] sm:$0xff]
    %v1952 = vld [vmem:[%s1904 + $0x178] sm:$0xff]
    %v1953 = vld [vmem:[%s1904 + $0x180] sm:$0xff]
    %v1954 = vld [vmem:[%s1904 + $0x188] sm:$0xff]
    %v1955 = vld [vmem:[%s1904 + $0x190] sm:$0xff]
    %v1956 = vld [vmem:[%s1904 + $0x198] sm:$0xff]
    %v1957 = vld [vmem:[%s1904 + $0x1a0] sm:$0xff]
    %v1958 = vld [vmem:[%s1904 + $0x1a8] sm:$0xff]
    %v1959 = vld [vmem:[%s1904 + $0x1b0] sm:$0xff]
    %v1960 = vld [vmem:[%s1904 + $0x1b8] sm:$0xff]
    %v1961 = vld [vmem:[%s1904 + $0x1c0] sm:$0xff]
    %v1962 = vld [vmem:[%s1904 + $0x1c8] sm:$0xff]
    %v1963 = vld [vmem:[%s1904 + $0x1d0] sm:$0xff]
    %v1964 = vld [vmem:[%s1904 + $0x1d8] sm:$0xff]
    %v1965 = vld [vmem:[%s1904 + $0x1e0] sm:$0xff]
    %v1966 = vld [vmem:[%s1904 + $0x1e8] sm:$0xff]
    %v1967 = vld [vmem:[%s1904 + $0x1f0] sm:$0xff]
    %v1968 = vld [vmem:[%s1904 + $0x1f8] sm:$0xff]
    %1969 = vmatprep.subr.mxu0 0.0
    %1970 = vmatpush1.msra.mxu0 %v1905
    %1971 = vmatprep.subr.mxu0 0.0
    %1972 = vmatpush1.msra.mxu0 %v1906
    %1973 = vmatprep.subr.mxu0 0.0
    %1974 = vmatpush1.msra.mxu0 %v1907
    %1975 = vmatprep.subr.mxu0 0.0
    %1976 = vmatpush1.msra.mxu0 %v1908
    %1977 = vmatprep.subr.mxu0 0.0
    %1978 = vmatpush1.msra.mxu0 %v1909
    %1979 = vmatprep.subr.mxu0 0.0
    %1980 = vmatpush1.msra.mxu0 %v1910
    %1981 = vmatprep.subr.mxu0 0.0
    %1982 = vmatpush1.msra.mxu0 %v1911
    %1983 = vmatprep.subr.mxu0 0.0
    %1984 = vmatpush1.msra.mxu0 %v1912
    %1985 = vmatprep.subr.mxu0 0.0
    %1986 = vmatpush1.msra.mxu0 %v1913
    %1987 = vmatprep.subr.mxu0 0.0
    %1988 = vmatpush1.msra.mxu0 %v1914
    %1989 = vmatprep.subr.mxu0 0.0
    %1990 = vmatpush1.msra.mxu0 %v1915
    %1991 = vmatprep.subr.mxu0 0.0
    %1992 = vmatpush1.msra.mxu0 %v1916
    %1993 = vmatprep.subr.mxu0 0.0
    %1994 = vmatpush1.msra.mxu0 %v1917
    %1995 = vmatprep.subr.mxu0 0.0
    %1996 = vmatpush1.msra.mxu0 %v1918
    %1997 = vmatprep.subr.mxu0 0.0
    %1998 = vmatpush1.msra.mxu0 %v1919
    %1999 = vmatprep.subr.mxu0 0.0
    %2000 = vmatpush1.msra.mxu0 %v1920
    %2001 = vmatprep.subr.mxu0 0.0
    %2002 = vmatpush1.msra.mxu0 %v1921
    %2003 = vmatprep.subr.mxu0 0.0
    %2004 = vmatpush1.msra.mxu0 %v1922
    %2005 = vmatprep.subr.mxu0 0.0
    %2006 = vmatpush1.msra.mxu0 %v1923
    %2007 = vmatprep.subr.mxu0 0.0
    %2008 = vmatpush1.msra.mxu0 %v1924
    %2009 = vmatprep.subr.mxu0 0.0
    %2010 = vmatpush1.msra.mxu0 %v1925
    %2011 = vmatprep.subr.mxu0 0.0
    %2012 = vmatpush1.msra.mxu0 %v1926
    %2013 = vmatprep.subr.mxu0 0.0
    %2014 = vmatpush1.msra.mxu0 %v1927
    %2015 = vmatprep.subr.mxu0 0.0
    %2016 = vmatpush1.msra.mxu0 %v1928
    %2017 = vmatprep.subr.mxu0 0.0
    %2018 = vmatpush1.msra.mxu0 %v1929
    %2019 = vmatprep.subr.mxu0 0.0
    %2020 = vmatpush1.msra.mxu0 %v1930
    %2021 = vmatprep.subr.mxu0 0.0
    %2022 = vmatpush1.msra.mxu0 %v1931
    %2023 = vmatprep.subr.mxu0 0.0
    %2024 = vmatpush1.msra.mxu0 %v1932
    %2025 = vmatprep.subr.mxu0 0.0
    %2026 = vmatpush1.msra.mxu0 %v1933
    %2027 = vmatprep.subr.mxu0 0.0
    %2028 = vmatpush1.msra.mxu0 %v1934
    %2029 = vmatprep.subr.mxu0 0.0
    %2030 = vmatpush1.msra.mxu0 %v1935
    %2031 = vmatprep.subr.mxu0 0.0
    %2032 = vmatpush1.msra.mxu0 %v1936
    %2033 = vmatprep.mubr.f32.mxu0 %v260
    %2034 = vmatmul.mubr.f32.gmra.mrb[0].mxu0 %v191
    %v2035 = vpop.f32.mrb[0].mxu0
    %v2036 = vadd.f32 0.0, %v2035
    %v2037 = vpop.f32.mrb[0].mxu0
    %2038 = vdwg.mxu0
    %2039 = vmatprep.subr.mxu0 0.0
    %2040 = vmatpush1.msra.mxu0 %v1937
    %2041 = vmatprep.subr.mxu0 0.0
    %2042 = vmatpush1.msra.mxu0 %v1938
    %2043 = vmatprep.subr.mxu0 0.0
    %2044 = vmatpush1.msra.mxu0 %v1939
    %2045 = vmatprep.subr.mxu0 0.0
    %2046 = vmatpush1.msra.mxu0 %v1940
    %2047 = vmatprep.subr.mxu0 0.0
    %2048 = vmatpush1.msra.mxu0 %v1941
    %2049 = vmatprep.subr.mxu0 0.0
    %2050 = vmatpush1.msra.mxu0 %v1942
    %2051 = vmatprep.subr.mxu0 0.0
    %2052 = vmatpush1.msra.mxu0 %v1943
    %2053 = vmatprep.subr.mxu0 0.0
    %2054 = vmatpush1.msra.mxu0 %v1944
    %2055 = vmatprep.subr.mxu0 0.0
    %2056 = vmatpush1.msra.mxu0 %v1945
    %2057 = vmatprep.subr.mxu0 0.0
    %2058 = vmatpush1.msra.mxu0 %v1946
    %2059 = vmatprep.subr.mxu0 0.0
    %2060 = vmatpush1.msra.mxu0 %v1947
    %2061 = vmatprep.subr.mxu0 0.0
    %2062 = vmatpush1.msra.mxu0 %v1948
    %2063 = vmatprep.subr.mxu0 0.0
    %2064 = vmatpush1.msra.mxu0 %v1949
    %2065 = vmatprep.subr.mxu0 0.0
    %2066 = vmatpush1.msra.mxu0 %v1950
    %2067 = vmatprep.subr.mxu0 0.0
    %2068 = vmatpush1.msra.mxu0 %v1951
    %2069 = vmatprep.subr.mxu0 0.0
    %2070 = vmatpush1.msra.mxu0 %v1952
    %2071 = vmatprep.subr.mxu0 0.0
    %2072 = vmatpush1.msra.mxu0 %v1953
    %2073 = vmatprep.subr.mxu0 0.0
    %2074 = vmatpush1.msra.mxu0 %v1954
    %2075 = vmatprep.subr.mxu0 0.0
    %2076 = vmatpush1.msra.mxu0 %v1955
    %2077 = vmatprep.subr.mxu0 0.0
    %2078 = vmatpush1.msra.mxu0 %v1956
    %2079 = vmatprep.subr.mxu0 0.0
    %2080 = vmatpush1.msra.mxu0 %v1957
    %2081 = vmatprep.subr.mxu0 0.0
    %2082 = vmatpush1.msra.mxu0 %v1958
    %2083 = vmatprep.subr.mxu0 0.0
    %2084 = vmatpush1.msra.mxu0 %v1959
    %2085 = vmatprep.subr.mxu0 0.0
    %2086 = vmatpush1.msra.mxu0 %v1960
    %2087 = vmatprep.subr.mxu0 0.0
    %2088 = vmatpush1.msra.mxu0 %v1961
    %2089 = vmatprep.subr.mxu0 0.0
    %2090 = vmatpush1.msra.mxu0 %v1962
    %2091 = vmatprep.subr.mxu0 0.0
    %2092 = vmatpush1.msra.mxu0 %v1963
    %2093 = vmatprep.subr.mxu0 0.0
    %2094 = vmatpush1.msra.mxu0 %v1964
    %2095 = vmatprep.subr.mxu0 0.0
    %2096 = vmatpush1.msra.mxu0 %v1965
    %2097 = vmatprep.subr.mxu0 0.0
    %2098 = vmatpush1.msra.mxu0 %v1966
    %2099 = vmatprep.subr.mxu0 0.0
    %2100 = vmatpush1.msra.mxu0 %v1967
    %2101 = vmatprep.subr.mxu0 0.0
    %2102 = vmatpush1.msra.mxu0 %v1968
    %2103 = vmatprep.mubr.f32.mxu0 %v261
    %2104 = vmatmul.mubr.f32.gmra.mrb[0].mxu0 %v192
    %v2105 = vpop.f32.mrb[0].mxu0
    %v2106 = vadd.f32 %v2036, %v2105
    %v2107 = vpop.f32.mrb[0].mxu0
    %2108 = vdwg.mxu0
    %s2109 = scalar_lea.vmem [#allocation11], 40
    %v2110 = vld [vmem:[%s2109] sm:$0xff]
    %v2112 = vsel %vm410, %v2110, 0
    %v2115 = vsel %vm414, %v2106, 0
    %2117 = vmatprep.subr.mxu0 0.0
    %2118 = vmatpush1.msra.mxu0 %v2115
    %2119 = vmatprep.subr.mxu0 0.0
    %2120 = vmatpush1.msra.mxu0 0.0
    %2121 = vmatprep.subr.mxu0 0.0
    %2122 = vmatpush1.msra.mxu0 0.0
    %2123 = vmatprep.subr.mxu0 0.0
    %2124 = vmatpush1.msra.mxu0 0.0
    %2125 = vmatprep.subr.mxu0 0.0
    %2126 = vmatpush1.msra.mxu0 0.0
    %2127 = vmatprep.subr.mxu0 0.0
    %2128 = vmatpush1.msra.mxu0 0.0
    %2129 = vmatprep.subr.mxu0 0.0
    %2130 = vmatpush1.msra.mxu0 0.0
    %2131 = vmatprep.subr.mxu0 0.0
    %2132 = vmatpush1.msra.mxu0 0.0
    %2133 = vmatprep.subr.mxu0 0.0
    %2134 = vmatpush1.msra.mxu0 0.0
    %2135 = vmatprep.subr.mxu0 0.0
    %2136 = vmatpush1.msra.mxu0 0.0
    %2137 = vmatprep.subr.mxu0 0.0
    %2138 = vmatpush1.msra.mxu0 0.0
    %2139 = vmatprep.subr.mxu0 0.0
    %2140 = vmatpush1.msra.mxu0 0.0
    %2141 = vmatprep.subr.mxu0 0.0
    %2142 = vmatpush1.msra.mxu0 0.0
    %2143 = vmatprep.subr.mxu0 0.0
    %2144 = vmatpush1.msra.mxu0 0.0
    %2145 = vmatprep.subr.mxu0 0.0
    %2146 = vmatpush1.msra.mxu0 0.0
    %2147 = vmatprep.subr.mxu0 0.0
    %2148 = vmatpush1.msra.mxu0 0.0
    %2149 = vmatprep.subr.mxu0 0.0
    %2150 = vmatpush1.msra.mxu0 0.0
    %2151 = vmatprep.subr.mxu0 0.0
    %2152 = vmatpush1.msra.mxu0 0.0
    %2153 = vmatprep.subr.mxu0 0.0
    %2154 = vmatpush1.msra.mxu0 0.0
    %2155 = vmatprep.subr.mxu0 0.0
    %2156 = vmatpush1.msra.mxu0 0.0
    %2157 = vmatprep.subr.mxu0 0.0
    %2158 = vmatpush1.msra.mxu0 0.0
    %2159 = vmatprep.subr.mxu0 0.0
    %2160 = vmatpush1.msra.mxu0 0.0
    %2161 = vmatprep.subr.mxu0 0.0
    %2162 = vmatpush1.msra.mxu0 0.0
    %2163 = vmatprep.subr.mxu0 0.0
    %2164 = vmatpush1.msra.mxu0 0.0
    %2165 = vmatprep.subr.mxu0 0.0
    %2166 = vmatpush1.msra.mxu0 0.0
    %2167 = vmatprep.subr.mxu0 0.0
    %2168 = vmatpush1.msra.mxu0 0.0
    %2169 = vmatprep.subr.mxu0 0.0
    %2170 = vmatpush1.msra.mxu0 0.0
    %2171 = vmatprep.subr.mxu0 0.0
    %2172 = vmatpush1.msra.mxu0 0.0
    %2173 = vmatprep.subr.mxu0 0.0
    %2174 = vmatpush1.msra.mxu0 0.0
    %2175 = vmatprep.subr.mxu0 0.0
    %2176 = vmatpush1.msra.mxu0 0.0
    %2177 = vmatprep.subr.mxu0 0.0
    %2178 = vmatpush1.msra.mxu0 0.0
    %2179 = vmatprep.subr.mxu0 0.0
    %2180 = vmatpush1.msra.mxu0 0.0
    %2181 = vmatprep.mubr.f32.mxu0 0.0
    %2182 = vmatmul.mubr.f32.gmra.mrb[0].mxu0 %v2112
    %v2183 = vpop.f32.mrb[0].mxu0
    %v2184 = vadd.f32 0.0, %v2183
    %v2185 = vpop.f32.mrb[0].mxu0
    %2186 = vdwg.mxu0
    %v2187 = vadd.f32 %v1903, %v2184
    %s2188 = scalar_lea.vmem [#allocation10], 3072
    %v2189 = vld [vmem:[%s2188] sm:$0xff]
    %v2190 = vld [vmem:[%s2188 + $0x8] sm:$0xff]
    %v2191 = vld [vmem:[%s2188 + $0x10] sm:$0xff]
    %v2192 = vld [vmem:[%s2188 + $0x18] sm:$0xff]
    %v2193 = vld [vmem:[%s2188 + $0x20] sm:$0xff]
    %v2194 = vld [vmem:[%s2188 + $0x28] sm:$0xff]
    %v2195 = vld [vmem:[%s2188 + $0x30] sm:$0xff]
    %v2196 = vld [vmem:[%s2188 + $0x38] sm:$0xff]
    %v2197 = vld [vmem:[%s2188 + $0x40] sm:$0xff]
    %v2198 = vld [vmem:[%s2188 + $0x48] sm:$0xff]
    %v2199 = vld [vmem:[%s2188 + $0x50] sm:$0xff]
    %v2200 = vld [vmem:[%s2188 + $0x58] sm:$0xff]
    %v2201 = vld [vmem:[%s2188 + $0x60] sm:$0xff]
    %v2202 = vld [vmem:[%s2188 + $0x68] sm:$0xff]
    %v2203 = vld [vmem:[%s2188 + $0x70] sm:$0xff]
    %v2204 = vld [vmem:[%s2188 + $0x78] sm:$0xff]
    %v2205 = vld [vmem:[%s2188 + $0x80] sm:$0xff]
    %v2206 = vld [vmem:[%s2188 + $0x88] sm:$0xff]
    %v2207 = vld [vmem:[%s2188 + $0x90] sm:$0xff]
    %v2208 = vld [vmem:[%s2188 + $0x98] sm:$0xff]
    %v2209 = vld [vmem:[%s2188 + $0xa0] sm:$0xff]
    %v2210 = vld [vmem:[%s2188 + $0xa8] sm:$0xff]
    %v2211 = vld [vmem:[%s2188 + $0xb0] sm:$0xff]
    %v2212 = vld [vmem:[%s2188 + $0xb8] sm:$0xff]
    %v2213 = vld [vmem:[%s2188 + $0xc0] sm:$0xff]
    %v2214 = vld [vmem:[%s2188 + $0xc8] sm:$0xff]
    %v2215 = vld [vmem:[%s2188 + $0xd0] sm:$0xff]
    %v2216 = vld [vmem:[%s2188 + $0xd8] sm:$0xff]
    %v2217 = vld [vmem:[%s2188 + $0xe0] sm:$0xff]
    %v2218 = vld [vmem:[%s2188 + $0xe8] sm:$0xff]
    %v2219 = vld [vmem:[%s2188 + $0xf0] sm:$0xff]
    %v2220 = vld [vmem:[%s2188 + $0xf8] sm:$0xff]
    %v2221 = vld [vmem:[%s2188 + $0x100] sm:$0xff]
    %v2222 = vld [vmem:[%s2188 + $0x108] sm:$0xff]
    %v2223 = vld [vmem:[%s2188 + $0x110] sm:$0xff]
    %v2224 = vld [vmem:[%s2188 + $0x118] sm:$0xff]
    %v2225 = vld [vmem:[%s2188 + $0x120] sm:$0xff]
    %v2226 = vld [vmem:[%s2188 + $0x128] sm:$0xff]
    %v2227 = vld [vmem:[%s2188 + $0x130] sm:$0xff]
    %v2228 = vld [vmem:[%s2188 + $0x138] sm:$0xff]
    %v2229 = vld [vmem:[%s2188 + $0x140] sm:$0xff]
    %v2230 = vld [vmem:[%s2188 + $0x148] sm:$0xff]
    %v2231 = vld [vmem:[%s2188 + $0x150] sm:$0xff]
    %v2232 = vld [vmem:[%s2188 + $0x158] sm:$0xff]
    %v2233 = vld [vmem:[%s2188 + $0x160] sm:$0xff]
    %v2234 = vld [vmem:[%s2188 + $0x168] sm:$0xff]
    %v2235 = vld [vmem:[%s2188 + $0x170] sm:$0xff]
    %v2236 = vld [vmem:[%s2188 + $0x178] sm:$0xff]
    %v2237 = vld [vmem:[%s2188 + $0x180] sm:$0xff]
    %v2238 = vld [vmem:[%s2188 + $0x188] sm:$0xff]
    %v2239 = vld [vmem:[%s2188 + $0x190] sm:$0xff]
    %v2240 = vld [vmem:[%s2188 + $0x198] sm:$0xff]
    %v2241 = vld [vmem:[%s2188 + $0x1a0] sm:$0xff]
    %v2242 = vld [vmem:[%s2188 + $0x1a8] sm:$0xff]
    %v2243 = vld [vmem:[%s2188 + $0x1b0] sm:$0xff]
    %v2244 = vld [vmem:[%s2188 + $0x1b8] sm:$0xff]
    %v2245 = vld [vmem:[%s2188 + $0x1c0] sm:$0xff]
    %v2246 = vld [vmem:[%s2188 + $0x1c8] sm:$0xff]
    %v2247 = vld [vmem:[%s2188 + $0x1d0] sm:$0xff]
    %v2248 = vld [vmem:[%s2188 + $0x1d8] sm:$0xff]
    %v2249 = vld [vmem:[%s2188 + $0x1e0] sm:$0xff]
    %v2250 = vld [vmem:[%s2188 + $0x1e8] sm:$0xff]
    %v2251 = vld [vmem:[%s2188 + $0x1f0] sm:$0xff]
    %v2252 = vld [vmem:[%s2188 + $0x1f8] sm:$0xff]
    %2253 = vmatprep.subr.mxu0 0.0
    %2254 = vmatpush1.msra.mxu0 %v2189
    %2255 = vmatprep.subr.mxu0 0.0
    %2256 = vmatpush1.msra.mxu0 %v2190
    %2257 = vmatprep.subr.mxu0 0.0
    %2258 = vmatpush1.msra.mxu0 %v2191
    %2259 = vmatprep.subr.mxu0 0.0
    %2260 = vmatpush1.msra.mxu0 %v2192
    %2261 = vmatprep.subr.mxu0 0.0
    %2262 = vmatpush1.msra.mxu0 %v2193
    %2263 = vmatprep.subr.mxu0 0.0
    %2264 = vmatpush1.msra.mxu0 %v2194
    %2265 = vmatprep.subr.mxu0 0.0
    %2266 = vmatpush1.msra.mxu0 %v2195
    %2267 = vmatprep.subr.mxu0 0.0
    %2268 = vmatpush1.msra.mxu0 %v2196
    %2269 = vmatprep.subr.mxu0 0.0
    %2270 = vmatpush1.msra.mxu0 %v2197
    %2271 = vmatprep.subr.mxu0 0.0
    %2272 = vmatpush1.msra.mxu0 %v2198
    %2273 = vmatprep.subr.mxu0 0.0
    %2274 = vmatpush1.msra.mxu0 %v2199
    %2275 = vmatprep.subr.mxu0 0.0
    %2276 = vmatpush1.msra.mxu0 %v2200
    %2277 = vmatprep.subr.mxu0 0.0
    %2278 = vmatpush1.msra.mxu0 %v2201
    %2279 = vmatprep.subr.mxu0 0.0
    %2280 = vmatpush1.msra.mxu0 %v2202
    %2281 = vmatprep.subr.mxu0 0.0
    %2282 = vmatpush1.msra.mxu0 %v2203
    %2283 = vmatprep.subr.mxu0 0.0
    %2284 = vmatpush1.msra.mxu0 %v2204
    %2285 = vmatprep.subr.mxu0 0.0
    %2286 = vmatpush1.msra.mxu0 %v2205
    %2287 = vmatprep.subr.mxu0 0.0
    %2288 = vmatpush1.msra.mxu0 %v2206
    %2289 = vmatprep.subr.mxu0 0.0
    %2290 = vmatpush1.msra.mxu0 %v2207
    %2291 = vmatprep.subr.mxu0 0.0
    %2292 = vmatpush1.msra.mxu0 %v2208
    %2293 = vmatprep.subr.mxu0 0.0
    %2294 = vmatpush1.msra.mxu0 %v2209
    %2295 = vmatprep.subr.mxu0 0.0
    %2296 = vmatpush1.msra.mxu0 %v2210
    %2297 = vmatprep.subr.mxu0 0.0
    %2298 = vmatpush1.msra.mxu0 %v2211
    %2299 = vmatprep.subr.mxu0 0.0
    %2300 = vmatpush1.msra.mxu0 %v2212
    %2301 = vmatprep.subr.mxu0 0.0
    %2302 = vmatpush1.msra.mxu0 %v2213
    %2303 = vmatprep.subr.mxu0 0.0
    %2304 = vmatpush1.msra.mxu0 %v2214
    %2305 = vmatprep.subr.mxu0 0.0
    %2306 = vmatpush1.msra.mxu0 %v2215
    %2307 = vmatprep.subr.mxu0 0.0
    %2308 = vmatpush1.msra.mxu0 %v2216
    %2309 = vmatprep.subr.mxu0 0.0
    %2310 = vmatpush1.msra.mxu0 %v2217
    %2311 = vmatprep.subr.mxu0 0.0
    %2312 = vmatpush1.msra.mxu0 %v2218
    %2313 = vmatprep.subr.mxu0 0.0
    %2314 = vmatpush1.msra.mxu0 %v2219
    %2315 = vmatprep.subr.mxu0 0.0
    %2316 = vmatpush1.msra.mxu0 %v2220
    %2317 = vmatprep.mubr.f32.mxu0 %v260
    %2318 = vmatmul.mubr.f32.gmra.mrb[0].mxu0 %v191
    %v2319 = vpop.f32.mrb[0].mxu0
    %v2320 = vadd.f32 0.0, %v2319
    %v2321 = vpop.f32.mrb[0].mxu0
    %2322 = vdwg.mxu0
    %2323 = vmatprep.subr.mxu0 0.0
    %2324 = vmatpush1.msra.mxu0 %v2221
    %2325 = vmatprep.subr.mxu0 0.0
    %2326 = vmatpush1.msra.mxu0 %v2222
    %2327 = vmatprep.subr.mxu0 0.0
    %2328 = vmatpush1.msra.mxu0 %v2223
    %2329 = vmatprep.subr.mxu0 0.0
    %2330 = vmatpush1.msra.mxu0 %v2224
    %2331 = vmatprep.subr.mxu0 0.0
    %2332 = vmatpush1.msra.mxu0 %v2225
    %2333 = vmatprep.subr.mxu0 0.0
    %2334 = vmatpush1.msra.mxu0 %v2226
    %2335 = vmatprep.subr.mxu0 0.0
    %2336 = vmatpush1.msra.mxu0 %v2227
    %2337 = vmatprep.subr.mxu0 0.0
    %2338 = vmatpush1.msra.mxu0 %v2228
    %2339 = vmatprep.subr.mxu0 0.0
    %2340 = vmatpush1.msra.mxu0 %v2229
    %2341 = vmatprep.subr.mxu0 0.0
    %2342 = vmatpush1.msra.mxu0 %v2230
    %2343 = vmatprep.subr.mxu0 0.0
    %2344 = vmatpush1.msra.mxu0 %v2231
    %2345 = vmatprep.subr.mxu0 0.0
    %2346 = vmatpush1.msra.mxu0 %v2232
    %2347 = vmatprep.subr.mxu0 0.0
    %2348 = vmatpush1.msra.mxu0 %v2233
    %2349 = vmatprep.subr.mxu0 0.0
    %2350 = vmatpush1.msra.mxu0 %v2234
    %2351 = vmatprep.subr.mxu0 0.0
    %2352 = vmatpush1.msra.mxu0 %v2235
    %2353 = vmatprep.subr.mxu0 0.0
    %2354 = vmatpush1.msra.mxu0 %v2236
    %2355 = vmatprep.subr.mxu0 0.0
    %2356 = vmatpush1.msra.mxu0 %v2237
    %2357 = vmatprep.subr.mxu0 0.0
    %2358 = vmatpush1.msra.mxu0 %v2238
    %2359 = vmatprep.subr.mxu0 0.0
    %2360 = vmatpush1.msra.mxu0 %v2239
    %2361 = vmatprep.subr.mxu0 0.0
    %2362 = vmatpush1.msra.mxu0 %v2240
    %2363 = vmatprep.subr.mxu0 0.0
    %2364 = vmatpush1.msra.mxu0 %v2241
    %2365 = vmatprep.subr.mxu0 0.0
    %2366 = vmatpush1.msra.mxu0 %v2242
    %2367 = vmatprep.subr.mxu0 0.0
    %2368 = vmatpush1.msra.mxu0 %v2243
    %2369 = vmatprep.subr.mxu0 0.0
    %2370 = vmatpush1.msra.mxu0 %v2244
    %2371 = vmatprep.subr.mxu0 0.0
    %2372 = vmatpush1.msra.mxu0 %v2245
    %2373 = vmatprep.subr.mxu0 0.0
    %2374 = vmatpush1.msra.mxu0 %v2246
    %2375 = vmatprep.subr.mxu0 0.0
    %2376 = vmatpush1.msra.mxu0 %v2247
    %2377 = vmatprep.subr.mxu0 0.0
    %2378 = vmatpush1.msra.mxu0 %v2248
    %2379 = vmatprep.subr.mxu0 0.0
    %2380 = vmatpush1.msra.mxu0 %v2249
    %2381 = vmatprep.subr.mxu0 0.0
    %2382 = vmatpush1.msra.mxu0 %v2250
    %2383 = vmatprep.subr.mxu0 0.0
    %2384 = vmatpush1.msra.mxu0 %v2251
    %2385 = vmatprep.subr.mxu0 0.0
    %2386 = vmatpush1.msra.mxu0 %v2252
    %2387 = vmatprep.mubr.f32.mxu0 %v261
    %2388 = vmatmul.mubr.f32.gmra.mrb[0].mxu0 %v192
    %v2389 = vpop.f32.mrb[0].mxu0
    %v2390 = vadd.f32 %v2320, %v2389
    %v2391 = vpop.f32.mrb[0].mxu0
    %2392 = vdwg.mxu0
    %s2393 = scalar_lea.vmem [#allocation11], 48
    %v2394 = vld [vmem:[%s2393] sm:$0xff]
    %v2396 = vsel %vm410, %v2394, 0
    %v2399 = vsel %vm414, %v2390, 0
    %2401 = vmatprep.subr.mxu0 0.0
    %2402 = vmatpush1.msra.mxu0 %v2399
    %2403 = vmatprep.subr.mxu0 0.0
    %2404 = vmatpush1.msra.mxu0 0.0
    %2405 = vmatprep.subr.mxu0 0.0
    %2406 = vmatpush1.msra.mxu0 0.0
    %2407 = vmatprep.subr.mxu0 0.0
    %2408 = vmatpush1.msra.mxu0 0.0
    %2409 = vmatprep.subr.mxu0 0.0
    %2410 = vmatpush1.msra.mxu0 0.0
    %2411 = vmatprep.subr.mxu0 0.0
    %2412 = vmatpush1.msra.mxu0 0.0
    %2413 = vmatprep.subr.mxu0 0.0
    %2414 = vmatpush1.msra.mxu0 0.0
    %2415 = vmatprep.subr.mxu0 0.0
    %2416 = vmatpush1.msra.mxu0 0.0
    %2417 = vmatprep.subr.mxu0 0.0
    %2418 = vmatpush1.msra.mxu0 0.0
    %2419 = vmatprep.subr.mxu0 0.0
    %2420 = vmatpush1.msra.mxu0 0.0
    %2421 = vmatprep.subr.mxu0 0.0
    %2422 = vmatpush1.msra.mxu0 0.0
    %2423 = vmatprep.subr.mxu0 0.0
    %2424 = vmatpush1.msra.mxu0 0.0
    %2425 = vmatprep.subr.mxu0 0.0
    %2426 = vmatpush1.msra.mxu0 0.0
    %2427 = vmatprep.subr.mxu0 0.0
    %2428 = vmatpush1.msra.mxu0 0.0
    %2429 = vmatprep.subr.mxu0 0.0
    %2430 = vmatpush1.msra.mxu0 0.0
    %2431 = vmatprep.subr.mxu0 0.0
    %2432 = vmatpush1.msra.mxu0 0.0
    %2433 = vmatprep.subr.mxu0 0.0
    %2434 = vmatpush1.msra.mxu0 0.0
    %2435 = vmatprep.subr.mxu0 0.0
    %2436 = vmatpush1.msra.mxu0 0.0
    %2437 = vmatprep.subr.mxu0 0.0
    %2438 = vmatpush1.msra.mxu0 0.0
    %2439 = vmatprep.subr.mxu0 0.0
    %2440 = vmatpush1.msra.mxu0 0.0
    %2441 = vmatprep.subr.mxu0 0.0
    %2442 = vmatpush1.msra.mxu0 0.0
    %2443 = vmatprep.subr.mxu0 0.0
    %2444 = vmatpush1.msra.mxu0 0.0
    %2445 = vmatprep.subr.mxu0 0.0
    %2446 = vmatpush1.msra.mxu0 0.0
    %2447 = vmatprep.subr.mxu0 0.0
    %2448 = vmatpush1.msra.mxu0 0.0
    %2449 = vmatprep.subr.mxu0 0.0
    %2450 = vmatpush1.msra.mxu0 0.0
    %2451 = vmatprep.subr.mxu0 0.0
    %2452 = vmatpush1.msra.mxu0 0.0
    %2453 = vmatprep.subr.mxu0 0.0
    %2454 = vmatpush1.msra.mxu0 0.0
    %2455 = vmatprep.subr.mxu0 0.0
    %2456 = vmatpush1.msra.mxu0 0.0
    %2457 = vmatprep.subr.mxu0 0.0
    %2458 = vmatpush1.msra.mxu0 0.0
    %2459 = vmatprep.subr.mxu0 0.0
    %2460 = vmatpush1.msra.mxu0 0.0
    %2461 = vmatprep.subr.mxu0 0.0
    %2462 = vmatpush1.msra.mxu0 0.0
    %2463 = vmatprep.subr.mxu0 0.0
    %2464 = vmatpush1.msra.mxu0 0.0
    %2465 = vmatprep.mubr.f32.mxu0 0.0
    %2466 = vmatmul.mubr.f32.gmra.mrb[0].mxu0 %v2396
    %v2467 = vpop.f32.mrb[0].mxu0
    %v2468 = vadd.f32 0.0, %v2467
    %v2469 = vpop.f32.mrb[0].mxu0
    %2470 = vdwg.mxu0
    %v2471 = vadd.f32 %v2187, %v2468
    %s2472 = scalar_lea.vmem [#allocation10], 3584
    %v2473 = vld [vmem:[%s2472] sm:$0xff]
    %v2474 = vld [vmem:[%s2472 + $0x8] sm:$0xff]
    %v2475 = vld [vmem:[%s2472 + $0x10] sm:$0xff]
    %v2476 = vld [vmem:[%s2472 + $0x18] sm:$0xff]
    %v2477 = vld [vmem:[%s2472 + $0x20] sm:$0xff]
    %v2478 = vld [vmem:[%s2472 + $0x28] sm:$0xff]
    %v2479 = vld [vmem:[%s2472 + $0x30] sm:$0xff]
    %v2480 = vld [vmem:[%s2472 + $0x38] sm:$0xff]
    %v2481 = vld [vmem:[%s2472 + $0x40] sm:$0xff]
    %v2482 = vld [vmem:[%s2472 + $0x48] sm:$0xff]
    %v2483 = vld [vmem:[%s2472 + $0x50] sm:$0xff]
    %v2484 = vld [vmem:[%s2472 + $0x58] sm:$0xff]
    %v2485 = vld [vmem:[%s2472 + $0x60] sm:$0xff]
    %v2486 = vld [vmem:[%s2472 + $0x68] sm:$0xff]
    %v2487 = vld [vmem:[%s2472 + $0x70] sm:$0xff]
    %v2488 = vld [vmem:[%s2472 + $0x78] sm:$0xff]
    %v2489 = vld [vmem:[%s2472 + $0x80] sm:$0xff]
    %v2490 = vld [vmem:[%s2472 + $0x88] sm:$0xff]
    %v2491 = vld [vmem:[%s2472 + $0x90] sm:$0xff]
    %v2492 = vld [vmem:[%s2472 + $0x98] sm:$0xff]
    %v2493 = vld [vmem:[%s2472 + $0xa0] sm:$0xff]
    %v2494 = vld [vmem:[%s2472 + $0xa8] sm:$0xff]
    %v2495 = vld [vmem:[%s2472 + $0xb0] sm:$0xff]
    %v2496 = vld [vmem:[%s2472 + $0xb8] sm:$0xff]
    %v2497 = vld [vmem:[%s2472 + $0xc0] sm:$0xff]
    %v2498 = vld [vmem:[%s2472 + $0xc8] sm:$0xff]
    %v2499 = vld [vmem:[%s2472 + $0xd0] sm:$0xff]
    %v2500 = vld [vmem:[%s2472 + $0xd8] sm:$0xff]
    %v2501 = vld [vmem:[%s2472 + $0xe0] sm:$0xff]
    %v2502 = vld [vmem:[%s2472 + $0xe8] sm:$0xff]
    %v2503 = vld [vmem:[%s2472 + $0xf0] sm:$0xff]
    %v2504 = vld [vmem:[%s2472 + $0xf8] sm:$0xff]
    %v2505 = vld [vmem:[%s2472 + $0x100] sm:$0xff]
    %v2506 = vld [vmem:[%s2472 + $0x108] sm:$0xff]
    %v2507 = vld [vmem:[%s2472 + $0x110] sm:$0xff]
    %v2508 = vld [vmem:[%s2472 + $0x118] sm:$0xff]
    %v2509 = vld [vmem:[%s2472 + $0x120] sm:$0xff]
    %v2510 = vld [vmem:[%s2472 + $0x128] sm:$0xff]
    %v2511 = vld [vmem:[%s2472 + $0x130] sm:$0xff]
    %v2512 = vld [vmem:[%s2472 + $0x138] sm:$0xff]
    %v2513 = vld [vmem:[%s2472 + $0x140] sm:$0xff]
    %v2514 = vld [vmem:[%s2472 + $0x148] sm:$0xff]
    %v2515 = vld [vmem:[%s2472 + $0x150] sm:$0xff]
    %v2516 = vld [vmem:[%s2472 + $0x158] sm:$0xff]
    %v2517 = vld [vmem:[%s2472 + $0x160] sm:$0xff]
    %v2518 = vld [vmem:[%s2472 + $0x168] sm:$0xff]
    %v2519 = vld [vmem:[%s2472 + $0x170] sm:$0xff]
    %v2520 = vld [vmem:[%s2472 + $0x178] sm:$0xff]
    %v2521 = vld [vmem:[%s2472 + $0x180] sm:$0xff]
    %v2522 = vld [vmem:[%s2472 + $0x188] sm:$0xff]
    %v2523 = vld [vmem:[%s2472 + $0x190] sm:$0xff]
    %v2524 = vld [vmem:[%s2472 + $0x198] sm:$0xff]
    %v2525 = vld [vmem:[%s2472 + $0x1a0] sm:$0xff]
    %v2526 = vld [vmem:[%s2472 + $0x1a8] sm:$0xff]
    %v2527 = vld [vmem:[%s2472 + $0x1b0] sm:$0xff]
    %v2528 = vld [vmem:[%s2472 + $0x1b8] sm:$0xff]
    %v2529 = vld [vmem:[%s2472 + $0x1c0] sm:$0xff]
    %v2530 = vld [vmem:[%s2472 + $0x1c8] sm:$0xff]
    %v2531 = vld [vmem:[%s2472 + $0x1d0] sm:$0xff]
    %v2532 = vld [vmem:[%s2472 + $0x1d8] sm:$0xff]
    %v2533 = vld [vmem:[%s2472 + $0x1e0] sm:$0xff]
    %v2534 = vld [vmem:[%s2472 + $0x1e8] sm:$0xff]
    %v2535 = vld [vmem:[%s2472 + $0x1f0] sm:$0xff]
    %v2536 = vld [vmem:[%s2472 + $0x1f8] sm:$0xff]
    %2537 = vmatprep.subr.mxu0 0.0
    %2538 = vmatpush1.msra.mxu0 %v2473
    %2539 = vmatprep.subr.mxu0 0.0
    %2540 = vmatpush1.msra.mxu0 %v2474
    %2541 = vmatprep.subr.mxu0 0.0
    %2542 = vmatpush1.msra.mxu0 %v2475
    %2543 = vmatprep.subr.mxu0 0.0
    %2544 = vmatpush1.msra.mxu0 %v2476
    %2545 = vmatprep.subr.mxu0 0.0
    %2546 = vmatpush1.msra.mxu0 %v2477
    %2547 = vmatprep.subr.mxu0 0.0
    %2548 = vmatpush1.msra.mxu0 %v2478
    %2549 = vmatprep.subr.mxu0 0.0
    %2550 = vmatpush1.msra.mxu0 %v2479
    %2551 = vmatprep.subr.mxu0 0.0
    %2552 = vmatpush1.msra.mxu0 %v2480
    %2553 = vmatprep.subr.mxu0 0.0
    %2554 = vmatpush1.msra.mxu0 %v2481
    %2555 = vmatprep.subr.mxu0 0.0
    %2556 = vmatpush1.msra.mxu0 %v2482
    %2557 = vmatprep.subr.mxu0 0.0
    %2558 = vmatpush1.msra.mxu0 %v2483
    %2559 = vmatprep.subr.mxu0 0.0
    %2560 = vmatpush1.msra.mxu0 %v2484
    %2561 = vmatprep.subr.mxu0 0.0
    %2562 = vmatpush1.msra.mxu0 %v2485
    %2563 = vmatprep.subr.mxu0 0.0
    %2564 = vmatpush1.msra.mxu0 %v2486
    %2565 = vmatprep.subr.mxu0 0.0
    %2566 = vmatpush1.msra.mxu0 %v2487
    %2567 = vmatprep.subr.mxu0 0.0
    %2568 = vmatpush1.msra.mxu0 %v2488
    %2569 = vmatprep.subr.mxu0 0.0
    %2570 = vmatpush1.msra.mxu0 %v2489
    %2571 = vmatprep.subr.mxu0 0.0
    %2572 = vmatpush1.msra.mxu0 %v2490
    %2573 = vmatprep.subr.mxu0 0.0
    %2574 = vmatpush1.msra.mxu0 %v2491
    %2575 = vmatprep.subr.mxu0 0.0
    %2576 = vmatpush1.msra.mxu0 %v2492
    %2577 = vmatprep.subr.mxu0 0.0
    %2578 = vmatpush1.msra.mxu0 %v2493
    %2579 = vmatprep.subr.mxu0 0.0
    %2580 = vmatpush1.msra.mxu0 %v2494
    %2581 = vmatprep.subr.mxu0 0.0
    %2582 = vmatpush1.msra.mxu0 %v2495
    %2583 = vmatprep.subr.mxu0 0.0
    %2584 = vmatpush1.msra.mxu0 %v2496
    %2585 = vmatprep.subr.mxu0 0.0
    %2586 = vmatpush1.msra.mxu0 %v2497
    %2587 = vmatprep.subr.mxu0 0.0
    %2588 = vmatpush1.msra.mxu0 %v2498
    %2589 = vmatprep.subr.mxu0 0.0
    %2590 = vmatpush1.msra.mxu0 %v2499
    %2591 = vmatprep.subr.mxu0 0.0
    %2592 = vmatpush1.msra.mxu0 %v2500
    %2593 = vmatprep.subr.mxu0 0.0
    %2594 = vmatpush1.msra.mxu0 %v2501
    %2595 = vmatprep.subr.mxu0 0.0
    %2596 = vmatpush1.msra.mxu0 %v2502
    %2597 = vmatprep.subr.mxu0 0.0
    %2598 = vmatpush1.msra.mxu0 %v2503
    %2599 = vmatprep.subr.mxu0 0.0
    %2600 = vmatpush1.msra.mxu0 %v2504
    %2601 = vmatprep.mubr.f32.mxu0 %v260
    %2602 = vmatmul.mubr.f32.gmra.mrb[0].mxu0 %v191
    %v2603 = vpop.f32.mrb[0].mxu0
    %v2604 = vadd.f32 0.0, %v2603
    %v2605 = vpop.f32.mrb[0].mxu0
    %2606 = vdwg.mxu0
    %2607 = vmatprep.subr.mxu0 0.0
    %2608 = vmatpush1.msra.mxu0 %v2505
    %2609 = vmatprep.subr.mxu0 0.0
    %2610 = vmatpush1.msra.mxu0 %v2506
    %2611 = vmatprep.subr.mxu0 0.0
    %2612 = vmatpush1.msra.mxu0 %v2507
    %2613 = vmatprep.subr.mxu0 0.0
    %2614 = vmatpush1.msra.mxu0 %v2508
    %2615 = vmatprep.subr.mxu0 0.0
    %2616 = vmatpush1.msra.mxu0 %v2509
    %2617 = vmatprep.subr.mxu0 0.0
    %2618 = vmatpush1.msra.mxu0 %v2510
    %2619 = vmatprep.subr.mxu0 0.0
    %2620 = vmatpush1.msra.mxu0 %v2511
    %2621 = vmatprep.subr.mxu0 0.0
    %2622 = vmatpush1.msra.mxu0 %v2512
    %2623 = vmatprep.subr.mxu0 0.0
    %2624 = vmatpush1.msra.mxu0 %v2513
    %2625 = vmatprep.subr.mxu0 0.0
    %2626 = vmatpush1.msra.mxu0 %v2514
    %2627 = vmatprep.subr.mxu0 0.0
    %2628 = vmatpush1.msra.mxu0 %v2515
    %2629 = vmatprep.subr.mxu0 0.0
    %2630 = vmatpush1.msra.mxu0 %v2516
    %2631 = vmatprep.subr.mxu0 0.0
    %2632 = vmatpush1.msra.mxu0 %v2517
    %2633 = vmatprep.subr.mxu0 0.0
    %2634 = vmatpush1.msra.mxu0 %v2518
    %2635 = vmatprep.subr.mxu0 0.0
    %2636 = vmatpush1.msra.mxu0 %v2519
    %2637 = vmatprep.subr.mxu0 0.0
    %2638 = vmatpush1.msra.mxu0 %v2520
    %2639 = vmatprep.subr.mxu0 0.0
    %2640 = vmatpush1.msra.mxu0 %v2521
    %2641 = vmatprep.subr.mxu0 0.0
    %2642 = vmatpush1.msra.mxu0 %v2522
    %2643 = vmatprep.subr.mxu0 0.0
    %2644 = vmatpush1.msra.mxu0 %v2523
    %2645 = vmatprep.subr.mxu0 0.0
    %2646 = vmatpush1.msra.mxu0 %v2524
    %2647 = vmatprep.subr.mxu0 0.0
    %2648 = vmatpush1.msra.mxu0 %v2525
    %2649 = vmatprep.subr.mxu0 0.0
    %2650 = vmatpush1.msra.mxu0 %v2526
    %2651 = vmatprep.subr.mxu0 0.0
    %2652 = vmatpush1.msra.mxu0 %v2527
    %2653 = vmatprep.subr.mxu0 0.0
    %2654 = vmatpush1.msra.mxu0 %v2528
    %2655 = vmatprep.subr.mxu0 0.0
    %2656 = vmatpush1.msra.mxu0 %v2529
    %2657 = vmatprep.subr.mxu0 0.0
    %2658 = vmatpush1.msra.mxu0 %v2530
    %2659 = vmatprep.subr.mxu0 0.0
    %2660 = vmatpush1.msra.mxu0 %v2531
    %2661 = vmatprep.subr.mxu0 0.0
    %2662 = vmatpush1.msra.mxu0 %v2532
    %2663 = vmatprep.subr.mxu0 0.0
    %2664 = vmatpush1.msra.mxu0 %v2533
    %2665 = vmatprep.subr.mxu0 0.0
    %2666 = vmatpush1.msra.mxu0 %v2534
    %2667 = vmatprep.subr.mxu0 0.0
    %2668 = vmatpush1.msra.mxu0 %v2535
    %2669 = vmatprep.subr.mxu0 0.0
    %2670 = vmatpush1.msra.mxu0 %v2536
    %2671 = vmatprep.mubr.f32.mxu0 %v261
    %2672 = vmatmul.mubr.f32.gmra.mrb[0].mxu0 %v192
    %v2673 = vpop.f32.mrb[0].mxu0
    %v2674 = vadd.f32 %v2604, %v2673
    %v2675 = vpop.f32.mrb[0].mxu0
    %2676 = vdwg.mxu0
    %s2677 = scalar_lea.vmem [#allocation11], 56
    %v2678 = vld [vmem:[%s2677] sm:$0xff]
    %v2680 = vsel %vm410, %v2678, 0
    %v2683 = vsel %vm414, %v2674, 0
    %2685 = vmatprep.subr.mxu0 0.0
    %2686 = vmatpush1.msra.mxu0 %v2683
    %2687 = vmatprep.subr.mxu0 0.0
    %2688 = vmatpush1.msra.mxu0 0.0
    %2689 = vmatprep.subr.mxu0 0.0
    %2690 = vmatpush1.msra.mxu0 0.0
    %2691 = vmatprep.subr.mxu0 0.0
    %2692 = vmatpush1.msra.mxu0 0.0
    %2693 = vmatprep.subr.mxu0 0.0
    %2694 = vmatpush1.msra.mxu0 0.0
    %2695 = vmatprep.subr.mxu0 0.0
    %2696 = vmatpush1.msra.mxu0 0.0
    %2697 = vmatprep.subr.mxu0 0.0
    %2698 = vmatpush1.msra.mxu0 0.0
    %2699 = vmatprep.subr.mxu0 0.0
    %2700 = vmatpush1.msra.mxu0 0.0
    %2701 = vmatprep.subr.mxu0 0.0
    %2702 = vmatpush1.msra.mxu0 0.0
    %2703 = vmatprep.subr.mxu0 0.0
    %2704 = vmatpush1.msra.mxu0 0.0
    %2705 = vmatprep.subr.mxu0 0.0
    %2706 = vmatpush1.msra.mxu0 0.0
    %2707 = vmatprep.subr.mxu0 0.0
    %2708 = vmatpush1.msra.mxu0 0.0
    %2709 = vmatprep.subr.mxu0 0.0
    %2710 = vmatpush1.msra.mxu0 0.0
    %2711 = vmatprep.subr.mxu0 0.0
    %2712 = vmatpush1.msra.mxu0 0.0
    %2713 = vmatprep.subr.mxu0 0.0
    %2714 = vmatpush1.msra.mxu0 0.0
    %2715 = vmatprep.subr.mxu0 0.0
    %2716 = vmatpush1.msra.mxu0 0.0
    %2717 = vmatprep.subr.mxu0 0.0
    %2718 = vmatpush1.msra.mxu0 0.0
    %2719 = vmatprep.subr.mxu0 0.0
    %2720 = vmatpush1.msra.mxu0 0.0
    %2721 = vmatprep.subr.mxu0 0.0
    %2722 = vmatpush1.msra.mxu0 0.0
    %2723 = vmatprep.subr.mxu0 0.0
    %2724 = vmatpush1.msra.mxu0 0.0
    %2725 = vmatprep.subr.mxu0 0.0
    %2726 = vmatpush1.msra.mxu0 0.0
    %2727 = vmatprep.subr.mxu0 0.0
    %2728 = vmatpush1.msra.mxu0 0.0
    %2729 = vmatprep.subr.mxu0 0.0
    %2730 = vmatpush1.msra.mxu0 0.0
    %2731 = vmatprep.subr.mxu0 0.0
    %2732 = vmatpush1.msra.mxu0 0.0
    %2733 = vmatprep.subr.mxu0 0.0
    %2734 = vmatpush1.msra.mxu0 0.0
    %2735 = vmatprep.subr.mxu0 0.0
    %2736 = vmatpush1.msra.mxu0 0.0
    %2737 = vmatprep.subr.mxu0 0.0
    %2738 = vmatpush1.msra.mxu0 0.0
    %2739 = vmatprep.subr.mxu0 0.0
    %2740 = vmatpush1.msra.mxu0 0.0
    %2741 = vmatprep.subr.mxu0 0.0
    %2742 = vmatpush1.msra.mxu0 0.0
    %2743 = vmatprep.subr.mxu0 0.0
    %2744 = vmatpush1.msra.mxu0 0.0
    %2745 = vmatprep.subr.mxu0 0.0
    %2746 = vmatpush1.msra.mxu0 0.0
    %2747 = vmatprep.subr.mxu0 0.0
    %2748 = vmatpush1.msra.mxu0 0.0
    %2749 = vmatprep.mubr.f32.mxu0 0.0
    %2750 = vmatmul.mubr.f32.gmra.mrb[0].mxu0 %v2680
    %v2751 = vpop.f32.mrb[0].mxu0
    %v2752 = vadd.f32 0.0, %v2751
    %v2753 = vpop.f32.mrb[0].mxu0
    %2754 = vdwg.mxu0
    %v2755 = vadd.f32 %v2471, %v2752
    %s2756 = scalar_lea.vmem [#allocation10], 4096
    %v2757 = vld [vmem:[%s2756] sm:$0xff]
    %v2758 = vld [vmem:[%s2756 + $0x8] sm:$0xff]
    %v2759 = vld [vmem:[%s2756 + $0x10] sm:$0xff]
    %v2760 = vld [vmem:[%s2756 + $0x18] sm:$0xff]
    %v2761 = vld [vmem:[%s2756 + $0x20] sm:$0xff]
    %v2762 = vld [vmem:[%s2756 + $0x28] sm:$0xff]
    %v2763 = vld [vmem:[%s2756 + $0x30] sm:$0xff]
    %v2764 = vld [vmem:[%s2756 + $0x38] sm:$0xff]
    %v2765 = vld [vmem:[%s2756 + $0x40] sm:$0xff]
    %v2766 = vld [vmem:[%s2756 + $0x48] sm:$0xff]
    %v2767 = vld [vmem:[%s2756 + $0x50] sm:$0xff]
    %v2768 = vld [vmem:[%s2756 + $0x58] sm:$0xff]
    %v2769 = vld [vmem:[%s2756 + $0x60] sm:$0xff]
    %v2770 = vld [vmem:[%s2756 + $0x68] sm:$0xff]
    %v2771 = vld [vmem:[%s2756 + $0x70] sm:$0xff]
    %v2772 = vld [vmem:[%s2756 + $0x78] sm:$0xff]
    %v2773 = vld [vmem:[%s2756 + $0x80] sm:$0xff]
    %v2774 = vld [vmem:[%s2756 + $0x88] sm:$0xff]
    %v2775 = vld [vmem:[%s2756 + $0x90] sm:$0xff]
    %v2776 = vld [vmem:[%s2756 + $0x98] sm:$0xff]
    %v2777 = vld [vmem:[%s2756 + $0xa0] sm:$0xff]
    %v2778 = vld [vmem:[%s2756 + $0xa8] sm:$0xff]
    %v2779 = vld [vmem:[%s2756 + $0xb0] sm:$0xff]
    %v2780 = vld [vmem:[%s2756 + $0xb8] sm:$0xff]
    %v2781 = vld [vmem:[%s2756 + $0xc0] sm:$0xff]
    %v2782 = vld [vmem:[%s2756 + $0xc8] sm:$0xff]
    %v2783 = vld [vmem:[%s2756 + $0xd0] sm:$0xff]
    %v2784 = vld [vmem:[%s2756 + $0xd8] sm:$0xff]
    %v2785 = vld [vmem:[%s2756 + $0xe0] sm:$0xff]
    %v2786 = vld [vmem:[%s2756 + $0xe8] sm:$0xff]
    %v2787 = vld [vmem:[%s2756 + $0xf0] sm:$0xff]
    %v2788 = vld [vmem:[%s2756 + $0xf8] sm:$0xff]
    %v2789 = vld [vmem:[%s2756 + $0x100] sm:$0xff]
    %v2790 = vld [vmem:[%s2756 + $0x108] sm:$0xff]
    %v2791 = vld [vmem:[%s2756 + $0x110] sm:$0xff]
    %v2792 = vld [vmem:[%s2756 + $0x118] sm:$0xff]
    %v2793 = vld [vmem:[%s2756 + $0x120] sm:$0xff]
    %v2794 = vld [vmem:[%s2756 + $0x128] sm:$0xff]
    %v2795 = vld [vmem:[%s2756 + $0x130] sm:$0xff]
    %v2796 = vld [vmem:[%s2756 + $0x138] sm:$0xff]
    %v2797 = vld [vmem:[%s2756 + $0x140] sm:$0xff]
    %v2798 = vld [vmem:[%s2756 + $0x148] sm:$0xff]
    %v2799 = vld [vmem:[%s2756 + $0x150] sm:$0xff]
    %v2800 = vld [vmem:[%s2756 + $0x158] sm:$0xff]
    %v2801 = vld [vmem:[%s2756 + $0x160] sm:$0xff]
    %v2802 = vld [vmem:[%s2756 + $0x168] sm:$0xff]
    %v2803 = vld [vmem:[%s2756 + $0x170] sm:$0xff]
    %v2804 = vld [vmem:[%s2756 + $0x178] sm:$0xff]
    %v2805 = vld [vmem:[%s2756 + $0x180] sm:$0xff]
    %v2806 = vld [vmem:[%s2756 + $0x188] sm:$0xff]
    %v2807 = vld [vmem:[%s2756 + $0x190] sm:$0xff]
    %v2808 = vld [vmem:[%s2756 + $0x198] sm:$0xff]
    %v2809 = vld [vmem:[%s2756 + $0x1a0] sm:$0xff]
    %v2810 = vld [vmem:[%s2756 + $0x1a8] sm:$0xff]
    %v2811 = vld [vmem:[%s2756 + $0x1b0] sm:$0xff]
    %v2812 = vld [vmem:[%s2756 + $0x1b8] sm:$0xff]
    %v2813 = vld [vmem:[%s2756 + $0x1c0] sm:$0xff]
    %v2814 = vld [vmem:[%s2756 + $0x1c8] sm:$0xff]
    %v2815 = vld [vmem:[%s2756 + $0x1d0] sm:$0xff]
    %v2816 = vld [vmem:[%s2756 + $0x1d8] sm:$0xff]
    %v2817 = vld [vmem:[%s2756 + $0x1e0] sm:$0xff]
    %v2818 = vld [vmem:[%s2756 + $0x1e8] sm:$0xff]
    %v2819 = vld [vmem:[%s2756 + $0x1f0] sm:$0xff]
    %v2820 = vld [vmem:[%s2756 + $0x1f8] sm:$0xff]
    %2821 = vmatprep.subr.mxu0 0.0
    %2822 = vmatpush1.msra.mxu0 %v2757
    %2823 = vmatprep.subr.mxu0 0.0
    %2824 = vmatpush1.msra.mxu0 %v2758
    %2825 = vmatprep.subr.mxu0 0.0
    %2826 = vmatpush1.msra.mxu0 %v2759
    %2827 = vmatprep.subr.mxu0 0.0
    %2828 = vmatpush1.msra.mxu0 %v2760
    %2829 = vmatprep.subr.mxu0 0.0
    %2830 = vmatpush1.msra.mxu0 %v2761
    %2831 = vmatprep.subr.mxu0 0.0
    %2832 = vmatpush1.msra.mxu0 %v2762
    %2833 = vmatprep.subr.mxu0 0.0
    %2834 = vmatpush1.msra.mxu0 %v2763
    %2835 = vmatprep.subr.mxu0 0.0
    %2836 = vmatpush1.msra.mxu0 %v2764
    %2837 = vmatprep.subr.mxu0 0.0
    %2838 = vmatpush1.msra.mxu0 %v2765
    %2839 = vmatprep.subr.mxu0 0.0
    %2840 = vmatpush1.msra.mxu0 %v2766
    %2841 = vmatprep.subr.mxu0 0.0
    %2842 = vmatpush1.msra.mxu0 %v2767
    %2843 = vmatprep.subr.mxu0 0.0
    %2844 = vmatpush1.msra.mxu0 %v2768
    %2845 = vmatprep.subr.mxu0 0.0
    %2846 = vmatpush1.msra.mxu0 %v2769
    %2847 = vmatprep.subr.mxu0 0.0
    %2848 = vmatpush1.msra.mxu0 %v2770
    %2849 = vmatprep.subr.mxu0 0.0
    %2850 = vmatpush1.msra.mxu0 %v2771
    %2851 = vmatprep.subr.mxu0 0.0
    %2852 = vmatpush1.msra.mxu0 %v2772
    %2853 = vmatprep.subr.mxu0 0.0
    %2854 = vmatpush1.msra.mxu0 %v2773
    %2855 = vmatprep.subr.mxu0 0.0
    %2856 = vmatpush1.msra.mxu0 %v2774
    %2857 = vmatprep.subr.mxu0 0.0
    %2858 = vmatpush1.msra.mxu0 %v2775
    %2859 = vmatprep.subr.mxu0 0.0
    %2860 = vmatpush1.msra.mxu0 %v2776
    %2861 = vmatprep.subr.mxu0 0.0
    %2862 = vmatpush1.msra.mxu0 %v2777
    %2863 = vmatprep.subr.mxu0 0.0
    %2864 = vmatpush1.msra.mxu0 %v2778
    %2865 = vmatprep.subr.mxu0 0.0
    %2866 = vmatpush1.msra.mxu0 %v2779
    %2867 = vmatprep.subr.mxu0 0.0
    %2868 = vmatpush1.msra.mxu0 %v2780
    %2869 = vmatprep.subr.mxu0 0.0
    %2870 = vmatpush1.msra.mxu0 %v2781
    %2871 = vmatprep.subr.mxu0 0.0
    %2872 = vmatpush1.msra.mxu0 %v2782
    %2873 = vmatprep.subr.mxu0 0.0
    %2874 = vmatpush1.msra.mxu0 %v2783
    %2875 = vmatprep.subr.mxu0 0.0
    %2876 = vmatpush1.msra.mxu0 %v2784
    %2877 = vmatprep.subr.mxu0 0.0
    %2878 = vmatpush1.msra.mxu0 %v2785
    %2879 = vmatprep.subr.mxu0 0.0
    %2880 = vmatpush1.msra.mxu0 %v2786
    %2881 = vmatprep.subr.mxu0 0.0
    %2882 = vmatpush1.msra.mxu0 %v2787
    %2883 = vmatprep.subr.mxu0 0.0
    %2884 = vmatpush1.msra.mxu0 %v2788
    %2885 = vmatprep.mubr.f32.mxu0 %v260
    %2886 = vmatmul.mubr.f32.gmra.mrb[0].mxu0 %v191
    %v2887 = vpop.f32.mrb[0].mxu0
    %v2888 = vadd.f32 0.0, %v2887
    %v2889 = vpop.f32.mrb[0].mxu0
    %2890 = vdwg.mxu0
    %2891 = vmatprep.subr.mxu0 0.0
    %2892 = vmatpush1.msra.mxu0 %v2789
    %2893 = vmatprep.subr.mxu0 0.0
    %2894 = vmatpush1.msra.mxu0 %v2790
    %2895 = vmatprep.subr.mxu0 0.0
    %2896 = vmatpush1.msra.mxu0 %v2791
    %2897 = vmatprep.subr.mxu0 0.0
    %2898 = vmatpush1.msra.mxu0 %v2792
    %2899 = vmatprep.subr.mxu0 0.0
    %2900 = vmatpush1.msra.mxu0 %v2793
    %2901 = vmatprep.subr.mxu0 0.0
    %2902 = vmatpush1.msra.mxu0 %v2794
    %2903 = vmatprep.subr.mxu0 0.0
    %2904 = vmatpush1.msra.mxu0 %v2795
    %2905 = vmatprep.subr.mxu0 0.0
    %2906 = vmatpush1.msra.mxu0 %v2796
    %2907 = vmatprep.subr.mxu0 0.0
    %2908 = vmatpush1.msra.mxu0 %v2797
    %2909 = vmatprep.subr.mxu0 0.0
    %2910 = vmatpush1.msra.mxu0 %v2798
    %2911 = vmatprep.subr.mxu0 0.0
    %2912 = vmatpush1.msra.mxu0 %v2799
    %2913 = vmatprep.subr.mxu0 0.0
    %2914 = vmatpush1.msra.mxu0 %v2800
    %2915 = vmatprep.subr.mxu0 0.0
    %2916 = vmatpush1.msra.mxu0 %v2801
    %2917 = vmatprep.subr.mxu0 0.0
    %2918 = vmatpush1.msra.mxu0 %v2802
    %2919 = vmatprep.subr.mxu0 0.0
    %2920 = vmatpush1.msra.mxu0 %v2803
    %2921 = vmatprep.subr.mxu0 0.0
    %2922 = vmatpush1.msra.mxu0 %v2804
    %2923 = vmatprep.subr.mxu0 0.0
    %2924 = vmatpush1.msra.mxu0 %v2805
    %2925 = vmatprep.subr.mxu0 0.0
    %2926 = vmatpush1.msra.mxu0 %v2806
    %2927 = vmatprep.subr.mxu0 0.0
    %2928 = vmatpush1.msra.mxu0 %v2807
    %2929 = vmatprep.subr.mxu0 0.0
    %2930 = vmatpush1.msra.mxu0 %v2808
    %2931 = vmatprep.subr.mxu0 0.0
    %2932 = vmatpush1.msra.mxu0 %v2809
    %2933 = vmatprep.subr.mxu0 0.0
    %2934 = vmatpush1.msra.mxu0 %v2810
    %2935 = vmatprep.subr.mxu0 0.0
    %2936 = vmatpush1.msra.mxu0 %v2811
    %2937 = vmatprep.subr.mxu0 0.0
    %2938 = vmatpush1.msra.mxu0 %v2812
    %2939 = vmatprep.subr.mxu0 0.0
    %2940 = vmatpush1.msra.mxu0 %v2813
    %2941 = vmatprep.subr.mxu0 0.0
    %2942 = vmatpush1.msra.mxu0 %v2814
    %2943 = vmatprep.subr.mxu0 0.0
    %2944 = vmatpush1.msra.mxu0 %v2815
    %2945 = vmatprep.subr.mxu0 0.0
    %2946 = vmatpush1.msra.mxu0 %v2816
    %2947 = vmatprep.subr.mxu0 0.0
    %2948 = vmatpush1.msra.mxu0 %v2817
    %2949 = vmatprep.subr.mxu0 0.0
    %2950 = vmatpush1.msra.mxu0 %v2818
    %2951 = vmatprep.subr.mxu0 0.0
    %2952 = vmatpush1.msra.mxu0 %v2819
    %2953 = vmatprep.subr.mxu0 0.0
    %2954 = vmatpush1.msra.mxu0 %v2820
    %2955 = vmatprep.mubr.f32.mxu0 %v261
    %2956 = vmatmul.mubr.f32.gmra.mrb[0].mxu0 %v192
    %v2957 = vpop.f32.mrb[0].mxu0
    %v2958 = vadd.f32 %v2888, %v2957
    %v2959 = vpop.f32.mrb[0].mxu0
    %2960 = vdwg.mxu0
    %s2961 = scalar_lea.vmem [#allocation11], 64
    %v2962 = vld [vmem:[%s2961] sm:$0xff]
    %v2964 = vsel %vm410, %v2962, 0
    %v2967 = vsel %vm414, %v2958, 0
    %2969 = vmatprep.subr.mxu0 0.0
    %2970 = vmatpush1.msra.mxu0 %v2967
    %2971 = vmatprep.subr.mxu0 0.0
    %2972 = vmatpush1.msra.mxu0 0.0
    %2973 = vmatprep.subr.mxu0 0.0
    %2974 = vmatpush1.msra.mxu0 0.0
    %2975 = vmatprep.subr.mxu0 0.0
    %2976 = vmatpush1.msra.mxu0 0.0
    %2977 = vmatprep.subr.mxu0 0.0
    %2978 = vmatpush1.msra.mxu0 0.0
    %2979 = vmatprep.subr.mxu0 0.0
    %2980 = vmatpush1.msra.mxu0 0.0
    %2981 = vmatprep.subr.mxu0 0.0
    %2982 = vmatpush1.msra.mxu0 0.0
    %2983 = vmatprep.subr.mxu0 0.0
    %2984 = vmatpush1.msra.mxu0 0.0
    %2985 = vmatprep.subr.mxu0 0.0
    %2986 = vmatpush1.msra.mxu0 0.0
    %2987 = vmatprep.subr.mxu0 0.0
    %2988 = vmatpush1.msra.mxu0 0.0
    %2989 = vmatprep.subr.mxu0 0.0
    %2990 = vmatpush1.msra.mxu0 0.0
    %2991 = vmatprep.subr.mxu0 0.0
    %2992 = vmatpush1.msra.mxu0 0.0
    %2993 = vmatprep.subr.mxu0 0.0
    %2994 = vmatpush1.msra.mxu0 0.0
    %2995 = vmatprep.subr.mxu0 0.0
    %2996 = vmatpush1.msra.mxu0 0.0
    %2997 = vmatprep.subr.mxu0 0.0
    %2998 = vmatpush1.msra.mxu0 0.0
    %2999 = vmatprep.subr.mxu0 0.0
    %3000 = vmatpush1.msra.mxu0 0.0
    %3001 = vmatprep.subr.mxu0 0.0
    %3002 = vmatpush1.msra.mxu0 0.0
    %3003 = vmatprep.subr.mxu0 0.0
    %3004 = vmatpush1.msra.mxu0 0.0
    %3005 = vmatprep.subr.mxu0 0.0
    %3006 = vmatpush1.msra.mxu0 0.0
    %3007 = vmatprep.subr.mxu0 0.0
    %3008 = vmatpush1.msra.mxu0 0.0
    %3009 = vmatprep.subr.mxu0 0.0
    %3010 = vmatpush1.msra.mxu0 0.0
    %3011 = vmatprep.subr.mxu0 0.0
    %3012 = vmatpush1.msra.mxu0 0.0
    %3013 = vmatprep.subr.mxu0 0.0
    %3014 = vmatpush1.msra.mxu0 0.0
    %3015 = vmatprep.subr.mxu0 0.0
    %3016 = vmatpush1.msra.mxu0 0.0
    %3017 = vmatprep.subr.mxu0 0.0
    %3018 = vmatpush1.msra.mxu0 0.0
    %3019 = vmatprep.subr.mxu0 0.0
    %3020 = vmatpush1.msra.mxu0 0.0
    %3021 = vmatprep.subr.mxu0 0.0
    %3022 = vmatpush1.msra.mxu0 0.0
    %3023 = vmatprep.subr.mxu0 0.0
    %3024 = vmatpush1.msra.mxu0 0.0
    %3025 = vmatprep.subr.mxu0 0.0
    %3026 = vmatpush1.msra.mxu0 0.0
    %3027 = vmatprep.subr.mxu0 0.0
    %3028 = vmatpush1.msra.mxu0 0.0
    %3029 = vmatprep.subr.mxu0 0.0
    %3030 = vmatpush1.msra.mxu0 0.0
    %3031 = vmatprep.subr.mxu0 0.0
    %3032 = vmatpush1.msra.mxu0 0.0
    %3033 = vmatprep.mubr.f32.mxu0 0.0
    %3034 = vmatmul.mubr.f32.gmra.mrb[0].mxu0 %v2964
    %v3035 = vpop.f32.mrb[0].mxu0
    %v3036 = vadd.f32 0.0, %v3035
    %v3037 = vpop.f32.mrb[0].mxu0
    %3038 = vdwg.mxu0
    %v3039 = vadd.f32 %v2755, %v3036
    %3040 = vadd.xlane.f32.xlu0 %v3039
    %v3041 = vpop.xlane.xlu0 %3040
    %v3042 = vrcp.pop 128.0
    %v3043 = vmul.f32 %v3041, %v3042
    %v3044 = vsub.f32 %v3039, %v3043
    %v3045 = vmul.f32 %v3044, %v3044
    %3046 = vadd.xlane.f32.xlu0 %v3045
    %v3047 = vpop.xlane.xlu0 %3046
    %v3048 = vmul.f32 %v3047, %v3042
    %v3049 = vadd.f32 %v3048, 1e-05
    %v3050 = vrsqrt.pop %v3049
    %v3051 = vmul.f32 %v3044, %v3050
    %v3052 = vld [vmem:[#allocation13] sm:$0xff]
    %3054 = vset.pattern.permute.xlu0 0
    %3055 = vperm.xlu0 %3054, %v3052
    %v3056 = vpop.permute.xlu0 %3055
    %v3058 = vmul.f32 %v3051, %v3056
    %v3059 = vld [vmem:[#allocation14] sm:$0xff]
    %3061 = vset.pattern.permute.xlu0 0
    %3062 = vperm.xlu0 %3061, %v3059
    %v3063 = vpop.permute.xlu0 %3062
    %v3065 = vadd.f32 %v3058, %v3063
    %v3066 = vmax.f32 %v3065, 0.0
    %v3067 = vld [vmem:[#allocation16] sm:$0xff]
    %v3068 = vld [vmem:[#allocation16 + $0x8] sm:$0xff]
    %v3069 = vld [vmem:[#allocation16 + $0x10] sm:$0xff]
    %v3070 = vld [vmem:[#allocation16 + $0x18] sm:$0xff]
    %v3071 = vld [vmem:[#allocation16 + $0x20] sm:$0xff]
    %v3072 = vld [vmem:[#allocation16 + $0x28] sm:$0xff]
    %v3073 = vld [vmem:[#allocation16 + $0x30] sm:$0xff]
    %v3074 = vld [vmem:[#allocation16 + $0x38] sm:$0xff]
    %v3075 = vld [vmem:[#allocation16 + $0x40] sm:$0xff]
    %v3076 = vld [vmem:[#allocation16 + $0x48] sm:$0xff]
    %v3077 = vld [vmem:[#allocation16 + $0x50] sm:$0xff]
    %v3078 = vld [vmem:[#allocation16 + $0x58] sm:$0xff]
    %v3079 = vld [vmem:[#allocation16 + $0x60] sm:$0xff]
    %v3080 = vld [vmem:[#allocation16 + $0x68] sm:$0xff]
    %v3081 = vld [vmem:[#allocation16 + $0x70] sm:$0xff]
    %v3082 = vld [vmem:[#allocation16 + $0x78] sm:$0xff]
    %3083 = vmatprep.subr.mxu0 0.0
    %3084 = vmatpush1.msra.mxu0 %v3067
    %3085 = vmatprep.subr.mxu0 0.0
    %3086 = vmatpush1.msra.mxu0 %v3068
    %3087 = vmatprep.subr.mxu0 0.0
    %3088 = vmatpush1.msra.mxu0 %v3069
    %3089 = vmatprep.subr.mxu0 0.0
    %3090 = vmatpush1.msra.mxu0 %v3070
    %3091 = vmatprep.subr.mxu0 0.0
    %3092 = vmatpush1.msra.mxu0 %v3071
    %3093 = vmatprep.subr.mxu0 0.0
    %3094 = vmatpush1.msra.mxu0 %v3072
    %3095 = vmatprep.subr.mxu0 0.0
    %3096 = vmatpush1.msra.mxu0 %v3073
    %3097 = vmatprep.subr.mxu0 0.0
    %3098 = vmatpush1.msra.mxu0 %v3074
    %3099 = vmatprep.subr.mxu0 0.0
    %3100 = vmatpush1.msra.mxu0 %v3075
    %3101 = vmatprep.subr.mxu0 0.0
    %3102 = vmatpush1.msra.mxu0 %v3076
    %3103 = vmatprep.subr.mxu0 0.0
    %3104 = vmatpush1.msra.mxu0 %v3077
    %3105 = vmatprep.subr.mxu0 0.0
    %3106 = vmatpush1.msra.mxu0 %v3078
    %3107 = vmatprep.subr.mxu0 0.0
    %3108 = vmatpush1.msra.mxu0 %v3079
    %3109 = vmatprep.subr.mxu0 0.0
    %3110 = vmatpush1.msra.mxu0 %v3080
    %3111 = vmatprep.subr.mxu0 0.0
    %3112 = vmatpush1.msra.mxu0 %v3081
    %3113 = vmatprep.subr.mxu0 0.0
    %3114 = vmatpush1.msra.mxu0 %v3082
    %3115 = vmatprep.subr.mxu0 0.0
    %3116 = vmatpush1.msra.mxu0 0.0
    %3117 = vmatprep.subr.mxu0 0.0
    %3118 = vmatpush1.msra.mxu0 0.0
    %3119 = vmatprep.subr.mxu0 0.0
    %3120 = vmatpush1.msra.mxu0 0.0
    %3121 = vmatprep.subr.mxu0 0.0
    %3122 = vmatpush1.msra.mxu0 0.0
    %3123 = vmatprep.subr.mxu0 0.0
    %3124 = vmatpush1.msra.mxu0 0.0
    %3125 = vmatprep.subr.mxu0 0.0
    %3126 = vmatpush1.msra.mxu0 0.0
    %3127 = vmatprep.subr.mxu0 0.0
    %3128 = vmatpush1.msra.mxu0 0.0
    %3129 = vmatprep.subr.mxu0 0.0
    %3130 = vmatpush1.msra.mxu0 0.0
    %3131 = vmatprep.subr.mxu0 0.0
    %3132 = vmatpush1.msra.mxu0 0.0
    %3133 = vmatprep.subr.mxu0 0.0
    %3134 = vmatpush1.msra.mxu0 0.0
    %3135 = vmatprep.subr.mxu0 0.0
    %3136 = vmatpush1.msra.mxu0 0.0
    %3137 = vmatprep.subr.mxu0 0.0
    %3138 = vmatpush1.msra.mxu0 0.0
    %3139 = vmatprep.subr.mxu0 0.0
    %3140 = vmatpush1.msra.mxu0 0.0
    %3141 = vmatprep.subr.mxu0 0.0
    %3142 = vmatpush1.msra.mxu0 0.0
    %3143 = vmatprep.subr.mxu0 0.0
    %3144 = vmatpush1.msra.mxu0 0.0
    %3145 = vmatprep.subr.mxu0 0.0
    %3146 = vmatpush1.msra.mxu0 0.0
    %3147 = vmatprep.mubr.f32.mxu0 0.0
    %3148 = vmatmul.mubr.f32.gmra.mrb[0].mxu0 %v3066
    %v3149 = vpop.f32.mrb[0].mxu0
    %v3150 = vadd.f32 0.0, %v3149
    %v3151 = vpop.f32.mrb[0].mxu0
    %3152 = vdwg.mxu0
    %v3153 = vld [vmem:[#allocation17] sm:$0xff]
    %s3154 = scalar_lea.vmem [#allocation16], 128
    %v3155 = vld [vmem:[%s3154] sm:$0xff]
    %v3156 = vld [vmem:[%s3154 + $0x8] sm:$0xff]
    %v3157 = vld [vmem:[%s3154 + $0x10] sm:$0xff]
    %v3158 = vld [vmem:[%s3154 + $0x18] sm:$0xff]
    %v3159 = vld [vmem:[%s3154 + $0x20] sm:$0xff]
    %v3160 = vld [vmem:[%s3154 + $0x28] sm:$0xff]
    %v3161 = vld [vmem:[%s3154 + $0x30] sm:$0xff]
    %v3162 = vld [vmem:[%s3154 + $0x38] sm:$0xff]
    %v3163 = vld [vmem:[%s3154 + $0x40] sm:$0xff]
    %v3164 = vld [vmem:[%s3154 + $0x48] sm:$0xff]
    %v3165 = vld [vmem:[%s3154 + $0x50] sm:$0xff]
    %v3166 = vld [vmem:[%s3154 + $0x58] sm:$0xff]
    %v3167 = vld [vmem:[%s3154 + $0x60] sm:$0xff]
    %v3168 = vld [vmem:[%s3154 + $0x68] sm:$0xff]
    %v3169 = vld [vmem:[%s3154 + $0x70] sm:$0xff]
    %v3170 = vld [vmem:[%s3154 + $0x78] sm:$0xff]
    %3171 = vmatprep.subr.mxu0 0.0
    %3172 = vmatpush1.msra.mxu0 %v3155
    %3173 = vmatprep.subr.mxu0 0.0
    %3174 = vmatpush1.msra.mxu0 %v3156
    %3175 = vmatprep.subr.mxu0 0.0
    %3176 = vmatpush1.msra.mxu0 %v3157
    %3177 = vmatprep.subr.mxu0 0.0
    %3178 = vmatpush1.msra.mxu0 %v3158
    %3179 = vmatprep.subr.mxu0 0.0
    %3180 = vmatpush1.msra.mxu0 %v3159
    %3181 = vmatprep.subr.mxu0 0.0
    %3182 = vmatpush1.msra.mxu0 %v3160
    %3183 = vmatprep.subr.mxu0 0.0
    %3184 = vmatpush1.msra.mxu0 %v3161
    %3185 = vmatprep.subr.mxu0 0.0
    %3186 = vmatpush1.msra.mxu0 %v3162
    %3187 = vmatprep.subr.mxu0 0.0
    %3188 = vmatpush1.msra.mxu0 %v3163
    %3189 = vmatprep.subr.mxu0 0.0
    %3190 = vmatpush1.msra.mxu0 %v3164
    %3191 = vmatprep.subr.mxu0 0.0
    %3192 = vmatpush1.msra.mxu0 %v3165
    %3193 = vmatprep.subr.mxu0 0.0
    %3194 = vmatpush1.msra.mxu0 %v3166
    %3195 = vmatprep.subr.mxu0 0.0
    %3196 = vmatpush1.msra.mxu0 %v3167
    %3197 = vmatprep.subr.mxu0 0.0
    %3198 = vmatpush1.msra.mxu0 %v3168
    %3199 = vmatprep.subr.mxu0 0.0
    %3200 = vmatpush1.msra.mxu0 %v3169
    %3201 = vmatprep.subr.mxu0 0.0
    %3202 = vmatpush1.msra.mxu0 %v3170
    %3203 = vmatprep.subr.mxu0 0.0
    %3204 = vmatpush1.msra.mxu0 0.0
    %3205 = vmatprep.subr.mxu0 0.0
    %3206 = vmatpush1.msra.mxu0 0.0
    %3207 = vmatprep.subr.mxu0 0.0
    %3208 = vmatpush1.msra.mxu0 0.0
    %3209 = vmatprep.subr.mxu0 0.0
    %3210 = vmatpush1.msra.mxu0 0.0
    %3211 = vmatprep.subr.mxu0 0.0
    %3212 = vmatpush1.msra.mxu0 0.0
    %3213 = vmatprep.subr.mxu0 0.0
    %3214 = vmatpush1.msra.mxu0 0.0
    %3215 = vmatprep.subr.mxu0 0.0
    %3216 = vmatpush1.msra.mxu0 0.0
    %3217 = vmatprep.subr.mxu0 0.0
    %3218 = vmatpush1.msra.mxu0 0.0
    %3219 = vmatprep.subr.mxu0 0.0
    %3220 = vmatpush1.msra.mxu0 0.0
    %3221 = vmatprep.subr.mxu0 0.0
    %3222 = vmatpush1.msra.mxu0 0.0
    %3223 = vmatprep.subr.mxu0 0.0
    %3224 = vmatpush1.msra.mxu0 0.0
    %3225 = vmatprep.subr.mxu0 0.0
    %3226 = vmatpush1.msra.mxu0 0.0
    %3227 = vmatprep.subr.mxu0 0.0
    %3228 = vmatpush1.msra.mxu0 0.0
    %3229 = vmatprep.subr.mxu0 0.0
    %3230 = vmatpush1.msra.mxu0 0.0
    %3231 = vmatprep.subr.mxu0 0.0
    %3232 = vmatpush1.msra.mxu0 0.0
    %3233 = vmatprep.subr.mxu0 0.0
    %3234 = vmatpush1.msra.mxu0 0.0
    %3235 = vmatprep.mubr.f32.mxu0 0.0
    %3236 = vmatmul.mubr.f32.gmra.mrb[0].mxu0 %v3066
    %v3237 = vpop.f32.mrb[0].mxu0
    %v3238 = vadd.f32 0.0, %v3237
    %v3239 = vpop.f32.mrb[0].mxu0
    %3240 = vdwg.mxu0
    %s3241 = scalar_lea.vmem [#allocation17], 8
    %v3242 = vld [vmem:[%s3241] sm:$0xff]
    %vm3243 = vcmask 64512
    %v3245 = vsel %vm3243, %v3242, 0
    %3247 = vmatprep.subr.mxu0 0.0
    %3248 = vmatpush1.msra.mxu0 %v3238
    %3249 = vmatprep.subr.mxu0 0.0
    %3250 = vmatpush1.msra.mxu0 0.0
    %3251 = vmatprep.subr.mxu0 0.0
    %3252 = vmatpush1.msra.mxu0 0.0
    %3253 = vmatprep.subr.mxu0 0.0
    %3254 = vmatpush1.msra.mxu0 0.0
    %3255 = vmatprep.subr.mxu0 0.0
    %3256 = vmatpush1.msra.mxu0 0.0
    %3257 = vmatprep.subr.mxu0 0.0
    %3258 = vmatpush1.msra.mxu0 0.0
    %3259 = vmatprep.subr.mxu0 0.0
    %3260 = vmatpush1.msra.mxu0 0.0
    %3261 = vmatprep.subr.mxu0 0.0
    %3262 = vmatpush1.msra.mxu0 0.0
    %3263 = vmatprep.subr.mxu0 0.0
    %3264 = vmatpush1.msra.mxu0 0.0
    %3265 = vmatprep.subr.mxu0 0.0
    %3266 = vmatpush1.msra.mxu0 0.0
    %3267 = vmatprep.subr.mxu0 0.0
    %3268 = vmatpush1.msra.mxu0 0.0
    %3269 = vmatprep.subr.mxu0 0.0
    %3270 = vmatpush1.msra.mxu0 0.0
    %3271 = vmatprep.subr.mxu0 0.0
    %3272 = vmatpush1.msra.mxu0 0.0
    %3273 = vmatprep.subr.mxu0 0.0
    %3274 = vmatpush1.msra.mxu0 0.0
    %3275 = vmatprep.subr.mxu0 0.0
    %3276 = vmatpush1.msra.mxu0 0.0
    %3277 = vmatprep.subr.mxu0 0.0
    %3278 = vmatpush1.msra.mxu0 0.0
    %3279 = vmatprep.subr.mxu0 0.0
    %3280 = vmatpush1.msra.mxu0 0.0
    %3281 = vmatprep.subr.mxu0 0.0
    %3282 = vmatpush1.msra.mxu0 0.0
    %3283 = vmatprep.subr.mxu0 0.0
    %3284 = vmatpush1.msra.mxu0 0.0
    %3285 = vmatprep.subr.mxu0 0.0
    %3286 = vmatpush1.msra.mxu0 0.0
    %3287 = vmatprep.subr.mxu0 0.0
    %3288 = vmatpush1.msra.mxu0 0.0
    %3289 = vmatprep.subr.mxu0 0.0
    %3290 = vmatpush1.msra.mxu0 0.0
    %3291 = vmatprep.subr.mxu0 0.0
    %3292 = vmatpush1.msra.mxu0 0.0
    %3293 = vmatprep.subr.mxu0 0.0
    %3294 = vmatpush1.msra.mxu0 0.0
    %3295 = vmatprep.subr.mxu0 0.0
    %3296 = vmatpush1.msra.mxu0 0.0
    %3297 = vmatprep.subr.mxu0 0.0
    %3298 = vmatpush1.msra.mxu0 0.0
    %3299 = vmatprep.subr.mxu0 0.0
    %3300 = vmatpush1.msra.mxu0 0.0
    %3301 = vmatprep.subr.mxu0 0.0
    %3302 = vmatpush1.msra.mxu0 0.0
    %3303 = vmatprep.subr.mxu0 0.0
    %3304 = vmatpush1.msra.mxu0 0.0
    %3305 = vmatprep.subr.mxu0 0.0
    %3306 = vmatpush1.msra.mxu0 0.0
    %3307 = vmatprep.subr.mxu0 0.0
    %3308 = vmatpush1.msra.mxu0 0.0
    %3309 = vmatprep.subr.mxu0 0.0
    %3310 = vmatpush1.msra.mxu0 0.0
    %3311 = vmatprep.mubr.f32.mxu0 0.0
    %3312 = vmatmul.mubr.f32.gmra.mrb[0].mxu0 %v3245
    %v3313 = vpop.f32.mrb[0].mxu0
    %v3314 = vadd.f32 0.0, %v3313
    %v3315 = vpop.f32.mrb[0].mxu0
    %3316 = vdwg.mxu0
    %v3318 = vsel %vm3243, %v3153, 0
    %3320 = vmatprep.subr.mxu0 0.0
    %3321 = vmatpush1.msra.mxu0 %v3150
    %3322 = vmatprep.subr.mxu0 0.0
    %3323 = vmatpush1.msra.mxu0 0.0
    %3324 = vmatprep.subr.mxu0 0.0
    %3325 = vmatpush1.msra.mxu0 0.0
    %3326 = vmatprep.subr.mxu0 0.0
    %3327 = vmatpush1.msra.mxu0 0.0
    %3328 = vmatprep.subr.mxu0 0.0
    %3329 = vmatpush1.msra.mxu0 0.0
    %3330 = vmatprep.subr.mxu0 0.0
    %3331 = vmatpush1.msra.mxu0 0.0
    %3332 = vmatprep.subr.mxu0 0.0
    %3333 = vmatpush1.msra.mxu0 0.0
    %3334 = vmatprep.subr.mxu0 0.0
    %3335 = vmatpush1.msra.mxu0 0.0
    %3336 = vmatprep.subr.mxu0 0.0
    %3337 = vmatpush1.msra.mxu0 0.0
    %3338 = vmatprep.subr.mxu0 0.0
    %3339 = vmatpush1.msra.mxu0 0.0
    %3340 = vmatprep.subr.mxu0 0.0
    %3341 = vmatpush1.msra.mxu0 0.0
    %3342 = vmatprep.subr.mxu0 0.0
    %3343 = vmatpush1.msra.mxu0 0.0
    %3344 = vmatprep.subr.mxu0 0.0
    %3345 = vmatpush1.msra.mxu0 0.0
    %3346 = vmatprep.subr.mxu0 0.0
    %3347 = vmatpush1.msra.mxu0 0.0
    %3348 = vmatprep.subr.mxu0 0.0
    %3349 = vmatpush1.msra.mxu0 0.0
    %3350 = vmatprep.subr.mxu0 0.0
    %3351 = vmatpush1.msra.mxu0 0.0
    %3352 = vmatprep.subr.mxu0 0.0
    %3353 = vmatpush1.msra.mxu0 0.0
    %3354 = vmatprep.subr.mxu0 0.0
    %3355 = vmatpush1.msra.mxu0 0.0
    %3356 = vmatprep.subr.mxu0 0.0
    %3357 = vmatpush1.msra.mxu0 0.0
    %3358 = vmatprep.subr.mxu0 0.0
    %3359 = vmatpush1.msra.mxu0 0.0
    %3360 = vmatprep.subr.mxu0 0.0
    %3361 = vmatpush1.msra.mxu0 0.0
    %3362 = vmatprep.subr.mxu0 0.0
    %3363 = vmatpush1.msra.mxu0 0.0
    %3364 = vmatprep.subr.mxu0 0.0
    %3365 = vmatpush1.msra.mxu0 0.0
    %3366 = vmatprep.subr.mxu0 0.0
    %3367 = vmatpush1.msra.mxu0 0.0
    %3368 = vmatprep.subr.mxu0 0.0
    %3369 = vmatpush1.msra.mxu0 0.0
    %3370 = vmatprep.subr.mxu0 0.0
    %3371 = vmatpush1.msra.mxu0 0.0
    %3372 = vmatprep.subr.mxu0 0.0
    %3373 = vmatpush1.msra.mxu0 0.0
    %3374 = vmatprep.subr.mxu0 0.0
    %3375 = vmatpush1.msra.mxu0 0.0
    %3376 = vmatprep.subr.mxu0 0.0
    %3377 = vmatpush1.msra.mxu0 0.0
    %3378 = vmatprep.subr.mxu0 0.0
    %3379 = vmatpush1.msra.mxu0 0.0
    %3380 = vmatprep.subr.mxu0 0.0
    %3381 = vmatpush1.msra.mxu0 0.0
    %3382 = vmatprep.subr.mxu0 0.0
    %3383 = vmatpush1.msra.mxu0 0.0
    %3384 = vmatprep.mubr.f32.mxu0 0.0
    %3385 = vmatmul.mubr.f32.gmra.mrb[0].mxu0 %v3318
    %v3386 = vpop.f32.mrb[0].mxu0
    %v3387 = vadd.f32 %v3314, %v3386
    %v3388 = vpop.f32.mrb[0].mxu0
    %3389 = vdwg.mxu0
    %s3390 = scalar_lea.vmem [#allocation16], 256
    %v3391 = vld [vmem:[%s3390] sm:$0xff]
    %v3392 = vld [vmem:[%s3390 + $0x8] sm:$0xff]
    %v3393 = vld [vmem:[%s3390 + $0x10] sm:$0xff]
    %v3394 = vld [vmem:[%s3390 + $0x18] sm:$0xff]
    %v3395 = vld [vmem:[%s3390 + $0x20] sm:$0xff]
    %v3396 = vld [vmem:[%s3390 + $0x28] sm:$0xff]
    %v3397 = vld [vmem:[%s3390 + $0x30] sm:$0xff]
    %v3398 = vld [vmem:[%s3390 + $0x38] sm:$0xff]
    %v3399 = vld [vmem:[%s3390 + $0x40] sm:$0xff]
    %v3400 = vld [vmem:[%s3390 + $0x48] sm:$0xff]
    %v3401 = vld [vmem:[%s3390 + $0x50] sm:$0xff]
    %v3402 = vld [vmem:[%s3390 + $0x58] sm:$0xff]
    %v3403 = vld [vmem:[%s3390 + $0x60] sm:$0xff]
    %v3404 = vld [vmem:[%s3390 + $0x68] sm:$0xff]
    %v3405 = vld [vmem:[%s3390 + $0x70] sm:$0xff]
    %v3406 = vld [vmem:[%s3390 + $0x78] sm:$0xff]
    %3407 = vmatprep.subr.mxu0 0.0
    %3408 = vmatpush1.msra.mxu0 %v3391
    %3409 = vmatprep.subr.mxu0 0.0
    %3410 = vmatpush1.msra.mxu0 %v3392
    %3411 = vmatprep.subr.mxu0 0.0
    %3412 = vmatpush1.msra.mxu0 %v3393
    %3413 = vmatprep.subr.mxu0 0.0
    %3414 = vmatpush1.msra.mxu0 %v3394
    %3415 = vmatprep.subr.mxu0 0.0
    %3416 = vmatpush1.msra.mxu0 %v3395
    %3417 = vmatprep.subr.mxu0 0.0
    %3418 = vmatpush1.msra.mxu0 %v3396
    %3419 = vmatprep.subr.mxu0 0.0
    %3420 = vmatpush1.msra.mxu0 %v3397
    %3421 = vmatprep.subr.mxu0 0.0
    %3422 = vmatpush1.msra.mxu0 %v3398
    %3423 = vmatprep.subr.mxu0 0.0
    %3424 = vmatpush1.msra.mxu0 %v3399
    %3425 = vmatprep.subr.mxu0 0.0
    %3426 = vmatpush1.msra.mxu0 %v3400
    %3427 = vmatprep.subr.mxu0 0.0
    %3428 = vmatpush1.msra.mxu0 %v3401
    %3429 = vmatprep.subr.mxu0 0.0
    %3430 = vmatpush1.msra.mxu0 %v3402
    %3431 = vmatprep.subr.mxu0 0.0
    %3432 = vmatpush1.msra.mxu0 %v3403
    %3433 = vmatprep.subr.mxu0 0.0
    %3434 = vmatpush1.msra.mxu0 %v3404
    %3435 = vmatprep.subr.mxu0 0.0
    %3436 = vmatpush1.msra.mxu0 %v3405
    %3437 = vmatprep.subr.mxu0 0.0
    %3438 = vmatpush1.msra.mxu0 %v3406
    %3439 = vmatprep.subr.mxu0 0.0
    %3440 = vmatpush1.msra.mxu0 0.0
    %3441 = vmatprep.subr.mxu0 0.0
    %3442 = vmatpush1.msra.mxu0 0.0
    %3443 = vmatprep.subr.mxu0 0.0
    %3444 = vmatpush1.msra.mxu0 0.0
    %3445 = vmatprep.subr.mxu0 0.0
    %3446 = vmatpush1.msra.mxu0 0.0
    %3447 = vmatprep.subr.mxu0 0.0
    %3448 = vmatpush1.msra.mxu0 0.0
    %3449 = vmatprep.subr.mxu0 0.0
    %3450 = vmatpush1.msra.mxu0 0.0
    %3451 = vmatprep.subr.mxu0 0.0
    %3452 = vmatpush1.msra.mxu0 0.0
    %3453 = vmatprep.subr.mxu0 0.0
    %3454 = vmatpush1.msra.mxu0 0.0
    %3455 = vmatprep.subr.mxu0 0.0
    %3456 = vmatpush1.msra.mxu0 0.0
    %3457 = vmatprep.subr.mxu0 0.0
    %3458 = vmatpush1.msra.mxu0 0.0
    %3459 = vmatprep.subr.mxu0 0.0
    %3460 = vmatpush1.msra.mxu0 0.0
    %3461 = vmatprep.subr.mxu0 0.0
    %3462 = vmatpush1.msra.mxu0 0.0
    %3463 = vmatprep.subr.mxu0 0.0
    %3464 = vmatpush1.msra.mxu0 0.0
    %3465 = vmatprep.subr.mxu0 0.0
    %3466 = vmatpush1.msra.mxu0 0.0
    %3467 = vmatprep.subr.mxu0 0.0
    %3468 = vmatpush1.msra.mxu0 0.0
    %3469 = vmatprep.subr.mxu0 0.0
    %3470 = vmatpush1.msra.mxu0 0.0
    %3471 = vmatprep.mubr.f32.mxu0 0.0
    %3472 = vmatmul.mubr.f32.gmra.mrb[0].mxu0 %v3066
    %v3473 = vpop.f32.mrb[0].mxu0
    %v3474 = vadd.f32 0.0, %v3473
    %v3475 = vpop.f32.mrb[0].mxu0
    %3476 = vdwg.mxu0
    %s3477 = scalar_lea.vmem [#allocation17], 16
    %v3478 = vld [vmem:[%s3477] sm:$0xff]
    %v3480 = vsel %vm3243, %v3478, 0
    %3482 = vmatprep.subr.mxu0 0.0
    %3483 = vmatpush1.msra.mxu0 %v3474
    %3484 = vmatprep.subr.mxu0 0.0
    %3485 = vmatpush1.msra.mxu0 0.0
    %3486 = vmatprep.subr.mxu0 0.0
    %3487 = vmatpush1.msra.mxu0 0.0
    %3488 = vmatprep.subr.mxu0 0.0
    %3489 = vmatpush1.msra.mxu0 0.0
    %3490 = vmatprep.subr.mxu0 0.0
    %3491 = vmatpush1.msra.mxu0 0.0
    %3492 = vmatprep.subr.mxu0 0.0
    %3493 = vmatpush1.msra.mxu0 0.0
    %3494 = vmatprep.subr.mxu0 0.0
    %3495 = vmatpush1.msra.mxu0 0.0
    %3496 = vmatprep.subr.mxu0 0.0
    %3497 = vmatpush1.msra.mxu0 0.0
    %3498 = vmatprep.subr.mxu0 0.0
    %3499 = vmatpush1.msra.mxu0 0.0
    %3500 = vmatprep.subr.mxu0 0.0
    %3501 = vmatpush1.msra.mxu0 0.0
    %3502 = vmatprep.subr.mxu0 0.0
    %3503 = vmatpush1.msra.mxu0 0.0
    %3504 = vmatprep.subr.mxu0 0.0
    %3505 = vmatpush1.msra.mxu0 0.0
    %3506 = vmatprep.subr.mxu0 0.0
    %3507 = vmatpush1.msra.mxu0 0.0
    %3508 = vmatprep.subr.mxu0 0.0
    %3509 = vmatpush1.msra.mxu0 0.0
    %3510 = vmatprep.subr.mxu0 0.0
    %3511 = vmatpush1.msra.mxu0 0.0
    %3512 = vmatprep.subr.mxu0 0.0
    %3513 = vmatpush1.msra.mxu0 0.0
    %3514 = vmatprep.subr.mxu0 0.0
    %3515 = vmatpush1.msra.mxu0 0.0
    %3516 = vmatprep.subr.mxu0 0.0
    %3517 = vmatpush1.msra.mxu0 0.0
    %3518 = vmatprep.subr.mxu0 0.0
    %3519 = vmatpush1.msra.mxu0 0.0
    %3520 = vmatprep.subr.mxu0 0.0
    %3521 = vmatpush1.msra.mxu0 0.0
    %3522 = vmatprep.subr.mxu0 0.0
    %3523 = vmatpush1.msra.mxu0 0.0
    %3524 = vmatprep.subr.mxu0 0.0
    %3525 = vmatpush1.msra.mxu0 0.0
    %3526 = vmatprep.subr.mxu0 0.0
    %3527 = vmatpush1.msra.mxu0 0.0
    %3528 = vmatprep.subr.mxu0 0.0
    %3529 = vmatpush1.msra.mxu0 0.0
    %3530 = vmatprep.subr.mxu0 0.0
    %3531 = vmatpush1.msra.mxu0 0.0
    %3532 = vmatprep.subr.mxu0 0.0
    %3533 = vmatpush1.msra.mxu0 0.0
    %3534 = vmatprep.subr.mxu0 0.0
    %3535 = vmatpush1.msra.mxu0 0.0
    %3536 = vmatprep.subr.mxu0 0.0
    %3537 = vmatpush1.msra.mxu0 0.0
    %3538 = vmatprep.subr.mxu0 0.0
    %3539 = vmatpush1.msra.mxu0 0.0
    %3540 = vmatprep.subr.mxu0 0.0
    %3541 = vmatpush1.msra.mxu0 0.0
    %3542 = vmatprep.subr.mxu0 0.0
    %3543 = vmatpush1.msra.mxu0 0.0
    %3544 = vmatprep.subr.mxu0 0.0
    %3545 = vmatpush1.msra.mxu0 0.0
    %3546 = vmatprep.mubr.f32.mxu0 0.0
    %3547 = vmatmul.mubr.f32.gmra.mrb[0].mxu0 %v3480
    %v3548 = vpop.f32.mrb[0].mxu0
    %v3549 = vadd.f32 0.0, %v3548
    %v3550 = vpop.f32.mrb[0].mxu0
    %3551 = vdwg.mxu0
    %v3552 = vadd.f32 %v3387, %v3549
    %s3553 = scalar_lea.vmem [#allocation16], 384
    %v3554 = vld [vmem:[%s3553] sm:$0xff]
    %v3555 = vld [vmem:[%s3553 + $0x8] sm:$0xff]
    %v3556 = vld [vmem:[%s3553 + $0x10] sm:$0xff]
    %v3557 = vld [vmem:[%s3553 + $0x18] sm:$0xff]
    %v3558 = vld [vmem:[%s3553 + $0x20] sm:$0xff]
    %v3559 = vld [vmem:[%s3553 + $0x28] sm:$0xff]
    %v3560 = vld [vmem:[%s3553 + $0x30] sm:$0xff]
    %v3561 = vld [vmem:[%s3553 + $0x38] sm:$0xff]
    %v3562 = vld [vmem:[%s3553 + $0x40] sm:$0xff]
    %v3563 = vld [vmem:[%s3553 + $0x48] sm:$0xff]
    %v3564 = vld [vmem:[%s3553 + $0x50] sm:$0xff]
    %v3565 = vld [vmem:[%s3553 + $0x58] sm:$0xff]
    %v3566 = vld [vmem:[%s3553 + $0x60] sm:$0xff]
    %v3567 = vld [vmem:[%s3553 + $0x68] sm:$0xff]
    %v3568 = vld [vmem:[%s3553 + $0x70] sm:$0xff]
    %v3569 = vld [vmem:[%s3553 + $0x78] sm:$0xff]
    %3570 = vmatprep.subr.mxu0 0.0
    %3571 = vmatpush1.msra.mxu0 %v3554
    %3572 = vmatprep.subr.mxu0 0.0
    %3573 = vmatpush1.msra.mxu0 %v3555
    %3574 = vmatprep.subr.mxu0 0.0
    %3575 = vmatpush1.msra.mxu0 %v3556
    %3576 = vmatprep.subr.mxu0 0.0
    %3577 = vmatpush1.msra.mxu0 %v3557
    %3578 = vmatprep.subr.mxu0 0.0
    %3579 = vmatpush1.msra.mxu0 %v3558
    %3580 = vmatprep.subr.mxu0 0.0
    %3581 = vmatpush1.msra.mxu0 %v3559
    %3582 = vmatprep.subr.mxu0 0.0
    %3583 = vmatpush1.msra.mxu0 %v3560
    %3584 = vmatprep.subr.mxu0 0.0
    %3585 = vmatpush1.msra.mxu0 %v3561
    %3586 = vmatprep.subr.mxu0 0.0
    %3587 = vmatpush1.msra.mxu0 %v3562
    %3588 = vmatprep.subr.mxu0 0.0
    %3589 = vmatpush1.msra.mxu0 %v3563
    %3590 = vmatprep.subr.mxu0 0.0
    %3591 = vmatpush1.msra.mxu0 %v3564
    %3592 = vmatprep.subr.mxu0 0.0
    %3593 = vmatpush1.msra.mxu0 %v3565
    %3594 = vmatprep.subr.mxu0 0.0
    %3595 = vmatpush1.msra.mxu0 %v3566
    %3596 = vmatprep.subr.mxu0 0.0
    %3597 = vmatpush1.msra.mxu0 %v3567
    %3598 = vmatprep.subr.mxu0 0.0
    %3599 = vmatpush1.msra.mxu0 %v3568
    %3600 = vmatprep.subr.mxu0 0.0
    %3601 = vmatpush1.msra.mxu0 %v3569
    %3602 = vmatprep.subr.mxu0 0.0
    %3603 = vmatpush1.msra.mxu0 0.0
    %3604 = vmatprep.subr.mxu0 0.0
    %3605 = vmatpush1.msra.mxu0 0.0
    %3606 = vmatprep.subr.mxu0 0.0
    %3607 = vmatpush1.msra.mxu0 0.0
    %3608 = vmatprep.subr.mxu0 0.0
    %3609 = vmatpush1.msra.mxu0 0.0
    %3610 = vmatprep.subr.mxu0 0.0
    %3611 = vmatpush1.msra.mxu0 0.0
    %3612 = vmatprep.subr.mxu0 0.0
    %3613 = vmatpush1.msra.mxu0 0.0
    %3614 = vmatprep.subr.mxu0 0.0
    %3615 = vmatpush1.msra.mxu0 0.0
    %3616 = vmatprep.subr.mxu0 0.0
    %3617 = vmatpush1.msra.mxu0 0.0
    %3618 = vmatprep.subr.mxu0 0.0
    %3619 = vmatpush1.msra.mxu0 0.0
    %3620 = vmatprep.subr.mxu0 0.0
    %3621 = vmatpush1.msra.mxu0 0.0
    %3622 = vmatprep.subr.mxu0 0.0
    %3623 = vmatpush1.msra.mxu0 0.0
    %3624 = vmatprep.subr.mxu0 0.0
    %3625 = vmatpush1.msra.mxu0 0.0
    %3626 = vmatprep.subr.mxu0 0.0
    %3627 = vmatpush1.msra.mxu0 0.0
    %3628 = vmatprep.subr.mxu0 0.0
    %3629 = vmatpush1.msra.mxu0 0.0
    %3630 = vmatprep.subr.mxu0 0.0
    %3631 = vmatpush1.msra.mxu0 0.0
    %3632 = vmatprep.subr.mxu0 0.0
    %3633 = vmatpush1.msra.mxu0 0.0
    %3634 = vmatprep.mubr.f32.mxu0 0.0
    %3635 = vmatmul.mubr.f32.gmra.mrb[0].mxu0 %v3066
    %v3636 = vpop.f32.mrb[0].mxu0
    %v3637 = vadd.f32 0.0, %v3636
    %v3638 = vpop.f32.mrb[0].mxu0
    %3639 = vdwg.mxu0
    %s3640 = scalar_lea.vmem [#allocation17], 24
    %v3641 = vld [vmem:[%s3640] sm:$0xff]
    %v3643 = vsel %vm3243, %v3641, 0
    %3645 = vmatprep.subr.mxu0 0.0
    %3646 = vmatpush1.msra.mxu0 %v3637
    %3647 = vmatprep.subr.mxu0 0.0
    %3648 = vmatpush1.msra.mxu0 0.0
    %3649 = vmatprep.subr.mxu0 0.0
    %3650 = vmatpush1.msra.mxu0 0.0
    %3651 = vmatprep.subr.mxu0 0.0
    %3652 = vmatpush1.msra.mxu0 0.0
    %3653 = vmatprep.subr.mxu0 0.0
    %3654 = vmatpush1.msra.mxu0 0.0
    %3655 = vmatprep.subr.mxu0 0.0
    %3656 = vmatpush1.msra.mxu0 0.0
    %3657 = vmatprep.subr.mxu0 0.0
    %3658 = vmatpush1.msra.mxu0 0.0
    %3659 = vmatprep.subr.mxu0 0.0
    %3660 = vmatpush1.msra.mxu0 0.0
    %3661 = vmatprep.subr.mxu0 0.0
    %3662 = vmatpush1.msra.mxu0 0.0
    %3663 = vmatprep.subr.mxu0 0.0
    %3664 = vmatpush1.msra.mxu0 0.0
    %3665 = vmatprep.subr.mxu0 0.0
    %3666 = vmatpush1.msra.mxu0 0.0
    %3667 = vmatprep.subr.mxu0 0.0
    %3668 = vmatpush1.msra.mxu0 0.0
    %3669 = vmatprep.subr.mxu0 0.0
    %3670 = vmatpush1.msra.mxu0 0.0
    %3671 = vmatprep.subr.mxu0 0.0
    %3672 = vmatpush1.msra.mxu0 0.0
    %3673 = vmatprep.subr.mxu0 0.0
    %3674 = vmatpush1.msra.mxu0 0.0
    %3675 = vmatprep.subr.mxu0 0.0
    %3676 = vmatpush1.msra.mxu0 0.0
    %3677 = vmatprep.subr.mxu0 0.0
    %3678 = vmatpush1.msra.mxu0 0.0
    %3679 = vmatprep.subr.mxu0 0.0
    %3680 = vmatpush1.msra.mxu0 0.0
    %3681 = vmatprep.subr.mxu0 0.0
    %3682 = vmatpush1.msra.mxu0 0.0
    %3683 = vmatprep.subr.mxu0 0.0
    %3684 = vmatpush1.msra.mxu0 0.0
    %3685 = vmatprep.subr.mxu0 0.0
    %3686 = vmatpush1.msra.mxu0 0.0
    %3687 = vmatprep.subr.mxu0 0.0
    %3688 = vmatpush1.msra.mxu0 0.0
    %3689 = vmatprep.subr.mxu0 0.0
    %3690 = vmatpush1.msra.mxu0 0.0
    %3691 = vmatprep.subr.mxu0 0.0
    %3692 = vmatpush1.msra.mxu0 0.0
    %3693 = vmatprep.subr.mxu0 0.0
    %3694 = vmatpush1.msra.mxu0 0.0
    %3695 = vmatprep.subr.mxu0 0.0
    %3696 = vmatpush1.msra.mxu0 0.0
    %3697 = vmatprep.subr.mxu0 0.0
    %3698 = vmatpush1.msra.mxu0 0.0
    %3699 = vmatprep.subr.mxu0 0.0
    %3700 = vmatpush1.msra.mxu0 0.0
    %3701 = vmatprep.subr.mxu0 0.0
    %3702 = vmatpush1.msra.mxu0 0.0
    %3703 = vmatprep.subr.mxu0 0.0
    %3704 = vmatpush1.msra.mxu0 0.0
    %3705 = vmatprep.subr.mxu0 0.0
    %3706 = vmatpush1.msra.mxu0 0.0
    %3707 = vmatprep.subr.mxu0 0.0
    %3708 = vmatpush1.msra.mxu0 0.0
    %3709 = vmatprep.mubr.f32.mxu0 0.0
    %3710 = vmatmul.mubr.f32.gmra.mrb[0].mxu0 %v3643
    %v3711 = vpop.f32.mrb[0].mxu0
    %v3712 = vadd.f32 0.0, %v3711
    %v3713 = vpop.f32.mrb[0].mxu0
    %3714 = vdwg.mxu0
    %v3715 = vadd.f32 %v3552, %v3712
    %s3716 = scalar_lea.vmem [#allocation16], 512
    %v3717 = vld [vmem:[%s3716] sm:$0xff]
    %v3718 = vld [vmem:[%s3716 + $0x8] sm:$0xff]
    %v3719 = vld [vmem:[%s3716 + $0x10] sm:$0xff]
    %v3720 = vld [vmem:[%s3716 + $0x18] sm:$0xff]
    %v3721 = vld [vmem:[%s3716 + $0x20] sm:$0xff]
    %v3722 = vld [vmem:[%s3716 + $0x28] sm:$0xff]
    %v3723 = vld [vmem:[%s3716 + $0x30] sm:$0xff]
    %v3724 = vld [vmem:[%s3716 + $0x38] sm:$0xff]
    %v3725 = vld [vmem:[%s3716 + $0x40] sm:$0xff]
    %v3726 = vld [vmem:[%s3716 + $0x48] sm:$0xff]
    %v3727 = vld [vmem:[%s3716 + $0x50] sm:$0xff]
    %v3728 = vld [vmem:[%s3716 + $0x58] sm:$0xff]
    %v3729 = vld [vmem:[%s3716 + $0x60] sm:$0xff]
    %v3730 = vld [vmem:[%s3716 + $0x68] sm:$0xff]
    %v3731 = vld [vmem:[%s3716 + $0x70] sm:$0xff]
    %v3732 = vld [vmem:[%s3716 + $0x78] sm:$0xff]
    %3733 = vmatprep.subr.mxu0 0.0
    %3734 = vmatpush1.msra.mxu0 %v3717
    %3735 = vmatprep.subr.mxu0 0.0
    %3736 = vmatpush1.msra.mxu0 %v3718
    %3737 = vmatprep.subr.mxu0 0.0
    %3738 = vmatpush1.msra.mxu0 %v3719
    %3739 = vmatprep.subr.mxu0 0.0
    %3740 = vmatpush1.msra.mxu0 %v3720
    %3741 = vmatprep.subr.mxu0 0.0
    %3742 = vmatpush1.msra.mxu0 %v3721
    %3743 = vmatprep.subr.mxu0 0.0
    %3744 = vmatpush1.msra.mxu0 %v3722
    %3745 = vmatprep.subr.mxu0 0.0
    %3746 = vmatpush1.msra.mxu0 %v3723
    %3747 = vmatprep.subr.mxu0 0.0
    %3748 = vmatpush1.msra.mxu0 %v3724
    %3749 = vmatprep.subr.mxu0 0.0
    %3750 = vmatpush1.msra.mxu0 %v3725
    %3751 = vmatprep.subr.mxu0 0.0
    %3752 = vmatpush1.msra.mxu0 %v3726
    %3753 = vmatprep.subr.mxu0 0.0
    %3754 = vmatpush1.msra.mxu0 %v3727
    %3755 = vmatprep.subr.mxu0 0.0
    %3756 = vmatpush1.msra.mxu0 %v3728
    %3757 = vmatprep.subr.mxu0 0.0
    %3758 = vmatpush1.msra.mxu0 %v3729
    %3759 = vmatprep.subr.mxu0 0.0
    %3760 = vmatpush1.msra.mxu0 %v3730
    %3761 = vmatprep.subr.mxu0 0.0
    %3762 = vmatpush1.msra.mxu0 %v3731
    %3763 = vmatprep.subr.mxu0 0.0
    %3764 = vmatpush1.msra.mxu0 %v3732
    %3765 = vmatprep.subr.mxu0 0.0
    %3766 = vmatpush1.msra.mxu0 0.0
    %3767 = vmatprep.subr.mxu0 0.0
    %3768 = vmatpush1.msra.mxu0 0.0
    %3769 = vmatprep.subr.mxu0 0.0
    %3770 = vmatpush1.msra.mxu0 0.0
    %3771 = vmatprep.subr.mxu0 0.0
    %3772 = vmatpush1.msra.mxu0 0.0
    %3773 = vmatprep.subr.mxu0 0.0
    %3774 = vmatpush1.msra.mxu0 0.0
    %3775 = vmatprep.subr.mxu0 0.0
    %3776 = vmatpush1.msra.mxu0 0.0
    %3777 = vmatprep.subr.mxu0 0.0
    %3778 = vmatpush1.msra.mxu0 0.0
    %3779 = vmatprep.subr.mxu0 0.0
    %3780 = vmatpush1.msra.mxu0 0.0
    %3781 = vmatprep.subr.mxu0 0.0
    %3782 = vmatpush1.msra.mxu0 0.0
    %3783 = vmatprep.subr.mxu0 0.0
    %3784 = vmatpush1.msra.mxu0 0.0
    %3785 = vmatprep.subr.mxu0 0.0
    %3786 = vmatpush1.msra.mxu0 0.0
    %3787 = vmatprep.subr.mxu0 0.0
    %3788 = vmatpush1.msra.mxu0 0.0
    %3789 = vmatprep.subr.mxu0 0.0
    %3790 = vmatpush1.msra.mxu0 0.0
    %3791 = vmatprep.subr.mxu0 0.0
    %3792 = vmatpush1.msra.mxu0 0.0
    %3793 = vmatprep.subr.mxu0 0.0
    %3794 = vmatpush1.msra.mxu0 0.0
    %3795 = vmatprep.subr.mxu0 0.0
    %3796 = vmatpush1.msra.mxu0 0.0
    %3797 = vmatprep.mubr.f32.mxu0 0.0
    %3798 = vmatmul.mubr.f32.gmra.mrb[0].mxu0 %v3066
    %v3799 = vpop.f32.mrb[0].mxu0
    %v3800 = vadd.f32 0.0, %v3799
    %v3801 = vpop.f32.mrb[0].mxu0
    %3802 = vdwg.mxu0
    %s3803 = scalar_lea.vmem [#allocation17], 32
    %v3804 = vld [vmem:[%s3803] sm:$0xff]
    %v3806 = vsel %vm3243, %v3804, 0
    %3808 = vmatprep.subr.mxu0 0.0
    %3809 = vmatpush1.msra.mxu0 %v3800
    %3810 = vmatprep.subr.mxu0 0.0
    %3811 = vmatpush1.msra.mxu0 0.0
    %3812 = vmatprep.subr.mxu0 0.0
    %3813 = vmatpush1.msra.mxu0 0.0
    %3814 = vmatprep.subr.mxu0 0.0
    %3815 = vmatpush1.msra.mxu0 0.0
    %3816 = vmatprep.subr.mxu0 0.0
    %3817 = vmatpush1.msra.mxu0 0.0
    %3818 = vmatprep.subr.mxu0 0.0
    %3819 = vmatpush1.msra.mxu0 0.0
    %3820 = vmatprep.subr.mxu0 0.0
    %3821 = vmatpush1.msra.mxu0 0.0
    %3822 = vmatprep.subr.mxu0 0.0
    %3823 = vmatpush1.msra.mxu0 0.0
    %3824 = vmatprep.subr.mxu0 0.0
    %3825 = vmatpush1.msra.mxu0 0.0
    %3826 = vmatprep.subr.mxu0 0.0
    %3827 = vmatpush1.msra.mxu0 0.0
    %3828 = vmatprep.subr.mxu0 0.0
    %3829 = vmatpush1.msra.mxu0 0.0
    %3830 = vmatprep.subr.mxu0 0.0
    %3831 = vmatpush1.msra.mxu0 0.0
    %3832 = vmatprep.subr.mxu0 0.0
    %3833 = vmatpush1.msra.mxu0 0.0
    %3834 = vmatprep.subr.mxu0 0.0
    %3835 = vmatpush1.msra.mxu0 0.0
    %3836 = vmatprep.subr.mxu0 0.0
    %3837 = vmatpush1.msra.mxu0 0.0
    %3838 = vmatprep.subr.mxu0 0.0
    %3839 = vmatpush1.msra.mxu0 0.0
    %3840 = vmatprep.subr.mxu0 0.0
    %3841 = vmatpush1.msra.mxu0 0.0
    %3842 = vmatprep.subr.mxu0 0.0
    %3843 = vmatpush1.msra.mxu0 0.0
    %3844 = vmatprep.subr.mxu0 0.0
    %3845 = vmatpush1.msra.mxu0 0.0
    %3846 = vmatprep.subr.mxu0 0.0
    %3847 = vmatpush1.msra.mxu0 0.0
    %3848 = vmatprep.subr.mxu0 0.0
    %3849 = vmatpush1.msra.mxu0 0.0
    %3850 = vmatprep.subr.mxu0 0.0
    %3851 = vmatpush1.msra.mxu0 0.0
    %3852 = vmatprep.subr.mxu0 0.0
    %3853 = vmatpush1.msra.mxu0 0.0
    %3854 = vmatprep.subr.mxu0 0.0
    %3855 = vmatpush1.msra.mxu0 0.0
    %3856 = vmatprep.subr.mxu0 0.0
    %3857 = vmatpush1.msra.mxu0 0.0
    %3858 = vmatprep.subr.mxu0 0.0
    %3859 = vmatpush1.msra.mxu0 0.0
    %3860 = vmatprep.subr.mxu0 0.0
    %3861 = vmatpush1.msra.mxu0 0.0
    %3862 = vmatprep.subr.mxu0 0.0
    %3863 = vmatpush1.msra.mxu0 0.0
    %3864 = vmatprep.subr.mxu0 0.0
    %3865 = vmatpush1.msra.mxu0 0.0
    %3866 = vmatprep.subr.mxu0 0.0
    %3867 = vmatpush1.msra.mxu0 0.0
    %3868 = vmatprep.subr.mxu0 0.0
    %3869 = vmatpush1.msra.mxu0 0.0
    %3870 = vmatprep.subr.mxu0 0.0
    %3871 = vmatpush1.msra.mxu0 0.0
    %3872 = vmatprep.mubr.f32.mxu0 0.0
    %3873 = vmatmul.mubr.f32.gmra.mrb[0].mxu0 %v3806
    %v3874 = vpop.f32.mrb[0].mxu0
    %v3875 = vadd.f32 0.0, %v3874
    %v3876 = vpop.f32.mrb[0].mxu0
    %3877 = vdwg.mxu0
    %v3878 = vadd.f32 %v3715, %v3875
    %s3879 = scalar_lea.vmem [#allocation16], 640
    %v3880 = vld [vmem:[%s3879] sm:$0xff]
    %v3881 = vld [vmem:[%s3879 + $0x8] sm:$0xff]
    %v3882 = vld [vmem:[%s3879 + $0x10] sm:$0xff]
    %v3883 = vld [vmem:[%s3879 + $0x18] sm:$0xff]
    %v3884 = vld [vmem:[%s3879 + $0x20] sm:$0xff]
    %v3885 = vld [vmem:[%s3879 + $0x28] sm:$0xff]
    %v3886 = vld [vmem:[%s3879 + $0x30] sm:$0xff]
    %v3887 = vld [vmem:[%s3879 + $0x38] sm:$0xff]
    %v3888 = vld [vmem:[%s3879 + $0x40] sm:$0xff]
    %v3889 = vld [vmem:[%s3879 + $0x48] sm:$0xff]
    %v3890 = vld [vmem:[%s3879 + $0x50] sm:$0xff]
    %v3891 = vld [vmem:[%s3879 + $0x58] sm:$0xff]
    %v3892 = vld [vmem:[%s3879 + $0x60] sm:$0xff]
    %v3893 = vld [vmem:[%s3879 + $0x68] sm:$0xff]
    %v3894 = vld [vmem:[%s3879 + $0x70] sm:$0xff]
    %v3895 = vld [vmem:[%s3879 + $0x78] sm:$0xff]
    %3896 = vmatprep.subr.mxu0 0.0
    %3897 = vmatpush1.msra.mxu0 %v3880
    %3898 = vmatprep.subr.mxu0 0.0
    %3899 = vmatpush1.msra.mxu0 %v3881
    %3900 = vmatprep.subr.mxu0 0.0
    %3901 = vmatpush1.msra.mxu0 %v3882
    %3902 = vmatprep.subr.mxu0 0.0
    %3903 = vmatpush1.msra.mxu0 %v3883
    %3904 = vmatprep.subr.mxu0 0.0
    %3905 = vmatpush1.msra.mxu0 %v3884
    %3906 = vmatprep.subr.mxu0 0.0
    %3907 = vmatpush1.msra.mxu0 %v3885
    %3908 = vmatprep.subr.mxu0 0.0
    %3909 = vmatpush1.msra.mxu0 %v3886
    %3910 = vmatprep.subr.mxu0 0.0
    %3911 = vmatpush1.msra.mxu0 %v3887
    %3912 = vmatprep.subr.mxu0 0.0
    %3913 = vmatpush1.msra.mxu0 %v3888
    %3914 = vmatprep.subr.mxu0 0.0
    %3915 = vmatpush1.msra.mxu0 %v3889
    %3916 = vmatprep.subr.mxu0 0.0
    %3917 = vmatpush1.msra.mxu0 %v3890
    %3918 = vmatprep.subr.mxu0 0.0
    %3919 = vmatpush1.msra.mxu0 %v3891
    %3920 = vmatprep.subr.mxu0 0.0
    %3921 = vmatpush1.msra.mxu0 %v3892
    %3922 = vmatprep.subr.mxu0 0.0
    %3923 = vmatpush1.msra.mxu0 %v3893
    %3924 = vmatprep.subr.mxu0 0.0
    %3925 = vmatpush1.msra.mxu0 %v3894
    %3926 = vmatprep.subr.mxu0 0.0
    %3927 = vmatpush1.msra.mxu0 %v3895
    %3928 = vmatprep.subr.mxu0 0.0
    %3929 = vmatpush1.msra.mxu0 0.0
    %3930 = vmatprep.subr.mxu0 0.0
    %3931 = vmatpush1.msra.mxu0 0.0
    %3932 = vmatprep.subr.mxu0 0.0
    %3933 = vmatpush1.msra.mxu0 0.0
    %3934 = vmatprep.subr.mxu0 0.0
    %3935 = vmatpush1.msra.mxu0 0.0
    %3936 = vmatprep.subr.mxu0 0.0
    %3937 = vmatpush1.msra.mxu0 0.0
    %3938 = vmatprep.subr.mxu0 0.0
    %3939 = vmatpush1.msra.mxu0 0.0
    %3940 = vmatprep.subr.mxu0 0.0
    %3941 = vmatpush1.msra.mxu0 0.0
    %3942 = vmatprep.subr.mxu0 0.0
    %3943 = vmatpush1.msra.mxu0 0.0
    %3944 = vmatprep.subr.mxu0 0.0
    %3945 = vmatpush1.msra.mxu0 0.0
    %3946 = vmatprep.subr.mxu0 0.0
    %3947 = vmatpush1.msra.mxu0 0.0
    %3948 = vmatprep.subr.mxu0 0.0
    %3949 = vmatpush1.msra.mxu0 0.0
    %3950 = vmatprep.subr.mxu0 0.0
    %3951 = vmatpush1.msra.mxu0 0.0
    %3952 = vmatprep.subr.mxu0 0.0
    %3953 = vmatpush1.msra.mxu0 0.0
    %3954 = vmatprep.subr.mxu0 0.0
    %3955 = vmatpush1.msra.mxu0 0.0
    %3956 = vmatprep.subr.mxu0 0.0
    %3957 = vmatpush1.msra.mxu0 0.0
    %3958 = vmatprep.subr.mxu0 0.0
    %3959 = vmatpush1.msra.mxu0 0.0
    %3960 = vmatprep.mubr.f32.mxu0 0.0
    %3961 = vmatmul.mubr.f32.gmra.mrb[0].mxu0 %v3066
    %v3962 = vpop.f32.mrb[0].mxu0
    %v3963 = vadd.f32 0.0, %v3962
    %v3964 = vpop.f32.mrb[0].mxu0
    %3965 = vdwg.mxu0
    %s3966 = scalar_lea.vmem [#allocation17], 40
    %v3967 = vld [vmem:[%s3966] sm:$0xff]
    %v3969 = vsel %vm3243, %v3967, 0
    %3971 = vmatprep.subr.mxu0 0.0
    %3972 = vmatpush1.msra.mxu0 %v3963
    %3973 = vmatprep.subr.mxu0 0.0
    %3974 = vmatpush1.msra.mxu0 0.0
    %3975 = vmatprep.subr.mxu0 0.0
    %3976 = vmatpush1.msra.mxu0 0.0
    %3977 = vmatprep.subr.mxu0 0.0
    %3978 = vmatpush1.msra.mxu0 0.0
    %3979 = vmatprep.subr.mxu0 0.0
    %3980 = vmatpush1.msra.mxu0 0.0
    %3981 = vmatprep.subr.mxu0 0.0
    %3982 = vmatpush1.msra.mxu0 0.0
    %3983 = vmatprep.subr.mxu0 0.0
    %3984 = vmatpush1.msra.mxu0 0.0
    %3985 = vmatprep.subr.mxu0 0.0
    %3986 = vmatpush1.msra.mxu0 0.0
    %3987 = vmatprep.subr.mxu0 0.0
    %3988 = vmatpush1.msra.mxu0 0.0
    %3989 = vmatprep.subr.mxu0 0.0
    %3990 = vmatpush1.msra.mxu0 0.0
    %3991 = vmatprep.subr.mxu0 0.0
    %3992 = vmatpush1.msra.mxu0 0.0
    %3993 = vmatprep.subr.mxu0 0.0
    %3994 = vmatpush1.msra.mxu0 0.0
    %3995 = vmatprep.subr.mxu0 0.0
    %3996 = vmatpush1.msra.mxu0 0.0
    %3997 = vmatprep.subr.mxu0 0.0
    %3998 = vmatpush1.msra.mxu0 0.0
    %3999 = vmatprep.subr.mxu0 0.0
    %4000 = vmatpush1.msra.mxu0 0.0
    %4001 = vmatprep.subr.mxu0 0.0
    %4002 = vmatpush1.msra.mxu0 0.0
    %4003 = vmatprep.subr.mxu0 0.0
    %4004 = vmatpush1.msra.mxu0 0.0
    %4005 = vmatprep.subr.mxu0 0.0
    %4006 = vmatpush1.msra.mxu0 0.0
    %4007 = vmatprep.subr.mxu0 0.0
    %4008 = vmatpush1.msra.mxu0 0.0
    %4009 = vmatprep.subr.mxu0 0.0
    %4010 = vmatpush1.msra.mxu0 0.0
    %4011 = vmatprep.subr.mxu0 0.0
    %4012 = vmatpush1.msra.mxu0 0.0
    %4013 = vmatprep.subr.mxu0 0.0
    %4014 = vmatpush1.msra.mxu0 0.0
    %4015 = vmatprep.subr.mxu0 0.0
    %4016 = vmatpush1.msra.mxu0 0.0
    %4017 = vmatprep.subr.mxu0 0.0
    %4018 = vmatpush1.msra.mxu0 0.0
    %4019 = vmatprep.subr.mxu0 0.0
    %4020 = vmatpush1.msra.mxu0 0.0
    %4021 = vmatprep.subr.mxu0 0.0
    %4022 = vmatpush1.msra.mxu0 0.0
    %4023 = vmatprep.subr.mxu0 0.0
    %4024 = vmatpush1.msra.mxu0 0.0
    %4025 = vmatprep.subr.mxu0 0.0
    %4026 = vmatpush1.msra.mxu0 0.0
    %4027 = vmatprep.subr.mxu0 0.0
    %4028 = vmatpush1.msra.mxu0 0.0
    %4029 = vmatprep.subr.mxu0 0.0
    %4030 = vmatpush1.msra.mxu0 0.0
    %4031 = vmatprep.subr.mxu0 0.0
    %4032 = vmatpush1.msra.mxu0 0.0
    %4033 = vmatprep.subr.mxu0 0.0
    %4034 = vmatpush1.msra.mxu0 0.0
    %4035 = vmatprep.mubr.f32.mxu0 0.0
    %4036 = vmatmul.mubr.f32.gmra.mrb[0].mxu0 %v3969
    %v4037 = vpop.f32.mrb[0].mxu0
    %v4038 = vadd.f32 0.0, %v4037
    %v4039 = vpop.f32.mrb[0].mxu0
    %4040 = vdwg.mxu0
    %v4041 = vadd.f32 %v3878, %v4038
    %s4042 = scalar_lea.vmem [#allocation16], 768
    %v4043 = vld [vmem:[%s4042] sm:$0xff]
    %v4044 = vld [vmem:[%s4042 + $0x8] sm:$0xff]
    %v4045 = vld [vmem:[%s4042 + $0x10] sm:$0xff]
    %v4046 = vld [vmem:[%s4042 + $0x18] sm:$0xff]
    %v4047 = vld [vmem:[%s4042 + $0x20] sm:$0xff]
    %v4048 = vld [vmem:[%s4042 + $0x28] sm:$0xff]
    %v4049 = vld [vmem:[%s4042 + $0x30] sm:$0xff]
    %v4050 = vld [vmem:[%s4042 + $0x38] sm:$0xff]
    %v4051 = vld [vmem:[%s4042 + $0x40] sm:$0xff]
    %v4052 = vld [vmem:[%s4042 + $0x48] sm:$0xff]
    %v4053 = vld [vmem:[%s4042 + $0x50] sm:$0xff]
    %v4054 = vld [vmem:[%s4042 + $0x58] sm:$0xff]
    %v4055 = vld [vmem:[%s4042 + $0x60] sm:$0xff]
    %v4056 = vld [vmem:[%s4042 + $0x68] sm:$0xff]
    %v4057 = vld [vmem:[%s4042 + $0x70] sm:$0xff]
    %v4058 = vld [vmem:[%s4042 + $0x78] sm:$0xff]
    %4059 = vmatprep.subr.mxu0 0.0
    %4060 = vmatpush1.msra.mxu0 %v4043
    %4061 = vmatprep.subr.mxu0 0.0
    %4062 = vmatpush1.msra.mxu0 %v4044
    %4063 = vmatprep.subr.mxu0 0.0
    %4064 = vmatpush1.msra.mxu0 %v4045
    %4065 = vmatprep.subr.mxu0 0.0
    %4066 = vmatpush1.msra.mxu0 %v4046
    %4067 = vmatprep.subr.mxu0 0.0
    %4068 = vmatpush1.msra.mxu0 %v4047
    %4069 = vmatprep.subr.mxu0 0.0
    %4070 = vmatpush1.msra.mxu0 %v4048
    %4071 = vmatprep.subr.mxu0 0.0
    %4072 = vmatpush1.msra.mxu0 %v4049
    %4073 = vmatprep.subr.mxu0 0.0
    %4074 = vmatpush1.msra.mxu0 %v4050
    %4075 = vmatprep.subr.mxu0 0.0
    %4076 = vmatpush1.msra.mxu0 %v4051
    %4077 = vmatprep.subr.mxu0 0.0
    %4078 = vmatpush1.msra.mxu0 %v4052
    %4079 = vmatprep.subr.mxu0 0.0
    %4080 = vmatpush1.msra.mxu0 %v4053
    %4081 = vmatprep.subr.mxu0 0.0
    %4082 = vmatpush1.msra.mxu0 %v4054
    %4083 = vmatprep.subr.mxu0 0.0
    %4084 = vmatpush1.msra.mxu0 %v4055
    %4085 = vmatprep.subr.mxu0 0.0
    %4086 = vmatpush1.msra.mxu0 %v4056
    %4087 = vmatprep.subr.mxu0 0.0
    %4088 = vmatpush1.msra.mxu0 %v4057
    %4089 = vmatprep.subr.mxu0 0.0
    %4090 = vmatpush1.msra.mxu0 %v4058
    %4091 = vmatprep.subr.mxu0 0.0
    %4092 = vmatpush1.msra.mxu0 0.0
    %4093 = vmatprep.subr.mxu0 0.0
    %4094 = vmatpush1.msra.mxu0 0.0
    %4095 = vmatprep.subr.mxu0 0.0
    %4096 = vmatpush1.msra.mxu0 0.0
    %4097 = vmatprep.subr.mxu0 0.0
    %4098 = vmatpush1.msra.mxu0 0.0
    %4099 = vmatprep.subr.mxu0 0.0
    %4100 = vmatpush1.msra.mxu0 0.0
    %4101 = vmatprep.subr.mxu0 0.0
    %4102 = vmatpush1.msra.mxu0 0.0
    %4103 = vmatprep.subr.mxu0 0.0
    %4104 = vmatpush1.msra.mxu0 0.0
    %4105 = vmatprep.subr.mxu0 0.0
    %4106 = vmatpush1.msra.mxu0 0.0
    %4107 = vmatprep.subr.mxu0 0.0
    %4108 = vmatpush1.msra.mxu0 0.0
    %4109 = vmatprep.subr.mxu0 0.0
    %4110 = vmatpush1.msra.mxu0 0.0
    %4111 = vmatprep.subr.mxu0 0.0
    %4112 = vmatpush1.msra.mxu0 0.0
    %4113 = vmatprep.subr.mxu0 0.0
    %4114 = vmatpush1.msra.mxu0 0.0
    %4115 = vmatprep.subr.mxu0 0.0
    %4116 = vmatpush1.msra.mxu0 0.0
    %4117 = vmatprep.subr.mxu0 0.0
    %4118 = vmatpush1.msra.mxu0 0.0
    %4119 = vmatprep.subr.mxu0 0.0
    %4120 = vmatpush1.msra.mxu0 0.0
    %4121 = vmatprep.subr.mxu0 0.0
    %4122 = vmatpush1.msra.mxu0 0.0
    %4123 = vmatprep.mubr.f32.mxu0 0.0
    %4124 = vmatmul.mubr.f32.gmra.mrb[0].mxu0 %v3066
    %v4125 = vpop.f32.mrb[0].mxu0
    %v4126 = vadd.f32 0.0, %v4125
    %v4127 = vpop.f32.mrb[0].mxu0
    %4128 = vdwg.mxu0
    %s4129 = scalar_lea.vmem [#allocation17], 48
    %v4130 = vld [vmem:[%s4129] sm:$0xff]
    %v4132 = vsel %vm3243, %v4130, 0
    %4134 = vmatprep.subr.mxu0 0.0
    %4135 = vmatpush1.msra.mxu0 %v4126
    %4136 = vmatprep.subr.mxu0 0.0
    %4137 = vmatpush1.msra.mxu0 0.0
    %4138 = vmatprep.subr.mxu0 0.0
    %4139 = vmatpush1.msra.mxu0 0.0
    %4140 = vmatprep.subr.mxu0 0.0
    %4141 = vmatpush1.msra.mxu0 0.0
    %4142 = vmatprep.subr.mxu0 0.0
    %4143 = vmatpush1.msra.mxu0 0.0
    %4144 = vmatprep.subr.mxu0 0.0
    %4145 = vmatpush1.msra.mxu0 0.0
    %4146 = vmatprep.subr.mxu0 0.0
    %4147 = vmatpush1.msra.mxu0 0.0
    %4148 = vmatprep.subr.mxu0 0.0
    %4149 = vmatpush1.msra.mxu0 0.0
    %4150 = vmatprep.subr.mxu0 0.0
    %4151 = vmatpush1.msra.mxu0 0.0
    %4152 = vmatprep.subr.mxu0 0.0
    %4153 = vmatpush1.msra.mxu0 0.0
    %4154 = vmatprep.subr.mxu0 0.0
    %4155 = vmatpush1.msra.mxu0 0.0
    %4156 = vmatprep.subr.mxu0 0.0
    %4157 = vmatpush1.msra.mxu0 0.0
    %4158 = vmatprep.subr.mxu0 0.0
    %4159 = vmatpush1.msra.mxu0 0.0
    %4160 = vmatprep.subr.mxu0 0.0
    %4161 = vmatpush1.msra.mxu0 0.0
    %4162 = vmatprep.subr.mxu0 0.0
    %4163 = vmatpush1.msra.mxu0 0.0
    %4164 = vmatprep.subr.mxu0 0.0
    %4165 = vmatpush1.msra.mxu0 0.0
    %4166 = vmatprep.subr.mxu0 0.0
    %4167 = vmatpush1.msra.mxu0 0.0
    %4168 = vmatprep.subr.mxu0 0.0
    %4169 = vmatpush1.msra.mxu0 0.0
    %4170 = vmatprep.subr.mxu0 0.0
    %4171 = vmatpush1.msra.mxu0 0.0
    %4172 = vmatprep.subr.mxu0 0.0
    %4173 = vmatpush1.msra.mxu0 0.0
    %4174 = vmatprep.subr.mxu0 0.0
    %4175 = vmatpush1.msra.mxu0 0.0
    %4176 = vmatprep.subr.mxu0 0.0
    %4177 = vmatpush1.msra.mxu0 0.0
    %4178 = vmatprep.subr.mxu0 0.0
    %4179 = vmatpush1.msra.mxu0 0.0
    %4180 = vmatprep.subr.mxu0 0.0
    %4181 = vmatpush1.msra.mxu0 0.0
    %4182 = vmatprep.subr.mxu0 0.0
    %4183 = vmatpush1.msra.mxu0 0.0
    %4184 = vmatprep.subr.mxu0 0.0
    %4185 = vmatpush1.msra.mxu0 0.0
    %4186 = vmatprep.subr.mxu0 0.0
    %4187 = vmatpush1.msra.mxu0 0.0
    %4188 = vmatprep.subr.mxu0 0.0
    %4189 = vmatpush1.msra.mxu0 0.0
    %4190 = vmatprep.subr.mxu0 0.0
    %4191 = vmatpush1.msra.mxu0 0.0
    %4192 = vmatprep.subr.mxu0 0.0
    %4193 = vmatpush1.msra.mxu0 0.0
    %4194 = vmatprep.subr.mxu0 0.0
    %4195 = vmatpush1.msra.mxu0 0.0
    %4196 = vmatprep.subr.mxu0 0.0
    %4197 = vmatpush1.msra.mxu0 0.0
    %4198 = vmatprep.mubr.f32.mxu0 0.0
    %4199 = vmatmul.mubr.f32.gmra.mrb[0].mxu0 %v4132
    %v4200 = vpop.f32.mrb[0].mxu0
    %v4201 = vadd.f32 0.0, %v4200
    %v4202 = vpop.f32.mrb[0].mxu0
    %4203 = vdwg.mxu0
    %v4204 = vadd.f32 %v4041, %v4201
    %s4205 = scalar_lea.vmem [#allocation16], 896
    %v4206 = vld [vmem:[%s4205] sm:$0xff]
    %v4207 = vld [vmem:[%s4205 + $0x8] sm:$0xff]
    %v4208 = vld [vmem:[%s4205 + $0x10] sm:$0xff]
    %v4209 = vld [vmem:[%s4205 + $0x18] sm:$0xff]
    %v4210 = vld [vmem:[%s4205 + $0x20] sm:$0xff]
    %v4211 = vld [vmem:[%s4205 + $0x28] sm:$0xff]
    %v4212 = vld [vmem:[%s4205 + $0x30] sm:$0xff]
    %v4213 = vld [vmem:[%s4205 + $0x38] sm:$0xff]
    %v4214 = vld [vmem:[%s4205 + $0x40] sm:$0xff]
    %v4215 = vld [vmem:[%s4205 + $0x48] sm:$0xff]
    %v4216 = vld [vmem:[%s4205 + $0x50] sm:$0xff]
    %v4217 = vld [vmem:[%s4205 + $0x58] sm:$0xff]
    %v4218 = vld [vmem:[%s4205 + $0x60] sm:$0xff]
    %v4219 = vld [vmem:[%s4205 + $0x68] sm:$0xff]
    %v4220 = vld [vmem:[%s4205 + $0x70] sm:$0xff]
    %v4221 = vld [vmem:[%s4205 + $0x78] sm:$0xff]
    %4222 = vmatprep.subr.mxu0 0.0
    %4223 = vmatpush1.msra.mxu0 %v4206
    %4224 = vmatprep.subr.mxu0 0.0
    %4225 = vmatpush1.msra.mxu0 %v4207
    %4226 = vmatprep.subr.mxu0 0.0
    %4227 = vmatpush1.msra.mxu0 %v4208
    %4228 = vmatprep.subr.mxu0 0.0
    %4229 = vmatpush1.msra.mxu0 %v4209
    %4230 = vmatprep.subr.mxu0 0.0
    %4231 = vmatpush1.msra.mxu0 %v4210
    %4232 = vmatprep.subr.mxu0 0.0
    %4233 = vmatpush1.msra.mxu0 %v4211
    %4234 = vmatprep.subr.mxu0 0.0
    %4235 = vmatpush1.msra.mxu0 %v4212
    %4236 = vmatprep.subr.mxu0 0.0
    %4237 = vmatpush1.msra.mxu0 %v4213
    %4238 = vmatprep.subr.mxu0 0.0
    %4239 = vmatpush1.msra.mxu0 %v4214
    %4240 = vmatprep.subr.mxu0 0.0
    %4241 = vmatpush1.msra.mxu0 %v4215
    %4242 = vmatprep.subr.mxu0 0.0
    %4243 = vmatpush1.msra.mxu0 %v4216
    %4244 = vmatprep.subr.mxu0 0.0
    %4245 = vmatpush1.msra.mxu0 %v4217
    %4246 = vmatprep.subr.mxu0 0.0
    %4247 = vmatpush1.msra.mxu0 %v4218
    %4248 = vmatprep.subr.mxu0 0.0
    %4249 = vmatpush1.msra.mxu0 %v4219
    %4250 = vmatprep.subr.mxu0 0.0
    %4251 = vmatpush1.msra.mxu0 %v4220
    %4252 = vmatprep.subr.mxu0 0.0
    %4253 = vmatpush1.msra.mxu0 %v4221
    %4254 = vmatprep.subr.mxu0 0.0
    %4255 = vmatpush1.msra.mxu0 0.0
    %4256 = vmatprep.subr.mxu0 0.0
    %4257 = vmatpush1.msra.mxu0 0.0
    %4258 = vmatprep.subr.mxu0 0.0
    %4259 = vmatpush1.msra.mxu0 0.0
    %4260 = vmatprep.subr.mxu0 0.0
    %4261 = vmatpush1.msra.mxu0 0.0
    %4262 = vmatprep.subr.mxu0 0.0
    %4263 = vmatpush1.msra.mxu0 0.0
    %4264 = vmatprep.subr.mxu0 0.0
    %4265 = vmatpush1.msra.mxu0 0.0
    %4266 = vmatprep.subr.mxu0 0.0
    %4267 = vmatpush1.msra.mxu0 0.0
    %4268 = vmatprep.subr.mxu0 0.0
    %4269 = vmatpush1.msra.mxu0 0.0
    %4270 = vmatprep.subr.mxu0 0.0
    %4271 = vmatpush1.msra.mxu0 0.0
    %4272 = vmatprep.subr.mxu0 0.0
    %4273 = vmatpush1.msra.mxu0 0.0
    %4274 = vmatprep.subr.mxu0 0.0
    %4275 = vmatpush1.msra.mxu0 0.0
    %4276 = vmatprep.subr.mxu0 0.0
    %4277 = vmatpush1.msra.mxu0 0.0
    %4278 = vmatprep.subr.mxu0 0.0
    %4279 = vmatpush1.msra.mxu0 0.0
    %4280 = vmatprep.subr.mxu0 0.0
    %4281 = vmatpush1.msra.mxu0 0.0
    %4282 = vmatprep.subr.mxu0 0.0
    %4283 = vmatpush1.msra.mxu0 0.0
    %4284 = vmatprep.subr.mxu0 0.0
    %4285 = vmatpush1.msra.mxu0 0.0
    %4286 = vmatprep.mubr.f32.mxu0 0.0
    %4287 = vmatmul.mubr.f32.gmra.mrb[0].mxu0 %v3066
    %v4288 = vpop.f32.mrb[0].mxu0
    %v4289 = vadd.f32 0.0, %v4288
    %v4290 = vpop.f32.mrb[0].mxu0
    %4291 = vdwg.mxu0
    %s4292 = scalar_lea.vmem [#allocation17], 56
    %v4293 = vld [vmem:[%s4292] sm:$0xff]
    %v4295 = vsel %vm3243, %v4293, 0
    %4297 = vmatprep.subr.mxu0 0.0
    %4298 = vmatpush1.msra.mxu0 %v4289
    %4299 = vmatprep.subr.mxu0 0.0
    %4300 = vmatpush1.msra.mxu0 0.0
    %4301 = vmatprep.subr.mxu0 0.0
    %4302 = vmatpush1.msra.mxu0 0.0
    %4303 = vmatprep.subr.mxu0 0.0
    %4304 = vmatpush1.msra.mxu0 0.0
    %4305 = vmatprep.subr.mxu0 0.0
    %4306 = vmatpush1.msra.mxu0 0.0
    %4307 = vmatprep.subr.mxu0 0.0
    %4308 = vmatpush1.msra.mxu0 0.0
    %4309 = vmatprep.subr.mxu0 0.0
    %4310 = vmatpush1.msra.mxu0 0.0
    %4311 = vmatprep.subr.mxu0 0.0
    %4312 = vmatpush1.msra.mxu0 0.0
    %4313 = vmatprep.subr.mxu0 0.0
    %4314 = vmatpush1.msra.mxu0 0.0
    %4315 = vmatprep.subr.mxu0 0.0
    %4316 = vmatpush1.msra.mxu0 0.0
    %4317 = vmatprep.subr.mxu0 0.0
    %4318 = vmatpush1.msra.mxu0 0.0
    %4319 = vmatprep.subr.mxu0 0.0
    %4320 = vmatpush1.msra.mxu0 0.0
    %4321 = vmatprep.subr.mxu0 0.0
    %4322 = vmatpush1.msra.mxu0 0.0
    %4323 = vmatprep.subr.mxu0 0.0
    %4324 = vmatpush1.msra.mxu0 0.0
    %4325 = vmatprep.subr.mxu0 0.0
    %4326 = vmatpush1.msra.mxu0 0.0
    %4327 = vmatprep.subr.mxu0 0.0
    %4328 = vmatpush1.msra.mxu0 0.0
    %4329 = vmatprep.subr.mxu0 0.0
    %4330 = vmatpush1.msra.mxu0 0.0
    %4331 = vmatprep.subr.mxu0 0.0
    %4332 = vmatpush1.msra.mxu0 0.0
    %4333 = vmatprep.subr.mxu0 0.0
    %4334 = vmatpush1.msra.mxu0 0.0
    %4335 = vmatprep.subr.mxu0 0.0
    %4336 = vmatpush1.msra.mxu0 0.0
    %4337 = vmatprep.subr.mxu0 0.0
    %4338 = vmatpush1.msra.mxu0 0.0
    %4339 = vmatprep.subr.mxu0 0.0
    %4340 = vmatpush1.msra.mxu0 0.0
    %4341 = vmatprep.subr.mxu0 0.0
    %4342 = vmatpush1.msra.mxu0 0.0
    %4343 = vmatprep.subr.mxu0 0.0
    %4344 = vmatpush1.msra.mxu0 0.0
    %4345 = vmatprep.subr.mxu0 0.0
    %4346 = vmatpush1.msra.mxu0 0.0
    %4347 = vmatprep.subr.mxu0 0.0
    %4348 = vmatpush1.msra.mxu0 0.0
    %4349 = vmatprep.subr.mxu0 0.0
    %4350 = vmatpush1.msra.mxu0 0.0
    %4351 = vmatprep.subr.mxu0 0.0
    %4352 = vmatpush1.msra.mxu0 0.0
    %4353 = vmatprep.subr.mxu0 0.0
    %4354 = vmatpush1.msra.mxu0 0.0
    %4355 = vmatprep.subr.mxu0 0.0
    %4356 = vmatpush1.msra.mxu0 0.0
    %4357 = vmatprep.subr.mxu0 0.0
    %4358 = vmatpush1.msra.mxu0 0.0
    %4359 = vmatprep.subr.mxu0 0.0
    %4360 = vmatpush1.msra.mxu0 0.0
    %4361 = vmatprep.mubr.f32.mxu0 0.0
    %4362 = vmatmul.mubr.f32.gmra.mrb[0].mxu0 %v4295
    %v4363 = vpop.f32.mrb[0].mxu0
    %v4364 = vadd.f32 0.0, %v4363
    %v4365 = vpop.f32.mrb[0].mxu0
    %4366 = vdwg.mxu0
    %v4367 = vadd.f32 %v4204, %v4364
    %s4368 = scalar_lea.vmem [#allocation16], 1024
    %v4369 = vld [vmem:[%s4368] sm:$0xff]
    %v4370 = vld [vmem:[%s4368 + $0x8] sm:$0xff]
    %v4371 = vld [vmem:[%s4368 + $0x10] sm:$0xff]
    %v4372 = vld [vmem:[%s4368 + $0x18] sm:$0xff]
    %v4373 = vld [vmem:[%s4368 + $0x20] sm:$0xff]
    %v4374 = vld [vmem:[%s4368 + $0x28] sm:$0xff]
    %v4375 = vld [vmem:[%s4368 + $0x30] sm:$0xff]
    %v4376 = vld [vmem:[%s4368 + $0x38] sm:$0xff]
    %v4377 = vld [vmem:[%s4368 + $0x40] sm:$0xff]
    %v4378 = vld [vmem:[%s4368 + $0x48] sm:$0xff]
    %v4379 = vld [vmem:[%s4368 + $0x50] sm:$0xff]
    %v4380 = vld [vmem:[%s4368 + $0x58] sm:$0xff]
    %v4381 = vld [vmem:[%s4368 + $0x60] sm:$0xff]
    %v4382 = vld [vmem:[%s4368 + $0x68] sm:$0xff]
    %v4383 = vld [vmem:[%s4368 + $0x70] sm:$0xff]
    %v4384 = vld [vmem:[%s4368 + $0x78] sm:$0xff]
    %4385 = vmatprep.subr.mxu0 0.0
    %4386 = vmatpush1.msra.mxu0 %v4369
    %4387 = vmatprep.subr.mxu0 0.0
    %4388 = vmatpush1.msra.mxu0 %v4370
    %4389 = vmatprep.subr.mxu0 0.0
    %4390 = vmatpush1.msra.mxu0 %v4371
    %4391 = vmatprep.subr.mxu0 0.0
    %4392 = vmatpush1.msra.mxu0 %v4372
    %4393 = vmatprep.subr.mxu0 0.0
    %4394 = vmatpush1.msra.mxu0 %v4373
    %4395 = vmatprep.subr.mxu0 0.0
    %4396 = vmatpush1.msra.mxu0 %v4374
    %4397 = vmatprep.subr.mxu0 0.0
    %4398 = vmatpush1.msra.mxu0 %v4375
    %4399 = vmatprep.subr.mxu0 0.0
    %4400 = vmatpush1.msra.mxu0 %v4376
    %4401 = vmatprep.subr.mxu0 0.0
    %4402 = vmatpush1.msra.mxu0 %v4377
    %4403 = vmatprep.subr.mxu0 0.0
    %4404 = vmatpush1.msra.mxu0 %v4378
    %4405 = vmatprep.subr.mxu0 0.0
    %4406 = vmatpush1.msra.mxu0 %v4379
    %4407 = vmatprep.subr.mxu0 0.0
    %4408 = vmatpush1.msra.mxu0 %v4380
    %4409 = vmatprep.subr.mxu0 0.0
    %4410 = vmatpush1.msra.mxu0 %v4381
    %4411 = vmatprep.subr.mxu0 0.0
    %4412 = vmatpush1.msra.mxu0 %v4382
    %4413 = vmatprep.subr.mxu0 0.0
    %4414 = vmatpush1.msra.mxu0 %v4383
    %4415 = vmatprep.subr.mxu0 0.0
    %4416 = vmatpush1.msra.mxu0 %v4384
    %4417 = vmatprep.subr.mxu0 0.0
    %4418 = vmatpush1.msra.mxu0 0.0
    %4419 = vmatprep.subr.mxu0 0.0
    %4420 = vmatpush1.msra.mxu0 0.0
    %4421 = vmatprep.subr.mxu0 0.0
    %4422 = vmatpush1.msra.mxu0 0.0
    %4423 = vmatprep.subr.mxu0 0.0
    %4424 = vmatpush1.msra.mxu0 0.0
    %4425 = vmatprep.subr.mxu0 0.0
    %4426 = vmatpush1.msra.mxu0 0.0
    %4427 = vmatprep.subr.mxu0 0.0
    %4428 = vmatpush1.msra.mxu0 0.0
    %4429 = vmatprep.subr.mxu0 0.0
    %4430 = vmatpush1.msra.mxu0 0.0
    %4431 = vmatprep.subr.mxu0 0.0
    %4432 = vmatpush1.msra.mxu0 0.0
    %4433 = vmatprep.subr.mxu0 0.0
    %4434 = vmatpush1.msra.mxu0 0.0
    %4435 = vmatprep.subr.mxu0 0.0
    %4436 = vmatpush1.msra.mxu0 0.0
    %4437 = vmatprep.subr.mxu0 0.0
    %4438 = vmatpush1.msra.mxu0 0.0
    %4439 = vmatprep.subr.mxu0 0.0
    %4440 = vmatpush1.msra.mxu0 0.0
    %4441 = vmatprep.subr.mxu0 0.0
    %4442 = vmatpush1.msra.mxu0 0.0
    %4443 = vmatprep.subr.mxu0 0.0
    %4444 = vmatpush1.msra.mxu0 0.0
    %4445 = vmatprep.subr.mxu0 0.0
    %4446 = vmatpush1.msra.mxu0 0.0
    %4447 = vmatprep.subr.mxu0 0.0
    %4448 = vmatpush1.msra.mxu0 0.0
    %4449 = vmatprep.mubr.f32.mxu0 0.0
    %4450 = vmatmul.mubr.f32.gmra.mrb[0].mxu0 %v3066
    %v4451 = vpop.f32.mrb[0].mxu0
    %v4452 = vadd.f32 0.0, %v4451
    %v4453 = vpop.f32.mrb[0].mxu0
    %4454 = vdwg.mxu0
    %s4455 = scalar_lea.vmem [#allocation17], 64
    %v4456 = vld [vmem:[%s4455] sm:$0xff]
    %v4458 = vsel %vm3243, %v4456, 0
    %4460 = vmatprep.subr.mxu0 0.0
    %4461 = vmatpush1.msra.mxu0 %v4452
    %4462 = vmatprep.subr.mxu0 0.0
    %4463 = vmatpush1.msra.mxu0 0.0
    %4464 = vmatprep.subr.mxu0 0.0
    %4465 = vmatpush1.msra.mxu0 0.0
    %4466 = vmatprep.subr.mxu0 0.0
    %4467 = vmatpush1.msra.mxu0 0.0
    %4468 = vmatprep.subr.mxu0 0.0
    %4469 = vmatpush1.msra.mxu0 0.0
    %4470 = vmatprep.subr.mxu0 0.0
    %4471 = vmatpush1.msra.mxu0 0.0
    %4472 = vmatprep.subr.mxu0 0.0
    %4473 = vmatpush1.msra.mxu0 0.0
    %4474 = vmatprep.subr.mxu0 0.0
    %4475 = vmatpush1.msra.mxu0 0.0
    %4476 = vmatprep.subr.mxu0 0.0
    %4477 = vmatpush1.msra.mxu0 0.0
    %4478 = vmatprep.subr.mxu0 0.0
    %4479 = vmatpush1.msra.mxu0 0.0
    %4480 = vmatprep.subr.mxu0 0.0
    %4481 = vmatpush1.msra.mxu0 0.0
    %4482 = vmatprep.subr.mxu0 0.0
    %4483 = vmatpush1.msra.mxu0 0.0
    %4484 = vmatprep.subr.mxu0 0.0
    %4485 = vmatpush1.msra.mxu0 0.0
    %4486 = vmatprep.subr.mxu0 0.0
    %4487 = vmatpush1.msra.mxu0 0.0
    %4488 = vmatprep.subr.mxu0 0.0
    %4489 = vmatpush1.msra.mxu0 0.0
    %4490 = vmatprep.subr.mxu0 0.0
    %4491 = vmatpush1.msra.mxu0 0.0
    %4492 = vmatprep.subr.mxu0 0.0
    %4493 = vmatpush1.msra.mxu0 0.0
    %4494 = vmatprep.subr.mxu0 0.0
    %4495 = vmatpush1.msra.mxu0 0.0
    %4496 = vmatprep.subr.mxu0 0.0
    %4497 = vmatpush1.msra.mxu0 0.0
    %4498 = vmatprep.subr.mxu0 0.0
    %4499 = vmatpush1.msra.mxu0 0.0
    %4500 = vmatprep.subr.mxu0 0.0
    %4501 = vmatpush1.msra.mxu0 0.0
    %4502 = vmatprep.subr.mxu0 0.0
    %4503 = vmatpush1.msra.mxu0 0.0
    %4504 = vmatprep.subr.mxu0 0.0
    %4505 = vmatpush1.msra.mxu0 0.0
    %4506 = vmatprep.subr.mxu0 0.0
    %4507 = vmatpush1.msra.mxu0 0.0
    %4508 = vmatprep.subr.mxu0 0.0
    %4509 = vmatpush1.msra.mxu0 0.0
    %4510 = vmatprep.subr.mxu0 0.0
    %4511 = vmatpush1.msra.mxu0 0.0
    %4512 = vmatprep.subr.mxu0 0.0
    %4513 = vmatpush1.msra.mxu0 0.0
    %4514 = vmatprep.subr.mxu0 0.0
    %4515 = vmatpush1.msra.mxu0 0.0
    %4516 = vmatprep.subr.mxu0 0.0
    %4517 = vmatpush1.msra.mxu0 0.0
    %4518 = vmatprep.subr.mxu0 0.0
    %4519 = vmatpush1.msra.mxu0 0.0
    %4520 = vmatprep.subr.mxu0 0.0
    %4521 = vmatpush1.msra.mxu0 0.0
    %4522 = vmatprep.subr.mxu0 0.0
    %4523 = vmatpush1.msra.mxu0 0.0
    %4524 = vmatprep.mubr.f32.mxu0 0.0
    %4525 = vmatmul.mubr.f32.gmra.mrb[0].mxu0 %v4458
    %v4526 = vpop.f32.mrb[0].mxu0
    %v4527 = vadd.f32 0.0, %v4526
    %v4528 = vpop.f32.mrb[0].mxu0
    %4529 = vdwg.mxu0
    %v4530 = vadd.f32 %v4367, %v4527
    %4531 = vadd.xlane.f32.xlu0 %v4530
    %v4532 = vpop.xlane.xlu0 %4531
    %v4533 = vmul.f32 %v4532, %v3042
    %v4534 = vsub.f32 %v4530, %v4533
    %v4535 = vmul.f32 %v4534, %v4534
    %4536 = vadd.xlane.f32.xlu0 %v4535
    %v4537 = vpop.xlane.xlu0 %4536
    %v4538 = vmul.f32 %v4537, %v3042
    %v4539 = vadd.f32 %v4538, 1e-05
    %v4540 = vrsqrt.pop %v4539
    %v4541 = vmul.f32 %v4534, %v4540
    %v4542 = vld [vmem:[#allocation19] sm:$0xff]
    %4544 = vset.pattern.permute.xlu0 0
    %4545 = vperm.xlu0 %4544, %v4542
    %v4546 = vpop.permute.xlu0 %4545
    %v4548 = vmul.f32 %v4541, %v4546
    %v4549 = vld [vmem:[#allocation20] sm:$0xff]
    %4551 = vset.pattern.permute.xlu0 0
    %4552 = vperm.xlu0 %4551, %v4549
    %v4553 = vpop.permute.xlu0 %4552
    %v4555 = vadd.f32 %v4548, %v4553
    %v4556 = vadd.f32 %v4555, %v485
    %v4557 = vmax.f32 %v4556, 0.0
    %4558 = vst [vmem:[#allocation22] sm:$0xff] %v4557
    // Predicated region
    $region98: #{layer_fwd.5} parent=1 // pred_check
      _
    $region99: #{layer_fwd.5} parent=1 // pred_check_branch
      %4560 = sbr.rel (0) target = $region101
    $region100: #{layer_fwd.5} parent=1 // pred_region
      %s4562 = ssub.s32 128, 128
      %4563 = vsyncadd [#allocation4], %s4562
      %s4565 = sshll.u32 [#allocation22], 4
      %s4566 = int_to_ptr.vmem [resolvable:$true] %s4565
      %4568 = dma.vmem_to_hbm [thread:$0]  %s4566, 128, %s12, [#allocation4]
    $region101: #{layer_fwd.5} parent=1 // pred_fallthru
      _
    // Predicated region
    $region102: #{layer_fwd.5} parent=1 // pred_check
      _
    $region103: #{layer_fwd.5} parent=1 // pred_check_branch
      %4570 = sbr.rel (0) target = $region105
    $region104: #{layer_fwd.5} parent=1 // pred_region
      %4571 = dma.done [#allocation4], 128
    $region105: #{layer_fwd.5} parent=1 // pred_fallthru
      _
    %4572 = vsyncpa [#allocation3], 1
    %4573 = vsyncpa [#allocation6], 1
    %4574 = vsyncpa [#allocation9], 1
    %4575 = vsyncpa [#allocation12], 1
    %4576 = vsyncpa [#allocation15], 1
    %4577 = vsyncpa [#allocation18], 1
    %4578 = vsyncpa [#allocation21], 1
    %4579 = vsyncpa [#allocation4], 1

// kernel: layer_fwd.6
$region0: #{layer_fwd.6}
  #allocation0 [shape = 'u32[]', space=smem, size = 0x4, offset = 0x4, fixed_abs, tag = 'smem constant byte address 0x4 - core index']
  #allocation1 [shape = 'u32[144,128]{1,0:T(1,128)}', space=vmem, size = 0x12000, scoped, tag = 'internal scratch']
  %s0 = inlined_call_operand.hbm [shape: f32[8,128], index: 0, kind: input, shape index: {}]
  %s1 = inlined_call_operand.hbm [shape: f32[128,128], index: 1, kind: input, shape index: {}]
  %s2 = inlined_call_operand.hbm [shape: f32[8,8], index: 2, kind: input, shape index: {}]
  %s3 = inlined_call_operand.hbm [shape: f32[8,1], index: 3, kind: input, shape index: {}]
  %s4 = inlined_call_operand.hbm [shape: f32[9,128,128], index: 4, kind: input, shape index: {}, may-alias: {4,8}]
  %s5 = inlined_call_operand.hbm [shape: f32[9,8,8], index: 5, kind: input, shape index: {}]
  %s6 = inlined_call_operand.hbm [shape: f32[8,1], index: 6, kind: input, shape index: {}]
  %s7 = inlined_call_operand.hbm [shape: f32[8,1], index: 7, kind: input, shape index: {}]
  %s8 = inlined_call_operand.hbm [shape: f32[9,128,128], index: 8, kind: input, shape index: {}, may-alias: {4,8}]
  %s9 = inlined_call_operand.hbm [shape: f32[9,8,8], index: 9, kind: input, shape index: {}]
  %s10 = inlined_call_operand.hbm [shape: f32[8,1], index: 10, kind: input, shape index: {}]
  %s11 = inlined_call_operand.hbm [shape: f32[8,1], index: 11, kind: input, shape index: {}]
  %s12 = inlined_call_operand.hbm [shape: f32[8,128], index: 12, kind: output, shape index: {}]
  %s13 = sld [smem:[#allocation0]]
  $region106: #{layer_fwd.6} parent=0
    _
  %s15 = ssub.s32 1, %s13
  %s16 = scalar_select 0, %s15, %s13
  $region1: #{layer_fwd.6} parent=0
    #allocation2 [shape = 'u8[4096]{0}', space=vmem, size = 0x1000, scoped, tag = 'input window, operand 0, single buffered']
    #allocation3 [shape = 's32[1]{0}', space=sflag, size = 0x4, scoped, tag = 'scoped memory for layer_fwd.6']
    #allocation4 [shape = 's32[1]{0}', space=sflag, size = 0x4, scoped, tag = 'scoped memory for layer_fwd.6']
    #allocation5 [shape = 'u8[65536]{0}', space=vmem, size = 0x10000, scoped, tag = 'input window, operand 1, single buffered']
    #allocation6 [shape = 's32[1]{0}', space=sflag, size = 0x4, scoped, tag = 'scoped memory for layer_fwd.6']
    #allocation7 [shape = 'u8[4096]{0}', space=vmem, size = 0x1000, scoped, tag = 'input window, operand 2, single buffered']
    #allocation8 [shape = 'u8[4096]{0}', space=vmem, size = 0x1000, scoped, tag = 'input window, operand 3, single buffered']
    #allocation9 [shape = 's32[1]{0}', space=sflag, size = 0x4, scoped, tag = 'scoped memory for layer_fwd.6']
    #allocation10 [shape = 'u8[589824]{0}', space=vmem, size = 0x90000, scoped, tag = 'input window, operand 4, single buffered']
    #allocation11 [shape = 'u8[36864]{0}', space=vmem, size = 0x9000, scoped, tag = 'input window, operand 5, single buffered']
    #allocation12 [shape = 's32[1]{0}', space=sflag, size = 0x4, scoped, tag = 'scoped memory for layer_fwd.6']
    #allocation13 [shape = 'u8[4096]{0}', space=vmem, size = 0x1000, scoped, tag = 'input window, operand 6, single buffered']
    #allocation14 [shape = 'u8[4096]{0}', space=vmem, size = 0x1000, scoped, tag = 'input window, operand 7, single buffered']
    #allocation15 [shape = 's32[1]{0}', space=sflag, size = 0x4, scoped, tag = 'scoped memory for layer_fwd.6']
    #allocation16 [shape = 'u8[589824]{0}', space=vmem, size = 0x90000, scoped, tag = 'input window, operand 8, single buffered']
    #allocation17 [shape = 'u8[36864]{0}', space=vmem, size = 0x9000, scoped, tag = 'input window, operand 9, single buffered']
    #allocation18 [shape = 's32[1]{0}', space=sflag, size = 0x4, scoped, tag = 'scoped memory for layer_fwd.6']
    #allocation19 [shape = 'u8[4096]{0}', space=vmem, size = 0x1000, scoped, tag = 'input window, operand 10, single buffered']
    #allocation20 [shape = 'u8[4096]{0}', space=vmem, size = 0x1000, scoped, tag = 'input window, operand 11, single buffered']
    #allocation21 [shape = 's32[1]{0}', space=sflag, size = 0x4, scoped, tag = 'scoped memory for layer_fwd.6']
    #allocation22 [shape = 'u8[4096]{0}', space=vmem, size = 0x1000, scoped, tag = 'output window, operand 0, single buffered']
    %17 = vsyncpa [#allocation3], 0
    %18 = vsyncpa [#allocation6], 0
    %19 = vsyncpa [#allocation9], 0
    %20 = vsyncpa [#allocation12], 0
    %21 = vsyncpa [#allocation15], 0
    %22 = vsyncpa [#allocation18], 0
    %23 = vsyncpa [#allocation21], 0
    %24 = vsyncpa [#allocation4], 0
    // Predicated region
    $region2: #{layer_fwd.6} parent=1 // pred_check
      _
    $region3: #{layer_fwd.6} parent=1 // pred_check_branch
      %26 = sbr.rel (0) target = $region5
    $region4: #{layer_fwd.6} parent=1 // pred_region
      %s28 = ssub.s32 128, 128
      %29 = vsyncadd [#allocation3], %s28
      %s31 = sshll.u32 [#allocation2], 4
      %s32 = int_to_ptr.vmem [resolvable:$true] %s31
      %34 = dma.hbm_to_vmem [thread:$0]  %s0, 128, %s32, [#allocation3]
    $region5: #{layer_fwd.6} parent=1 // pred_fallthru
      _
    // Predicated region
    $region6: #{layer_fwd.6} parent=1 // pred_check
      _
    $region7: #{layer_fwd.6} parent=1 // pred_check_branch
      %36 = sbr.rel (0) target = $region9
    $region8: #{layer_fwd.6} parent=1 // pred_region
      %s38 = ssub.s32 2048, 2048
      %39 = vsyncadd [#allocation6], %s38
      %s40 = sshll.u32 [#allocation5], 4
      %s41 = int_to_ptr.vmem [resolvable:$true] %s40
      %46 = dma.hbm_to_vmem [thread:$0]  %s1, 2048, %s41, [#allocation6], 128, 128, 8
    $region9: #{layer_fwd.6} parent=1 // pred_fallthru
      _
    // Predicated region
    $region10: #{layer_fwd.6} parent=1 // pred_check
      _
    $region11: #{layer_fwd.6} parent=1 // pred_check_branch
      %48 = sbr.rel (0) target = $region13
    $region12: #{layer_fwd.6} parent=1 // pred_region
      %s50 = ssub.s32 128, 128
      %51 = vsyncadd [#allocation6], %s50
      %s53 = sshll.u32 [#allocation7], 4
      %s54 = int_to_ptr.vmem [resolvable:$true] %s53
      %56 = dma.hbm_to_vmem [thread:$0]  %s2, 128, %s54, [#allocation6]
    $region13: #{layer_fwd.6} parent=1 // pred_fallthru
      _
    // Predicated region
    $region14: #{layer_fwd.6} parent=1 // pred_check
      _
    $region15: #{layer_fwd.6} parent=1 // pred_check_branch
      %58 = sbr.rel (0) target = $region17
    $region16: #{layer_fwd.6} parent=1 // pred_region
      %s60 = ssub.s32 128, 128
      %61 = vsyncadd [#allocation9], %s60
      %s63 = sshll.u32 [#allocation8], 4
      %s64 = int_to_ptr.vmem [resolvable:$true] %s63
      %66 = dma.hbm_to_vmem [thread:$0]  %s3, 128, %s64, [#allocation9]
    $region17: #{layer_fwd.6} parent=1 // pred_fallthru
      _
    // Predicated region
    $region18: #{layer_fwd.6} parent=1 // pred_check
      _
    $region19: #{layer_fwd.6} parent=1 // pred_check_branch
      %68 = sbr.rel (0) target = $region21
    $region20: #{layer_fwd.6} parent=1 // pred_region
      %s70 = ssub.s32 18432, 18432
      %71 = vsyncadd [#allocation9], %s70
      %s72 = sshll.u32 [#allocation10], 4
      %s73 = int_to_ptr.vmem [resolvable:$true] %s72
      %78 = dma.hbm_to_vmem [thread:$0]  %s4, 18432, %s73, [#allocation9], 128, 128, 8
    $region21: #{layer_fwd.6} parent=1 // pred_fallthru
      _
    // Predicated region
    $region22: #{layer_fwd.6} parent=1 // pred_check
      _
    $region23: #{layer_fwd.6} parent=1 // pred_check_branch
      %80 = sbr.rel (0) target = $region25
    $region24: #{layer_fwd.6} parent=1 // pred_region
      %s82 = ssub.s32 1152, 1152
      %83 = vsyncadd [#allocation12], %s82
      %s84 = sshll.u32 [#allocation11], 4
      %s85 = int_to_ptr.vmem [resolvable:$true] %s84
      %90 = dma.hbm_to_vmem [thread:$0]  %s5, 1152, %s85, [#allocation12], 128, 128, 8
    $region25: #{layer_fwd.6} parent=1 // pred_fallthru
      _
    // Predicated region
    $region26: #{layer_fwd.6} parent=1 // pred_check
      _
    $region27: #{layer_fwd.6} parent=1 // pred_check_branch
      %92 = sbr.rel (0) target = $region29
    $region28: #{layer_fwd.6} parent=1 // pred_region
      %s94 = ssub.s32 128, 128
      %95 = vsyncadd [#allocation12], %s94
      %s97 = sshll.u32 [#allocation13], 4
      %s98 = int_to_ptr.vmem [resolvable:$true] %s97
      %100 = dma.hbm_to_vmem [thread:$0]  %s6, 128, %s98, [#allocation12]
    $region29: #{layer_fwd.6} parent=1 // pred_fallthru
      _
    // Predicated region
    $region30: #{layer_fwd.6} parent=1 // pred_check
      _
    $region31: #{layer_fwd.6} parent=1 // pred_check_branch
      %102 = sbr.rel (0) target = $region33
    $region32: #{layer_fwd.6} parent=1 // pred_region
      %s104 = ssub.s32 128, 128
      %105 = vsyncadd [#allocation15], %s104
      %s107 = sshll.u32 [#allocation14], 4
      %s108 = int_to_ptr.vmem [resolvable:$true] %s107
      %110 = dma.hbm_to_vmem [thread:$0]  %s7, 128, %s108, [#allocation15]
    $region33: #{layer_fwd.6} parent=1 // pred_fallthru
      _
    // Predicated region
    $region34: #{layer_fwd.6} parent=1 // pred_check
      _
    $region35: #{layer_fwd.6} parent=1 // pred_check_branch
      %112 = sbr.rel (0) target = $region37
    $region36: #{layer_fwd.6} parent=1 // pred_region
      %s114 = ssub.s32 18432, 18432
      %115 = vsyncadd [#allocation15], %s114
      %s116 = sshll.u32 [#allocation16], 4
      %s117 = int_to_ptr.vmem [resolvable:$true] %s116
      %122 = dma.hbm_to_vmem [thread:$0]  %s8, 18432, %s117, [#allocation15], 128, 128, 8
    $region37: #{layer_fwd.6} parent=1 // pred_fallthru
      _
    // Predicated region
    $region38: #{layer_fwd.6} parent=1 // pred_check
      _
    $region39: #{layer_fwd.6} parent=1 // pred_check_branch
      %124 = sbr.rel (0) target = $region41
    $region40: #{layer_fwd.6} parent=1 // pred_region
      %s126 = ssub.s32 1152, 1152
      %127 = vsyncadd [#allocation18], %s126
      %s128 = sshll.u32 [#allocation17], 4
      %s129 = int_to_ptr.vmem [resolvable:$true] %s128
      %134 = dma.hbm_to_vmem [thread:$0]  %s9, 1152, %s129, [#allocation18], 128, 128, 8
    $region41: #{layer_fwd.6} parent=1 // pred_fallthru
      _
    // Predicated region
    $region42: #{layer_fwd.6} parent=1 // pred_check
      _
    $region43: #{layer_fwd.6} parent=1 // pred_check_branch
      %136 = sbr.rel (0) target = $region45
    $region44: #{layer_fwd.6} parent=1 // pred_region
      %s138 = ssub.s32 128, 128
      %139 = vsyncadd [#allocation18], %s138
      %s141 = sshll.u32 [#allocation19], 4
      %s142 = int_to_ptr.vmem [resolvable:$true] %s141
      %144 = dma.hbm_to_vmem [thread:$0]  %s10, 128, %s142, [#allocation18]
    $region45: #{layer_fwd.6} parent=1 // pred_fallthru
      _
    // Predicated region
    $region46: #{layer_fwd.6} parent=1 // pred_check
      _
    $region47: #{layer_fwd.6} parent=1 // pred_check_branch
      %146 = sbr.rel (0) target = $region49
    $region48: #{layer_fwd.6} parent=1 // pred_region
      %s148 = ssub.s32 128, 128
      %149 = vsyncadd [#allocation21], %s148
      %s151 = sshll.u32 [#allocation20], 4
      %s152 = int_to_ptr.vmem [resolvable:$true] %s151
      %154 = dma.hbm_to_vmem [thread:$0]  %s11, 128, %s152, [#allocation21]
    $region49: #{layer_fwd.6} parent=1 // pred_fallthru
      _
    // Predicated region
    $region50: #{layer_fwd.6} parent=1 // pred_check
      _
    $region51: #{layer_fwd.6} parent=1 // pred_check_branch
      %156 = sbr.rel (0) target = $region53
    $region52: #{layer_fwd.6} parent=1 // pred_region
      %157 = dma.done [#allocation3], 128
    $region53: #{layer_fwd.6} parent=1 // pred_fallthru
      _
    // Predicated region
    $region54: #{layer_fwd.6} parent=1 // pred_check
      _
    $region55: #{layer_fwd.6} parent=1 // pred_check_branch
      %159 = sbr.rel (0) target = $region57
    $region56: #{layer_fwd.6} parent=1 // pred_region
      %160 = dma.done [#allocation6], 2048
    $region57: #{layer_fwd.6} parent=1 // pred_fallthru
      _
    // Predicated region
    $region58: #{layer_fwd.6} parent=1 // pred_check
      _
    $region59: #{layer_fwd.6} parent=1 // pred_check_branch
      %162 = sbr.rel (0) target = $region61
    $region60: #{layer_fwd.6} parent=1 // pred_region
      %163 = dma.done [#allocation6], 128
    $region61: #{layer_fwd.6} parent=1 // pred_fallthru
      _
    // Predicated region
    $region62: #{layer_fwd.6} parent=1 // pred_check
      _
    $region63: #{layer_fwd.6} parent=1 // pred_check_branch
      %165 = sbr.rel (0) target = $region65
    $region64: #{layer_fwd.6} parent=1 // pred_region
      %166 = dma.done [#allocation9], 128
    $region65: #{layer_fwd.6} parent=1 // pred_fallthru
      _
    // Predicated region
    $region66: #{layer_fwd.6} parent=1 // pred_check
      _
    $region67: #{layer_fwd.6} parent=1 // pred_check_branch
      %168 = sbr.rel (0) target = $region69
    $region68: #{layer_fwd.6} parent=1 // pred_region
      %169 = dma.done [#allocation9], 18432
    $region69: #{layer_fwd.6} parent=1 // pred_fallthru
      _
    // Predicated region
    $region70: #{layer_fwd.6} parent=1 // pred_check
      _
    $region71: #{layer_fwd.6} parent=1 // pred_check_branch
      %171 = sbr.rel (0) target = $region73
    $region72: #{layer_fwd.6} parent=1 // pred_region
      %172 = dma.done [#allocation12], 1152
    $region73: #{layer_fwd.6} parent=1 // pred_fallthru
      _
    // Predicated region
    $region74: #{layer_fwd.6} parent=1 // pred_check
      _
    $region75: #{layer_fwd.6} parent=1 // pred_check_branch
      %174 = sbr.rel (0) target = $region77
    $region76: #{layer_fwd.6} parent=1 // pred_region
      %175 = dma.done [#allocation12], 128
    $region77: #{layer_fwd.6} parent=1 // pred_fallthru
      _
    // Predicated region
    $region78: #{layer_fwd.6} parent=1 // pred_check
      _
    $region79: #{layer_fwd.6} parent=1 // pred_check_branch
      %177 = sbr.rel (0) target = $region81
    $region80: #{layer_fwd.6} parent=1 // pred_region
      %178 = dma.done [#allocation15], 128
    $region81: #{layer_fwd.6} parent=1 // pred_fallthru
      _
    // Predicated region
    $region82: #{layer_fwd.6} parent=1 // pred_check
      _
    $region83: #{layer_fwd.6} parent=1 // pred_check_branch
      %180 = sbr.rel (0) target = $region85
    $region84: #{layer_fwd.6} parent=1 // pred_region
      %181 = dma.done [#allocation15], 18432
    $region85: #{layer_fwd.6} parent=1 // pred_fallthru
      _
    // Predicated region
    $region86: #{layer_fwd.6} parent=1 // pred_check
      _
    $region87: #{layer_fwd.6} parent=1 // pred_check_branch
      %183 = sbr.rel (0) target = $region89
    $region88: #{layer_fwd.6} parent=1 // pred_region
      %184 = dma.done [#allocation18], 1152
    $region89: #{layer_fwd.6} parent=1 // pred_fallthru
      _
    // Predicated region
    $region90: #{layer_fwd.6} parent=1 // pred_check
      _
    $region91: #{layer_fwd.6} parent=1 // pred_check_branch
      %186 = sbr.rel (0) target = $region93
    $region92: #{layer_fwd.6} parent=1 // pred_region
      %187 = dma.done [#allocation18], 128
    $region93: #{layer_fwd.6} parent=1 // pred_fallthru
      _
    // Predicated region
    $region94: #{layer_fwd.6} parent=1 // pred_check
      _
    $region95: #{layer_fwd.6} parent=1 // pred_check_branch
      %189 = sbr.rel (0) target = $region97
    $region96: #{layer_fwd.6} parent=1 // pred_region
      %190 = dma.done [#allocation21], 128
    $region97: #{layer_fwd.6} parent=1 // pred_fallthru
      _
    %v191 = vld [vmem:[#allocation2] sm:$0xff]
    %v192 = vld [vmem:[#allocation7] sm:$0xff]
    %v193 = vld [vmem:[#allocation5] sm:$0xff]
    %v194 = vld [vmem:[#allocation5 + $0x8] sm:$0xff]
    %v195 = vld [vmem:[#allocation5 + $0x10] sm:$0xff]
    %v196 = vld [vmem:[#allocation5 + $0x18] sm:$0xff]
    %v197 = vld [vmem:[#allocation5 + $0x20] sm:$0xff]
    %v198 = vld [vmem:[#allocation5 + $0x28] sm:$0xff]
    %v199 = vld [vmem:[#allocation5 + $0x30] sm:$0xff]
    %v200 = vld [vmem:[#allocation5 + $0x38] sm:$0xff]
    %v201 = vld [vmem:[#allocation5 + $0x40] sm:$0xff]
    %v202 = vld [vmem:[#allocation5 + $0x48] sm:$0xff]
    %v203 = vld [vmem:[#allocation5 + $0x50] sm:$0xff]
    %v204 = vld [vmem:[#allocation5 + $0x58] sm:$0xff]
    %v205 = vld [vmem:[#allocation5 + $0x60] sm:$0xff]
    %v206 = vld [vmem:[#allocation5 + $0x68] sm:$0xff]
    %v207 = vld [vmem:[#allocation5 + $0x70] sm:$0xff]
    %v208 = vld [vmem:[#allocation5 + $0x78] sm:$0xff]
    %209 = vmatprep.subr.mxu0 0.0
    %210 = vmatpush1.msra.mxu0 %v193
    %211 = vmatprep.subr.mxu0 0.0
    %212 = vmatpush1.msra.mxu0 %v194
    %213 = vmatprep.subr.mxu0 0.0
    %214 = vmatpush1.msra.mxu0 %v195
    %215 = vmatprep.subr.mxu0 0.0
    %216 = vmatpush1.msra.mxu0 %v196
    %217 = vmatprep.subr.mxu0 0.0
    %218 = vmatpush1.msra.mxu0 %v197
    %219 = vmatprep.subr.mxu0 0.0
    %220 = vmatpush1.msra.mxu0 %v198
    %221 = vmatprep.subr.mxu0 0.0
    %222 = vmatpush1.msra.mxu0 %v199
    %223 = vmatprep.subr.mxu0 0.0
    %224 = vmatpush1.msra.mxu0 %v200
    %225 = vmatprep.subr.mxu0 0.0
    %226 = vmatpush1.msra.mxu0 %v201
    %227 = vmatprep.subr.mxu0 0.0
    %228 = vmatpush1.msra.mxu0 %v202
    %229 = vmatprep.subr.mxu0 0.0
    %230 = vmatpush1.msra.mxu0 %v203
    %231 = vmatprep.subr.mxu0 0.0
    %232 = vmatpush1.msra.mxu0 %v204
    %233 = vmatprep.subr.mxu0 0.0
    %234 = vmatpush1.msra.mxu0 %v205
    %235 = vmatprep.subr.mxu0 0.0
    %236 = vmatpush1.msra.mxu0 %v206
    %237 = vmatprep.subr.mxu0 0.0
    %238 = vmatpush1.msra.mxu0 %v207
    %239 = vmatprep.subr.mxu0 0.0
    %240 = vmatpush1.msra.mxu0 %v208
    %241 = vmatprep.subr.mxu0 0.0
    %242 = vmatpush1.msra.mxu0 0.0
    %243 = vmatprep.subr.mxu0 0.0
    %244 = vmatpush1.msra.mxu0 0.0
    %245 = vmatprep.subr.mxu0 0.0
    %246 = vmatpush1.msra.mxu0 0.0
    %247 = vmatprep.subr.mxu0 0.0
    %248 = vmatpush1.msra.mxu0 0.0
    %249 = vmatprep.subr.mxu0 0.0
    %250 = vmatpush1.msra.mxu0 0.0
    %251 = vmatprep.subr.mxu0 0.0
    %252 = vmatpush1.msra.mxu0 0.0
    %253 = vmatprep.subr.mxu0 0.0
    %254 = vmatpush1.msra.mxu0 0.0
    %255 = vmatprep.subr.mxu0 0.0
    %256 = vmatpush1.msra.mxu0 0.0
    %257 = vmatprep.subr.mxu0 0.0
    %258 = vmatpush1.msra.mxu0 0.0
    %259 = vmatprep.subr.mxu0 0.0
    %260 = vmatpush1.msra.mxu0 0.0
    %261 = vmatprep.subr.mxu0 0.0
    %262 = vmatpush1.msra.mxu0 0.0
    %263 = vmatprep.subr.mxu0 0.0
    %264 = vmatpush1.msra.mxu0 0.0
    %265 = vmatprep.subr.mxu0 0.0
    %266 = vmatpush1.msra.mxu0 0.0
    %267 = vmatprep.subr.mxu0 0.0
    %268 = vmatpush1.msra.mxu0 0.0
    %269 = vmatprep.subr.mxu0 0.0
    %270 = vmatpush1.msra.mxu0 0.0
    %271 = vmatprep.subr.mxu0 0.0
    %272 = vmatpush1.msra.mxu0 0.0
    %273 = vmatprep.mubr.f32.mxu0 0.0
    %274 = vmatmul.mubr.f32.gmra.mrb[0].mxu0 %v191
    %v275 = vpop.f32.mrb[0].mxu0
    %v276 = vadd.f32 0.0, %v275
    %v277 = vpop.f32.mrb[0].mxu0
    %278 = vdwg.mxu0
    %v279 = vld [vmem:[#allocation8] sm:$0xff]
    %281 = vset.pattern.permute.xlu0 0
    %282 = vperm.xlu0 %281, %v279
    %v283 = vpop.permute.xlu0 %282
    %vm285 = vcmask 64512
    %v287 = vsel %vm285, %v192, 0
    %289 = vmatprep.subr.mxu0 0.0
    %290 = vmatpush1.msra.mxu0 %v276
    %291 = vmatprep.subr.mxu0 0.0
    %292 = vmatpush1.msra.mxu0 0.0
    %293 = vmatprep.subr.mxu0 0.0
    %294 = vmatpush1.msra.mxu0 0.0
    %295 = vmatprep.subr.mxu0 0.0
    %296 = vmatpush1.msra.mxu0 0.0
    %297 = vmatprep.subr.mxu0 0.0
    %298 = vmatpush1.msra.mxu0 0.0
    %299 = vmatprep.subr.mxu0 0.0
    %300 = vmatpush1.msra.mxu0 0.0
    %301 = vmatprep.subr.mxu0 0.0
    %302 = vmatpush1.msra.mxu0 0.0
    %303 = vmatprep.subr.mxu0 0.0
    %304 = vmatpush1.msra.mxu0 0.0
    %305 = vmatprep.subr.mxu0 0.0
    %306 = vmatpush1.msra.mxu0 0.0
    %307 = vmatprep.subr.mxu0 0.0
    %308 = vmatpush1.msra.mxu0 0.0
    %309 = vmatprep.subr.mxu0 0.0
    %310 = vmatpush1.msra.mxu0 0.0
    %311 = vmatprep.subr.mxu0 0.0
    %312 = vmatpush1.msra.mxu0 0.0
    %313 = vmatprep.subr.mxu0 0.0
    %314 = vmatpush1.msra.mxu0 0.0
    %315 = vmatprep.subr.mxu0 0.0
    %316 = vmatpush1.msra.mxu0 0.0
    %317 = vmatprep.subr.mxu0 0.0
    %318 = vmatpush1.msra.mxu0 0.0
    %319 = vmatprep.subr.mxu0 0.0
    %320 = vmatpush1.msra.mxu0 0.0
    %321 = vmatprep.subr.mxu0 0.0
    %322 = vmatpush1.msra.mxu0 0.0
    %323 = vmatprep.subr.mxu0 0.0
    %324 = vmatpush1.msra.mxu0 0.0
    %325 = vmatprep.subr.mxu0 0.0
    %326 = vmatpush1.msra.mxu0 0.0
    %327 = vmatprep.subr.mxu0 0.0
    %328 = vmatpush1.msra.mxu0 0.0
    %329 = vmatprep.subr.mxu0 0.0
    %330 = vmatpush1.msra.mxu0 0.0
    %331 = vmatprep.subr.mxu0 0.0
    %332 = vmatpush1.msra.mxu0 0.0
    %333 = vmatprep.subr.mxu0 0.0
    %334 = vmatpush1.msra.mxu0 0.0
    %335 = vmatprep.subr.mxu0 0.0
    %336 = vmatpush1.msra.mxu0 0.0
    %337 = vmatprep.subr.mxu0 0.0
    %338 = vmatpush1.msra.mxu0 0.0
    %339 = vmatprep.subr.mxu0 0.0
    %340 = vmatpush1.msra.mxu0 0.0
    %341 = vmatprep.subr.mxu0 0.0
    %342 = vmatpush1.msra.mxu0 0.0
    %343 = vmatprep.subr.mxu0 0.0
    %344 = vmatpush1.msra.mxu0 0.0
    %345 = vmatprep.subr.mxu0 0.0
    %346 = vmatpush1.msra.mxu0 0.0
    %347 = vmatprep.subr.mxu0 0.0
    %348 = vmatpush1.msra.mxu0 0.0
    %349 = vmatprep.subr.mxu0 0.0
    %350 = vmatpush1.msra.mxu0 0.0
    %351 = vmatprep.subr.mxu0 0.0
    %352 = vmatpush1.msra.mxu0 0.0
    %353 = vmatprep.mubr.f32.mxu0 0.0
    %354 = vmatmul.mubr.f32.gmra.mrb[0].mxu0 %v287
    %v355 = vpop.f32.mrb[0].mxu0
    %v356 = vadd.f32 %v283, %v355
    %v357 = vpop.f32.mrb[0].mxu0
    %358 = vdwg.mxu0
    %v359 = vld [vmem:[#allocation10] sm:$0xff]
    %v360 = vld [vmem:[#allocation10 + $0x8] sm:$0xff]
    %v361 = vld [vmem:[#allocation10 + $0x10] sm:$0xff]
    %v362 = vld [vmem:[#allocation10 + $0x18] sm:$0xff]
    %v363 = vld [vmem:[#allocation10 + $0x20] sm:$0xff]
    %v364 = vld [vmem:[#allocation10 + $0x28] sm:$0xff]
    %v365 = vld [vmem:[#allocation10 + $0x30] sm:$0xff]
    %v366 = vld [vmem:[#allocation10 + $0x38] sm:$0xff]
    %v367 = vld [vmem:[#allocation10 + $0x40] sm:$0xff]
    %v368 = vld [vmem:[#allocation10 + $0x48] sm:$0xff]
    %v369 = vld [vmem:[#allocation10 + $0x50] sm:$0xff]
    %v370 = vld [vmem:[#allocation10 + $0x58] sm:$0xff]
    %v371 = vld [vmem:[#allocation10 + $0x60] sm:$0xff]
    %v372 = vld [vmem:[#allocation10 + $0x68] sm:$0xff]
    %v373 = vld [vmem:[#allocation10 + $0x70] sm:$0xff]
    %v374 = vld [vmem:[#allocation10 + $0x78] sm:$0xff]
    %375 = vmatprep.subr.mxu0 0.0
    %376 = vmatpush1.msra.mxu0 %v359
    %377 = vmatprep.subr.mxu0 0.0
    %378 = vmatpush1.msra.mxu0 %v360
    %379 = vmatprep.subr.mxu0 0.0
    %380 = vmatpush1.msra.mxu0 %v361
    %381 = vmatprep.subr.mxu0 0.0
    %382 = vmatpush1.msra.mxu0 %v362
    %383 = vmatprep.subr.mxu0 0.0
    %384 = vmatpush1.msra.mxu0 %v363
    %385 = vmatprep.subr.mxu0 0.0
    %386 = vmatpush1.msra.mxu0 %v364
    %387 = vmatprep.subr.mxu0 0.0
    %388 = vmatpush1.msra.mxu0 %v365
    %389 = vmatprep.subr.mxu0 0.0
    %390 = vmatpush1.msra.mxu0 %v366
    %391 = vmatprep.subr.mxu0 0.0
    %392 = vmatpush1.msra.mxu0 %v367
    %393 = vmatprep.subr.mxu0 0.0
    %394 = vmatpush1.msra.mxu0 %v368
    %395 = vmatprep.subr.mxu0 0.0
    %396 = vmatpush1.msra.mxu0 %v369
    %397 = vmatprep.subr.mxu0 0.0
    %398 = vmatpush1.msra.mxu0 %v370
    %399 = vmatprep.subr.mxu0 0.0
    %400 = vmatpush1.msra.mxu0 %v371
    %401 = vmatprep.subr.mxu0 0.0
    %402 = vmatpush1.msra.mxu0 %v372
    %403 = vmatprep.subr.mxu0 0.0
    %404 = vmatpush1.msra.mxu0 %v373
    %405 = vmatprep.subr.mxu0 0.0
    %406 = vmatpush1.msra.mxu0 %v374
    %407 = vmatprep.subr.mxu0 0.0
    %408 = vmatpush1.msra.mxu0 0.0
    %409 = vmatprep.subr.mxu0 0.0
    %410 = vmatpush1.msra.mxu0 0.0
    %411 = vmatprep.subr.mxu0 0.0
    %412 = vmatpush1.msra.mxu0 0.0
    %413 = vmatprep.subr.mxu0 0.0
    %414 = vmatpush1.msra.mxu0 0.0
    %415 = vmatprep.subr.mxu0 0.0
    %416 = vmatpush1.msra.mxu0 0.0
    %417 = vmatprep.subr.mxu0 0.0
    %418 = vmatpush1.msra.mxu0 0.0
    %419 = vmatprep.subr.mxu0 0.0
    %420 = vmatpush1.msra.mxu0 0.0
    %421 = vmatprep.subr.mxu0 0.0
    %422 = vmatpush1.msra.mxu0 0.0
    %423 = vmatprep.subr.mxu0 0.0
    %424 = vmatpush1.msra.mxu0 0.0
    %425 = vmatprep.subr.mxu0 0.0
    %426 = vmatpush1.msra.mxu0 0.0
    %427 = vmatprep.subr.mxu0 0.0
    %428 = vmatpush1.msra.mxu0 0.0
    %429 = vmatprep.subr.mxu0 0.0
    %430 = vmatpush1.msra.mxu0 0.0
    %431 = vmatprep.subr.mxu0 0.0
    %432 = vmatpush1.msra.mxu0 0.0
    %433 = vmatprep.subr.mxu0 0.0
    %434 = vmatpush1.msra.mxu0 0.0
    %435 = vmatprep.subr.mxu0 0.0
    %436 = vmatpush1.msra.mxu0 0.0
    %437 = vmatprep.subr.mxu0 0.0
    %438 = vmatpush1.msra.mxu0 0.0
    %439 = vmatprep.mubr.f32.mxu0 0.0
    %440 = vmatmul.mubr.f32.gmra.mrb[0].mxu0 %v191
    %v441 = vpop.f32.mrb[0].mxu0
    %v442 = vadd.f32 0.0, %v441
    %v443 = vpop.f32.mrb[0].mxu0
    %444 = vdwg.mxu0
    %v445 = vld [vmem:[#allocation11] sm:$0xff]
    %s446 = scalar_lea.vmem [#allocation10], 128
    %v447 = vld [vmem:[%s446] sm:$0xff]
    %v448 = vld [vmem:[%s446 + $0x8] sm:$0xff]
    %v449 = vld [vmem:[%s446 + $0x10] sm:$0xff]
    %v450 = vld [vmem:[%s446 + $0x18] sm:$0xff]
    %v451 = vld [vmem:[%s446 + $0x20] sm:$0xff]
    %v452 = vld [vmem:[%s446 + $0x28] sm:$0xff]
    %v453 = vld [vmem:[%s446 + $0x30] sm:$0xff]
    %v454 = vld [vmem:[%s446 + $0x38] sm:$0xff]
    %v455 = vld [vmem:[%s446 + $0x40] sm:$0xff]
    %v456 = vld [vmem:[%s446 + $0x48] sm:$0xff]
    %v457 = vld [vmem:[%s446 + $0x50] sm:$0xff]
    %v458 = vld [vmem:[%s446 + $0x58] sm:$0xff]
    %v459 = vld [vmem:[%s446 + $0x60] sm:$0xff]
    %v460 = vld [vmem:[%s446 + $0x68] sm:$0xff]
    %v461 = vld [vmem:[%s446 + $0x70] sm:$0xff]
    %v462 = vld [vmem:[%s446 + $0x78] sm:$0xff]
    %463 = vmatprep.subr.mxu0 0.0
    %464 = vmatpush1.msra.mxu0 %v447
    %465 = vmatprep.subr.mxu0 0.0
    %466 = vmatpush1.msra.mxu0 %v448
    %467 = vmatprep.subr.mxu0 0.0
    %468 = vmatpush1.msra.mxu0 %v449
    %469 = vmatprep.subr.mxu0 0.0
    %470 = vmatpush1.msra.mxu0 %v450
    %471 = vmatprep.subr.mxu0 0.0
    %472 = vmatpush1.msra.mxu0 %v451
    %473 = vmatprep.subr.mxu0 0.0
    %474 = vmatpush1.msra.mxu0 %v452
    %475 = vmatprep.subr.mxu0 0.0
    %476 = vmatpush1.msra.mxu0 %v453
    %477 = vmatprep.subr.mxu0 0.0
    %478 = vmatpush1.msra.mxu0 %v454
    %479 = vmatprep.subr.mxu0 0.0
    %480 = vmatpush1.msra.mxu0 %v455
    %481 = vmatprep.subr.mxu0 0.0
    %482 = vmatpush1.msra.mxu0 %v456
    %483 = vmatprep.subr.mxu0 0.0
    %484 = vmatpush1.msra.mxu0 %v457
    %485 = vmatprep.subr.mxu0 0.0
    %486 = vmatpush1.msra.mxu0 %v458
    %487 = vmatprep.subr.mxu0 0.0
    %488 = vmatpush1.msra.mxu0 %v459
    %489 = vmatprep.subr.mxu0 0.0
    %490 = vmatpush1.msra.mxu0 %v460
    %491 = vmatprep.subr.mxu0 0.0
    %492 = vmatpush1.msra.mxu0 %v461
    %493 = vmatprep.subr.mxu0 0.0
    %494 = vmatpush1.msra.mxu0 %v462
    %495 = vmatprep.subr.mxu0 0.0
    %496 = vmatpush1.msra.mxu0 0.0
    %497 = vmatprep.subr.mxu0 0.0
    %498 = vmatpush1.msra.mxu0 0.0
    %499 = vmatprep.subr.mxu0 0.0
    %500 = vmatpush1.msra.mxu0 0.0
    %501 = vmatprep.subr.mxu0 0.0
    %502 = vmatpush1.msra.mxu0 0.0
    %503 = vmatprep.subr.mxu0 0.0
    %504 = vmatpush1.msra.mxu0 0.0
    %505 = vmatprep.subr.mxu0 0.0
    %506 = vmatpush1.msra.mxu0 0.0
    %507 = vmatprep.subr.mxu0 0.0
    %508 = vmatpush1.msra.mxu0 0.0
    %509 = vmatprep.subr.mxu0 0.0
    %510 = vmatpush1.msra.mxu0 0.0
    %511 = vmatprep.subr.mxu0 0.0
    %512 = vmatpush1.msra.mxu0 0.0
    %513 = vmatprep.subr.mxu0 0.0
    %514 = vmatpush1.msra.mxu0 0.0
    %515 = vmatprep.subr.mxu0 0.0
    %516 = vmatpush1.msra.mxu0 0.0
    %517 = vmatprep.subr.mxu0 0.0
    %518 = vmatpush1.msra.mxu0 0.0
    %519 = vmatprep.subr.mxu0 0.0
    %520 = vmatpush1.msra.mxu0 0.0
    %521 = vmatprep.subr.mxu0 0.0
    %522 = vmatpush1.msra.mxu0 0.0
    %523 = vmatprep.subr.mxu0 0.0
    %524 = vmatpush1.msra.mxu0 0.0
    %525 = vmatprep.subr.mxu0 0.0
    %526 = vmatpush1.msra.mxu0 0.0
    %527 = vmatprep.mubr.f32.mxu0 0.0
    %528 = vmatmul.mubr.f32.gmra.mrb[0].mxu0 %v191
    %v529 = vpop.f32.mrb[0].mxu0
    %v530 = vadd.f32 0.0, %v529
    %v531 = vpop.f32.mrb[0].mxu0
    %532 = vdwg.mxu0
    %s533 = scalar_lea.vmem [#allocation11], 8
    %v534 = vld [vmem:[%s533] sm:$0xff]
    %v536 = vsel %vm285, %v534, 0
    %538 = vmatprep.subr.mxu0 0.0
    %539 = vmatpush1.msra.mxu0 %v530
    %540 = vmatprep.subr.mxu0 0.0
    %541 = vmatpush1.msra.mxu0 0.0
    %542 = vmatprep.subr.mxu0 0.0
    %543 = vmatpush1.msra.mxu0 0.0
    %544 = vmatprep.subr.mxu0 0.0
    %545 = vmatpush1.msra.mxu0 0.0
    %546 = vmatprep.subr.mxu0 0.0
    %547 = vmatpush1.msra.mxu0 0.0
    %548 = vmatprep.subr.mxu0 0.0
    %549 = vmatpush1.msra.mxu0 0.0
    %550 = vmatprep.subr.mxu0 0.0
    %551 = vmatpush1.msra.mxu0 0.0
    %552 = vmatprep.subr.mxu0 0.0
    %553 = vmatpush1.msra.mxu0 0.0
    %554 = vmatprep.subr.mxu0 0.0
    %555 = vmatpush1.msra.mxu0 0.0
    %556 = vmatprep.subr.mxu0 0.0
    %557 = vmatpush1.msra.mxu0 0.0
    %558 = vmatprep.subr.mxu0 0.0
    %559 = vmatpush1.msra.mxu0 0.0
    %560 = vmatprep.subr.mxu0 0.0
    %561 = vmatpush1.msra.mxu0 0.0
    %562 = vmatprep.subr.mxu0 0.0
    %563 = vmatpush1.msra.mxu0 0.0
    %564 = vmatprep.subr.mxu0 0.0
    %565 = vmatpush1.msra.mxu0 0.0
    %566 = vmatprep.subr.mxu0 0.0
    %567 = vmatpush1.msra.mxu0 0.0
    %568 = vmatprep.subr.mxu0 0.0
    %569 = vmatpush1.msra.mxu0 0.0
    %570 = vmatprep.subr.mxu0 0.0
    %571 = vmatpush1.msra.mxu0 0.0
    %572 = vmatprep.subr.mxu0 0.0
    %573 = vmatpush1.msra.mxu0 0.0
    %574 = vmatprep.subr.mxu0 0.0
    %575 = vmatpush1.msra.mxu0 0.0
    %576 = vmatprep.subr.mxu0 0.0
    %577 = vmatpush1.msra.mxu0 0.0
    %578 = vmatprep.subr.mxu0 0.0
    %579 = vmatpush1.msra.mxu0 0.0
    %580 = vmatprep.subr.mxu0 0.0
    %581 = vmatpush1.msra.mxu0 0.0
    %582 = vmatprep.subr.mxu0 0.0
    %583 = vmatpush1.msra.mxu0 0.0
    %584 = vmatprep.subr.mxu0 0.0
    %585 = vmatpush1.msra.mxu0 0.0
    %586 = vmatprep.subr.mxu0 0.0
    %587 = vmatpush1.msra.mxu0 0.0
    %588 = vmatprep.subr.mxu0 0.0
    %589 = vmatpush1.msra.mxu0 0.0
    %590 = vmatprep.subr.mxu0 0.0
    %591 = vmatpush1.msra.mxu0 0.0
    %592 = vmatprep.subr.mxu0 0.0
    %593 = vmatpush1.msra.mxu0 0.0
    %594 = vmatprep.subr.mxu0 0.0
    %595 = vmatpush1.msra.mxu0 0.0
    %596 = vmatprep.subr.mxu0 0.0
    %597 = vmatpush1.msra.mxu0 0.0
    %598 = vmatprep.subr.mxu0 0.0
    %599 = vmatpush1.msra.mxu0 0.0
    %600 = vmatprep.subr.mxu0 0.0
    %601 = vmatpush1.msra.mxu0 0.0
    %602 = vmatprep.mubr.f32.mxu0 0.0
    %603 = vmatmul.mubr.f32.gmra.mrb[0].mxu0 %v536
    %v604 = vpop.f32.mrb[0].mxu0
    %v605 = vadd.f32 0.0, %v604
    %v606 = vpop.f32.mrb[0].mxu0
    %607 = vdwg.mxu0
    %v609 = vsel %vm285, %v445, 0
    %611 = vmatprep.subr.mxu0 0.0
    %612 = vmatpush1.msra.mxu0 %v442
    %613 = vmatprep.subr.mxu0 0.0
    %614 = vmatpush1.msra.mxu0 0.0
    %615 = vmatprep.subr.mxu0 0.0
    %616 = vmatpush1.msra.mxu0 0.0
    %617 = vmatprep.subr.mxu0 0.0
    %618 = vmatpush1.msra.mxu0 0.0
    %619 = vmatprep.subr.mxu0 0.0
    %620 = vmatpush1.msra.mxu0 0.0
    %621 = vmatprep.subr.mxu0 0.0
    %622 = vmatpush1.msra.mxu0 0.0
    %623 = vmatprep.subr.mxu0 0.0
    %624 = vmatpush1.msra.mxu0 0.0
    %625 = vmatprep.subr.mxu0 0.0
    %626 = vmatpush1.msra.mxu0 0.0
    %627 = vmatprep.subr.mxu0 0.0
    %628 = vmatpush1.msra.mxu0 0.0
    %629 = vmatprep.subr.mxu0 0.0
    %630 = vmatpush1.msra.mxu0 0.0
    %631 = vmatprep.subr.mxu0 0.0
    %632 = vmatpush1.msra.mxu0 0.0
    %633 = vmatprep.subr.mxu0 0.0
    %634 = vmatpush1.msra.mxu0 0.0
    %635 = vmatprep.subr.mxu0 0.0
    %636 = vmatpush1.msra.mxu0 0.0
    %637 = vmatprep.subr.mxu0 0.0
    %638 = vmatpush1.msra.mxu0 0.0
    %639 = vmatprep.subr.mxu0 0.0
    %640 = vmatpush1.msra.mxu0 0.0
    %641 = vmatprep.subr.mxu0 0.0
    %642 = vmatpush1.msra.mxu0 0.0
    %643 = vmatprep.subr.mxu0 0.0
    %644 = vmatpush1.msra.mxu0 0.0
    %645 = vmatprep.subr.mxu0 0.0
    %646 = vmatpush1.msra.mxu0 0.0
    %647 = vmatprep.subr.mxu0 0.0
    %648 = vmatpush1.msra.mxu0 0.0
    %649 = vmatprep.subr.mxu0 0.0
    %650 = vmatpush1.msra.mxu0 0.0
    %651 = vmatprep.subr.mxu0 0.0
    %652 = vmatpush1.msra.mxu0 0.0
    %653 = vmatprep.subr.mxu0 0.0
    %654 = vmatpush1.msra.mxu0 0.0
    %655 = vmatprep.subr.mxu0 0.0
    %656 = vmatpush1.msra.mxu0 0.0
    %657 = vmatprep.subr.mxu0 0.0
    %658 = vmatpush1.msra.mxu0 0.0
    %659 = vmatprep.subr.mxu0 0.0
    %660 = vmatpush1.msra.mxu0 0.0
    %661 = vmatprep.subr.mxu0 0.0
    %662 = vmatpush1.msra.mxu0 0.0
    %663 = vmatprep.subr.mxu0 0.0
    %664 = vmatpush1.msra.mxu0 0.0
    %665 = vmatprep.subr.mxu0 0.0
    %666 = vmatpush1.msra.mxu0 0.0
    %667 = vmatprep.subr.mxu0 0.0
    %668 = vmatpush1.msra.mxu0 0.0
    %669 = vmatprep.subr.mxu0 0.0
    %670 = vmatpush1.msra.mxu0 0.0
    %671 = vmatprep.subr.mxu0 0.0
    %672 = vmatpush1.msra.mxu0 0.0
    %673 = vmatprep.subr.mxu0 0.0
    %674 = vmatpush1.msra.mxu0 0.0
    %675 = vmatprep.mubr.f32.mxu0 0.0
    %676 = vmatmul.mubr.f32.gmra.mrb[0].mxu0 %v609
    %v677 = vpop.f32.mrb[0].mxu0
    %v678 = vadd.f32 %v605, %v677
    %v679 = vpop.f32.mrb[0].mxu0
    %680 = vdwg.mxu0
    %s681 = scalar_lea.vmem [#allocation10], 256
    %v682 = vld [vmem:[%s681] sm:$0xff]
    %v683 = vld [vmem:[%s681 + $0x8] sm:$0xff]
    %v684 = vld [vmem:[%s681 + $0x10] sm:$0xff]
    %v685 = vld [vmem:[%s681 + $0x18] sm:$0xff]
    %v686 = vld [vmem:[%s681 + $0x20] sm:$0xff]
    %v687 = vld [vmem:[%s681 + $0x28] sm:$0xff]
    %v688 = vld [vmem:[%s681 + $0x30] sm:$0xff]
    %v689 = vld [vmem:[%s681 + $0x38] sm:$0xff]
    %v690 = vld [vmem:[%s681 + $0x40] sm:$0xff]
    %v691 = vld [vmem:[%s681 + $0x48] sm:$0xff]
    %v692 = vld [vmem:[%s681 + $0x50] sm:$0xff]
    %v693 = vld [vmem:[%s681 + $0x58] sm:$0xff]
    %v694 = vld [vmem:[%s681 + $0x60] sm:$0xff]
    %v695 = vld [vmem:[%s681 + $0x68] sm:$0xff]
    %v696 = vld [vmem:[%s681 + $0x70] sm:$0xff]
    %v697 = vld [vmem:[%s681 + $0x78] sm:$0xff]
    %698 = vmatprep.subr.mxu0 0.0
    %699 = vmatpush1.msra.mxu0 %v682
    %700 = vmatprep.subr.mxu0 0.0
    %701 = vmatpush1.msra.mxu0 %v683
    %702 = vmatprep.subr.mxu0 0.0
    %703 = vmatpush1.msra.mxu0 %v684
    %704 = vmatprep.subr.mxu0 0.0
    %705 = vmatpush1.msra.mxu0 %v685
    %706 = vmatprep.subr.mxu0 0.0
    %707 = vmatpush1.msra.mxu0 %v686
    %708 = vmatprep.subr.mxu0 0.0
    %709 = vmatpush1.msra.mxu0 %v687
    %710 = vmatprep.subr.mxu0 0.0
    %711 = vmatpush1.msra.mxu0 %v688
    %712 = vmatprep.subr.mxu0 0.0
    %713 = vmatpush1.msra.mxu0 %v689
    %714 = vmatprep.subr.mxu0 0.0
    %715 = vmatpush1.msra.mxu0 %v690
    %716 = vmatprep.subr.mxu0 0.0
    %717 = vmatpush1.msra.mxu0 %v691
    %718 = vmatprep.subr.mxu0 0.0
    %719 = vmatpush1.msra.mxu0 %v692
    %720 = vmatprep.subr.mxu0 0.0
    %721 = vmatpush1.msra.mxu0 %v693
    %722 = vmatprep.subr.mxu0 0.0
    %723 = vmatpush1.msra.mxu0 %v694
    %724 = vmatprep.subr.mxu0 0.0
    %725 = vmatpush1.msra.mxu0 %v695
    %726 = vmatprep.subr.mxu0 0.0
    %727 = vmatpush1.msra.mxu0 %v696
    %728 = vmatprep.subr.mxu0 0.0
    %729 = vmatpush1.msra.mxu0 %v697
    %730 = vmatprep.subr.mxu0 0.0
    %731 = vmatpush1.msra.mxu0 0.0
    %732 = vmatprep.subr.mxu0 0.0
    %733 = vmatpush1.msra.mxu0 0.0
    %734 = vmatprep.subr.mxu0 0.0
    %735 = vmatpush1.msra.mxu0 0.0
    %736 = vmatprep.subr.mxu0 0.0
    %737 = vmatpush1.msra.mxu0 0.0
    %738 = vmatprep.subr.mxu0 0.0
    %739 = vmatpush1.msra.mxu0 0.0
    %740 = vmatprep.subr.mxu0 0.0
    %741 = vmatpush1.msra.mxu0 0.0
    %742 = vmatprep.subr.mxu0 0.0
    %743 = vmatpush1.msra.mxu0 0.0
    %744 = vmatprep.subr.mxu0 0.0
    %745 = vmatpush1.msra.mxu0 0.0
    %746 = vmatprep.subr.mxu0 0.0
    %747 = vmatpush1.msra.mxu0 0.0
    %748 = vmatprep.subr.mxu0 0.0
    %749 = vmatpush1.msra.mxu0 0.0
    %750 = vmatprep.subr.mxu0 0.0
    %751 = vmatpush1.msra.mxu0 0.0
    %752 = vmatprep.subr.mxu0 0.0
    %753 = vmatpush1.msra.mxu0 0.0
    %754 = vmatprep.subr.mxu0 0.0
    %755 = vmatpush1.msra.mxu0 0.0
    %756 = vmatprep.subr.mxu0 0.0
    %757 = vmatpush1.msra.mxu0 0.0
    %758 = vmatprep.subr.mxu0 0.0
    %759 = vmatpush1.msra.mxu0 0.0
    %760 = vmatprep.subr.mxu0 0.0
    %761 = vmatpush1.msra.mxu0 0.0
    %762 = vmatprep.mubr.f32.mxu0 0.0
    %763 = vmatmul.mubr.f32.gmra.mrb[0].mxu0 %v191
    %v764 = vpop.f32.mrb[0].mxu0
    %v765 = vadd.f32 0.0, %v764
    %v766 = vpop.f32.mrb[0].mxu0
    %767 = vdwg.mxu0
    %s768 = scalar_lea.vmem [#allocation11], 16
    %v769 = vld [vmem:[%s768] sm:$0xff]
    %v771 = vsel %vm285, %v769, 0
    %773 = vmatprep.subr.mxu0 0.0
    %774 = vmatpush1.msra.mxu0 %v765
    %775 = vmatprep.subr.mxu0 0.0
    %776 = vmatpush1.msra.mxu0 0.0
    %777 = vmatprep.subr.mxu0 0.0
    %778 = vmatpush1.msra.mxu0 0.0
    %779 = vmatprep.subr.mxu0 0.0
    %780 = vmatpush1.msra.mxu0 0.0
    %781 = vmatprep.subr.mxu0 0.0
    %782 = vmatpush1.msra.mxu0 0.0
    %783 = vmatprep.subr.mxu0 0.0
    %784 = vmatpush1.msra.mxu0 0.0
    %785 = vmatprep.subr.mxu0 0.0
    %786 = vmatpush1.msra.mxu0 0.0
    %787 = vmatprep.subr.mxu0 0.0
    %788 = vmatpush1.msra.mxu0 0.0
    %789 = vmatprep.subr.mxu0 0.0
    %790 = vmatpush1.msra.mxu0 0.0
    %791 = vmatprep.subr.mxu0 0.0
    %792 = vmatpush1.msra.mxu0 0.0
    %793 = vmatprep.subr.mxu0 0.0
    %794 = vmatpush1.msra.mxu0 0.0
    %795 = vmatprep.subr.mxu0 0.0
    %796 = vmatpush1.msra.mxu0 0.0
    %797 = vmatprep.subr.mxu0 0.0
    %798 = vmatpush1.msra.mxu0 0.0
    %799 = vmatprep.subr.mxu0 0.0
    %800 = vmatpush1.msra.mxu0 0.0
    %801 = vmatprep.subr.mxu0 0.0
    %802 = vmatpush1.msra.mxu0 0.0
    %803 = vmatprep.subr.mxu0 0.0
    %804 = vmatpush1.msra.mxu0 0.0
    %805 = vmatprep.subr.mxu0 0.0
    %806 = vmatpush1.msra.mxu0 0.0
    %807 = vmatprep.subr.mxu0 0.0
    %808 = vmatpush1.msra.mxu0 0.0
    %809 = vmatprep.subr.mxu0 0.0
    %810 = vmatpush1.msra.mxu0 0.0
    %811 = vmatprep.subr.mxu0 0.0
    %812 = vmatpush1.msra.mxu0 0.0
    %813 = vmatprep.subr.mxu0 0.0
    %814 = vmatpush1.msra.mxu0 0.0
    %815 = vmatprep.subr.mxu0 0.0
    %816 = vmatpush1.msra.mxu0 0.0
    %817 = vmatprep.subr.mxu0 0.0
    %818 = vmatpush1.msra.mxu0 0.0
    %819 = vmatprep.subr.mxu0 0.0
    %820 = vmatpush1.msra.mxu0 0.0
    %821 = vmatprep.subr.mxu0 0.0
    %822 = vmatpush1.msra.mxu0 0.0
    %823 = vmatprep.subr.mxu0 0.0
    %824 = vmatpush1.msra.mxu0 0.0
    %825 = vmatprep.subr.mxu0 0.0
    %826 = vmatpush1.msra.mxu0 0.0
    %827 = vmatprep.subr.mxu0 0.0
    %828 = vmatpush1.msra.mxu0 0.0
    %829 = vmatprep.subr.mxu0 0.0
    %830 = vmatpush1.msra.mxu0 0.0
    %831 = vmatprep.subr.mxu0 0.0
    %832 = vmatpush1.msra.mxu0 0.0
    %833 = vmatprep.subr.mxu0 0.0
    %834 = vmatpush1.msra.mxu0 0.0
    %835 = vmatprep.subr.mxu0 0.0
    %836 = vmatpush1.msra.mxu0 0.0
    %837 = vmatprep.mubr.f32.mxu0 0.0
    %838 = vmatmul.mubr.f32.gmra.mrb[0].mxu0 %v771
    %v839 = vpop.f32.mrb[0].mxu0
    %v840 = vadd.f32 0.0, %v839
    %v841 = vpop.f32.mrb[0].mxu0
    %842 = vdwg.mxu0
    %v843 = vadd.f32 %v678, %v840
    %s844 = scalar_lea.vmem [#allocation10], 384
    %v845 = vld [vmem:[%s844] sm:$0xff]
    %v846 = vld [vmem:[%s844 + $0x8] sm:$0xff]
    %v847 = vld [vmem:[%s844 + $0x10] sm:$0xff]
    %v848 = vld [vmem:[%s844 + $0x18] sm:$0xff]
    %v849 = vld [vmem:[%s844 + $0x20] sm:$0xff]
    %v850 = vld [vmem:[%s844 + $0x28] sm:$0xff]
    %v851 = vld [vmem:[%s844 + $0x30] sm:$0xff]
    %v852 = vld [vmem:[%s844 + $0x38] sm:$0xff]
    %v853 = vld [vmem:[%s844 + $0x40] sm:$0xff]
    %v854 = vld [vmem:[%s844 + $0x48] sm:$0xff]
    %v855 = vld [vmem:[%s844 + $0x50] sm:$0xff]
    %v856 = vld [vmem:[%s844 + $0x58] sm:$0xff]
    %v857 = vld [vmem:[%s844 + $0x60] sm:$0xff]
    %v858 = vld [vmem:[%s844 + $0x68] sm:$0xff]
    %v859 = vld [vmem:[%s844 + $0x70] sm:$0xff]
    %v860 = vld [vmem:[%s844 + $0x78] sm:$0xff]
    %861 = vmatprep.subr.mxu0 0.0
    %862 = vmatpush1.msra.mxu0 %v845
    %863 = vmatprep.subr.mxu0 0.0
    %864 = vmatpush1.msra.mxu0 %v846
    %865 = vmatprep.subr.mxu0 0.0
    %866 = vmatpush1.msra.mxu0 %v847
    %867 = vmatprep.subr.mxu0 0.0
    %868 = vmatpush1.msra.mxu0 %v848
    %869 = vmatprep.subr.mxu0 0.0
    %870 = vmatpush1.msra.mxu0 %v849
    %871 = vmatprep.subr.mxu0 0.0
    %872 = vmatpush1.msra.mxu0 %v850
    %873 = vmatprep.subr.mxu0 0.0
    %874 = vmatpush1.msra.mxu0 %v851
    %875 = vmatprep.subr.mxu0 0.0
    %876 = vmatpush1.msra.mxu0 %v852
    %877 = vmatprep.subr.mxu0 0.0
    %878 = vmatpush1.msra.mxu0 %v853
    %879 = vmatprep.subr.mxu0 0.0
    %880 = vmatpush1.msra.mxu0 %v854
    %881 = vmatprep.subr.mxu0 0.0
    %882 = vmatpush1.msra.mxu0 %v855
    %883 = vmatprep.subr.mxu0 0.0
    %884 = vmatpush1.msra.mxu0 %v856
    %885 = vmatprep.subr.mxu0 0.0
    %886 = vmatpush1.msra.mxu0 %v857
    %887 = vmatprep.subr.mxu0 0.0
    %888 = vmatpush1.msra.mxu0 %v858
    %889 = vmatprep.subr.mxu0 0.0
    %890 = vmatpush1.msra.mxu0 %v859
    %891 = vmatprep.subr.mxu0 0.0
    %892 = vmatpush1.msra.mxu0 %v860
    %893 = vmatprep.subr.mxu0 0.0
    %894 = vmatpush1.msra.mxu0 0.0
    %895 = vmatprep.subr.mxu0 0.0
    %896 = vmatpush1.msra.mxu0 0.0
    %897 = vmatprep.subr.mxu0 0.0
    %898 = vmatpush1.msra.mxu0 0.0
    %899 = vmatprep.subr.mxu0 0.0
    %900 = vmatpush1.msra.mxu0 0.0
    %901 = vmatprep.subr.mxu0 0.0
    %902 = vmatpush1.msra.mxu0 0.0
    %903 = vmatprep.subr.mxu0 0.0
    %904 = vmatpush1.msra.mxu0 0.0
    %905 = vmatprep.subr.mxu0 0.0
    %906 = vmatpush1.msra.mxu0 0.0
    %907 = vmatprep.subr.mxu0 0.0
    %908 = vmatpush1.msra.mxu0 0.0
    %909 = vmatprep.subr.mxu0 0.0
    %910 = vmatpush1.msra.mxu0 0.0
    %911 = vmatprep.subr.mxu0 0.0
    %912 = vmatpush1.msra.mxu0 0.0
    %913 = vmatprep.subr.mxu0 0.0
    %914 = vmatpush1.msra.mxu0 0.0
    %915 = vmatprep.subr.mxu0 0.0
    %916 = vmatpush1.msra.mxu0 0.0
    %917 = vmatprep.subr.mxu0 0.0
    %918 = vmatpush1.msra.mxu0 0.0
    %919 = vmatprep.subr.mxu0 0.0
    %920 = vmatpush1.msra.mxu0 0.0
    %921 = vmatprep.subr.mxu0 0.0
    %922 = vmatpush1.msra.mxu0 0.0
    %923 = vmatprep.subr.mxu0 0.0
    %924 = vmatpush1.msra.mxu0 0.0
    %925 = vmatprep.mubr.f32.mxu0 0.0
    %926 = vmatmul.mubr.f32.gmra.mrb[0].mxu0 %v191
    %v927 = vpop.f32.mrb[0].mxu0
    %v928 = vadd.f32 0.0, %v927
    %v929 = vpop.f32.mrb[0].mxu0
    %930 = vdwg.mxu0
    %s931 = scalar_lea.vmem [#allocation11], 24
    %v932 = vld [vmem:[%s931] sm:$0xff]
    %v934 = vsel %vm285, %v932, 0
    %936 = vmatprep.subr.mxu0 0.0
    %937 = vmatpush1.msra.mxu0 %v928
    %938 = vmatprep.subr.mxu0 0.0
    %939 = vmatpush1.msra.mxu0 0.0
    %940 = vmatprep.subr.mxu0 0.0
    %941 = vmatpush1.msra.mxu0 0.0
    %942 = vmatprep.subr.mxu0 0.0
    %943 = vmatpush1.msra.mxu0 0.0
    %944 = vmatprep.subr.mxu0 0.0
    %945 = vmatpush1.msra.mxu0 0.0
    %946 = vmatprep.subr.mxu0 0.0
    %947 = vmatpush1.msra.mxu0 0.0
    %948 = vmatprep.subr.mxu0 0.0
    %949 = vmatpush1.msra.mxu0 0.0
    %950 = vmatprep.subr.mxu0 0.0
    %951 = vmatpush1.msra.mxu0 0.0
    %952 = vmatprep.subr.mxu0 0.0
    %953 = vmatpush1.msra.mxu0 0.0
    %954 = vmatprep.subr.mxu0 0.0
    %955 = vmatpush1.msra.mxu0 0.0
    %956 = vmatprep.subr.mxu0 0.0
    %957 = vmatpush1.msra.mxu0 0.0
    %958 = vmatprep.subr.mxu0 0.0
    %959 = vmatpush1.msra.mxu0 0.0
    %960 = vmatprep.subr.mxu0 0.0
    %961 = vmatpush1.msra.mxu0 0.0
    %962 = vmatprep.subr.mxu0 0.0
    %963 = vmatpush1.msra.mxu0 0.0
    %964 = vmatprep.subr.mxu0 0.0
    %965 = vmatpush1.msra.mxu0 0.0
    %966 = vmatprep.subr.mxu0 0.0
    %967 = vmatpush1.msra.mxu0 0.0
    %968 = vmatprep.subr.mxu0 0.0
    %969 = vmatpush1.msra.mxu0 0.0
    %970 = vmatprep.subr.mxu0 0.0
    %971 = vmatpush1.msra.mxu0 0.0
    %972 = vmatprep.subr.mxu0 0.0
    %973 = vmatpush1.msra.mxu0 0.0
    %974 = vmatprep.subr.mxu0 0.0
    %975 = vmatpush1.msra.mxu0 0.0
    %976 = vmatprep.subr.mxu0 0.0
    %977 = vmatpush1.msra.mxu0 0.0
    %978 = vmatprep.subr.mxu0 0.0
    %979 = vmatpush1.msra.mxu0 0.0
    %980 = vmatprep.subr.mxu0 0.0
    %981 = vmatpush1.msra.mxu0 0.0
    %982 = vmatprep.subr.mxu0 0.0
    %983 = vmatpush1.msra.mxu0 0.0
    %984 = vmatprep.subr.mxu0 0.0
    %985 = vmatpush1.msra.mxu0 0.0
    %986 = vmatprep.subr.mxu0 0.0
    %987 = vmatpush1.msra.mxu0 0.0
    %988 = vmatprep.subr.mxu0 0.0
    %989 = vmatpush1.msra.mxu0 0.0
    %990 = vmatprep.subr.mxu0 0.0
    %991 = vmatpush1.msra.mxu0 0.0
    %992 = vmatprep.subr.mxu0 0.0
    %993 = vmatpush1.msra.mxu0 0.0
    %994 = vmatprep.subr.mxu0 0.0
    %995 = vmatpush1.msra.mxu0 0.0
    %996 = vmatprep.subr.mxu0 0.0
    %997 = vmatpush1.msra.mxu0 0.0
    %998 = vmatprep.subr.mxu0 0.0
    %999 = vmatpush1.msra.mxu0 0.0
    %1000 = vmatprep.mubr.f32.mxu0 0.0
    %1001 = vmatmul.mubr.f32.gmra.mrb[0].mxu0 %v934
    %v1002 = vpop.f32.mrb[0].mxu0
    %v1003 = vadd.f32 0.0, %v1002
    %v1004 = vpop.f32.mrb[0].mxu0
    %1005 = vdwg.mxu0
    %v1006 = vadd.f32 %v843, %v1003
    %s1007 = scalar_lea.vmem [#allocation10], 512
    %v1008 = vld [vmem:[%s1007] sm:$0xff]
    %v1009 = vld [vmem:[%s1007 + $0x8] sm:$0xff]
    %v1010 = vld [vmem:[%s1007 + $0x10] sm:$0xff]
    %v1011 = vld [vmem:[%s1007 + $0x18] sm:$0xff]
    %v1012 = vld [vmem:[%s1007 + $0x20] sm:$0xff]
    %v1013 = vld [vmem:[%s1007 + $0x28] sm:$0xff]
    %v1014 = vld [vmem:[%s1007 + $0x30] sm:$0xff]
    %v1015 = vld [vmem:[%s1007 + $0x38] sm:$0xff]
    %v1016 = vld [vmem:[%s1007 + $0x40] sm:$0xff]
    %v1017 = vld [vmem:[%s1007 + $0x48] sm:$0xff]
    %v1018 = vld [vmem:[%s1007 + $0x50] sm:$0xff]
    %v1019 = vld [vmem:[%s1007 + $0x58] sm:$0xff]
    %v1020 = vld [vmem:[%s1007 + $0x60] sm:$0xff]
    %v1021 = vld [vmem:[%s1007 + $0x68] sm:$0xff]
    %v1022 = vld [vmem:[%s1007 + $0x70] sm:$0xff]
    %v1023 = vld [vmem:[%s1007 + $0x78] sm:$0xff]
    %1024 = vmatprep.subr.mxu0 0.0
    %1025 = vmatpush1.msra.mxu0 %v1008
    %1026 = vmatprep.subr.mxu0 0.0
    %1027 = vmatpush1.msra.mxu0 %v1009
    %1028 = vmatprep.subr.mxu0 0.0
    %1029 = vmatpush1.msra.mxu0 %v1010
    %1030 = vmatprep.subr.mxu0 0.0
    %1031 = vmatpush1.msra.mxu0 %v1011
    %1032 = vmatprep.subr.mxu0 0.0
    %1033 = vmatpush1.msra.mxu0 %v1012
    %1034 = vmatprep.subr.mxu0 0.0
    %1035 = vmatpush1.msra.mxu0 %v1013
    %1036 = vmatprep.subr.mxu0 0.0
    %1037 = vmatpush1.msra.mxu0 %v1014
    %1038 = vmatprep.subr.mxu0 0.0
    %1039 = vmatpush1.msra.mxu0 %v1015
    %1040 = vmatprep.subr.mxu0 0.0
    %1041 = vmatpush1.msra.mxu0 %v1016
    %1042 = vmatprep.subr.mxu0 0.0
    %1043 = vmatpush1.msra.mxu0 %v1017
    %1044 = vmatprep.subr.mxu0 0.0
    %1045 = vmatpush1.msra.mxu0 %v1018
    %1046 = vmatprep.subr.mxu0 0.0
    %1047 = vmatpush1.msra.mxu0 %v1019
    %1048 = vmatprep.subr.mxu0 0.0
    %1049 = vmatpush1.msra.mxu0 %v1020
    %1050 = vmatprep.subr.mxu0 0.0
    %1051 = vmatpush1.msra.mxu0 %v1021
    %1052 = vmatprep.subr.mxu0 0.0
    %1053 = vmatpush1.msra.mxu0 %v1022
    %1054 = vmatprep.subr.mxu0 0.0
    %1055 = vmatpush1.msra.mxu0 %v1023
    %1056 = vmatprep.subr.mxu0 0.0
    %1057 = vmatpush1.msra.mxu0 0.0
    %1058 = vmatprep.subr.mxu0 0.0
    %1059 = vmatpush1.msra.mxu0 0.0
    %1060 = vmatprep.subr.mxu0 0.0
    %1061 = vmatpush1.msra.mxu0 0.0
    %1062 = vmatprep.subr.mxu0 0.0
    %1063 = vmatpush1.msra.mxu0 0.0
    %1064 = vmatprep.subr.mxu0 0.0
    %1065 = vmatpush1.msra.mxu0 0.0
    %1066 = vmatprep.subr.mxu0 0.0
    %1067 = vmatpush1.msra.mxu0 0.0
    %1068 = vmatprep.subr.mxu0 0.0
    %1069 = vmatpush1.msra.mxu0 0.0
    %1070 = vmatprep.subr.mxu0 0.0
    %1071 = vmatpush1.msra.mxu0 0.0
    %1072 = vmatprep.subr.mxu0 0.0
    %1073 = vmatpush1.msra.mxu0 0.0
    %1074 = vmatprep.subr.mxu0 0.0
    %1075 = vmatpush1.msra.mxu0 0.0
    %1076 = vmatprep.subr.mxu0 0.0
    %1077 = vmatpush1.msra.mxu0 0.0
    %1078 = vmatprep.subr.mxu0 0.0
    %1079 = vmatpush1.msra.mxu0 0.0
    %1080 = vmatprep.subr.mxu0 0.0
    %1081 = vmatpush1.msra.mxu0 0.0
    %1082 = vmatprep.subr.mxu0 0.0
    %1083 = vmatpush1.msra.mxu0 0.0
    %1084 = vmatprep.subr.mxu0 0.0
    %1085 = vmatpush1.msra.mxu0 0.0
    %1086 = vmatprep.subr.mxu0 0.0
    %1087 = vmatpush1.msra.mxu0 0.0
    %1088 = vmatprep.mubr.f32.mxu0 0.0
    %1089 = vmatmul.mubr.f32.gmra.mrb[0].mxu0 %v191
    %v1090 = vpop.f32.mrb[0].mxu0
    %v1091 = vadd.f32 0.0, %v1090
    %v1092 = vpop.f32.mrb[0].mxu0
    %1093 = vdwg.mxu0
    %s1094 = scalar_lea.vmem [#allocation11], 32
    %v1095 = vld [vmem:[%s1094] sm:$0xff]
    %v1097 = vsel %vm285, %v1095, 0
    %1099 = vmatprep.subr.mxu0 0.0
    %1100 = vmatpush1.msra.mxu0 %v1091
    %1101 = vmatprep.subr.mxu0 0.0
    %1102 = vmatpush1.msra.mxu0 0.0
    %1103 = vmatprep.subr.mxu0 0.0
    %1104 = vmatpush1.msra.mxu0 0.0
    %1105 = vmatprep.subr.mxu0 0.0
    %1106 = vmatpush1.msra.mxu0 0.0
    %1107 = vmatprep.subr.mxu0 0.0
    %1108 = vmatpush1.msra.mxu0 0.0
    %1109 = vmatprep.subr.mxu0 0.0
    %1110 = vmatpush1.msra.mxu0 0.0
    %1111 = vmatprep.subr.mxu0 0.0
    %1112 = vmatpush1.msra.mxu0 0.0
    %1113 = vmatprep.subr.mxu0 0.0
    %1114 = vmatpush1.msra.mxu0 0.0
    %1115 = vmatprep.subr.mxu0 0.0
    %1116 = vmatpush1.msra.mxu0 0.0
    %1117 = vmatprep.subr.mxu0 0.0
    %1118 = vmatpush1.msra.mxu0 0.0
    %1119 = vmatprep.subr.mxu0 0.0
    %1120 = vmatpush1.msra.mxu0 0.0
    %1121 = vmatprep.subr.mxu0 0.0
    %1122 = vmatpush1.msra.mxu0 0.0
    %1123 = vmatprep.subr.mxu0 0.0
    %1124 = vmatpush1.msra.mxu0 0.0
    %1125 = vmatprep.subr.mxu0 0.0
    %1126 = vmatpush1.msra.mxu0 0.0
    %1127 = vmatprep.subr.mxu0 0.0
    %1128 = vmatpush1.msra.mxu0 0.0
    %1129 = vmatprep.subr.mxu0 0.0
    %1130 = vmatpush1.msra.mxu0 0.0
    %1131 = vmatprep.subr.mxu0 0.0
    %1132 = vmatpush1.msra.mxu0 0.0
    %1133 = vmatprep.subr.mxu0 0.0
    %1134 = vmatpush1.msra.mxu0 0.0
    %1135 = vmatprep.subr.mxu0 0.0
    %1136 = vmatpush1.msra.mxu0 0.0
    %1137 = vmatprep.subr.mxu0 0.0
    %1138 = vmatpush1.msra.mxu0 0.0
    %1139 = vmatprep.subr.mxu0 0.0
    %1140 = vmatpush1.msra.mxu0 0.0
    %1141 = vmatprep.subr.mxu0 0.0
    %1142 = vmatpush1.msra.mxu0 0.0
    %1143 = vmatprep.subr.mxu0 0.0
    %1144 = vmatpush1.msra.mxu0 0.0
    %1145 = vmatprep.subr.mxu0 0.0
    %1146 = vmatpush1.msra.mxu0 0.0
    %1147 = vmatprep.subr.mxu0 0.0
    %1148 = vmatpush1.msra.mxu0 0.0
    %1149 = vmatprep.subr.mxu0 0.0
    %1150 = vmatpush1.msra.mxu0 0.0
    %1151 = vmatprep.subr.mxu0 0.0
    %1152 = vmatpush1.msra.mxu0 0.0
    %1153 = vmatprep.subr.mxu0 0.0
    %1154 = vmatpush1.msra.mxu0 0.0
    %1155 = vmatprep.subr.mxu0 0.0
    %1156 = vmatpush1.msra.mxu0 0.0
    %1157 = vmatprep.subr.mxu0 0.0
    %1158 = vmatpush1.msra.mxu0 0.0
    %1159 = vmatprep.subr.mxu0 0.0
    %1160 = vmatpush1.msra.mxu0 0.0
    %1161 = vmatprep.subr.mxu0 0.0
    %1162 = vmatpush1.msra.mxu0 0.0
    %1163 = vmatprep.mubr.f32.mxu0 0.0
    %1164 = vmatmul.mubr.f32.gmra.mrb[0].mxu0 %v1097
    %v1165 = vpop.f32.mrb[0].mxu0
    %v1166 = vadd.f32 0.0, %v1165
    %v1167 = vpop.f32.mrb[0].mxu0
    %1168 = vdwg.mxu0
    %v1169 = vadd.f32 %v1006, %v1166
    %s1170 = scalar_lea.vmem [#allocation10], 640
    %v1171 = vld [vmem:[%s1170] sm:$0xff]
    %v1172 = vld [vmem:[%s1170 + $0x8] sm:$0xff]
    %v1173 = vld [vmem:[%s1170 + $0x10] sm:$0xff]
    %v1174 = vld [vmem:[%s1170 + $0x18] sm:$0xff]
    %v1175 = vld [vmem:[%s1170 + $0x20] sm:$0xff]
    %v1176 = vld [vmem:[%s1170 + $0x28] sm:$0xff]
    %v1177 = vld [vmem:[%s1170 + $0x30] sm:$0xff]
    %v1178 = vld [vmem:[%s1170 + $0x38] sm:$0xff]
    %v1179 = vld [vmem:[%s1170 + $0x40] sm:$0xff]
    %v1180 = vld [vmem:[%s1170 + $0x48] sm:$0xff]
    %v1181 = vld [vmem:[%s1170 + $0x50] sm:$0xff]
    %v1182 = vld [vmem:[%s1170 + $0x58] sm:$0xff]
    %v1183 = vld [vmem:[%s1170 + $0x60] sm:$0xff]
    %v1184 = vld [vmem:[%s1170 + $0x68] sm:$0xff]
    %v1185 = vld [vmem:[%s1170 + $0x70] sm:$0xff]
    %v1186 = vld [vmem:[%s1170 + $0x78] sm:$0xff]
    %1187 = vmatprep.subr.mxu0 0.0
    %1188 = vmatpush1.msra.mxu0 %v1171
    %1189 = vmatprep.subr.mxu0 0.0
    %1190 = vmatpush1.msra.mxu0 %v1172
    %1191 = vmatprep.subr.mxu0 0.0
    %1192 = vmatpush1.msra.mxu0 %v1173
    %1193 = vmatprep.subr.mxu0 0.0
    %1194 = vmatpush1.msra.mxu0 %v1174
    %1195 = vmatprep.subr.mxu0 0.0
    %1196 = vmatpush1.msra.mxu0 %v1175
    %1197 = vmatprep.subr.mxu0 0.0
    %1198 = vmatpush1.msra.mxu0 %v1176
    %1199 = vmatprep.subr.mxu0 0.0
    %1200 = vmatpush1.msra.mxu0 %v1177
    %1201 = vmatprep.subr.mxu0 0.0
    %1202 = vmatpush1.msra.mxu0 %v1178
    %1203 = vmatprep.subr.mxu0 0.0
    %1204 = vmatpush1.msra.mxu0 %v1179
    %1205 = vmatprep.subr.mxu0 0.0
    %1206 = vmatpush1.msra.mxu0 %v1180
    %1207 = vmatprep.subr.mxu0 0.0
    %1208 = vmatpush1.msra.mxu0 %v1181
    %1209 = vmatprep.subr.mxu0 0.0
    %1210 = vmatpush1.msra.mxu0 %v1182
    %1211 = vmatprep.subr.mxu0 0.0
    %1212 = vmatpush1.msra.mxu0 %v1183
    %1213 = vmatprep.subr.mxu0 0.0
    %1214 = vmatpush1.msra.mxu0 %v1184
    %1215 = vmatprep.subr.mxu0 0.0
    %1216 = vmatpush1.msra.mxu0 %v1185
    %1217 = vmatprep.subr.mxu0 0.0
    %1218 = vmatpush1.msra.mxu0 %v1186
    %1219 = vmatprep.subr.mxu0 0.0
    %1220 = vmatpush1.msra.mxu0 0.0
    %1221 = vmatprep.subr.mxu0 0.0
    %1222 = vmatpush1.msra.mxu0 0.0
    %1223 = vmatprep.subr.mxu0 0.0
    %1224 = vmatpush1.msra.mxu0 0.0
    %1225 = vmatprep.subr.mxu0 0.0
    %1226 = vmatpush1.msra.mxu0 0.0
    %1227 = vmatprep.subr.mxu0 0.0
    %1228 = vmatpush1.msra.mxu0 0.0
    %1229 = vmatprep.subr.mxu0 0.0
    %1230 = vmatpush1.msra.mxu0 0.0
    %1231 = vmatprep.subr.mxu0 0.0
    %1232 = vmatpush1.msra.mxu0 0.0
    %1233 = vmatprep.subr.mxu0 0.0
    %1234 = vmatpush1.msra.mxu0 0.0
    %1235 = vmatprep.subr.mxu0 0.0
    %1236 = vmatpush1.msra.mxu0 0.0
    %1237 = vmatprep.subr.mxu0 0.0
    %1238 = vmatpush1.msra.mxu0 0.0
    %1239 = vmatprep.subr.mxu0 0.0
    %1240 = vmatpush1.msra.mxu0 0.0
    %1241 = vmatprep.subr.mxu0 0.0
    %1242 = vmatpush1.msra.mxu0 0.0
    %1243 = vmatprep.subr.mxu0 0.0
    %1244 = vmatpush1.msra.mxu0 0.0
    %1245 = vmatprep.subr.mxu0 0.0
    %1246 = vmatpush1.msra.mxu0 0.0
    %1247 = vmatprep.subr.mxu0 0.0
    %1248 = vmatpush1.msra.mxu0 0.0
    %1249 = vmatprep.subr.mxu0 0.0
    %1250 = vmatpush1.msra.mxu0 0.0
    %1251 = vmatprep.mubr.f32.mxu0 0.0
    %1252 = vmatmul.mubr.f32.gmra.mrb[0].mxu0 %v191
    %v1253 = vpop.f32.mrb[0].mxu0
    %v1254 = vadd.f32 0.0, %v1253
    %v1255 = vpop.f32.mrb[0].mxu0
    %1256 = vdwg.mxu0
    %s1257 = scalar_lea.vmem [#allocation11], 40
    %v1258 = vld [vmem:[%s1257] sm:$0xff]
    %v1260 = vsel %vm285, %v1258, 0
    %1262 = vmatprep.subr.mxu0 0.0
    %1263 = vmatpush1.msra.mxu0 %v1254
    %1264 = vmatprep.subr.mxu0 0.0
    %1265 = vmatpush1.msra.mxu0 0.0
    %1266 = vmatprep.subr.mxu0 0.0
    %1267 = vmatpush1.msra.mxu0 0.0
    %1268 = vmatprep.subr.mxu0 0.0
    %1269 = vmatpush1.msra.mxu0 0.0
    %1270 = vmatprep.subr.mxu0 0.0
    %1271 = vmatpush1.msra.mxu0 0.0
    %1272 = vmatprep.subr.mxu0 0.0
    %1273 = vmatpush1.msra.mxu0 0.0
    %1274 = vmatprep.subr.mxu0 0.0
    %1275 = vmatpush1.msra.mxu0 0.0
    %1276 = vmatprep.subr.mxu0 0.0
    %1277 = vmatpush1.msra.mxu0 0.0
    %1278 = vmatprep.subr.mxu0 0.0
    %1279 = vmatpush1.msra.mxu0 0.0
    %1280 = vmatprep.subr.mxu0 0.0
    %1281 = vmatpush1.msra.mxu0 0.0
    %1282 = vmatprep.subr.mxu0 0.0
    %1283 = vmatpush1.msra.mxu0 0.0
    %1284 = vmatprep.subr.mxu0 0.0
    %1285 = vmatpush1.msra.mxu0 0.0
    %1286 = vmatprep.subr.mxu0 0.0
    %1287 = vmatpush1.msra.mxu0 0.0
    %1288 = vmatprep.subr.mxu0 0.0
    %1289 = vmatpush1.msra.mxu0 0.0
    %1290 = vmatprep.subr.mxu0 0.0
    %1291 = vmatpush1.msra.mxu0 0.0
    %1292 = vmatprep.subr.mxu0 0.0
    %1293 = vmatpush1.msra.mxu0 0.0
    %1294 = vmatprep.subr.mxu0 0.0
    %1295 = vmatpush1.msra.mxu0 0.0
    %1296 = vmatprep.subr.mxu0 0.0
    %1297 = vmatpush1.msra.mxu0 0.0
    %1298 = vmatprep.subr.mxu0 0.0
    %1299 = vmatpush1.msra.mxu0 0.0
    %1300 = vmatprep.subr.mxu0 0.0
    %1301 = vmatpush1.msra.mxu0 0.0
    %1302 = vmatprep.subr.mxu0 0.0
    %1303 = vmatpush1.msra.mxu0 0.0
    %1304 = vmatprep.subr.mxu0 0.0
    %1305 = vmatpush1.msra.mxu0 0.0
    %1306 = vmatprep.subr.mxu0 0.0
    %1307 = vmatpush1.msra.mxu0 0.0
    %1308 = vmatprep.subr.mxu0 0.0
    %1309 = vmatpush1.msra.mxu0 0.0
    %1310 = vmatprep.subr.mxu0 0.0
    %1311 = vmatpush1.msra.mxu0 0.0
    %1312 = vmatprep.subr.mxu0 0.0
    %1313 = vmatpush1.msra.mxu0 0.0
    %1314 = vmatprep.subr.mxu0 0.0
    %1315 = vmatpush1.msra.mxu0 0.0
    %1316 = vmatprep.subr.mxu0 0.0
    %1317 = vmatpush1.msra.mxu0 0.0
    %1318 = vmatprep.subr.mxu0 0.0
    %1319 = vmatpush1.msra.mxu0 0.0
    %1320 = vmatprep.subr.mxu0 0.0
    %1321 = vmatpush1.msra.mxu0 0.0
    %1322 = vmatprep.subr.mxu0 0.0
    %1323 = vmatpush1.msra.mxu0 0.0
    %1324 = vmatprep.subr.mxu0 0.0
    %1325 = vmatpush1.msra.mxu0 0.0
    %1326 = vmatprep.mubr.f32.mxu0 0.0
    %1327 = vmatmul.mubr.f32.gmra.mrb[0].mxu0 %v1260
    %v1328 = vpop.f32.mrb[0].mxu0
    %v1329 = vadd.f32 0.0, %v1328
    %v1330 = vpop.f32.mrb[0].mxu0
    %1331 = vdwg.mxu0
    %v1332 = vadd.f32 %v1169, %v1329
    %s1333 = scalar_lea.vmem [#allocation10], 768
    %v1334 = vld [vmem:[%s1333] sm:$0xff]
    %v1335 = vld [vmem:[%s1333 + $0x8] sm:$0xff]
    %v1336 = vld [vmem:[%s1333 + $0x10] sm:$0xff]
    %v1337 = vld [vmem:[%s1333 + $0x18] sm:$0xff]
    %v1338 = vld [vmem:[%s1333 + $0x20] sm:$0xff]
    %v1339 = vld [vmem:[%s1333 + $0x28] sm:$0xff]
    %v1340 = vld [vmem:[%s1333 + $0x30] sm:$0xff]
    %v1341 = vld [vmem:[%s1333 + $0x38] sm:$0xff]
    %v1342 = vld [vmem:[%s1333 + $0x40] sm:$0xff]
    %v1343 = vld [vmem:[%s1333 + $0x48] sm:$0xff]
    %v1344 = vld [vmem:[%s1333 + $0x50] sm:$0xff]
    %v1345 = vld [vmem:[%s1333 + $0x58] sm:$0xff]
    %v1346 = vld [vmem:[%s1333 + $0x60] sm:$0xff]
    %v1347 = vld [vmem:[%s1333 + $0x68] sm:$0xff]
    %v1348 = vld [vmem:[%s1333 + $0x70] sm:$0xff]
    %v1349 = vld [vmem:[%s1333 + $0x78] sm:$0xff]
    %1350 = vmatprep.subr.mxu0 0.0
    %1351 = vmatpush1.msra.mxu0 %v1334
    %1352 = vmatprep.subr.mxu0 0.0
    %1353 = vmatpush1.msra.mxu0 %v1335
    %1354 = vmatprep.subr.mxu0 0.0
    %1355 = vmatpush1.msra.mxu0 %v1336
    %1356 = vmatprep.subr.mxu0 0.0
    %1357 = vmatpush1.msra.mxu0 %v1337
    %1358 = vmatprep.subr.mxu0 0.0
    %1359 = vmatpush1.msra.mxu0 %v1338
    %1360 = vmatprep.subr.mxu0 0.0
    %1361 = vmatpush1.msra.mxu0 %v1339
    %1362 = vmatprep.subr.mxu0 0.0
    %1363 = vmatpush1.msra.mxu0 %v1340
    %1364 = vmatprep.subr.mxu0 0.0
    %1365 = vmatpush1.msra.mxu0 %v1341
    %1366 = vmatprep.subr.mxu0 0.0
    %1367 = vmatpush1.msra.mxu0 %v1342
    %1368 = vmatprep.subr.mxu0 0.0
    %1369 = vmatpush1.msra.mxu0 %v1343
    %1370 = vmatprep.subr.mxu0 0.0
    %1371 = vmatpush1.msra.mxu0 %v1344
    %1372 = vmatprep.subr.mxu0 0.0
    %1373 = vmatpush1.msra.mxu0 %v1345
    %1374 = vmatprep.subr.mxu0 0.0
    %1375 = vmatpush1.msra.mxu0 %v1346
    %1376 = vmatprep.subr.mxu0 0.0
    %1377 = vmatpush1.msra.mxu0 %v1347
    %1378 = vmatprep.subr.mxu0 0.0
    %1379 = vmatpush1.msra.mxu0 %v1348
    %1380 = vmatprep.subr.mxu0 0.0
    %1381 = vmatpush1.msra.mxu0 %v1349
    %1382 = vmatprep.subr.mxu0 0.0
    %1383 = vmatpush1.msra.mxu0 0.0
    %1384 = vmatprep.subr.mxu0 0.0
    %1385 = vmatpush1.msra.mxu0 0.0
    %1386 = vmatprep.subr.mxu0 0.0
    %1387 = vmatpush1.msra.mxu0 0.0
    %1388 = vmatprep.subr.mxu0 0.0
    %1389 = vmatpush1.msra.mxu0 0.0
    %1390 = vmatprep.subr.mxu0 0.0
    %1391 = vmatpush1.msra.mxu0 0.0
    %1392 = vmatprep.subr.mxu0 0.0
    %1393 = vmatpush1.msra.mxu0 0.0
    %1394 = vmatprep.subr.mxu0 0.0
    %1395 = vmatpush1.msra.mxu0 0.0
    %1396 = vmatprep.subr.mxu0 0.0
    %1397 = vmatpush1.msra.mxu0 0.0
    %1398 = vmatprep.subr.mxu0 0.0
    %1399 = vmatpush1.msra.mxu0 0.0
    %1400 = vmatprep.subr.mxu0 0.0
    %1401 = vmatpush1.msra.mxu0 0.0
    %1402 = vmatprep.subr.mxu0 0.0
    %1403 = vmatpush1.msra.mxu0 0.0
    %1404 = vmatprep.subr.mxu0 0.0
    %1405 = vmatpush1.msra.mxu0 0.0
    %1406 = vmatprep.subr.mxu0 0.0
    %1407 = vmatpush1.msra.mxu0 0.0
    %1408 = vmatprep.subr.mxu0 0.0
    %1409 = vmatpush1.msra.mxu0 0.0
    %1410 = vmatprep.subr.mxu0 0.0
    %1411 = vmatpush1.msra.mxu0 0.0
    %1412 = vmatprep.subr.mxu0 0.0
    %1413 = vmatpush1.msra.mxu0 0.0
    %1414 = vmatprep.mubr.f32.mxu0 0.0
    %1415 = vmatmul.mubr.f32.gmra.mrb[0].mxu0 %v191
    %v1416 = vpop.f32.mrb[0].mxu0
    %v1417 = vadd.f32 0.0, %v1416
    %v1418 = vpop.f32.mrb[0].mxu0
    %1419 = vdwg.mxu0
    %s1420 = scalar_lea.vmem [#allocation11], 48
    %v1421 = vld [vmem:[%s1420] sm:$0xff]
    %v1423 = vsel %vm285, %v1421, 0
    %1425 = vmatprep.subr.mxu0 0.0
    %1426 = vmatpush1.msra.mxu0 %v1417
    %1427 = vmatprep.subr.mxu0 0.0
    %1428 = vmatpush1.msra.mxu0 0.0
    %1429 = vmatprep.subr.mxu0 0.0
    %1430 = vmatpush1.msra.mxu0 0.0
    %1431 = vmatprep.subr.mxu0 0.0
    %1432 = vmatpush1.msra.mxu0 0.0
    %1433 = vmatprep.subr.mxu0 0.0
    %1434 = vmatpush1.msra.mxu0 0.0
    %1435 = vmatprep.subr.mxu0 0.0
    %1436 = vmatpush1.msra.mxu0 0.0
    %1437 = vmatprep.subr.mxu0 0.0
    %1438 = vmatpush1.msra.mxu0 0.0
    %1439 = vmatprep.subr.mxu0 0.0
    %1440 = vmatpush1.msra.mxu0 0.0
    %1441 = vmatprep.subr.mxu0 0.0
    %1442 = vmatpush1.msra.mxu0 0.0
    %1443 = vmatprep.subr.mxu0 0.0
    %1444 = vmatpush1.msra.mxu0 0.0
    %1445 = vmatprep.subr.mxu0 0.0
    %1446 = vmatpush1.msra.mxu0 0.0
    %1447 = vmatprep.subr.mxu0 0.0
    %1448 = vmatpush1.msra.mxu0 0.0
    %1449 = vmatprep.subr.mxu0 0.0
    %1450 = vmatpush1.msra.mxu0 0.0
    %1451 = vmatprep.subr.mxu0 0.0
    %1452 = vmatpush1.msra.mxu0 0.0
    %1453 = vmatprep.subr.mxu0 0.0
    %1454 = vmatpush1.msra.mxu0 0.0
    %1455 = vmatprep.subr.mxu0 0.0
    %1456 = vmatpush1.msra.mxu0 0.0
    %1457 = vmatprep.subr.mxu0 0.0
    %1458 = vmatpush1.msra.mxu0 0.0
    %1459 = vmatprep.subr.mxu0 0.0
    %1460 = vmatpush1.msra.mxu0 0.0
    %1461 = vmatprep.subr.mxu0 0.0
    %1462 = vmatpush1.msra.mxu0 0.0
    %1463 = vmatprep.subr.mxu0 0.0
    %1464 = vmatpush1.msra.mxu0 0.0
    %1465 = vmatprep.subr.mxu0 0.0
    %1466 = vmatpush1.msra.mxu0 0.0
    %1467 = vmatprep.subr.mxu0 0.0
    %1468 = vmatpush1.msra.mxu0 0.0
    %1469 = vmatprep.subr.mxu0 0.0
    %1470 = vmatpush1.msra.mxu0 0.0
    %1471 = vmatprep.subr.mxu0 0.0
    %1472 = vmatpush1.msra.mxu0 0.0
    %1473 = vmatprep.subr.mxu0 0.0
    %1474 = vmatpush1.msra.mxu0 0.0
    %1475 = vmatprep.subr.mxu0 0.0
    %1476 = vmatpush1.msra.mxu0 0.0
    %1477 = vmatprep.subr.mxu0 0.0
    %1478 = vmatpush1.msra.mxu0 0.0
    %1479 = vmatprep.subr.mxu0 0.0
    %1480 = vmatpush1.msra.mxu0 0.0
    %1481 = vmatprep.subr.mxu0 0.0
    %1482 = vmatpush1.msra.mxu0 0.0
    %1483 = vmatprep.subr.mxu0 0.0
    %1484 = vmatpush1.msra.mxu0 0.0
    %1485 = vmatprep.subr.mxu0 0.0
    %1486 = vmatpush1.msra.mxu0 0.0
    %1487 = vmatprep.subr.mxu0 0.0
    %1488 = vmatpush1.msra.mxu0 0.0
    %1489 = vmatprep.mubr.f32.mxu0 0.0
    %1490 = vmatmul.mubr.f32.gmra.mrb[0].mxu0 %v1423
    %v1491 = vpop.f32.mrb[0].mxu0
    %v1492 = vadd.f32 0.0, %v1491
    %v1493 = vpop.f32.mrb[0].mxu0
    %1494 = vdwg.mxu0
    %v1495 = vadd.f32 %v1332, %v1492
    %s1496 = scalar_lea.vmem [#allocation10], 896
    %v1497 = vld [vmem:[%s1496] sm:$0xff]
    %v1498 = vld [vmem:[%s1496 + $0x8] sm:$0xff]
    %v1499 = vld [vmem:[%s1496 + $0x10] sm:$0xff]
    %v1500 = vld [vmem:[%s1496 + $0x18] sm:$0xff]
    %v1501 = vld [vmem:[%s1496 + $0x20] sm:$0xff]
    %v1502 = vld [vmem:[%s1496 + $0x28] sm:$0xff]
    %v1503 = vld [vmem:[%s1496 + $0x30] sm:$0xff]
    %v1504 = vld [vmem:[%s1496 + $0x38] sm:$0xff]
    %v1505 = vld [vmem:[%s1496 + $0x40] sm:$0xff]
    %v1506 = vld [vmem:[%s1496 + $0x48] sm:$0xff]
    %v1507 = vld [vmem:[%s1496 + $0x50] sm:$0xff]
    %v1508 = vld [vmem:[%s1496 + $0x58] sm:$0xff]
    %v1509 = vld [vmem:[%s1496 + $0x60] sm:$0xff]
    %v1510 = vld [vmem:[%s1496 + $0x68] sm:$0xff]
    %v1511 = vld [vmem:[%s1496 + $0x70] sm:$0xff]
    %v1512 = vld [vmem:[%s1496 + $0x78] sm:$0xff]
    %1513 = vmatprep.subr.mxu0 0.0
    %1514 = vmatpush1.msra.mxu0 %v1497
    %1515 = vmatprep.subr.mxu0 0.0
    %1516 = vmatpush1.msra.mxu0 %v1498
    %1517 = vmatprep.subr.mxu0 0.0
    %1518 = vmatpush1.msra.mxu0 %v1499
    %1519 = vmatprep.subr.mxu0 0.0
    %1520 = vmatpush1.msra.mxu0 %v1500
    %1521 = vmatprep.subr.mxu0 0.0
    %1522 = vmatpush1.msra.mxu0 %v1501
    %1523 = vmatprep.subr.mxu0 0.0
    %1524 = vmatpush1.msra.mxu0 %v1502
    %1525 = vmatprep.subr.mxu0 0.0
    %1526 = vmatpush1.msra.mxu0 %v1503
    %1527 = vmatprep.subr.mxu0 0.0
    %1528 = vmatpush1.msra.mxu0 %v1504
    %1529 = vmatprep.subr.mxu0 0.0
    %1530 = vmatpush1.msra.mxu0 %v1505
    %1531 = vmatprep.subr.mxu0 0.0
    %1532 = vmatpush1.msra.mxu0 %v1506
    %1533 = vmatprep.subr.mxu0 0.0
    %1534 = vmatpush1.msra.mxu0 %v1507
    %1535 = vmatprep.subr.mxu0 0.0
    %1536 = vmatpush1.msra.mxu0 %v1508
    %1537 = vmatprep.subr.mxu0 0.0
    %1538 = vmatpush1.msra.mxu0 %v1509
    %1539 = vmatprep.subr.mxu0 0.0
    %1540 = vmatpush1.msra.mxu0 %v1510
    %1541 = vmatprep.subr.mxu0 0.0
    %1542 = vmatpush1.msra.mxu0 %v1511
    %1543 = vmatprep.subr.mxu0 0.0
    %1544 = vmatpush1.msra.mxu0 %v1512
    %1545 = vmatprep.subr.mxu0 0.0
    %1546 = vmatpush1.msra.mxu0 0.0
    %1547 = vmatprep.subr.mxu0 0.0
    %1548 = vmatpush1.msra.mxu0 0.0
    %1549 = vmatprep.subr.mxu0 0.0
    %1550 = vmatpush1.msra.mxu0 0.0
    %1551 = vmatprep.subr.mxu0 0.0
    %1552 = vmatpush1.msra.mxu0 0.0
    %1553 = vmatprep.subr.mxu0 0.0
    %1554 = vmatpush1.msra.mxu0 0.0
    %1555 = vmatprep.subr.mxu0 0.0
    %1556 = vmatpush1.msra.mxu0 0.0
    %1557 = vmatprep.subr.mxu0 0.0
    %1558 = vmatpush1.msra.mxu0 0.0
    %1559 = vmatprep.subr.mxu0 0.0
    %1560 = vmatpush1.msra.mxu0 0.0
    %1561 = vmatprep.subr.mxu0 0.0
    %1562 = vmatpush1.msra.mxu0 0.0
    %1563 = vmatprep.subr.mxu0 0.0
    %1564 = vmatpush1.msra.mxu0 0.0
    %1565 = vmatprep.subr.mxu0 0.0
    %1566 = vmatpush1.msra.mxu0 0.0
    %1567 = vmatprep.subr.mxu0 0.0
    %1568 = vmatpush1.msra.mxu0 0.0
    %1569 = vmatprep.subr.mxu0 0.0
    %1570 = vmatpush1.msra.mxu0 0.0
    %1571 = vmatprep.subr.mxu0 0.0
    %1572 = vmatpush1.msra.mxu0 0.0
    %1573 = vmatprep.subr.mxu0 0.0
    %1574 = vmatpush1.msra.mxu0 0.0
    %1575 = vmatprep.subr.mxu0 0.0
    %1576 = vmatpush1.msra.mxu0 0.0
    %1577 = vmatprep.mubr.f32.mxu0 0.0
    %1578 = vmatmul.mubr.f32.gmra.mrb[0].mxu0 %v191
    %v1579 = vpop.f32.mrb[0].mxu0
    %v1580 = vadd.f32 0.0, %v1579
    %v1581 = vpop.f32.mrb[0].mxu0
    %1582 = vdwg.mxu0
    %s1583 = scalar_lea.vmem [#allocation11], 56
    %v1584 = vld [vmem:[%s1583] sm:$0xff]
    %v1586 = vsel %vm285, %v1584, 0
    %1588 = vmatprep.subr.mxu0 0.0
    %1589 = vmatpush1.msra.mxu0 %v1580
    %1590 = vmatprep.subr.mxu0 0.0
    %1591 = vmatpush1.msra.mxu0 0.0
    %1592 = vmatprep.subr.mxu0 0.0
    %1593 = vmatpush1.msra.mxu0 0.0
    %1594 = vmatprep.subr.mxu0 0.0
    %1595 = vmatpush1.msra.mxu0 0.0
    %1596 = vmatprep.subr.mxu0 0.0
    %1597 = vmatpush1.msra.mxu0 0.0
    %1598 = vmatprep.subr.mxu0 0.0
    %1599 = vmatpush1.msra.mxu0 0.0
    %1600 = vmatprep.subr.mxu0 0.0
    %1601 = vmatpush1.msra.mxu0 0.0
    %1602 = vmatprep.subr.mxu0 0.0
    %1603 = vmatpush1.msra.mxu0 0.0
    %1604 = vmatprep.subr.mxu0 0.0
    %1605 = vmatpush1.msra.mxu0 0.0
    %1606 = vmatprep.subr.mxu0 0.0
    %1607 = vmatpush1.msra.mxu0 0.0
    %1608 = vmatprep.subr.mxu0 0.0
    %1609 = vmatpush1.msra.mxu0 0.0
    %1610 = vmatprep.subr.mxu0 0.0
    %1611 = vmatpush1.msra.mxu0 0.0
    %1612 = vmatprep.subr.mxu0 0.0
    %1613 = vmatpush1.msra.mxu0 0.0
    %1614 = vmatprep.subr.mxu0 0.0
    %1615 = vmatpush1.msra.mxu0 0.0
    %1616 = vmatprep.subr.mxu0 0.0
    %1617 = vmatpush1.msra.mxu0 0.0
    %1618 = vmatprep.subr.mxu0 0.0
    %1619 = vmatpush1.msra.mxu0 0.0
    %1620 = vmatprep.subr.mxu0 0.0
    %1621 = vmatpush1.msra.mxu0 0.0
    %1622 = vmatprep.subr.mxu0 0.0
    %1623 = vmatpush1.msra.mxu0 0.0
    %1624 = vmatprep.subr.mxu0 0.0
    %1625 = vmatpush1.msra.mxu0 0.0
    %1626 = vmatprep.subr.mxu0 0.0
    %1627 = vmatpush1.msra.mxu0 0.0
    %1628 = vmatprep.subr.mxu0 0.0
    %1629 = vmatpush1.msra.mxu0 0.0
    %1630 = vmatprep.subr.mxu0 0.0
    %1631 = vmatpush1.msra.mxu0 0.0
    %1632 = vmatprep.subr.mxu0 0.0
    %1633 = vmatpush1.msra.mxu0 0.0
    %1634 = vmatprep.subr.mxu0 0.0
    %1635 = vmatpush1.msra.mxu0 0.0
    %1636 = vmatprep.subr.mxu0 0.0
    %1637 = vmatpush1.msra.mxu0 0.0
    %1638 = vmatprep.subr.mxu0 0.0
    %1639 = vmatpush1.msra.mxu0 0.0
    %1640 = vmatprep.subr.mxu0 0.0
    %1641 = vmatpush1.msra.mxu0 0.0
    %1642 = vmatprep.subr.mxu0 0.0
    %1643 = vmatpush1.msra.mxu0 0.0
    %1644 = vmatprep.subr.mxu0 0.0
    %1645 = vmatpush1.msra.mxu0 0.0
    %1646 = vmatprep.subr.mxu0 0.0
    %1647 = vmatpush1.msra.mxu0 0.0
    %1648 = vmatprep.subr.mxu0 0.0
    %1649 = vmatpush1.msra.mxu0 0.0
    %1650 = vmatprep.subr.mxu0 0.0
    %1651 = vmatpush1.msra.mxu0 0.0
    %1652 = vmatprep.mubr.f32.mxu0 0.0
    %1653 = vmatmul.mubr.f32.gmra.mrb[0].mxu0 %v1586
    %v1654 = vpop.f32.mrb[0].mxu0
    %v1655 = vadd.f32 0.0, %v1654
    %v1656 = vpop.f32.mrb[0].mxu0
    %1657 = vdwg.mxu0
    %v1658 = vadd.f32 %v1495, %v1655
    %s1659 = scalar_lea.vmem [#allocation10], 1024
    %v1660 = vld [vmem:[%s1659] sm:$0xff]
    %v1661 = vld [vmem:[%s1659 + $0x8] sm:$0xff]
    %v1662 = vld [vmem:[%s1659 + $0x10] sm:$0xff]
    %v1663 = vld [vmem:[%s1659 + $0x18] sm:$0xff]
    %v1664 = vld [vmem:[%s1659 + $0x20] sm:$0xff]
    %v1665 = vld [vmem:[%s1659 + $0x28] sm:$0xff]
    %v1666 = vld [vmem:[%s1659 + $0x30] sm:$0xff]
    %v1667 = vld [vmem:[%s1659 + $0x38] sm:$0xff]
    %v1668 = vld [vmem:[%s1659 + $0x40] sm:$0xff]
    %v1669 = vld [vmem:[%s1659 + $0x48] sm:$0xff]
    %v1670 = vld [vmem:[%s1659 + $0x50] sm:$0xff]
    %v1671 = vld [vmem:[%s1659 + $0x58] sm:$0xff]
    %v1672 = vld [vmem:[%s1659 + $0x60] sm:$0xff]
    %v1673 = vld [vmem:[%s1659 + $0x68] sm:$0xff]
    %v1674 = vld [vmem:[%s1659 + $0x70] sm:$0xff]
    %v1675 = vld [vmem:[%s1659 + $0x78] sm:$0xff]
    %1676 = vmatprep.subr.mxu0 0.0
    %1677 = vmatpush1.msra.mxu0 %v1660
    %1678 = vmatprep.subr.mxu0 0.0
    %1679 = vmatpush1.msra.mxu0 %v1661
    %1680 = vmatprep.subr.mxu0 0.0
    %1681 = vmatpush1.msra.mxu0 %v1662
    %1682 = vmatprep.subr.mxu0 0.0
    %1683 = vmatpush1.msra.mxu0 %v1663
    %1684 = vmatprep.subr.mxu0 0.0
    %1685 = vmatpush1.msra.mxu0 %v1664
    %1686 = vmatprep.subr.mxu0 0.0
    %1687 = vmatpush1.msra.mxu0 %v1665
    %1688 = vmatprep.subr.mxu0 0.0
    %1689 = vmatpush1.msra.mxu0 %v1666
    %1690 = vmatprep.subr.mxu0 0.0
    %1691 = vmatpush1.msra.mxu0 %v1667
    %1692 = vmatprep.subr.mxu0 0.0
    %1693 = vmatpush1.msra.mxu0 %v1668
    %1694 = vmatprep.subr.mxu0 0.0
    %1695 = vmatpush1.msra.mxu0 %v1669
    %1696 = vmatprep.subr.mxu0 0.0
    %1697 = vmatpush1.msra.mxu0 %v1670
    %1698 = vmatprep.subr.mxu0 0.0
    %1699 = vmatpush1.msra.mxu0 %v1671
    %1700 = vmatprep.subr.mxu0 0.0
    %1701 = vmatpush1.msra.mxu0 %v1672
    %1702 = vmatprep.subr.mxu0 0.0
    %1703 = vmatpush1.msra.mxu0 %v1673
    %1704 = vmatprep.subr.mxu0 0.0
    %1705 = vmatpush1.msra.mxu0 %v1674
    %1706 = vmatprep.subr.mxu0 0.0
    %1707 = vmatpush1.msra.mxu0 %v1675
    %1708 = vmatprep.subr.mxu0 0.0
    %1709 = vmatpush1.msra.mxu0 0.0
    %1710 = vmatprep.subr.mxu0 0.0
    %1711 = vmatpush1.msra.mxu0 0.0
    %1712 = vmatprep.subr.mxu0 0.0
    %1713 = vmatpush1.msra.mxu0 0.0
    %1714 = vmatprep.subr.mxu0 0.0
    %1715 = vmatpush1.msra.mxu0 0.0
    %1716 = vmatprep.subr.mxu0 0.0
    %1717 = vmatpush1.msra.mxu0 0.0
    %1718 = vmatprep.subr.mxu0 0.0
    %1719 = vmatpush1.msra.mxu0 0.0
    %1720 = vmatprep.subr.mxu0 0.0
    %1721 = vmatpush1.msra.mxu0 0.0
    %1722 = vmatprep.subr.mxu0 0.0
    %1723 = vmatpush1.msra.mxu0 0.0
    %1724 = vmatprep.subr.mxu0 0.0
    %1725 = vmatpush1.msra.mxu0 0.0
    %1726 = vmatprep.subr.mxu0 0.0
    %1727 = vmatpush1.msra.mxu0 0.0
    %1728 = vmatprep.subr.mxu0 0.0
    %1729 = vmatpush1.msra.mxu0 0.0
    %1730 = vmatprep.subr.mxu0 0.0
    %1731 = vmatpush1.msra.mxu0 0.0
    %1732 = vmatprep.subr.mxu0 0.0
    %1733 = vmatpush1.msra.mxu0 0.0
    %1734 = vmatprep.subr.mxu0 0.0
    %1735 = vmatpush1.msra.mxu0 0.0
    %1736 = vmatprep.subr.mxu0 0.0
    %1737 = vmatpush1.msra.mxu0 0.0
    %1738 = vmatprep.subr.mxu0 0.0
    %1739 = vmatpush1.msra.mxu0 0.0
    %1740 = vmatprep.mubr.f32.mxu0 0.0
    %1741 = vmatmul.mubr.f32.gmra.mrb[0].mxu0 %v191
    %v1742 = vpop.f32.mrb[0].mxu0
    %v1743 = vadd.f32 0.0, %v1742
    %v1744 = vpop.f32.mrb[0].mxu0
    %1745 = vdwg.mxu0
    %s1746 = scalar_lea.vmem [#allocation11], 64
    %v1747 = vld [vmem:[%s1746] sm:$0xff]
    %v1749 = vsel %vm285, %v1747, 0
    %1751 = vmatprep.subr.mxu0 0.0
    %1752 = vmatpush1.msra.mxu0 %v1743
    %1753 = vmatprep.subr.mxu0 0.0
    %1754 = vmatpush1.msra.mxu0 0.0
    %1755 = vmatprep.subr.mxu0 0.0
    %1756 = vmatpush1.msra.mxu0 0.0
    %1757 = vmatprep.subr.mxu0 0.0
    %1758 = vmatpush1.msra.mxu0 0.0
    %1759 = vmatprep.subr.mxu0 0.0
    %1760 = vmatpush1.msra.mxu0 0.0
    %1761 = vmatprep.subr.mxu0 0.0
    %1762 = vmatpush1.msra.mxu0 0.0
    %1763 = vmatprep.subr.mxu0 0.0
    %1764 = vmatpush1.msra.mxu0 0.0
    %1765 = vmatprep.subr.mxu0 0.0
    %1766 = vmatpush1.msra.mxu0 0.0
    %1767 = vmatprep.subr.mxu0 0.0
    %1768 = vmatpush1.msra.mxu0 0.0
    %1769 = vmatprep.subr.mxu0 0.0
    %1770 = vmatpush1.msra.mxu0 0.0
    %1771 = vmatprep.subr.mxu0 0.0
    %1772 = vmatpush1.msra.mxu0 0.0
    %1773 = vmatprep.subr.mxu0 0.0
    %1774 = vmatpush1.msra.mxu0 0.0
    %1775 = vmatprep.subr.mxu0 0.0
    %1776 = vmatpush1.msra.mxu0 0.0
    %1777 = vmatprep.subr.mxu0 0.0
    %1778 = vmatpush1.msra.mxu0 0.0
    %1779 = vmatprep.subr.mxu0 0.0
    %1780 = vmatpush1.msra.mxu0 0.0
    %1781 = vmatprep.subr.mxu0 0.0
    %1782 = vmatpush1.msra.mxu0 0.0
    %1783 = vmatprep.subr.mxu0 0.0
    %1784 = vmatpush1.msra.mxu0 0.0
    %1785 = vmatprep.subr.mxu0 0.0
    %1786 = vmatpush1.msra.mxu0 0.0
    %1787 = vmatprep.subr.mxu0 0.0
    %1788 = vmatpush1.msra.mxu0 0.0
    %1789 = vmatprep.subr.mxu0 0.0
    %1790 = vmatpush1.msra.mxu0 0.0
    %1791 = vmatprep.subr.mxu0 0.0
    %1792 = vmatpush1.msra.mxu0 0.0
    %1793 = vmatprep.subr.mxu0 0.0
    %1794 = vmatpush1.msra.mxu0 0.0
    %1795 = vmatprep.subr.mxu0 0.0
    %1796 = vmatpush1.msra.mxu0 0.0
    %1797 = vmatprep.subr.mxu0 0.0
    %1798 = vmatpush1.msra.mxu0 0.0
    %1799 = vmatprep.subr.mxu0 0.0
    %1800 = vmatpush1.msra.mxu0 0.0
    %1801 = vmatprep.subr.mxu0 0.0
    %1802 = vmatpush1.msra.mxu0 0.0
    %1803 = vmatprep.subr.mxu0 0.0
    %1804 = vmatpush1.msra.mxu0 0.0
    %1805 = vmatprep.subr.mxu0 0.0
    %1806 = vmatpush1.msra.mxu0 0.0
    %1807 = vmatprep.subr.mxu0 0.0
    %1808 = vmatpush1.msra.mxu0 0.0
    %1809 = vmatprep.subr.mxu0 0.0
    %1810 = vmatpush1.msra.mxu0 0.0
    %1811 = vmatprep.subr.mxu0 0.0
    %1812 = vmatpush1.msra.mxu0 0.0
    %1813 = vmatprep.subr.mxu0 0.0
    %1814 = vmatpush1.msra.mxu0 0.0
    %1815 = vmatprep.mubr.f32.mxu0 0.0
    %1816 = vmatmul.mubr.f32.gmra.mrb[0].mxu0 %v1749
    %v1817 = vpop.f32.mrb[0].mxu0
    %v1818 = vadd.f32 0.0, %v1817
    %v1819 = vpop.f32.mrb[0].mxu0
    %1820 = vdwg.mxu0
    %v1821 = vadd.f32 %v1658, %v1818
    %1822 = vadd.xlane.f32.xlu0 %v1821
    %v1823 = vpop.xlane.xlu0 %1822
    %v1824 = vrcp.pop 128.0
    %v1825 = vmul.f32 %v1823, %v1824
    %v1826 = vsub.f32 %v1821, %v1825
    %v1827 = vmul.f32 %v1826, %v1826
    %1828 = vadd.xlane.f32.xlu0 %v1827
    %v1829 = vpop.xlane.xlu0 %1828
    %v1830 = vmul.f32 %v1829, %v1824
    %v1831 = vadd.f32 %v1830, 1e-05
    %v1832 = vrsqrt.pop %v1831
    %v1833 = vmul.f32 %v1826, %v1832
    %v1834 = vld [vmem:[#allocation13] sm:$0xff]
    %1836 = vset.pattern.permute.xlu0 0
    %1837 = vperm.xlu0 %1836, %v1834
    %v1838 = vpop.permute.xlu0 %1837
    %v1840 = vmul.f32 %v1833, %v1838
    %v1841 = vld [vmem:[#allocation14] sm:$0xff]
    %1843 = vset.pattern.permute.xlu0 0
    %1844 = vperm.xlu0 %1843, %v1841
    %v1845 = vpop.permute.xlu0 %1844
    %v1847 = vadd.f32 %v1840, %v1845
    %v1848 = vmax.f32 %v1847, 0.0
    %v1849 = vld [vmem:[#allocation16] sm:$0xff]
    %v1850 = vld [vmem:[#allocation16 + $0x8] sm:$0xff]
    %v1851 = vld [vmem:[#allocation16 + $0x10] sm:$0xff]
    %v1852 = vld [vmem:[#allocation16 + $0x18] sm:$0xff]
    %v1853 = vld [vmem:[#allocation16 + $0x20] sm:$0xff]
    %v1854 = vld [vmem:[#allocation16 + $0x28] sm:$0xff]
    %v1855 = vld [vmem:[#allocation16 + $0x30] sm:$0xff]
    %v1856 = vld [vmem:[#allocation16 + $0x38] sm:$0xff]
    %v1857 = vld [vmem:[#allocation16 + $0x40] sm:$0xff]
    %v1858 = vld [vmem:[#allocation16 + $0x48] sm:$0xff]
    %v1859 = vld [vmem:[#allocation16 + $0x50] sm:$0xff]
    %v1860 = vld [vmem:[#allocation16 + $0x58] sm:$0xff]
    %v1861 = vld [vmem:[#allocation16 + $0x60] sm:$0xff]
    %v1862 = vld [vmem:[#allocation16 + $0x68] sm:$0xff]
    %v1863 = vld [vmem:[#allocation16 + $0x70] sm:$0xff]
    %v1864 = vld [vmem:[#allocation16 + $0x78] sm:$0xff]
    %1865 = vmatprep.subr.mxu0 0.0
    %1866 = vmatpush1.msra.mxu0 %v1849
    %1867 = vmatprep.subr.mxu0 0.0
    %1868 = vmatpush1.msra.mxu0 %v1850
    %1869 = vmatprep.subr.mxu0 0.0
    %1870 = vmatpush1.msra.mxu0 %v1851
    %1871 = vmatprep.subr.mxu0 0.0
    %1872 = vmatpush1.msra.mxu0 %v1852
    %1873 = vmatprep.subr.mxu0 0.0
    %1874 = vmatpush1.msra.mxu0 %v1853
    %1875 = vmatprep.subr.mxu0 0.0
    %1876 = vmatpush1.msra.mxu0 %v1854
    %1877 = vmatprep.subr.mxu0 0.0
    %1878 = vmatpush1.msra.mxu0 %v1855
    %1879 = vmatprep.subr.mxu0 0.0
    %1880 = vmatpush1.msra.mxu0 %v1856
    %1881 = vmatprep.subr.mxu0 0.0
    %1882 = vmatpush1.msra.mxu0 %v1857
    %1883 = vmatprep.subr.mxu0 0.0
    %1884 = vmatpush1.msra.mxu0 %v1858
    %1885 = vmatprep.subr.mxu0 0.0
    %1886 = vmatpush1.msra.mxu0 %v1859
    %1887 = vmatprep.subr.mxu0 0.0
    %1888 = vmatpush1.msra.mxu0 %v1860
    %1889 = vmatprep.subr.mxu0 0.0
    %1890 = vmatpush1.msra.mxu0 %v1861
    %1891 = vmatprep.subr.mxu0 0.0
    %1892 = vmatpush1.msra.mxu0 %v1862
    %1893 = vmatprep.subr.mxu0 0.0
    %1894 = vmatpush1.msra.mxu0 %v1863
    %1895 = vmatprep.subr.mxu0 0.0
    %1896 = vmatpush1.msra.mxu0 %v1864
    %1897 = vmatprep.subr.mxu0 0.0
    %1898 = vmatpush1.msra.mxu0 0.0
    %1899 = vmatprep.subr.mxu0 0.0
    %1900 = vmatpush1.msra.mxu0 0.0
    %1901 = vmatprep.subr.mxu0 0.0
    %1902 = vmatpush1.msra.mxu0 0.0
    %1903 = vmatprep.subr.mxu0 0.0
    %1904 = vmatpush1.msra.mxu0 0.0
    %1905 = vmatprep.subr.mxu0 0.0
    %1906 = vmatpush1.msra.mxu0 0.0
    %1907 = vmatprep.subr.mxu0 0.0
    %1908 = vmatpush1.msra.mxu0 0.0
    %1909 = vmatprep.subr.mxu0 0.0
    %1910 = vmatpush1.msra.mxu0 0.0
    %1911 = vmatprep.subr.mxu0 0.0
    %1912 = vmatpush1.msra.mxu0 0.0
    %1913 = vmatprep.subr.mxu0 0.0
    %1914 = vmatpush1.msra.mxu0 0.0
    %1915 = vmatprep.subr.mxu0 0.0
    %1916 = vmatpush1.msra.mxu0 0.0
    %1917 = vmatprep.subr.mxu0 0.0
    %1918 = vmatpush1.msra.mxu0 0.0
    %1919 = vmatprep.subr.mxu0 0.0
    %1920 = vmatpush1.msra.mxu0 0.0
    %1921 = vmatprep.subr.mxu0 0.0
    %1922 = vmatpush1.msra.mxu0 0.0
    %1923 = vmatprep.subr.mxu0 0.0
    %1924 = vmatpush1.msra.mxu0 0.0
    %1925 = vmatprep.subr.mxu0 0.0
    %1926 = vmatpush1.msra.mxu0 0.0
    %1927 = vmatprep.subr.mxu0 0.0
    %1928 = vmatpush1.msra.mxu0 0.0
    %1929 = vmatprep.mubr.f32.mxu0 0.0
    %1930 = vmatmul.mubr.f32.gmra.mrb[0].mxu0 %v1848
    %v1931 = vpop.f32.mrb[0].mxu0
    %v1932 = vadd.f32 0.0, %v1931
    %v1933 = vpop.f32.mrb[0].mxu0
    %1934 = vdwg.mxu0
    %v1935 = vld [vmem:[#allocation17] sm:$0xff]
    %s1936 = scalar_lea.vmem [#allocation16], 128
    %v1937 = vld [vmem:[%s1936] sm:$0xff]
    %v1938 = vld [vmem:[%s1936 + $0x8] sm:$0xff]
    %v1939 = vld [vmem:[%s1936 + $0x10] sm:$0xff]
    %v1940 = vld [vmem:[%s1936 + $0x18] sm:$0xff]
    %v1941 = vld [vmem:[%s1936 + $0x20] sm:$0xff]
    %v1942 = vld [vmem:[%s1936 + $0x28] sm:$0xff]
    %v1943 = vld [vmem:[%s1936 + $0x30] sm:$0xff]
    %v1944 = vld [vmem:[%s1936 + $0x38] sm:$0xff]
    %v1945 = vld [vmem:[%s1936 + $0x40] sm:$0xff]
    %v1946 = vld [vmem:[%s1936 + $0x48] sm:$0xff]
    %v1947 = vld [vmem:[%s1936 + $0x50] sm:$0xff]
    %v1948 = vld [vmem:[%s1936 + $0x58] sm:$0xff]
    %v1949 = vld [vmem:[%s1936 + $0x60] sm:$0xff]
    %v1950 = vld [vmem:[%s1936 + $0x68] sm:$0xff]
    %v1951 = vld [vmem:[%s1936 + $0x70] sm:$0xff]
    %v1952 = vld [vmem:[%s1936 + $0x78] sm:$0xff]
    %1953 = vmatprep.subr.mxu0 0.0
    %1954 = vmatpush1.msra.mxu0 %v1937
    %1955 = vmatprep.subr.mxu0 0.0
    %1956 = vmatpush1.msra.mxu0 %v1938
    %1957 = vmatprep.subr.mxu0 0.0
    %1958 = vmatpush1.msra.mxu0 %v1939
    %1959 = vmatprep.subr.mxu0 0.0
    %1960 = vmatpush1.msra.mxu0 %v1940
    %1961 = vmatprep.subr.mxu0 0.0
    %1962 = vmatpush1.msra.mxu0 %v1941
    %1963 = vmatprep.subr.mxu0 0.0
    %1964 = vmatpush1.msra.mxu0 %v1942
    %1965 = vmatprep.subr.mxu0 0.0
    %1966 = vmatpush1.msra.mxu0 %v1943
    %1967 = vmatprep.subr.mxu0 0.0
    %1968 = vmatpush1.msra.mxu0 %v1944
    %1969 = vmatprep.subr.mxu0 0.0
    %1970 = vmatpush1.msra.mxu0 %v1945
    %1971 = vmatprep.subr.mxu0 0.0
    %1972 = vmatpush1.msra.mxu0 %v1946
    %1973 = vmatprep.subr.mxu0 0.0
    %1974 = vmatpush1.msra.mxu0 %v1947
    %1975 = vmatprep.subr.mxu0 0.0
    %1976 = vmatpush1.msra.mxu0 %v1948
    %1977 = vmatprep.subr.mxu0 0.0
    %1978 = vmatpush1.msra.mxu0 %v1949
    %1979 = vmatprep.subr.mxu0 0.0
    %1980 = vmatpush1.msra.mxu0 %v1950
    %1981 = vmatprep.subr.mxu0 0.0
    %1982 = vmatpush1.msra.mxu0 %v1951
    %1983 = vmatprep.subr.mxu0 0.0
    %1984 = vmatpush1.msra.mxu0 %v1952
    %1985 = vmatprep.subr.mxu0 0.0
    %1986 = vmatpush1.msra.mxu0 0.0
    %1987 = vmatprep.subr.mxu0 0.0
    %1988 = vmatpush1.msra.mxu0 0.0
    %1989 = vmatprep.subr.mxu0 0.0
    %1990 = vmatpush1.msra.mxu0 0.0
    %1991 = vmatprep.subr.mxu0 0.0
    %1992 = vmatpush1.msra.mxu0 0.0
    %1993 = vmatprep.subr.mxu0 0.0
    %1994 = vmatpush1.msra.mxu0 0.0
    %1995 = vmatprep.subr.mxu0 0.0
    %1996 = vmatpush1.msra.mxu0 0.0
    %1997 = vmatprep.subr.mxu0 0.0
    %1998 = vmatpush1.msra.mxu0 0.0
    %1999 = vmatprep.subr.mxu0 0.0
    %2000 = vmatpush1.msra.mxu0 0.0
    %2001 = vmatprep.subr.mxu0 0.0
    %2002 = vmatpush1.msra.mxu0 0.0
    %2003 = vmatprep.subr.mxu0 0.0
    %2004 = vmatpush1.msra.mxu0 0.0
    %2005 = vmatprep.subr.mxu0 0.0
    %2006 = vmatpush1.msra.mxu0 0.0
    %2007 = vmatprep.subr.mxu0 0.0
    %2008 = vmatpush1.msra.mxu0 0.0
    %2009 = vmatprep.subr.mxu0 0.0
    %2010 = vmatpush1.msra.mxu0 0.0
    %2011 = vmatprep.subr.mxu0 0.0
    %2012 = vmatpush1.msra.mxu0 0.0
    %2013 = vmatprep.subr.mxu0 0.0
    %2014 = vmatpush1.msra.mxu0 0.0
    %2015 = vmatprep.subr.mxu0 0.0
    %2016 = vmatpush1.msra.mxu0 0.0
    %2017 = vmatprep.mubr.f32.mxu0 0.0
    %2018 = vmatmul.mubr.f32.gmra.mrb[0].mxu0 %v1848
    %v2019 = vpop.f32.mrb[0].mxu0
    %v2020 = vadd.f32 0.0, %v2019
    %v2021 = vpop.f32.mrb[0].mxu0
    %2022 = vdwg.mxu0
    %s2023 = scalar_lea.vmem [#allocation17], 8
    %v2024 = vld [vmem:[%s2023] sm:$0xff]
    %v2026 = vsel %vm285, %v2024, 0
    %2028 = vmatprep.subr.mxu0 0.0
    %2029 = vmatpush1.msra.mxu0 %v2020
    %2030 = vmatprep.subr.mxu0 0.0
    %2031 = vmatpush1.msra.mxu0 0.0
    %2032 = vmatprep.subr.mxu0 0.0
    %2033 = vmatpush1.msra.mxu0 0.0
    %2034 = vmatprep.subr.mxu0 0.0
    %2035 = vmatpush1.msra.mxu0 0.0
    %2036 = vmatprep.subr.mxu0 0.0
    %2037 = vmatpush1.msra.mxu0 0.0
    %2038 = vmatprep.subr.mxu0 0.0
    %2039 = vmatpush1.msra.mxu0 0.0
    %2040 = vmatprep.subr.mxu0 0.0
    %2041 = vmatpush1.msra.mxu0 0.0
    %2042 = vmatprep.subr.mxu0 0.0
    %2043 = vmatpush1.msra.mxu0 0.0
    %2044 = vmatprep.subr.mxu0 0.0
    %2045 = vmatpush1.msra.mxu0 0.0
    %2046 = vmatprep.subr.mxu0 0.0
    %2047 = vmatpush1.msra.mxu0 0.0
    %2048 = vmatprep.subr.mxu0 0.0
    %2049 = vmatpush1.msra.mxu0 0.0
    %2050 = vmatprep.subr.mxu0 0.0
    %2051 = vmatpush1.msra.mxu0 0.0
    %2052 = vmatprep.subr.mxu0 0.0
    %2053 = vmatpush1.msra.mxu0 0.0
    %2054 = vmatprep.subr.mxu0 0.0
    %2055 = vmatpush1.msra.mxu0 0.0
    %2056 = vmatprep.subr.mxu0 0.0
    %2057 = vmatpush1.msra.mxu0 0.0
    %2058 = vmatprep.subr.mxu0 0.0
    %2059 = vmatpush1.msra.mxu0 0.0
    %2060 = vmatprep.subr.mxu0 0.0
    %2061 = vmatpush1.msra.mxu0 0.0
    %2062 = vmatprep.subr.mxu0 0.0
    %2063 = vmatpush1.msra.mxu0 0.0
    %2064 = vmatprep.subr.mxu0 0.0
    %2065 = vmatpush1.msra.mxu0 0.0
    %2066 = vmatprep.subr.mxu0 0.0
    %2067 = vmatpush1.msra.mxu0 0.0
    %2068 = vmatprep.subr.mxu0 0.0
    %2069 = vmatpush1.msra.mxu0 0.0
    %2070 = vmatprep.subr.mxu0 0.0
    %2071 = vmatpush1.msra.mxu0 0.0
    %2072 = vmatprep.subr.mxu0 0.0
    %2073 = vmatpush1.msra.mxu0 0.0
    %2074 = vmatprep.subr.mxu0 0.0
    %2075 = vmatpush1.msra.mxu0 0.0
    %2076 = vmatprep.subr.mxu0 0.0
    %2077 = vmatpush1.msra.mxu0 0.0
    %2078 = vmatprep.subr.mxu0 0.0
    %2079 = vmatpush1.msra.mxu0 0.0
    %2080 = vmatprep.subr.mxu0 0.0
    %2081 = vmatpush1.msra.mxu0 0.0
    %2082 = vmatprep.subr.mxu0 0.0
    %2083 = vmatpush1.msra.mxu0 0.0
    %2084 = vmatprep.subr.mxu0 0.0
    %2085 = vmatpush1.msra.mxu0 0.0
    %2086 = vmatprep.subr.mxu0 0.0
    %2087 = vmatpush1.msra.mxu0 0.0
    %2088 = vmatprep.subr.mxu0 0.0
    %2089 = vmatpush1.msra.mxu0 0.0
    %2090 = vmatprep.subr.mxu0 0.0
    %2091 = vmatpush1.msra.mxu0 0.0
    %2092 = vmatprep.mubr.f32.mxu0 0.0
    %2093 = vmatmul.mubr.f32.gmra.mrb[0].mxu0 %v2026
    %v2094 = vpop.f32.mrb[0].mxu0
    %v2095 = vadd.f32 0.0, %v2094
    %v2096 = vpop.f32.mrb[0].mxu0
    %2097 = vdwg.mxu0
    %v2099 = vsel %vm285, %v1935, 0
    %2101 = vmatprep.subr.mxu0 0.0
    %2102 = vmatpush1.msra.mxu0 %v1932
    %2103 = vmatprep.subr.mxu0 0.0
    %2104 = vmatpush1.msra.mxu0 0.0
    %2105 = vmatprep.subr.mxu0 0.0
    %2106 = vmatpush1.msra.mxu0 0.0
    %2107 = vmatprep.subr.mxu0 0.0
    %2108 = vmatpush1.msra.mxu0 0.0
    %2109 = vmatprep.subr.mxu0 0.0
    %2110 = vmatpush1.msra.mxu0 0.0
    %2111 = vmatprep.subr.mxu0 0.0
    %2112 = vmatpush1.msra.mxu0 0.0
    %2113 = vmatprep.subr.mxu0 0.0
    %2114 = vmatpush1.msra.mxu0 0.0
    %2115 = vmatprep.subr.mxu0 0.0
    %2116 = vmatpush1.msra.mxu0 0.0
    %2117 = vmatprep.subr.mxu0 0.0
    %2118 = vmatpush1.msra.mxu0 0.0
    %2119 = vmatprep.subr.mxu0 0.0
    %2120 = vmatpush1.msra.mxu0 0.0
    %2121 = vmatprep.subr.mxu0 0.0
    %2122 = vmatpush1.msra.mxu0 0.0
    %2123 = vmatprep.subr.mxu0 0.0
    %2124 = vmatpush1.msra.mxu0 0.0
    %2125 = vmatprep.subr.mxu0 0.0
    %2126 = vmatpush1.msra.mxu0 0.0
    %2127 = vmatprep.subr.mxu0 0.0
    %2128 = vmatpush1.msra.mxu0 0.0
    %2129 = vmatprep.subr.mxu0 0.0
    %2130 = vmatpush1.msra.mxu0 0.0
    %2131 = vmatprep.subr.mxu0 0.0
    %2132 = vmatpush1.msra.mxu0 0.0
    %2133 = vmatprep.subr.mxu0 0.0
    %2134 = vmatpush1.msra.mxu0 0.0
    %2135 = vmatprep.subr.mxu0 0.0
    %2136 = vmatpush1.msra.mxu0 0.0
    %2137 = vmatprep.subr.mxu0 0.0
    %2138 = vmatpush1.msra.mxu0 0.0
    %2139 = vmatprep.subr.mxu0 0.0
    %2140 = vmatpush1.msra.mxu0 0.0
    %2141 = vmatprep.subr.mxu0 0.0
    %2142 = vmatpush1.msra.mxu0 0.0
    %2143 = vmatprep.subr.mxu0 0.0
    %2144 = vmatpush1.msra.mxu0 0.0
    %2145 = vmatprep.subr.mxu0 0.0
    %2146 = vmatpush1.msra.mxu0 0.0
    %2147 = vmatprep.subr.mxu0 0.0
    %2148 = vmatpush1.msra.mxu0 0.0
    %2149 = vmatprep.subr.mxu0 0.0
    %2150 = vmatpush1.msra.mxu0 0.0
    %2151 = vmatprep.subr.mxu0 0.0
    %2152 = vmatpush1.msra.mxu0 0.0
    %2153 = vmatprep.subr.mxu0 0.0
    %2154 = vmatpush1.msra.mxu0 0.0
    %2155 = vmatprep.subr.mxu0 0.0
    %2156 = vmatpush1.msra.mxu0 0.0
    %2157 = vmatprep.subr.mxu0 0.0
    %2158 = vmatpush1.msra.mxu0 0.0
    %2159 = vmatprep.subr.mxu0 0.0
    %2160 = vmatpush1.msra.mxu0 0.0
    %2161 = vmatprep.subr.mxu0 0.0
    %2162 = vmatpush1.msra.mxu0 0.0
    %2163 = vmatprep.subr.mxu0 0.0
    %2164 = vmatpush1.msra.mxu0 0.0
    %2165 = vmatprep.mubr.f32.mxu0 0.0
    %2166 = vmatmul.mubr.f32.gmra.mrb[0].mxu0 %v2099
    %v2167 = vpop.f32.mrb[0].mxu0
    %v2168 = vadd.f32 %v2095, %v2167
    %v2169 = vpop.f32.mrb[0].mxu0
    %2170 = vdwg.mxu0
    %s2171 = scalar_lea.vmem [#allocation16], 256
    %v2172 = vld [vmem:[%s2171] sm:$0xff]
    %v2173 = vld [vmem:[%s2171 + $0x8] sm:$0xff]
    %v2174 = vld [vmem:[%s2171 + $0x10] sm:$0xff]
    %v2175 = vld [vmem:[%s2171 + $0x18] sm:$0xff]
    %v2176 = vld [vmem:[%s2171 + $0x20] sm:$0xff]
    %v2177 = vld [vmem:[%s2171 + $0x28] sm:$0xff]
    %v2178 = vld [vmem:[%s2171 + $0x30] sm:$0xff]
    %v2179 = vld [vmem:[%s2171 + $0x38] sm:$0xff]
    %v2180 = vld [vmem:[%s2171 + $0x40] sm:$0xff]
    %v2181 = vld [vmem:[%s2171 + $0x48] sm:$0xff]
    %v2182 = vld [vmem:[%s2171 + $0x50] sm:$0xff]
    %v2183 = vld [vmem:[%s2171 + $0x58] sm:$0xff]
    %v2184 = vld [vmem:[%s2171 + $0x60] sm:$0xff]
    %v2185 = vld [vmem:[%s2171 + $0x68] sm:$0xff]
    %v2186 = vld [vmem:[%s2171 + $0x70] sm:$0xff]
    %v2187 = vld [vmem:[%s2171 + $0x78] sm:$0xff]
    %2188 = vmatprep.subr.mxu0 0.0
    %2189 = vmatpush1.msra.mxu0 %v2172
    %2190 = vmatprep.subr.mxu0 0.0
    %2191 = vmatpush1.msra.mxu0 %v2173
    %2192 = vmatprep.subr.mxu0 0.0
    %2193 = vmatpush1.msra.mxu0 %v2174
    %2194 = vmatprep.subr.mxu0 0.0
    %2195 = vmatpush1.msra.mxu0 %v2175
    %2196 = vmatprep.subr.mxu0 0.0
    %2197 = vmatpush1.msra.mxu0 %v2176
    %2198 = vmatprep.subr.mxu0 0.0
    %2199 = vmatpush1.msra.mxu0 %v2177
    %2200 = vmatprep.subr.mxu0 0.0
    %2201 = vmatpush1.msra.mxu0 %v2178
    %2202 = vmatprep.subr.mxu0 0.0
    %2203 = vmatpush1.msra.mxu0 %v2179
    %2204 = vmatprep.subr.mxu0 0.0
    %2205 = vmatpush1.msra.mxu0 %v2180
    %2206 = vmatprep.subr.mxu0 0.0
    %2207 = vmatpush1.msra.mxu0 %v2181
    %2208 = vmatprep.subr.mxu0 0.0
    %2209 = vmatpush1.msra.mxu0 %v2182
    %2210 = vmatprep.subr.mxu0 0.0
    %2211 = vmatpush1.msra.mxu0 %v2183
    %2212 = vmatprep.subr.mxu0 0.0
    %2213 = vmatpush1.msra.mxu0 %v2184
    %2214 = vmatprep.subr.mxu0 0.0
    %2215 = vmatpush1.msra.mxu0 %v2185
    %2216 = vmatprep.subr.mxu0 0.0
    %2217 = vmatpush1.msra.mxu0 %v2186
    %2218 = vmatprep.subr.mxu0 0.0
    %2219 = vmatpush1.msra.mxu0 %v2187
    %2220 = vmatprep.subr.mxu0 0.0
    %2221 = vmatpush1.msra.mxu0 0.0
    %2222 = vmatprep.subr.mxu0 0.0
    %2223 = vmatpush1.msra.mxu0 0.0
    %2224 = vmatprep.subr.mxu0 0.0
    %2225 = vmatpush1.msra.mxu0 0.0
    %2226 = vmatprep.subr.mxu0 0.0
    %2227 = vmatpush1.msra.mxu0 0.0
    %2228 = vmatprep.subr.mxu0 0.0
    %2229 = vmatpush1.msra.mxu0 0.0
    %2230 = vmatprep.subr.mxu0 0.0
    %2231 = vmatpush1.msra.mxu0 0.0
    %2232 = vmatprep.subr.mxu0 0.0
    %2233 = vmatpush1.msra.mxu0 0.0
    %2234 = vmatprep.subr.mxu0 0.0
    %2235 = vmatpush1.msra.mxu0 0.0
    %2236 = vmatprep.subr.mxu0 0.0
    %2237 = vmatpush1.msra.mxu0 0.0
    %2238 = vmatprep.subr.mxu0 0.0
    %2239 = vmatpush1.msra.mxu0 0.0
    %2240 = vmatprep.subr.mxu0 0.0
    %2241 = vmatpush1.msra.mxu0 0.0
    %2242 = vmatprep.subr.mxu0 0.0
    %2243 = vmatpush1.msra.mxu0 0.0
    %2244 = vmatprep.subr.mxu0 0.0
    %2245 = vmatpush1.msra.mxu0 0.0
    %2246 = vmatprep.subr.mxu0 0.0
    %2247 = vmatpush1.msra.mxu0 0.0
    %2248 = vmatprep.subr.mxu0 0.0
    %2249 = vmatpush1.msra.mxu0 0.0
    %2250 = vmatprep.subr.mxu0 0.0
    %2251 = vmatpush1.msra.mxu0 0.0
    %2252 = vmatprep.mubr.f32.mxu0 0.0
    %2253 = vmatmul.mubr.f32.gmra.mrb[0].mxu0 %v1848
    %v2254 = vpop.f32.mrb[0].mxu0
    %v2255 = vadd.f32 0.0, %v2254
    %v2256 = vpop.f32.mrb[0].mxu0
    %2257 = vdwg.mxu0
    %s2258 = scalar_lea.vmem [#allocation17], 16
    %v2259 = vld [vmem:[%s2258] sm:$0xff]
    %v2261 = vsel %vm285, %v2259, 0
    %2263 = vmatprep.subr.mxu0 0.0
    %2264 = vmatpush1.msra.mxu0 %v2255
    %2265 = vmatprep.subr.mxu0 0.0
    %2266 = vmatpush1.msra.mxu0 0.0
    %2267 = vmatprep.subr.mxu0 0.0
    %2268 = vmatpush1.msra.mxu0 0.0
    %2269 = vmatprep.subr.mxu0 0.0
    %2270 = vmatpush1.msra.mxu0 0.0
    %2271 = vmatprep.subr.mxu0 0.0
    %2272 = vmatpush1.msra.mxu0 0.0
    %2273 = vmatprep.subr.mxu0 0.0
    %2274 = vmatpush1.msra.mxu0 0.0
    %2275 = vmatprep.subr.mxu0 0.0
    %2276 = vmatpush1.msra.mxu0 0.0
    %2277 = vmatprep.subr.mxu0 0.0
    %2278 = vmatpush1.msra.mxu0 0.0
    %2279 = vmatprep.subr.mxu0 0.0
    %2280 = vmatpush1.msra.mxu0 0.0
    %2281 = vmatprep.subr.mxu0 0.0
    %2282 = vmatpush1.msra.mxu0 0.0
    %2283 = vmatprep.subr.mxu0 0.0
    %2284 = vmatpush1.msra.mxu0 0.0
    %2285 = vmatprep.subr.mxu0 0.0
    %2286 = vmatpush1.msra.mxu0 0.0
    %2287 = vmatprep.subr.mxu0 0.0
    %2288 = vmatpush1.msra.mxu0 0.0
    %2289 = vmatprep.subr.mxu0 0.0
    %2290 = vmatpush1.msra.mxu0 0.0
    %2291 = vmatprep.subr.mxu0 0.0
    %2292 = vmatpush1.msra.mxu0 0.0
    %2293 = vmatprep.subr.mxu0 0.0
    %2294 = vmatpush1.msra.mxu0 0.0
    %2295 = vmatprep.subr.mxu0 0.0
    %2296 = vmatpush1.msra.mxu0 0.0
    %2297 = vmatprep.subr.mxu0 0.0
    %2298 = vmatpush1.msra.mxu0 0.0
    %2299 = vmatprep.subr.mxu0 0.0
    %2300 = vmatpush1.msra.mxu0 0.0
    %2301 = vmatprep.subr.mxu0 0.0
    %2302 = vmatpush1.msra.mxu0 0.0
    %2303 = vmatprep.subr.mxu0 0.0
    %2304 = vmatpush1.msra.mxu0 0.0
    %2305 = vmatprep.subr.mxu0 0.0
    %2306 = vmatpush1.msra.mxu0 0.0
    %2307 = vmatprep.subr.mxu0 0.0
    %2308 = vmatpush1.msra.mxu0 0.0
    %2309 = vmatprep.subr.mxu0 0.0
    %2310 = vmatpush1.msra.mxu0 0.0
    %2311 = vmatprep.subr.mxu0 0.0
    %2312 = vmatpush1.msra.mxu0 0.0
    %2313 = vmatprep.subr.mxu0 0.0
    %2314 = vmatpush1.msra.mxu0 0.0
    %2315 = vmatprep.subr.mxu0 0.0
    %2316 = vmatpush1.msra.mxu0 0.0
    %2317 = vmatprep.subr.mxu0 0.0
    %2318 = vmatpush1.msra.mxu0 0.0
    %2319 = vmatprep.subr.mxu0 0.0
    %2320 = vmatpush1.msra.mxu0 0.0
    %2321 = vmatprep.subr.mxu0 0.0
    %2322 = vmatpush1.msra.mxu0 0.0
    %2323 = vmatprep.subr.mxu0 0.0
    %2324 = vmatpush1.msra.mxu0 0.0
    %2325 = vmatprep.subr.mxu0 0.0
    %2326 = vmatpush1.msra.mxu0 0.0
    %2327 = vmatprep.mubr.f32.mxu0 0.0
    %2328 = vmatmul.mubr.f32.gmra.mrb[0].mxu0 %v2261
    %v2329 = vpop.f32.mrb[0].mxu0
    %v2330 = vadd.f32 0.0, %v2329
    %v2331 = vpop.f32.mrb[0].mxu0
    %2332 = vdwg.mxu0
    %v2333 = vadd.f32 %v2168, %v2330
    %s2334 = scalar_lea.vmem [#allocation16], 384
    %v2335 = vld [vmem:[%s2334] sm:$0xff]
    %v2336 = vld [vmem:[%s2334 + $0x8] sm:$0xff]
    %v2337 = vld [vmem:[%s2334 + $0x10] sm:$0xff]
    %v2338 = vld [vmem:[%s2334 + $0x18] sm:$0xff]
    %v2339 = vld [vmem:[%s2334 + $0x20] sm:$0xff]
    %v2340 = vld [vmem:[%s2334 + $0x28] sm:$0xff]
    %v2341 = vld [vmem:[%s2334 + $0x30] sm:$0xff]
    %v2342 = vld [vmem:[%s2334 + $0x38] sm:$0xff]
    %v2343 = vld [vmem:[%s2334 + $0x40] sm:$0xff]
    %v2344 = vld [vmem:[%s2334 + $0x48] sm:$0xff]
    %v2345 = vld [vmem:[%s2334 + $0x50] sm:$0xff]
    %v2346 = vld [vmem:[%s2334 + $0x58] sm:$0xff]
    %v2347 = vld [vmem:[%s2334 + $0x60] sm:$0xff]
    %v2348 = vld [vmem:[%s2334 + $0x68] sm:$0xff]
    %v2349 = vld [vmem:[%s2334 + $0x70] sm:$0xff]
    %v2350 = vld [vmem:[%s2334 + $0x78] sm:$0xff]
    %2351 = vmatprep.subr.mxu0 0.0
    %2352 = vmatpush1.msra.mxu0 %v2335
    %2353 = vmatprep.subr.mxu0 0.0
    %2354 = vmatpush1.msra.mxu0 %v2336
    %2355 = vmatprep.subr.mxu0 0.0
    %2356 = vmatpush1.msra.mxu0 %v2337
    %2357 = vmatprep.subr.mxu0 0.0
    %2358 = vmatpush1.msra.mxu0 %v2338
    %2359 = vmatprep.subr.mxu0 0.0
    %2360 = vmatpush1.msra.mxu0 %v2339
    %2361 = vmatprep.subr.mxu0 0.0
    %2362 = vmatpush1.msra.mxu0 %v2340
    %2363 = vmatprep.subr.mxu0 0.0
    %2364 = vmatpush1.msra.mxu0 %v2341
    %2365 = vmatprep.subr.mxu0 0.0
    %2366 = vmatpush1.msra.mxu0 %v2342
    %2367 = vmatprep.subr.mxu0 0.0
    %2368 = vmatpush1.msra.mxu0 %v2343
    %2369 = vmatprep.subr.mxu0 0.0
    %2370 = vmatpush1.msra.mxu0 %v2344
    %2371 = vmatprep.subr.mxu0 0.0
    %2372 = vmatpush1.msra.mxu0 %v2345
    %2373 = vmatprep.subr.mxu0 0.0
    %2374 = vmatpush1.msra.mxu0 %v2346
    %2375 = vmatprep.subr.mxu0 0.0
    %2376 = vmatpush1.msra.mxu0 %v2347
    %2377 = vmatprep.subr.mxu0 0.0
    %2378 = vmatpush1.msra.mxu0 %v2348
    %2379 = vmatprep.subr.mxu0 0.0
    %2380 = vmatpush1.msra.mxu0 %v2349
    %2381 = vmatprep.subr.mxu0 0.0
    %2382 = vmatpush1.msra.mxu0 %v2350
    %2383 = vmatprep.subr.mxu0 0.0
    %2384 = vmatpush1.msra.mxu0 0.0
    %2385 = vmatprep.subr.mxu0 0.0
    %2386 = vmatpush1.msra.mxu0 0.0
    %2387 = vmatprep.subr.mxu0 0.0
    %2388 = vmatpush1.msra.mxu0 0.0
    %2389 = vmatprep.subr.mxu0 0.0
    %2390 = vmatpush1.msra.mxu0 0.0
    %2391 = vmatprep.subr.mxu0 0.0
    %2392 = vmatpush1.msra.mxu0 0.0
    %2393 = vmatprep.subr.mxu0 0.0
    %2394 = vmatpush1.msra.mxu0 0.0
    %2395 = vmatprep.subr.mxu0 0.0
    %2396 = vmatpush1.msra.mxu0 0.0
    %2397 = vmatprep.subr.mxu0 0.0
    %2398 = vmatpush1.msra.mxu0 0.0
    %2399 = vmatprep.subr.mxu0 0.0
    %2400 = vmatpush1.msra.mxu0 0.0
    %2401 = vmatprep.subr.mxu0 0.0
    %2402 = vmatpush1.msra.mxu0 0.0
    %2403 = vmatprep.subr.mxu0 0.0
    %2404 = vmatpush1.msra.mxu0 0.0
    %2405 = vmatprep.subr.mxu0 0.0
    %2406 = vmatpush1.msra.mxu0 0.0
    %2407 = vmatprep.subr.mxu0 0.0
    %2408 = vmatpush1.msra.mxu0 0.0
    %2409 = vmatprep.subr.mxu0 0.0
    %2410 = vmatpush1.msra.mxu0 0.0
    %2411 = vmatprep.subr.mxu0 0.0
    %2412 = vmatpush1.msra.mxu0 0.0
    %2413 = vmatprep.subr.mxu0 0.0
    %2414 = vmatpush1.msra.mxu0 0.0
    %2415 = vmatprep.mubr.f32.mxu0 0.0
    %2416 = vmatmul.mubr.f32.gmra.mrb[0].mxu0 %v1848
    %v2417 = vpop.f32.mrb[0].mxu0
    %v2418 = vadd.f32 0.0, %v2417
    %v2419 = vpop.f32.mrb[0].mxu0
    %2420 = vdwg.mxu0
    %s2421 = scalar_lea.vmem [#allocation17], 24
    %v2422 = vld [vmem:[%s2421] sm:$0xff]
    %v2424 = vsel %vm285, %v2422, 0
    %2426 = vmatprep.subr.mxu0 0.0
    %2427 = vmatpush1.msra.mxu0 %v2418
    %2428 = vmatprep.subr.mxu0 0.0
    %2429 = vmatpush1.msra.mxu0 0.0
    %2430 = vmatprep.subr.mxu0 0.0
    %2431 = vmatpush1.msra.mxu0 0.0
    %2432 = vmatprep.subr.mxu0 0.0
    %2433 = vmatpush1.msra.mxu0 0.0
    %2434 = vmatprep.subr.mxu0 0.0
    %2435 = vmatpush1.msra.mxu0 0.0
    %2436 = vmatprep.subr.mxu0 0.0
    %2437 = vmatpush1.msra.mxu0 0.0
    %2438 = vmatprep.subr.mxu0 0.0
    %2439 = vmatpush1.msra.mxu0 0.0
    %2440 = vmatprep.subr.mxu0 0.0
    %2441 = vmatpush1.msra.mxu0 0.0
    %2442 = vmatprep.subr.mxu0 0.0
    %2443 = vmatpush1.msra.mxu0 0.0
    %2444 = vmatprep.subr.mxu0 0.0
    %2445 = vmatpush1.msra.mxu0 0.0
    %2446 = vmatprep.subr.mxu0 0.0
    %2447 = vmatpush1.msra.mxu0 0.0
    %2448 = vmatprep.subr.mxu0 0.0
    %2449 = vmatpush1.msra.mxu0 0.0
    %2450 = vmatprep.subr.mxu0 0.0
    %2451 = vmatpush1.msra.mxu0 0.0
    %2452 = vmatprep.subr.mxu0 0.0
    %2453 = vmatpush1.msra.mxu0 0.0
    %2454 = vmatprep.subr.mxu0 0.0
    %2455 = vmatpush1.msra.mxu0 0.0
    %2456 = vmatprep.subr.mxu0 0.0
    %2457 = vmatpush1.msra.mxu0 0.0
    %2458 = vmatprep.subr.mxu0 0.0
    %2459 = vmatpush1.msra.mxu0 0.0
    %2460 = vmatprep.subr.mxu0 0.0
    %2461 = vmatpush1.msra.mxu0 0.0
    %2462 = vmatprep.subr.mxu0 0.0
    %2463 = vmatpush1.msra.mxu0 0.0
    %2464 = vmatprep.subr.mxu0 0.0
    %2465 = vmatpush1.msra.mxu0 0.0
    %2466 = vmatprep.subr.mxu0 0.0
    %2467 = vmatpush1.msra.mxu0 0.0
    %2468 = vmatprep.subr.mxu0 0.0
    %2469 = vmatpush1.msra.mxu0 0.0
    %2470 = vmatprep.subr.mxu0 0.0
    %2471 = vmatpush1.msra.mxu0 0.0
    %2472 = vmatprep.subr.mxu0 0.0
    %2473 = vmatpush1.msra.mxu0 0.0
    %2474 = vmatprep.subr.mxu0 0.0
    %2475 = vmatpush1.msra.mxu0 0.0
    %2476 = vmatprep.subr.mxu0 0.0
    %2477 = vmatpush1.msra.mxu0 0.0
    %2478 = vmatprep.subr.mxu0 0.0
    %2479 = vmatpush1.msra.mxu0 0.0
    %2480 = vmatprep.subr.mxu0 0.0
    %2481 = vmatpush1.msra.mxu0 0.0
    %2482 = vmatprep.subr.mxu0 0.0
    %2483 = vmatpush1.msra.mxu0 0.0
    %2484 = vmatprep.subr.mxu0 0.0
    %2485 = vmatpush1.msra.mxu0 0.0
    %2486 = vmatprep.subr.mxu0 0.0
    %2487 = vmatpush1.msra.mxu0 0.0
    %2488 = vmatprep.subr.mxu0 0.0
    %2489 = vmatpush1.msra.mxu0 0.0
    %2490 = vmatprep.mubr.f32.mxu0 0.0
    %2491 = vmatmul.mubr.f32.gmra.mrb[0].mxu0 %v2424
    %v2492 = vpop.f32.mrb[0].mxu0
    %v2493 = vadd.f32 0.0, %v2492
    %v2494 = vpop.f32.mrb[0].mxu0
    %2495 = vdwg.mxu0
    %v2496 = vadd.f32 %v2333, %v2493
    %s2497 = scalar_lea.vmem [#allocation16], 512
    %v2498 = vld [vmem:[%s2497] sm:$0xff]
    %v2499 = vld [vmem:[%s2497 + $0x8] sm:$0xff]
    %v2500 = vld [vmem:[%s2497 + $0x10] sm:$0xff]
    %v2501 = vld [vmem:[%s2497 + $0x18] sm:$0xff]
    %v2502 = vld [vmem:[%s2497 + $0x20] sm:$0xff]
    %v2503 = vld [vmem:[%s2497 + $0x28] sm:$0xff]
    %v2504 = vld [vmem:[%s2497 + $0x30] sm:$0xff]
    %v2505 = vld [vmem:[%s2497 + $0x38] sm:$0xff]
    %v2506 = vld [vmem:[%s2497 + $0x40] sm:$0xff]
    %v2507 = vld [vmem:[%s2497 + $0x48] sm:$0xff]
    %v2508 = vld [vmem:[%s2497 + $0x50] sm:$0xff]
    %v2509 = vld [vmem:[%s2497 + $0x58] sm:$0xff]
    %v2510 = vld [vmem:[%s2497 + $0x60] sm:$0xff]
    %v2511 = vld [vmem:[%s2497 + $0x68] sm:$0xff]
    %v2512 = vld [vmem:[%s2497 + $0x70] sm:$0xff]
    %v2513 = vld [vmem:[%s2497 + $0x78] sm:$0xff]
    %2514 = vmatprep.subr.mxu0 0.0
    %2515 = vmatpush1.msra.mxu0 %v2498
    %2516 = vmatprep.subr.mxu0 0.0
    %2517 = vmatpush1.msra.mxu0 %v2499
    %2518 = vmatprep.subr.mxu0 0.0
    %2519 = vmatpush1.msra.mxu0 %v2500
    %2520 = vmatprep.subr.mxu0 0.0
    %2521 = vmatpush1.msra.mxu0 %v2501
    %2522 = vmatprep.subr.mxu0 0.0
    %2523 = vmatpush1.msra.mxu0 %v2502
    %2524 = vmatprep.subr.mxu0 0.0
    %2525 = vmatpush1.msra.mxu0 %v2503
    %2526 = vmatprep.subr.mxu0 0.0
    %2527 = vmatpush1.msra.mxu0 %v2504
    %2528 = vmatprep.subr.mxu0 0.0
    %2529 = vmatpush1.msra.mxu0 %v2505
    %2530 = vmatprep.subr.mxu0 0.0
    %2531 = vmatpush1.msra.mxu0 %v2506
    %2532 = vmatprep.subr.mxu0 0.0
    %2533 = vmatpush1.msra.mxu0 %v2507
    %2534 = vmatprep.subr.mxu0 0.0
    %2535 = vmatpush1.msra.mxu0 %v2508
    %2536 = vmatprep.subr.mxu0 0.0
    %2537 = vmatpush1.msra.mxu0 %v2509
    %2538 = vmatprep.subr.mxu0 0.0
    %2539 = vmatpush1.msra.mxu0 %v2510
    %2540 = vmatprep.subr.mxu0 0.0
    %2541 = vmatpush1.msra.mxu0 %v2511
    %2542 = vmatprep.subr.mxu0 0.0
    %2543 = vmatpush1.msra.mxu0 %v2512
    %2544 = vmatprep.subr.mxu0 0.0
    %2545 = vmatpush1.msra.mxu0 %v2513
    %2546 = vmatprep.subr.mxu0 0.0
    %2547 = vmatpush1.msra.mxu0 0.0
    %2548 = vmatprep.subr.mxu0 0.0
    %2549 = vmatpush1.msra.mxu0 0.0
    %2550 = vmatprep.subr.mxu0 0.0
    %2551 = vmatpush1.msra.mxu0 0.0
    %2552 = vmatprep.subr.mxu0 0.0
    %2553 = vmatpush1.msra.mxu0 0.0
    %2554 = vmatprep.subr.mxu0 0.0
    %2555 = vmatpush1.msra.mxu0 0.0
    %2556 = vmatprep.subr.mxu0 0.0
    %2557 = vmatpush1.msra.mxu0 0.0
    %2558 = vmatprep.subr.mxu0 0.0
    %2559 = vmatpush1.msra.mxu0 0.0
    %2560 = vmatprep.subr.mxu0 0.0
    %2561 = vmatpush1.msra.mxu0 0.0
    %2562 = vmatprep.subr.mxu0 0.0
    %2563 = vmatpush1.msra.mxu0 0.0
    %2564 = vmatprep.subr.mxu0 0.0
    %2565 = vmatpush1.msra.mxu0 0.0
    %2566 = vmatprep.subr.mxu0 0.0
    %2567 = vmatpush1.msra.mxu0 0.0
    %2568 = vmatprep.subr.mxu0 0.0
    %2569 = vmatpush1.msra.mxu0 0.0
    %2570 = vmatprep.subr.mxu0 0.0
    %2571 = vmatpush1.msra.mxu0 0.0
    %2572 = vmatprep.subr.mxu0 0.0
    %2573 = vmatpush1.msra.mxu0 0.0
    %2574 = vmatprep.subr.mxu0 0.0
    %2575 = vmatpush1.msra.mxu0 0.0
    %2576 = vmatprep.subr.mxu0 0.0
    %2577 = vmatpush1.msra.mxu0 0.0
    %2578 = vmatprep.mubr.f32.mxu0 0.0
    %2579 = vmatmul.mubr.f32.gmra.mrb[0].mxu0 %v1848
    %v2580 = vpop.f32.mrb[0].mxu0
    %v2581 = vadd.f32 0.0, %v2580
    %v2582 = vpop.f32.mrb[0].mxu0
    %2583 = vdwg.mxu0
    %s2584 = scalar_lea.vmem [#allocation17], 32
    %v2585 = vld [vmem:[%s2584] sm:$0xff]
    %v2587 = vsel %vm285, %v2585, 0
    %2589 = vmatprep.subr.mxu0 0.0
    %2590 = vmatpush1.msra.mxu0 %v2581
    %2591 = vmatprep.subr.mxu0 0.0
    %2592 = vmatpush1.msra.mxu0 0.0
    %2593 = vmatprep.subr.mxu0 0.0
    %2594 = vmatpush1.msra.mxu0 0.0
    %2595 = vmatprep.subr.mxu0 0.0
    %2596 = vmatpush1.msra.mxu0 0.0
    %2597 = vmatprep.subr.mxu0 0.0
    %2598 = vmatpush1.msra.mxu0 0.0
    %2599 = vmatprep.subr.mxu0 0.0
    %2600 = vmatpush1.msra.mxu0 0.0
    %2601 = vmatprep.subr.mxu0 0.0
    %2602 = vmatpush1.msra.mxu0 0.0
    %2603 = vmatprep.subr.mxu0 0.0
    %2604 = vmatpush1.msra.mxu0 0.0
    %2605 = vmatprep.subr.mxu0 0.0
    %2606 = vmatpush1.msra.mxu0 0.0
    %2607 = vmatprep.subr.mxu0 0.0
    %2608 = vmatpush1.msra.mxu0 0.0
    %2609 = vmatprep.subr.mxu0 0.0
    %2610 = vmatpush1.msra.mxu0 0.0
    %2611 = vmatprep.subr.mxu0 0.0
    %2612 = vmatpush1.msra.mxu0 0.0
    %2613 = vmatprep.subr.mxu0 0.0
    %2614 = vmatpush1.msra.mxu0 0.0
    %2615 = vmatprep.subr.mxu0 0.0
    %2616 = vmatpush1.msra.mxu0 0.0
    %2617 = vmatprep.subr.mxu0 0.0
    %2618 = vmatpush1.msra.mxu0 0.0
    %2619 = vmatprep.subr.mxu0 0.0
    %2620 = vmatpush1.msra.mxu0 0.0
    %2621 = vmatprep.subr.mxu0 0.0
    %2622 = vmatpush1.msra.mxu0 0.0
    %2623 = vmatprep.subr.mxu0 0.0
    %2624 = vmatpush1.msra.mxu0 0.0
    %2625 = vmatprep.subr.mxu0 0.0
    %2626 = vmatpush1.msra.mxu0 0.0
    %2627 = vmatprep.subr.mxu0 0.0
    %2628 = vmatpush1.msra.mxu0 0.0
    %2629 = vmatprep.subr.mxu0 0.0
    %2630 = vmatpush1.msra.mxu0 0.0
    %2631 = vmatprep.subr.mxu0 0.0
    %2632 = vmatpush1.msra.mxu0 0.0
    %2633 = vmatprep.subr.mxu0 0.0
    %2634 = vmatpush1.msra.mxu0 0.0
    %2635 = vmatprep.subr.mxu0 0.0
    %2636 = vmatpush1.msra.mxu0 0.0
    %2637 = vmatprep.subr.mxu0 0.0
    %2638 = vmatpush1.msra.mxu0 0.0
    %2639 = vmatprep.subr.mxu0 0.0
    %2640 = vmatpush1.msra.mxu0 0.0
    %2641 = vmatprep.subr.mxu0 0.0
    %2642 = vmatpush1.msra.mxu0 0.0
    %2643 = vmatprep.subr.mxu0 0.0
    %2644 = vmatpush1.msra.mxu0 0.0
    %2645 = vmatprep.subr.mxu0 0.0
    %2646 = vmatpush1.msra.mxu0 0.0
    %2647 = vmatprep.subr.mxu0 0.0
    %2648 = vmatpush1.msra.mxu0 0.0
    %2649 = vmatprep.subr.mxu0 0.0
    %2650 = vmatpush1.msra.mxu0 0.0
    %2651 = vmatprep.subr.mxu0 0.0
    %2652 = vmatpush1.msra.mxu0 0.0
    %2653 = vmatprep.mubr.f32.mxu0 0.0
    %2654 = vmatmul.mubr.f32.gmra.mrb[0].mxu0 %v2587
    %v2655 = vpop.f32.mrb[0].mxu0
    %v2656 = vadd.f32 0.0, %v2655
    %v2657 = vpop.f32.mrb[0].mxu0
    %2658 = vdwg.mxu0
    %v2659 = vadd.f32 %v2496, %v2656
    %s2660 = scalar_lea.vmem [#allocation16], 640
    %v2661 = vld [vmem:[%s2660] sm:$0xff]
    %v2662 = vld [vmem:[%s2660 + $0x8] sm:$0xff]
    %v2663 = vld [vmem:[%s2660 + $0x10] sm:$0xff]
    %v2664 = vld [vmem:[%s2660 + $0x18] sm:$0xff]
    %v2665 = vld [vmem:[%s2660 + $0x20] sm:$0xff]
    %v2666 = vld [vmem:[%s2660 + $0x28] sm:$0xff]
    %v2667 = vld [vmem:[%s2660 + $0x30] sm:$0xff]
    %v2668 = vld [vmem:[%s2660 + $0x38] sm:$0xff]
    %v2669 = vld [vmem:[%s2660 + $0x40] sm:$0xff]
    %v2670 = vld [vmem:[%s2660 + $0x48] sm:$0xff]
    %v2671 = vld [vmem:[%s2660 + $0x50] sm:$0xff]
    %v2672 = vld [vmem:[%s2660 + $0x58] sm:$0xff]
    %v2673 = vld [vmem:[%s2660 + $0x60] sm:$0xff]
    %v2674 = vld [vmem:[%s2660 + $0x68] sm:$0xff]
    %v2675 = vld [vmem:[%s2660 + $0x70] sm:$0xff]
    %v2676 = vld [vmem:[%s2660 + $0x78] sm:$0xff]
    %2677 = vmatprep.subr.mxu0 0.0
    %2678 = vmatpush1.msra.mxu0 %v2661
    %2679 = vmatprep.subr.mxu0 0.0
    %2680 = vmatpush1.msra.mxu0 %v2662
    %2681 = vmatprep.subr.mxu0 0.0
    %2682 = vmatpush1.msra.mxu0 %v2663
    %2683 = vmatprep.subr.mxu0 0.0
    %2684 = vmatpush1.msra.mxu0 %v2664
    %2685 = vmatprep.subr.mxu0 0.0
    %2686 = vmatpush1.msra.mxu0 %v2665
    %2687 = vmatprep.subr.mxu0 0.0
    %2688 = vmatpush1.msra.mxu0 %v2666
    %2689 = vmatprep.subr.mxu0 0.0
    %2690 = vmatpush1.msra.mxu0 %v2667
    %2691 = vmatprep.subr.mxu0 0.0
    %2692 = vmatpush1.msra.mxu0 %v2668
    %2693 = vmatprep.subr.mxu0 0.0
    %2694 = vmatpush1.msra.mxu0 %v2669
    %2695 = vmatprep.subr.mxu0 0.0
    %2696 = vmatpush1.msra.mxu0 %v2670
    %2697 = vmatprep.subr.mxu0 0.0
    %2698 = vmatpush1.msra.mxu0 %v2671
    %2699 = vmatprep.subr.mxu0 0.0
    %2700 = vmatpush1.msra.mxu0 %v2672
    %2701 = vmatprep.subr.mxu0 0.0
    %2702 = vmatpush1.msra.mxu0 %v2673
    %2703 = vmatprep.subr.mxu0 0.0
    %2704 = vmatpush1.msra.mxu0 %v2674
    %2705 = vmatprep.subr.mxu0 0.0
    %2706 = vmatpush1.msra.mxu0 %v2675
    %2707 = vmatprep.subr.mxu0 0.0
    %2708 = vmatpush1.msra.mxu0 %v2676
    %2709 = vmatprep.subr.mxu0 0.0
    %2710 = vmatpush1.msra.mxu0 0.0
    %2711 = vmatprep.subr.mxu0 0.0
    %2712 = vmatpush1.msra.mxu0 0.0
    %2713 = vmatprep.subr.mxu0 0.0
    %2714 = vmatpush1.msra.mxu0 0.0
    %2715 = vmatprep.subr.mxu0 0.0
    %2716 = vmatpush1.msra.mxu0 0.0
    %2717 = vmatprep.subr.mxu0 0.0
    %2718 = vmatpush1.msra.mxu0 0.0
    %2719 = vmatprep.subr.mxu0 0.0
    %2720 = vmatpush1.msra.mxu0 0.0
    %2721 = vmatprep.subr.mxu0 0.0
    %2722 = vmatpush1.msra.mxu0 0.0
    %2723 = vmatprep.subr.mxu0 0.0
    %2724 = vmatpush1.msra.mxu0 0.0
    %2725 = vmatprep.subr.mxu0 0.0
    %2726 = vmatpush1.msra.mxu0 0.0
    %2727 = vmatprep.subr.mxu0 0.0
    %2728 = vmatpush1.msra.mxu0 0.0
    %2729 = vmatprep.subr.mxu0 0.0
    %2730 = vmatpush1.msra.mxu0 0.0
    %2731 = vmatprep.subr.mxu0 0.0
    %2732 = vmatpush1.msra.mxu0 0.0
    %2733 = vmatprep.subr.mxu0 0.0
    %2734 = vmatpush1.msra.mxu0 0.0
    %2735 = vmatprep.subr.mxu0 0.0
    %2736 = vmatpush1.msra.mxu0 0.0
    %2737 = vmatprep.subr.mxu0 0.0
    %2738 = vmatpush1.msra.mxu0 0.0
    %2739 = vmatprep.subr.mxu0 0.0
    %2740 = vmatpush1.msra.mxu0 0.0
    %2741 = vmatprep.mubr.f32.mxu0 0.0
    %2742 = vmatmul.mubr.f32.gmra.mrb[0].mxu0 %v1848
    %v2743 = vpop.f32.mrb[0].mxu0
    %v2744 = vadd.f32 0.0, %v2743
    %v2745 = vpop.f32.mrb[0].mxu0
    %2746 = vdwg.mxu0
    %s2747 = scalar_lea.vmem [#allocation17], 40
    %v2748 = vld [vmem:[%s2747] sm:$0xff]
    %v2750 = vsel %vm285, %v2748, 0
    %2752 = vmatprep.subr.mxu0 0.0
    %2753 = vmatpush1.msra.mxu0 %v2744
    %2754 = vmatprep.subr.mxu0 0.0
    %2755 = vmatpush1.msra.mxu0 0.0
    %2756 = vmatprep.subr.mxu0 0.0
    %2757 = vmatpush1.msra.mxu0 0.0
    %2758 = vmatprep.subr.mxu0 0.0
    %2759 = vmatpush1.msra.mxu0 0.0
    %2760 = vmatprep.subr.mxu0 0.0
    %2761 = vmatpush1.msra.mxu0 0.0
    %2762 = vmatprep.subr.mxu0 0.0
    %2763 = vmatpush1.msra.mxu0 0.0
    %2764 = vmatprep.subr.mxu0 0.0
    %2765 = vmatpush1.msra.mxu0 0.0
    %2766 = vmatprep.subr.mxu0 0.0
    %2767 = vmatpush1.msra.mxu0 0.0
    %2768 = vmatprep.subr.mxu0 0.0
    %2769 = vmatpush1.msra.mxu0 0.0
    %2770 = vmatprep.subr.mxu0 0.0
    %2771 = vmatpush1.msra.mxu0 0.0
    %2772 = vmatprep.subr.mxu0 0.0
    %2773 = vmatpush1.msra.mxu0 0.0
    %2774 = vmatprep.subr.mxu0 0.0
    %2775 = vmatpush1.msra.mxu0 0.0
    %2776 = vmatprep.subr.mxu0 0.0
    %2777 = vmatpush1.msra.mxu0 0.0
    %2778 = vmatprep.subr.mxu0 0.0
    %2779 = vmatpush1.msra.mxu0 0.0
    %2780 = vmatprep.subr.mxu0 0.0
    %2781 = vmatpush1.msra.mxu0 0.0
    %2782 = vmatprep.subr.mxu0 0.0
    %2783 = vmatpush1.msra.mxu0 0.0
    %2784 = vmatprep.subr.mxu0 0.0
    %2785 = vmatpush1.msra.mxu0 0.0
    %2786 = vmatprep.subr.mxu0 0.0
    %2787 = vmatpush1.msra.mxu0 0.0
    %2788 = vmatprep.subr.mxu0 0.0
    %2789 = vmatpush1.msra.mxu0 0.0
    %2790 = vmatprep.subr.mxu0 0.0
    %2791 = vmatpush1.msra.mxu0 0.0
    %2792 = vmatprep.subr.mxu0 0.0
    %2793 = vmatpush1.msra.mxu0 0.0
    %2794 = vmatprep.subr.mxu0 0.0
    %2795 = vmatpush1.msra.mxu0 0.0
    %2796 = vmatprep.subr.mxu0 0.0
    %2797 = vmatpush1.msra.mxu0 0.0
    %2798 = vmatprep.subr.mxu0 0.0
    %2799 = vmatpush1.msra.mxu0 0.0
    %2800 = vmatprep.subr.mxu0 0.0
    %2801 = vmatpush1.msra.mxu0 0.0
    %2802 = vmatprep.subr.mxu0 0.0
    %2803 = vmatpush1.msra.mxu0 0.0
    %2804 = vmatprep.subr.mxu0 0.0
    %2805 = vmatpush1.msra.mxu0 0.0
    %2806 = vmatprep.subr.mxu0 0.0
    %2807 = vmatpush1.msra.mxu0 0.0
    %2808 = vmatprep.subr.mxu0 0.0
    %2809 = vmatpush1.msra.mxu0 0.0
    %2810 = vmatprep.subr.mxu0 0.0
    %2811 = vmatpush1.msra.mxu0 0.0
    %2812 = vmatprep.subr.mxu0 0.0
    %2813 = vmatpush1.msra.mxu0 0.0
    %2814 = vmatprep.subr.mxu0 0.0
    %2815 = vmatpush1.msra.mxu0 0.0
    %2816 = vmatprep.mubr.f32.mxu0 0.0
    %2817 = vmatmul.mubr.f32.gmra.mrb[0].mxu0 %v2750
    %v2818 = vpop.f32.mrb[0].mxu0
    %v2819 = vadd.f32 0.0, %v2818
    %v2820 = vpop.f32.mrb[0].mxu0
    %2821 = vdwg.mxu0
    %v2822 = vadd.f32 %v2659, %v2819
    %s2823 = scalar_lea.vmem [#allocation16], 768
    %v2824 = vld [vmem:[%s2823] sm:$0xff]
    %v2825 = vld [vmem:[%s2823 + $0x8] sm:$0xff]
    %v2826 = vld [vmem:[%s2823 + $0x10] sm:$0xff]
    %v2827 = vld [vmem:[%s2823 + $0x18] sm:$0xff]
    %v2828 = vld [vmem:[%s2823 + $0x20] sm:$0xff]
    %v2829 = vld [vmem:[%s2823 + $0x28] sm:$0xff]
    %v2830 = vld [vmem:[%s2823 + $0x30] sm:$0xff]
    %v2831 = vld [vmem:[%s2823 + $0x38] sm:$0xff]
    %v2832 = vld [vmem:[%s2823 + $0x40] sm:$0xff]
    %v2833 = vld [vmem:[%s2823 + $0x48] sm:$0xff]
    %v2834 = vld [vmem:[%s2823 + $0x50] sm:$0xff]
    %v2835 = vld [vmem:[%s2823 + $0x58] sm:$0xff]
    %v2836 = vld [vmem:[%s2823 + $0x60] sm:$0xff]
    %v2837 = vld [vmem:[%s2823 + $0x68] sm:$0xff]
    %v2838 = vld [vmem:[%s2823 + $0x70] sm:$0xff]
    %v2839 = vld [vmem:[%s2823 + $0x78] sm:$0xff]
    %2840 = vmatprep.subr.mxu0 0.0
    %2841 = vmatpush1.msra.mxu0 %v2824
    %2842 = vmatprep.subr.mxu0 0.0
    %2843 = vmatpush1.msra.mxu0 %v2825
    %2844 = vmatprep.subr.mxu0 0.0
    %2845 = vmatpush1.msra.mxu0 %v2826
    %2846 = vmatprep.subr.mxu0 0.0
    %2847 = vmatpush1.msra.mxu0 %v2827
    %2848 = vmatprep.subr.mxu0 0.0
    %2849 = vmatpush1.msra.mxu0 %v2828
    %2850 = vmatprep.subr.mxu0 0.0
    %2851 = vmatpush1.msra.mxu0 %v2829
    %2852 = vmatprep.subr.mxu0 0.0
    %2853 = vmatpush1.msra.mxu0 %v2830
    %2854 = vmatprep.subr.mxu0 0.0
    %2855 = vmatpush1.msra.mxu0 %v2831
    %2856 = vmatprep.subr.mxu0 0.0
    %2857 = vmatpush1.msra.mxu0 %v2832
    %2858 = vmatprep.subr.mxu0 0.0
    %2859 = vmatpush1.msra.mxu0 %v2833
    %2860 = vmatprep.subr.mxu0 0.0
    %2861 = vmatpush1.msra.mxu0 %v2834
    %2862 = vmatprep.subr.mxu0 0.0
    %2863 = vmatpush1.msra.mxu0 %v2835
    %2864 = vmatprep.subr.mxu0 0.0
    %2865 = vmatpush1.msra.mxu0 %v2836
    %2866 = vmatprep.subr.mxu0 0.0
    %2867 = vmatpush1.msra.mxu0 %v2837
    %2868 = vmatprep.subr.mxu0 0.0
    %2869 = vmatpush1.msra.mxu0 %v2838
    %2870 = vmatprep.subr.mxu0 0.0
    %2871 = vmatpush1.msra.mxu0 %v2839
    %2872 = vmatprep.subr.mxu0 0.0
    %2873 = vmatpush1.msra.mxu0 0.0
    %2874 = vmatprep.subr.mxu0 0.0
    %2875 = vmatpush1.msra.mxu0 0.0
    %2876 = vmatprep.subr.mxu0 0.0
    %2877 = vmatpush1.msra.mxu0 0.0
    %2878 = vmatprep.subr.mxu0 0.0
    %2879 = vmatpush1.msra.mxu0 0.0
    %2880 = vmatprep.subr.mxu0 0.0
    %2881 = vmatpush1.msra.mxu0 0.0
    %2882 = vmatprep.subr.mxu0 0.0
    %2883 = vmatpush1.msra.mxu0 0.0
    %2884 = vmatprep.subr.mxu0 0.0
    %2885 = vmatpush1.msra.mxu0 0.0
    %2886 = vmatprep.subr.mxu0 0.0
    %2887 = vmatpush1.msra.mxu0 0.0
    %2888 = vmatprep.subr.mxu0 0.0
    %2889 = vmatpush1.msra.mxu0 0.0
    %2890 = vmatprep.subr.mxu0 0.0
    %2891 = vmatpush1.msra.mxu0 0.0
    %2892 = vmatprep.subr.mxu0 0.0
    %2893 = vmatpush1.msra.mxu0 0.0
    %2894 = vmatprep.subr.mxu0 0.0
    %2895 = vmatpush1.msra.mxu0 0.0
    %2896 = vmatprep.subr.mxu0 0.0
    %2897 = vmatpush1.msra.mxu0 0.0
    %2898 = vmatprep.subr.mxu0 0.0
    %2899 = vmatpush1.msra.mxu0 0.0
    %2900 = vmatprep.subr.mxu0 0.0
    %2901 = vmatpush1.msra.mxu0 0.0
    %2902 = vmatprep.subr.mxu0 0.0
    %2903 = vmatpush1.msra.mxu0 0.0
    %2904 = vmatprep.mubr.f32.mxu0 0.0
    %2905 = vmatmul.mubr.f32.gmra.mrb[0].mxu0 %v1848
    %v2906 = vpop.f32.mrb[0].mxu0
    %v2907 = vadd.f32 0.0, %v2906
    %v2908 = vpop.f32.mrb[0].mxu0
    %2909 = vdwg.mxu0
    %s2910 = scalar_lea.vmem [#allocation17], 48
    %v2911 = vld [vmem:[%s2910] sm:$0xff]
    %v2913 = vsel %vm285, %v2911, 0
    %2915 = vmatprep.subr.mxu0 0.0
    %2916 = vmatpush1.msra.mxu0 %v2907
    %2917 = vmatprep.subr.mxu0 0.0
    %2918 = vmatpush1.msra.mxu0 0.0
    %2919 = vmatprep.subr.mxu0 0.0
    %2920 = vmatpush1.msra.mxu0 0.0
    %2921 = vmatprep.subr.mxu0 0.0
    %2922 = vmatpush1.msra.mxu0 0.0
    %2923 = vmatprep.subr.mxu0 0.0
    %2924 = vmatpush1.msra.mxu0 0.0
    %2925 = vmatprep.subr.mxu0 0.0
    %2926 = vmatpush1.msra.mxu0 0.0
    %2927 = vmatprep.subr.mxu0 0.0
    %2928 = vmatpush1.msra.mxu0 0.0
    %2929 = vmatprep.subr.mxu0 0.0
    %2930 = vmatpush1.msra.mxu0 0.0
    %2931 = vmatprep.subr.mxu0 0.0
    %2932 = vmatpush1.msra.mxu0 0.0
    %2933 = vmatprep.subr.mxu0 0.0
    %2934 = vmatpush1.msra.mxu0 0.0
    %2935 = vmatprep.subr.mxu0 0.0
    %2936 = vmatpush1.msra.mxu0 0.0
    %2937 = vmatprep.subr.mxu0 0.0
    %2938 = vmatpush1.msra.mxu0 0.0
    %2939 = vmatprep.subr.mxu0 0.0
    %2940 = vmatpush1.msra.mxu0 0.0
    %2941 = vmatprep.subr.mxu0 0.0
    %2942 = vmatpush1.msra.mxu0 0.0
    %2943 = vmatprep.subr.mxu0 0.0
    %2944 = vmatpush1.msra.mxu0 0.0
    %2945 = vmatprep.subr.mxu0 0.0
    %2946 = vmatpush1.msra.mxu0 0.0
    %2947 = vmatprep.subr.mxu0 0.0
    %2948 = vmatpush1.msra.mxu0 0.0
    %2949 = vmatprep.subr.mxu0 0.0
    %2950 = vmatpush1.msra.mxu0 0.0
    %2951 = vmatprep.subr.mxu0 0.0
    %2952 = vmatpush1.msra.mxu0 0.0
    %2953 = vmatprep.subr.mxu0 0.0
    %2954 = vmatpush1.msra.mxu0 0.0
    %2955 = vmatprep.subr.mxu0 0.0
    %2956 = vmatpush1.msra.mxu0 0.0
    %2957 = vmatprep.subr.mxu0 0.0
    %2958 = vmatpush1.msra.mxu0 0.0
    %2959 = vmatprep.subr.mxu0 0.0
    %2960 = vmatpush1.msra.mxu0 0.0
    %2961 = vmatprep.subr.mxu0 0.0
    %2962 = vmatpush1.msra.mxu0 0.0
    %2963 = vmatprep.subr.mxu0 0.0
    %2964 = vmatpush1.msra.mxu0 0.0
    %2965 = vmatprep.subr.mxu0 0.0
    %2966 = vmatpush1.msra.mxu0 0.0
    %2967 = vmatprep.subr.mxu0 0.0
    %2968 = vmatpush1.msra.mxu0 0.0
    %2969 = vmatprep.subr.mxu0 0.0
    %2970 = vmatpush1.msra.mxu0 0.0
    %2971 = vmatprep.subr.mxu0 0.0
    %2972 = vmatpush1.msra.mxu0 0.0
    %2973 = vmatprep.subr.mxu0 0.0
    %2974 = vmatpush1.msra.mxu0 0.0
    %2975 = vmatprep.subr.mxu0 0.0
    %2976 = vmatpush1.msra.mxu0 0.0
    %2977 = vmatprep.subr.mxu0 0.0
    %2978 = vmatpush1.msra.mxu0 0.0
    %2979 = vmatprep.mubr.f32.mxu0 0.0
    %2980 = vmatmul.mubr.f32.gmra.mrb[0].mxu0 %v2913
    %v2981 = vpop.f32.mrb[0].mxu0
    %v2982 = vadd.f32 0.0, %v2981
    %v2983 = vpop.f32.mrb[0].mxu0
    %2984 = vdwg.mxu0
    %v2985 = vadd.f32 %v2822, %v2982
    %s2986 = scalar_lea.vmem [#allocation16], 896
    %v2987 = vld [vmem:[%s2986] sm:$0xff]
    %v2988 = vld [vmem:[%s2986 + $0x8] sm:$0xff]
    %v2989 = vld [vmem:[%s2986 + $0x10] sm:$0xff]
    %v2990 = vld [vmem:[%s2986 + $0x18] sm:$0xff]
    %v2991 = vld [vmem:[%s2986 + $0x20] sm:$0xff]
    %v2992 = vld [vmem:[%s2986 + $0x28] sm:$0xff]
    %v2993 = vld [vmem:[%s2986 + $0x30] sm:$0xff]
    %v2994 = vld [vmem:[%s2986 + $0x38] sm:$0xff]
    %v2995 = vld [vmem:[%s2986 + $0x40] sm:$0xff]
    %v2996 = vld [vmem:[%s2986 + $0x48] sm:$0xff]
    %v2997 = vld [vmem:[%s2986 + $0x50] sm:$0xff]
    %v2998 = vld [vmem:[%s2986 + $0x58] sm:$0xff]
    %v2999 = vld [vmem:[%s2986 + $0x60] sm:$0xff]
    %v3000 = vld [vmem:[%s2986 + $0x68] sm:$0xff]
    %v3001 = vld [vmem:[%s2986 + $0x70] sm:$0xff]
    %v3002 = vld [vmem:[%s2986 + $0x78] sm:$0xff]
    %3003 = vmatprep.subr.mxu0 0.0
    %3004 = vmatpush1.msra.mxu0 %v2987
    %3005 = vmatprep.subr.mxu0 0.0
    %3006 = vmatpush1.msra.mxu0 %v2988
    %3007 = vmatprep.subr.mxu0 0.0
    %3008 = vmatpush1.msra.mxu0 %v2989
    %3009 = vmatprep.subr.mxu0 0.0
    %3010 = vmatpush1.msra.mxu0 %v2990
    %3011 = vmatprep.subr.mxu0 0.0
    %3012 = vmatpush1.msra.mxu0 %v2991
    %3013 = vmatprep.subr.mxu0 0.0
    %3014 = vmatpush1.msra.mxu0 %v2992
    %3015 = vmatprep.subr.mxu0 0.0
    %3016 = vmatpush1.msra.mxu0 %v2993
    %3017 = vmatprep.subr.mxu0 0.0
    %3018 = vmatpush1.msra.mxu0 %v2994
    %3019 = vmatprep.subr.mxu0 0.0
    %3020 = vmatpush1.msra.mxu0 %v2995
    %3021 = vmatprep.subr.mxu0 0.0
    %3022 = vmatpush1.msra.mxu0 %v2996
    %3023 = vmatprep.subr.mxu0 0.0
    %3024 = vmatpush1.msra.mxu0 %v2997
    %3025 = vmatprep.subr.mxu0 0.0
    %3026 = vmatpush1.msra.mxu0 %v2998
    %3027 = vmatprep.subr.mxu0 0.0
    %3028 = vmatpush1.msra.mxu0 %v2999
    %3029 = vmatprep.subr.mxu0 0.0
    %3030 = vmatpush1.msra.mxu0 %v3000
    %3031 = vmatprep.subr.mxu0 0.0
    %3032 = vmatpush1.msra.mxu0 %v3001
    %3033 = vmatprep.subr.mxu0 0.0
    %3034 = vmatpush1.msra.mxu0 %v3002
    %3035 = vmatprep.subr.mxu0 0.0
    %3036 = vmatpush1.msra.mxu0 0.0
    %3037 = vmatprep.subr.mxu0 0.0
    %3038 = vmatpush1.msra.mxu0 0.0
    %3039 = vmatprep.subr.mxu0 0.0
    %3040 = vmatpush1.msra.mxu0 0.0
    %3041 = vmatprep.subr.mxu0 0.0
    %3042 = vmatpush1.msra.mxu0 0.0
    %3043 = vmatprep.subr.mxu0 0.0
    %3044 = vmatpush1.msra.mxu0 0.0
    %3045 = vmatprep.subr.mxu0 0.0
    %3046 = vmatpush1.msra.mxu0 0.0
    %3047 = vmatprep.subr.mxu0 0.0
    %3048 = vmatpush1.msra.mxu0 0.0
    %3049 = vmatprep.subr.mxu0 0.0
    %3050 = vmatpush1.msra.mxu0 0.0
    %3051 = vmatprep.subr.mxu0 0.0
    %3052 = vmatpush1.msra.mxu0 0.0
    %3053 = vmatprep.subr.mxu0 0.0
    %3054 = vmatpush1.msra.mxu0 0.0
    %3055 = vmatprep.subr.mxu0 0.0
    %3056 = vmatpush1.msra.mxu0 0.0
    %3057 = vmatprep.subr.mxu0 0.0
    %3058 = vmatpush1.msra.mxu0 0.0
    %3059 = vmatprep.subr.mxu0 0.0
    %3060 = vmatpush1.msra.mxu0 0.0
    %3061 = vmatprep.subr.mxu0 0.0
    %3062 = vmatpush1.msra.mxu0 0.0
    %3063 = vmatprep.subr.mxu0 0.0
    %3064 = vmatpush1.msra.mxu0 0.0
    %3065 = vmatprep.subr.mxu0 0.0
    %3066 = vmatpush1.msra.mxu0 0.0
    %3067 = vmatprep.mubr.f32.mxu0 0.0
    %3068 = vmatmul.mubr.f32.gmra.mrb[0].mxu0 %v1848
    %v3069 = vpop.f32.mrb[0].mxu0
    %v3070 = vadd.f32 0.0, %v3069
    %v3071 = vpop.f32.mrb[0].mxu0
    %3072 = vdwg.mxu0
    %s3073 = scalar_lea.vmem [#allocation17], 56
    %v3074 = vld [vmem:[%s3073] sm:$0xff]
    %v3076 = vsel %vm285, %v3074, 0
    %3078 = vmatprep.subr.mxu0 0.0
    %3079 = vmatpush1.msra.mxu0 %v3070
    %3080 = vmatprep.subr.mxu0 0.0
    %3081 = vmatpush1.msra.mxu0 0.0
    %3082 = vmatprep.subr.mxu0 0.0
    %3083 = vmatpush1.msra.mxu0 0.0
    %3084 = vmatprep.subr.mxu0 0.0
    %3085 = vmatpush1.msra.mxu0 0.0
    %3086 = vmatprep.subr.mxu0 0.0
    %3087 = vmatpush1.msra.mxu0 0.0
    %3088 = vmatprep.subr.mxu0 0.0
    %3089 = vmatpush1.msra.mxu0 0.0
    %3090 = vmatprep.subr.mxu0 0.0
    %3091 = vmatpush1.msra.mxu0 0.0
    %3092 = vmatprep.subr.mxu0 0.0
    %3093 = vmatpush1.msra.mxu0 0.0
    %3094 = vmatprep.subr.mxu0 0.0
    %3095 = vmatpush1.msra.mxu0 0.0
    %3096 = vmatprep.subr.mxu0 0.0
    %3097 = vmatpush1.msra.mxu0 0.0
    %3098 = vmatprep.subr.mxu0 0.0
    %3099 = vmatpush1.msra.mxu0 0.0
    %3100 = vmatprep.subr.mxu0 0.0
    %3101 = vmatpush1.msra.mxu0 0.0
    %3102 = vmatprep.subr.mxu0 0.0
    %3103 = vmatpush1.msra.mxu0 0.0
    %3104 = vmatprep.subr.mxu0 0.0
    %3105 = vmatpush1.msra.mxu0 0.0
    %3106 = vmatprep.subr.mxu0 0.0
    %3107 = vmatpush1.msra.mxu0 0.0
    %3108 = vmatprep.subr.mxu0 0.0
    %3109 = vmatpush1.msra.mxu0 0.0
    %3110 = vmatprep.subr.mxu0 0.0
    %3111 = vmatpush1.msra.mxu0 0.0
    %3112 = vmatprep.subr.mxu0 0.0
    %3113 = vmatpush1.msra.mxu0 0.0
    %3114 = vmatprep.subr.mxu0 0.0
    %3115 = vmatpush1.msra.mxu0 0.0
    %3116 = vmatprep.subr.mxu0 0.0
    %3117 = vmatpush1.msra.mxu0 0.0
    %3118 = vmatprep.subr.mxu0 0.0
    %3119 = vmatpush1.msra.mxu0 0.0
    %3120 = vmatprep.subr.mxu0 0.0
    %3121 = vmatpush1.msra.mxu0 0.0
    %3122 = vmatprep.subr.mxu0 0.0
    %3123 = vmatpush1.msra.mxu0 0.0
    %3124 = vmatprep.subr.mxu0 0.0
    %3125 = vmatpush1.msra.mxu0 0.0
    %3126 = vmatprep.subr.mxu0 0.0
    %3127 = vmatpush1.msra.mxu0 0.0
    %3128 = vmatprep.subr.mxu0 0.0
    %3129 = vmatpush1.msra.mxu0 0.0
    %3130 = vmatprep.subr.mxu0 0.0
    %3131 = vmatpush1.msra.mxu0 0.0
    %3132 = vmatprep.subr.mxu0 0.0
    %3133 = vmatpush1.msra.mxu0 0.0
    %3134 = vmatprep.subr.mxu0 0.0
    %3135 = vmatpush1.msra.mxu0 0.0
    %3136 = vmatprep.subr.mxu0 0.0
    %3137 = vmatpush1.msra.mxu0 0.0
    %3138 = vmatprep.subr.mxu0 0.0
    %3139 = vmatpush1.msra.mxu0 0.0
    %3140 = vmatprep.subr.mxu0 0.0
    %3141 = vmatpush1.msra.mxu0 0.0
    %3142 = vmatprep.mubr.f32.mxu0 0.0
    %3143 = vmatmul.mubr.f32.gmra.mrb[0].mxu0 %v3076
    %v3144 = vpop.f32.mrb[0].mxu0
    %v3145 = vadd.f32 0.0, %v3144
    %v3146 = vpop.f32.mrb[0].mxu0
    %3147 = vdwg.mxu0
    %v3148 = vadd.f32 %v2985, %v3145
    %s3149 = scalar_lea.vmem [#allocation16], 1024
    %v3150 = vld [vmem:[%s3149] sm:$0xff]
    %v3151 = vld [vmem:[%s3149 + $0x8] sm:$0xff]
    %v3152 = vld [vmem:[%s3149 + $0x10] sm:$0xff]
    %v3153 = vld [vmem:[%s3149 + $0x18] sm:$0xff]
    %v3154 = vld [vmem:[%s3149 + $0x20] sm:$0xff]
    %v3155 = vld [vmem:[%s3149 + $0x28] sm:$0xff]
    %v3156 = vld [vmem:[%s3149 + $0x30] sm:$0xff]
    %v3157 = vld [vmem:[%s3149 + $0x38] sm:$0xff]
    %v3158 = vld [vmem:[%s3149 + $0x40] sm:$0xff]
    %v3159 = vld [vmem:[%s3149 + $0x48] sm:$0xff]
    %v3160 = vld [vmem:[%s3149 + $0x50] sm:$0xff]
    %v3161 = vld [vmem:[%s3149 + $0x58] sm:$0xff]
    %v3162 = vld [vmem:[%s3149 + $0x60] sm:$0xff]
    %v3163 = vld [vmem:[%s3149 + $0x68] sm:$0xff]
    %v3164 = vld [vmem:[%s3149 + $0x70] sm:$0xff]
    %v3165 = vld [vmem:[%s3149 + $0x78] sm:$0xff]
    %3166 = vmatprep.subr.mxu0 0.0
    %3167 = vmatpush1.msra.mxu0 %v3150
    %3168 = vmatprep.subr.mxu0 0.0
    %3169 = vmatpush1.msra.mxu0 %v3151
    %3170 = vmatprep.subr.mxu0 0.0
    %3171 = vmatpush1.msra.mxu0 %v3152
    %3172 = vmatprep.subr.mxu0 0.0
    %3173 = vmatpush1.msra.mxu0 %v3153
    %3174 = vmatprep.subr.mxu0 0.0
    %3175 = vmatpush1.msra.mxu0 %v3154
    %3176 = vmatprep.subr.mxu0 0.0
    %3177 = vmatpush1.msra.mxu0 %v3155
    %3178 = vmatprep.subr.mxu0 0.0
    %3179 = vmatpush1.msra.mxu0 %v3156
    %3180 = vmatprep.subr.mxu0 0.0
    %3181 = vmatpush1.msra.mxu0 %v3157
    %3182 = vmatprep.subr.mxu0 0.0
    %3183 = vmatpush1.msra.mxu0 %v3158
    %3184 = vmatprep.subr.mxu0 0.0
    %3185 = vmatpush1.msra.mxu0 %v3159
    %3186 = vmatprep.subr.mxu0 0.0
    %3187 = vmatpush1.msra.mxu0 %v3160
    %3188 = vmatprep.subr.mxu0 0.0
    %3189 = vmatpush1.msra.mxu0 %v3161
    %3190 = vmatprep.subr.mxu0 0.0
    %3191 = vmatpush1.msra.mxu0 %v3162
    %3192 = vmatprep.subr.mxu0 0.0
    %3193 = vmatpush1.msra.mxu0 %v3163
    %3194 = vmatprep.subr.mxu0 0.0
    %3195 = vmatpush1.msra.mxu0 %v3164
    %3196 = vmatprep.subr.mxu0 0.0
    %3197 = vmatpush1.msra.mxu0 %v3165
    %3198 = vmatprep.subr.mxu0 0.0
    %3199 = vmatpush1.msra.mxu0 0.0
    %3200 = vmatprep.subr.mxu0 0.0
    %3201 = vmatpush1.msra.mxu0 0.0
    %3202 = vmatprep.subr.mxu0 0.0
    %3203 = vmatpush1.msra.mxu0 0.0
    %3204 = vmatprep.subr.mxu0 0.0
    %3205 = vmatpush1.msra.mxu0 0.0
    %3206 = vmatprep.subr.mxu0 0.0
    %3207 = vmatpush1.msra.mxu0 0.0
    %3208 = vmatprep.subr.mxu0 0.0
    %3209 = vmatpush1.msra.mxu0 0.0
    %3210 = vmatprep.subr.mxu0 0.0
    %3211 = vmatpush1.msra.mxu0 0.0
    %3212 = vmatprep.subr.mxu0 0.0
    %3213 = vmatpush1.msra.mxu0 0.0
    %3214 = vmatprep.subr.mxu0 0.0
    %3215 = vmatpush1.msra.mxu0 0.0
    %3216 = vmatprep.subr.mxu0 0.0
    %3217 = vmatpush1.msra.mxu0 0.0
    %3218 = vmatprep.subr.mxu0 0.0
    %3219 = vmatpush1.msra.mxu0 0.0
    %3220 = vmatprep.subr.mxu0 0.0
    %3221 = vmatpush1.msra.mxu0 0.0
    %3222 = vmatprep.subr.mxu0 0.0
    %3223 = vmatpush1.msra.mxu0 0.0
    %3224 = vmatprep.subr.mxu0 0.0
    %3225 = vmatpush1.msra.mxu0 0.0
    %3226 = vmatprep.subr.mxu0 0.0
    %3227 = vmatpush1.msra.mxu0 0.0
    %3228 = vmatprep.subr.mxu0 0.0
    %3229 = vmatpush1.msra.mxu0 0.0
    %3230 = vmatprep.mubr.f32.mxu0 0.0
    %3231 = vmatmul.mubr.f32.gmra.mrb[0].mxu0 %v1848
    %v3232 = vpop.f32.mrb[0].mxu0
    %v3233 = vadd.f32 0.0, %v3232
    %v3234 = vpop.f32.mrb[0].mxu0
    %3235 = vdwg.mxu0
    %s3236 = scalar_lea.vmem [#allocation17], 64
    %v3237 = vld [vmem:[%s3236] sm:$0xff]
    %v3239 = vsel %vm285, %v3237, 0
    %3241 = vmatprep.subr.mxu0 0.0
    %3242 = vmatpush1.msra.mxu0 %v3233
    %3243 = vmatprep.subr.mxu0 0.0
    %3244 = vmatpush1.msra.mxu0 0.0
    %3245 = vmatprep.subr.mxu0 0.0
    %3246 = vmatpush1.msra.mxu0 0.0
    %3247 = vmatprep.subr.mxu0 0.0
    %3248 = vmatpush1.msra.mxu0 0.0
    %3249 = vmatprep.subr.mxu0 0.0
    %3250 = vmatpush1.msra.mxu0 0.0
    %3251 = vmatprep.subr.mxu0 0.0
    %3252 = vmatpush1.msra.mxu0 0.0
    %3253 = vmatprep.subr.mxu0 0.0
    %3254 = vmatpush1.msra.mxu0 0.0
    %3255 = vmatprep.subr.mxu0 0.0
    %3256 = vmatpush1.msra.mxu0 0.0
    %3257 = vmatprep.subr.mxu0 0.0
    %3258 = vmatpush1.msra.mxu0 0.0
    %3259 = vmatprep.subr.mxu0 0.0
    %3260 = vmatpush1.msra.mxu0 0.0
    %3261 = vmatprep.subr.mxu0 0.0
    %3262 = vmatpush1.msra.mxu0 0.0
    %3263 = vmatprep.subr.mxu0 0.0
    %3264 = vmatpush1.msra.mxu0 0.0
    %3265 = vmatprep.subr.mxu0 0.0
    %3266 = vmatpush1.msra.mxu0 0.0
    %3267 = vmatprep.subr.mxu0 0.0
    %3268 = vmatpush1.msra.mxu0 0.0
    %3269 = vmatprep.subr.mxu0 0.0
    %3270 = vmatpush1.msra.mxu0 0.0
    %3271 = vmatprep.subr.mxu0 0.0
    %3272 = vmatpush1.msra.mxu0 0.0
    %3273 = vmatprep.subr.mxu0 0.0
    %3274 = vmatpush1.msra.mxu0 0.0
    %3275 = vmatprep.subr.mxu0 0.0
    %3276 = vmatpush1.msra.mxu0 0.0
    %3277 = vmatprep.subr.mxu0 0.0
    %3278 = vmatpush1.msra.mxu0 0.0
    %3279 = vmatprep.subr.mxu0 0.0
    %3280 = vmatpush1.msra.mxu0 0.0
    %3281 = vmatprep.subr.mxu0 0.0
    %3282 = vmatpush1.msra.mxu0 0.0
    %3283 = vmatprep.subr.mxu0 0.0
    %3284 = vmatpush1.msra.mxu0 0.0
    %3285 = vmatprep.subr.mxu0 0.0
    %3286 = vmatpush1.msra.mxu0 0.0
    %3287 = vmatprep.subr.mxu0 0.0
    %3288 = vmatpush1.msra.mxu0 0.0
    %3289 = vmatprep.subr.mxu0 0.0
    %3290 = vmatpush1.msra.mxu0 0.0
    %3291 = vmatprep.subr.mxu0 0.0
    %3292 = vmatpush1.msra.mxu0 0.0
    %3293 = vmatprep.subr.mxu0 0.0
    %3294 = vmatpush1.msra.mxu0 0.0
    %3295 = vmatprep.subr.mxu0 0.0
    %3296 = vmatpush1.msra.mxu0 0.0
    %3297 = vmatprep.subr.mxu0 0.0
    %3298 = vmatpush1.msra.mxu0 0.0
    %3299 = vmatprep.subr.mxu0 0.0
    %3300 = vmatpush1.msra.mxu0 0.0
    %3301 = vmatprep.subr.mxu0 0.0
    %3302 = vmatpush1.msra.mxu0 0.0
    %3303 = vmatprep.subr.mxu0 0.0
    %3304 = vmatpush1.msra.mxu0 0.0
    %3305 = vmatprep.mubr.f32.mxu0 0.0
    %3306 = vmatmul.mubr.f32.gmra.mrb[0].mxu0 %v3239
    %v3307 = vpop.f32.mrb[0].mxu0
    %v3308 = vadd.f32 0.0, %v3307
    %v3309 = vpop.f32.mrb[0].mxu0
    %3310 = vdwg.mxu0
    %v3311 = vadd.f32 %v3148, %v3308
    %3312 = vadd.xlane.f32.xlu0 %v3311
    %v3313 = vpop.xlane.xlu0 %3312
    %v3314 = vmul.f32 %v3313, %v1824
    %v3315 = vsub.f32 %v3311, %v3314
    %v3316 = vmul.f32 %v3315, %v3315
    %3317 = vadd.xlane.f32.xlu0 %v3316
    %v3318 = vpop.xlane.xlu0 %3317
    %v3319 = vmul.f32 %v3318, %v1824
    %v3320 = vadd.f32 %v3319, 1e-05
    %v3321 = vrsqrt.pop %v3320
    %v3322 = vmul.f32 %v3315, %v3321
    %v3323 = vld [vmem:[#allocation19] sm:$0xff]
    %3325 = vset.pattern.permute.xlu0 0
    %3326 = vperm.xlu0 %3325, %v3323
    %v3327 = vpop.permute.xlu0 %3326
    %v3329 = vmul.f32 %v3322, %v3327
    %v3330 = vld [vmem:[#allocation20] sm:$0xff]
    %3332 = vset.pattern.permute.xlu0 0
    %3333 = vperm.xlu0 %3332, %v3330
    %v3334 = vpop.permute.xlu0 %3333
    %v3336 = vadd.f32 %v3329, %v3334
    %v3337 = vadd.f32 %v3336, %v356
    %v3338 = vmax.f32 %v3337, 0.0
    %3339 = vst [vmem:[#allocation22] sm:$0xff] %v3338
    // Predicated region
    $region98: #{layer_fwd.6} parent=1 // pred_check
      _
    $region99: #{layer_fwd.6} parent=1 // pred_check_branch
      %3341 = sbr.rel (0) target = $region101
    $region100: #{layer_fwd.6} parent=1 // pred_region
      %s3343 = ssub.s32 128, 128
      %3344 = vsyncadd [#allocation4], %s3343
      %s3346 = sshll.u32 [#allocation22], 4
      %s3347 = int_to_ptr.vmem [resolvable:$true] %s3346
      %3349 = dma.vmem_to_hbm [thread:$0]  %s3347, 128, %s12, [#allocation4]
    $region101: #{layer_fwd.6} parent=1 // pred_fallthru
      _
    // Predicated region
    $region102: #{layer_fwd.6} parent=1 // pred_check
      _
    $region103: #{layer_fwd.6} parent=1 // pred_check_branch
      %3351 = sbr.rel (0) target = $region105
    $region104: #{layer_fwd.6} parent=1 // pred_region
      %3352 = dma.done [#allocation4], 128
    $region105: #{layer_fwd.6} parent=1 // pred_fallthru
      _
    %3353 = vsyncpa [#allocation3], 1
    %3354 = vsyncpa [#allocation6], 1
    %3355 = vsyncpa [#allocation9], 1
    %3356 = vsyncpa [#allocation12], 1
    %3357 = vsyncpa [#allocation15], 1
    %3358 = vsyncpa [#allocation18], 1
    %3359 = vsyncpa [#allocation21], 1
    %3360 = vsyncpa [#allocation4], 1

</llo_original>
